<compile_context>
chip_gen: v7x
topology: tpu7x:2x2x1
jax: 0.10.0
libtpu: 0.0.40
codegen_flags: <defaults>
</compile_context>

<pallas_src>
import math

import jax
import jax.numpy as jnp
from jax.experimental import pallas as pl
from jax.experimental.pallas import tpu as pltpu


def _make_group_attention_kernel(num_heads: int, head_dim: int,
                                 group_size: int, g_blk: int, compute_dtype):
    c = num_heads * head_dim
    m = g_blk * group_size

    def mc(v):
        return v if compute_dtype is None else v.astype(compute_dtype)

    def kernel(x_ref, pe_ref, wqk_ref, bqk_ref, wvo_ref, bt_ref, o_ref):
        x = x_ref[...]                                                   # (M, C)
        xpe = x + pe_ref[...]                                            # (M, C)

        # ---- fused Q/K projection: one (M, C) @ (C, 2C) MXU matmul ----
        # (scale already folded into the Q columns of wqk / bqk)
        qk = jnp.dot(mc(xpe), mc(wqk_ref[...]),
                     preferred_element_type=jnp.float32) + bqk_ref[...]  # (M, 2C) f32

        # ---- V projection with the output projection folded in --------
        # column block h of wvo is Wv_h^T @ Wo_h^T  ->  (M, H*C), lane-dense
        vo = jnp.dot(mc(x), mc(wvo_ref[...]),
                     preferred_element_type=jnp.float32)                 # (M, H*C) f32

        acc = None
        # Short unrolled loop over heads; every einsum below is batched over
        # all g_blk groups in the block (single batch dim -> clean lowering).
        for h in range(num_heads):
            lo = h * head_dim
            qh = qk[:, lo:lo + head_dim].reshape(g_blk, group_size, head_dim)
            kh = qk[:, c + lo:c + lo + head_dim].reshape(g_blk, group_size, head_dim)
            vh = vo[:, h * c:(h + 1) * c].reshape(g_blk, group_size, c)

            s = jnp.einsum('gsd,gtd->gst', mc(qh), mc(kh),
                           preferred_element_type=jnp.float32)           # (G, S, S)
            mmax = jnp.max(s, axis=-1, keepdims=True)
            e = jnp.exp(s - mmax)
            denom = jnp.sum(e, axis=-1, keepdims=True)
            p = e * pl.reciprocal(denom, approx=True)                    # EUP recip

            contrib = jnp.einsum('gst,gtc->gsc', mc(p), mc(vh),
                                 preferred_element_type=jnp.float32)     # (G, S, C)
            acc = contrib if acc is None else acc + contrib

        # b_total = bv @ Wo^T + bo (the V bias collapses since softmax rows sum to 1)
        o_ref[...] = (acc.reshape(m, c) + bt_ref[...]).astype(o_ref.dtype)

    return kernel


def group_attention_pallas(x, pe, params, *, num_heads: int, group_size: int,
                           groups_per_block: int = 128, compute_dtype=None):
    """x, pe: (N, C).  N must be divisible by group_size (as in torch .view)."""
    n, c = x.shape
    assert n % group_size == 0, "view() in the reference requires exact divisibility"
    assert c % num_heads == 0
    num_groups = n // group_size
    head_dim = c // num_heads
    scale = 1.0 / math.sqrt(head_dim)

    # Choose how many groups each grid step handles; pad to whole blocks.
    g_blk = max(1, min(groups_per_block, num_groups))
    num_blocks = pl.cdiv(num_groups, g_blk)
    rows = num_blocks * g_blk * group_size
    if rows != n:
        x_in = jnp.pad(x, ((0, rows - n), (0, 0)))
        pe_in = jnp.pad(pe, ((0, rows - n), (0, 0)))
    else:
        x_in, pe_in = x, pe

    # ---- parameter prep (tiny, done once per call) ----
    w_in = params["in_proj_weight"]                       # (3C, C)
    b_in = params["in_proj_bias"]                         # (3C,)
    wo = params["out_proj_weight"]                        # (C, C)
    bo = params["out_proj_bias"]                          # (C,)

    wq_t = w_in[0 * c:1 * c].T * scale                    # fold 1/sqrt(d) into Q
    wk_t = w_in[1 * c:2 * c].T
    wqk = jnp.concatenate([wq_t, wk_t], axis=1)           # (C, 2C)
    bqk = jnp.concatenate([b_in[0 * c:1 * c] * scale,
                           b_in[1 * c:2 * c]]).reshape(1, 2 * c)

    wv = w_in[2 * c:3 * c]                                # (C, C)
    bv = b_in[2 * c:3 * c]                                # (C,)
    # Fold per-head slice of the output projection into the V projection:
    #   Wvo_h = Wv_h^T @ Wo_h^T  (C, C);  concatenated over heads -> (C, H*C)
    wvo_blocks = [wv[h * head_dim:(h + 1) * head_dim].T
                  @ wo[:, h * head_dim:(h + 1) * head_dim].T
                  for h in range(num_heads)]
    wvo = jnp.concatenate(wvo_blocks, axis=1)             # (C, H*C)
    b_total = (bv @ wo.T + bo).reshape(1, c)              # V bias folded via softmax

    kernel = _make_group_attention_kernel(num_heads, head_dim, group_size,
                                          g_blk, compute_dtype)

    block_rows = g_blk * group_size
    tile_spec = pl.BlockSpec((block_rows, c), lambda i: (i, 0))

    out = pl.pallas_call(
        kernel,
        out_shape=jax.ShapeDtypeStruct((rows, c), x.dtype),
        grid_spec=pltpu.PrefetchScalarGridSpec(
            num_scalar_prefetch=0,
            grid=(num_blocks,),
            in_specs=[tile_spec, tile_spec,
                      pl.BlockSpec((c, 2 * c), lambda i: (0, 0)),
                      pl.BlockSpec((1, 2 * c), lambda i: (0, 0)),
                      pl.BlockSpec((c, num_heads * c), lambda i: (0, 0)),
                      pl.BlockSpec((1, c), lambda i: (0, 0))],
            out_specs=tile_spec,
        ),
        compiler_params=pltpu.CompilerParams(
            dimension_semantics=("parallel",)),
    )(x_in, pe_in, wqk, bqk, wvo, b_total)

    return out[:n] if rows != n else out


def group_attention_reference(x, pe, params, *, num_heads: int, group_size: int):
    """Pure-JAX reference mirroring the PyTorch forward (for verification)."""
    n, c = x.shape
    g = n // group_size
    d = c // num_heads
    xg = x.reshape(g, group_size, c)
    peg = pe.reshape(g, group_size, c)
    q_in = k_in = xg + peg
    v_in = xg

    wq = params["in_proj_weight"][0 * c:1 * c]
    wk = params["in_proj_weight"][1 * c:2 * c]
    wv = params["in_proj_weight"][2 * c:3 * c]
    bq = params["in_proj_bias"][0 * c:1 * c]
    bk = params["in_proj_bias"][1 * c:2 * c]
    bv = params["in_proj_bias"][2 * c:3 * c]

    q = q_in @ wq.T + bq
    k = k_in @ wk.T + bk
    v = v_in @ wv.T + bv

    q = q.reshape(g, group_size, num_heads, d)
    k = k.reshape(g, group_size, num_heads, d)
    v = v.reshape(g, group_size, num_heads, d)
    s = jnp.einsum("gqhd,gkhd->ghqk", q, k) / math.sqrt(d)
    p = jax.nn.softmax(s, axis=-1)
    o = jnp.einsum("ghqk,gkhd->gqhd", p, v).reshape(g, group_size, c)
    o = o @ params["out_proj_weight"].T + params["out_proj_bias"]
    return o.reshape(n, c)


if __name__ == "__main__":
    # Config consistent with GroupAttention(in_channels, num_heads, group_size)
    in_channels = 32
    num_heads = 4
    group_size = 16
    num_tokens = 256          # 16 groups

    key = jax.random.PRNGKey(0)
    kx, kpe, kw1, kb1, kw2, kb2 = jax.random.split(key, 6)

    x = jax.random.normal(kx, (num_tokens, in_channels), dtype=jnp.float32)
    pe = jax.random.normal(kpe, (num_tokens, in_channels), dtype=jnp.float32)

    # Deterministic synthetic parameters (shapes from nn.MultiheadAttention).
    params = {
        "in_proj_weight": 0.1 * jax.random.normal(
            kw1, (3 * in_channels, in_channels), dtype=jnp.float32),
        "in_proj_bias": 0.05 * jax.random.normal(
            kb1, (3 * in_channels,), dtype=jnp.float32),
        "out_proj_weight": 0.1 * jax.random.normal(
            kw2, (in_channels, in_channels), dtype=jnp.float32),
        "out_proj_bias": 0.05 * jax.random.normal(
            kb2, (in_channels,), dtype=jnp.float32),
    }

    # groups_per_block=8 -> 2 grid steps (exercises the pipelined grid; also
    # gives both TensorCores work on v7x).  compute_dtype=jnp.bfloat16 can be
    # passed on v6e/v7x for faster MXU operands (loosen tolerance then).
    out = group_attention_pallas(
        x, pe, params, num_heads=num_heads, group_size=group_size,
        groups_per_block=8)
    out = jax.block_until_ready(out)

    ref = group_attention_reference(
        x, pe, params, num_heads=num_heads, group_size=group_size)
    ref = jax.block_until_ready(ref)

    assert out.shape == (num_tokens, in_channels)
    # tolerance slightly loosened vs exact f32: pl.reciprocal(approx=True)
    assert jnp.allclose(out, ref, atol=2e-3, rtol=2e-3), "mismatch vs reference"

    # Also exercise the padding path (num_groups not a multiple of the block).
    x2, pe2 = x[:240], pe[:240]          # 15 groups, blocks of 8 -> padded
    out2 = jax.block_until_ready(group_attention_pallas(
        x2, pe2, params, num_heads=num_heads, group_size=group_size,
        groups_per_block=8))
    ref2 = group_attention_reference(
        x2, pe2, params, num_heads=num_heads, group_size=group_size)
    assert out2.shape == (240, in_channels)
    assert jnp.allclose(out2, ref2, atol=2e-3, rtol=2e-3), "mismatch (padded)"

    print("KERNEL_OK")
</pallas_src>

<mosaic_0001>
module attributes {stable_mosaic.version = 11 : i64} {
  func.func @kernel(%arg0: i32, %arg1: memref<128x32xf32, #tpu.memory_space<vmem>>, %arg2: memref<128x32xf32, #tpu.memory_space<vmem>>, %arg3: memref<32x64xf32, #tpu.memory_space<vmem>>, %arg4: memref<1x64xf32, #tpu.memory_space<vmem>>, %arg5: memref<32x128xf32, #tpu.memory_space<vmem>>, %arg6: memref<1x32xf32, #tpu.memory_space<vmem>>, %arg7: memref<128x32xf32, #tpu.memory_space<vmem>>) attributes {dimension_semantics = [#tpu.dimension_semantics<parallel>], iteration_bounds = array<i64: 2>, scalar_prefetch = 0 : i64, scratch_operands = 0 : i64, tpu.core_type = #tpu.core_type<tc>, window_params = [{transform_indices = @transform_0, window_bounds = array<i64: 128, 32>}, {transform_indices = @transform_1, window_bounds = array<i64: 128, 32>}, {pipeline_mode = #tpu.pipeline_mode<synchronous>, transform_indices = @transform_2, window_bounds = array<i64: 32, 64>}, {pipeline_mode = #tpu.pipeline_mode<synchronous>, transform_indices = @transform_3, window_bounds = array<i64: 1, 64>}, {pipeline_mode = #tpu.pipeline_mode<synchronous>, transform_indices = @transform_4, window_bounds = array<i64: 32, 128>}, {pipeline_mode = #tpu.pipeline_mode<synchronous>, transform_indices = @transform_5, window_bounds = array<i64: 1, 32>}, {transform_indices = @transform_6, window_bounds = array<i64: 128, 32>}]} {
    %c0 = arith.constant 0 : index
    %c0_0 = arith.constant 0 : index
    %0 = vector.load %arg1[%c0, %c0_0] : memref<128x32xf32, #tpu.memory_space<vmem>>, vector<128x32xf32>
    %c0_1 = arith.constant 0 : index
    %c0_2 = arith.constant 0 : index
    %1 = vector.load %arg2[%c0_1, %c0_2] : memref<128x32xf32, #tpu.memory_space<vmem>>, vector<128x32xf32>
    %2 = arith.addf %0, %1 : vector<128x32xf32>
    %c0_3 = arith.constant 0 : index
    %c0_4 = arith.constant 0 : index
    %3 = vector.load %arg3[%c0_3, %c0_4] : memref<32x64xf32, #tpu.memory_space<vmem>>, vector<32x64xf32>
    %cst = arith.constant dense<0.000000e+00> : vector<128x64xf32>
    %4 = tpu.matmul %2, %3, %cst {dimension_numbers = #tpu.dot_dimension_numbers<[1], [0], [0], [1], [0, 0, 1, 1], [], []>} : vector<128x32xf32>, vector<32x64xf32>, vector<128x64xf32> -> vector<128x64xf32>
    %c0_5 = arith.constant 0 : index
    %c0_6 = arith.constant 0 : index
    %5 = vector.load %arg4[%c0_5, %c0_6] : memref<1x64xf32, #tpu.memory_space<vmem>>, vector<1x64xf32>
    %6 = vector.broadcast %5 : vector<1x64xf32> to vector<128x64xf32>
    %7 = arith.addf %4, %6 : vector<128x64xf32>
    %c0_7 = arith.constant 0 : index
    %c0_8 = arith.constant 0 : index
    %8 = vector.load %arg5[%c0_7, %c0_8] : memref<32x128xf32, #tpu.memory_space<vmem>>, vector<32x128xf32>
    %cst_9 = arith.constant dense<0.000000e+00> : vector<128x128xf32>
    %9 = tpu.matmul %0, %8, %cst_9 {dimension_numbers = #tpu.dot_dimension_numbers<[1], [0], [0], [1], [0, 0, 1, 1], [], []>} : vector<128x32xf32>, vector<32x128xf32>, vector<128x128xf32> -> vector<128x128xf32>
    %10 = vector.extract_strided_slice %7 {offsets = [0, 0], sizes = [128, 8], strides = [1, 1]} : vector<128x64xf32> to vector<128x8xf32>
    %11 = vector.shape_cast %10 : vector<128x8xf32> to vector<8x16x8xf32>
    %12 = vector.extract_strided_slice %7 {offsets = [0, 32], sizes = [128, 8], strides = [1, 1]} : vector<128x64xf32> to vector<128x8xf32>
    %13 = vector.shape_cast %12 : vector<128x8xf32> to vector<8x16x8xf32>
    %14 = vector.extract_strided_slice %9 {offsets = [0, 0], sizes = [128, 32], strides = [1, 1]} : vector<128x128xf32> to vector<128x32xf32>
    %15 = vector.shape_cast %14 : vector<128x32xf32> to vector<8x16x32xf32>
    "tpu.trace_start"() <{level = 10 : i32, message = "gsd,gtd->gst"}> : () -> ()
    %cst_10 = arith.constant dense<0.000000e+00> : vector<8x16x16xf32>
    %16 = tpu.matmul %11, %13, %cst_10 {dimension_numbers = #tpu.dot_dimension_numbers<[2], [2], [1], [1], [0, 0, 0, 1, 1, 1], [0], [0]>} : vector<8x16x8xf32>, vector<8x16x8xf32>, vector<8x16x16xf32> -> vector<8x16x16xf32>
    "tpu.trace_stop"() : () -> ()
    %cst_11 = arith.constant dense<0xFF800000> : vector<8x16xf32>
    %17 = vector.multi_reduction <maximumf>, %16, %cst_11 [2] : vector<8x16x16xf32> to vector<8x16xf32>
    %18 = vector.shape_cast %17 : vector<8x16xf32> to vector<8x16x1xf32>
    %19 = vector.broadcast %18 : vector<8x16x1xf32> to vector<8x16x16xf32>
    %20 = arith.subf %16, %19 : vector<8x16x16xf32>
    %21 = math.exp %20 : vector<8x16x16xf32>
    %cst_12 = arith.constant dense<0.000000e+00> : vector<8x16xf32>
    %22 = vector.multi_reduction <add>, %21, %cst_12 [2] : vector<8x16x16xf32> to vector<8x16xf32>
    %23 = vector.shape_cast %22 : vector<8x16xf32> to vector<8x16x1xf32>
    %24 = tpu.reciprocal %23 {approx = true} : vector<8x16x1xf32> -> vector<8x16x1xf32>
    %25 = vector.broadcast %24 : vector<8x16x1xf32> to vector<8x16x16xf32>
    %26 = arith.mulf %21, %25 : vector<8x16x16xf32>
    "tpu.trace_start"() <{level = 10 : i32, message = "gst,gtc->gsc"}> : () -> ()
    %cst_13 = arith.constant dense<0.000000e+00> : vector<8x16x32xf32>
    %27 = tpu.matmul %26, %15, %cst_13 {dimension_numbers = #tpu.dot_dimension_numbers<[2], [1], [1], [2], [0, 0, 0, 1, 1, 2], [0], [0]>} : vector<8x16x16xf32>, vector<8x16x32xf32>, vector<8x16x32xf32> -> vector<8x16x32xf32>
    "tpu.trace_stop"() : () -> ()
    %28 = vector.extract_strided_slice %7 {offsets = [0, 8], sizes = [128, 8], strides = [1, 1]} : vector<128x64xf32> to vector<128x8xf32>
    %29 = vector.shape_cast %28 : vector<128x8xf32> to vector<8x16x8xf32>
    %30 = vector.extract_strided_slice %7 {offsets = [0, 40], sizes = [128, 8], strides = [1, 1]} : vector<128x64xf32> to vector<128x8xf32>
    %31 = vector.shape_cast %30 : vector<128x8xf32> to vector<8x16x8xf32>
    %32 = vector.extract_strided_slice %9 {offsets = [0, 32], sizes = [128, 32], strides = [1, 1]} : vector<128x128xf32> to vector<128x32xf32>
    %33 = vector.shape_cast %32 : vector<128x32xf32> to vector<8x16x32xf32>
    "tpu.trace_start"() <{level = 10 : i32, message = "gsd,gtd->gst"}> : () -> ()
    %cst_14 = arith.constant dense<0.000000e+00> : vector<8x16x16xf32>
    %34 = tpu.matmul %29, %31, %cst_14 {dimension_numbers = #tpu.dot_dimension_numbers<[2], [2], [1], [1], [0, 0, 0, 1, 1, 1], [0], [0]>} : vector<8x16x8xf32>, vector<8x16x8xf32>, vector<8x16x16xf32> -> vector<8x16x16xf32>
    "tpu.trace_stop"() : () -> ()
    %cst_15 = arith.constant dense<0xFF800000> : vector<8x16xf32>
    %35 = vector.multi_reduction <maximumf>, %34, %cst_15 [2] : vector<8x16x16xf32> to vector<8x16xf32>
    %36 = vector.shape_cast %35 : vector<8x16xf32> to vector<8x16x1xf32>
    %37 = vector.broadcast %36 : vector<8x16x1xf32> to vector<8x16x16xf32>
    %38 = arith.subf %34, %37 : vector<8x16x16xf32>
    %39 = math.exp %38 : vector<8x16x16xf32>
    %cst_16 = arith.constant dense<0.000000e+00> : vector<8x16xf32>
    %40 = vector.multi_reduction <add>, %39, %cst_16 [2] : vector<8x16x16xf32> to vector<8x16xf32>
    %41 = vector.shape_cast %40 : vector<8x16xf32> to vector<8x16x1xf32>
    %42 = tpu.reciprocal %41 {approx = true} : vector<8x16x1xf32> -> vector<8x16x1xf32>
    %43 = vector.broadcast %42 : vector<8x16x1xf32> to vector<8x16x16xf32>
    %44 = arith.mulf %39, %43 : vector<8x16x16xf32>
    "tpu.trace_start"() <{level = 10 : i32, message = "gst,gtc->gsc"}> : () -> ()
    %cst_17 = arith.constant dense<0.000000e+00> : vector<8x16x32xf32>
    %45 = tpu.matmul %44, %33, %cst_17 {dimension_numbers = #tpu.dot_dimension_numbers<[2], [1], [1], [2], [0, 0, 0, 1, 1, 2], [0], [0]>} : vector<8x16x16xf32>, vector<8x16x32xf32>, vector<8x16x32xf32> -> vector<8x16x32xf32>
    "tpu.trace_stop"() : () -> ()
    %46 = arith.addf %27, %45 : vector<8x16x32xf32>
    %47 = vector.extract_strided_slice %7 {offsets = [0, 16], sizes = [128, 8], strides = [1, 1]} : vector<128x64xf32> to vector<128x8xf32>
    %48 = vector.shape_cast %47 : vector<128x8xf32> to vector<8x16x8xf32>
    %49 = vector.extract_strided_slice %7 {offsets = [0, 48], sizes = [128, 8], strides = [1, 1]} : vector<128x64xf32> to vector<128x8xf32>
    %50 = vector.shape_cast %49 : vector<128x8xf32> to vector<8x16x8xf32>
    %51 = vector.extract_strided_slice %9 {offsets = [0, 64], sizes = [128, 32], strides = [1, 1]} : vector<128x128xf32> to vector<128x32xf32>
    %52 = vector.shape_cast %51 : vector<128x32xf32> to vector<8x16x32xf32>
    "tpu.trace_start"() <{level = 10 : i32, message = "gsd,gtd->gst"}> : () -> ()
    %cst_18 = arith.constant dense<0.000000e+00> : vector<8x16x16xf32>
    %53 = tpu.matmul %48, %50, %cst_18 {dimension_numbers = #tpu.dot_dimension_numbers<[2], [2], [1], [1], [0, 0, 0, 1, 1, 1], [0], [0]>} : vector<8x16x8xf32>, vector<8x16x8xf32>, vector<8x16x16xf32> -> vector<8x16x16xf32>
    "tpu.trace_stop"() : () -> ()
    %cst_19 = arith.constant dense<0xFF800000> : vector<8x16xf32>
    %54 = vector.multi_reduction <maximumf>, %53, %cst_19 [2] : vector<8x16x16xf32> to vector<8x16xf32>
    %55 = vector.shape_cast %54 : vector<8x16xf32> to vector<8x16x1xf32>
    %56 = vector.broadcast %55 : vector<8x16x1xf32> to vector<8x16x16xf32>
    %57 = arith.subf %53, %56 : vector<8x16x16xf32>
    %58 = math.exp %57 : vector<8x16x16xf32>
    %cst_20 = arith.constant dense<0.000000e+00> : vector<8x16xf32>
    %59 = vector.multi_reduction <add>, %58, %cst_20 [2] : vector<8x16x16xf32> to vector<8x16xf32>
    %60 = vector.shape_cast %59 : vector<8x16xf32> to vector<8x16x1xf32>
    %61 = tpu.reciprocal %60 {approx = true} : vector<8x16x1xf32> -> vector<8x16x1xf32>
    %62 = vector.broadcast %61 : vector<8x16x1xf32> to vector<8x16x16xf32>
    %63 = arith.mulf %58, %62 : vector<8x16x16xf32>
    "tpu.trace_start"() <{level = 10 : i32, message = "gst,gtc->gsc"}> : () -> ()
    %cst_21 = arith.constant dense<0.000000e+00> : vector<8x16x32xf32>
    %64 = tpu.matmul %63, %52, %cst_21 {dimension_numbers = #tpu.dot_dimension_numbers<[2], [1], [1], [2], [0, 0, 0, 1, 1, 2], [0], [0]>} : vector<8x16x16xf32>, vector<8x16x32xf32>, vector<8x16x32xf32> -> vector<8x16x32xf32>
    "tpu.trace_stop"() : () -> ()
    %65 = arith.addf %46, %64 : vector<8x16x32xf32>
    %66 = vector.extract_strided_slice %7 {offsets = [0, 24], sizes = [128, 8], strides = [1, 1]} : vector<128x64xf32> to vector<128x8xf32>
    %67 = vector.shape_cast %66 : vector<128x8xf32> to vector<8x16x8xf32>
    %68 = vector.extract_strided_slice %7 {offsets = [0, 56], sizes = [128, 8], strides = [1, 1]} : vector<128x64xf32> to vector<128x8xf32>
    %69 = vector.shape_cast %68 : vector<128x8xf32> to vector<8x16x8xf32>
    %70 = vector.extract_strided_slice %9 {offsets = [0, 96], sizes = [128, 32], strides = [1, 1]} : vector<128x128xf32> to vector<128x32xf32>
    %71 = vector.shape_cast %70 : vector<128x32xf32> to vector<8x16x32xf32>
    "tpu.trace_start"() <{level = 10 : i32, message = "gsd,gtd->gst"}> : () -> ()
    %cst_22 = arith.constant dense<0.000000e+00> : vector<8x16x16xf32>
    %72 = tpu.matmul %67, %69, %cst_22 {dimension_numbers = #tpu.dot_dimension_numbers<[2], [2], [1], [1], [0, 0, 0, 1, 1, 1], [0], [0]>} : vector<8x16x8xf32>, vector<8x16x8xf32>, vector<8x16x16xf32> -> vector<8x16x16xf32>
    "tpu.trace_stop"() : () -> ()
    %cst_23 = arith.constant dense<0xFF800000> : vector<8x16xf32>
    %73 = vector.multi_reduction <maximumf>, %72, %cst_23 [2] : vector<8x16x16xf32> to vector<8x16xf32>
    %74 = vector.shape_cast %73 : vector<8x16xf32> to vector<8x16x1xf32>
    %75 = vector.broadcast %74 : vector<8x16x1xf32> to vector<8x16x16xf32>
    %76 = arith.subf %72, %75 : vector<8x16x16xf32>
    %77 = math.exp %76 : vector<8x16x16xf32>
    %cst_24 = arith.constant dense<0.000000e+00> : vector<8x16xf32>
    %78 = vector.multi_reduction <add>, %77, %cst_24 [2] : vector<8x16x16xf32> to vector<8x16xf32>
    %79 = vector.shape_cast %78 : vector<8x16xf32> to vector<8x16x1xf32>
    %80 = tpu.reciprocal %79 {approx = true} : vector<8x16x1xf32> -> vector<8x16x1xf32>
    %81 = vector.broadcast %80 : vector<8x16x1xf32> to vector<8x16x16xf32>
    %82 = arith.mulf %77, %81 : vector<8x16x16xf32>
    "tpu.trace_start"() <{level = 10 : i32, message = "gst,gtc->gsc"}> : () -> ()
    %cst_25 = arith.constant dense<0.000000e+00> : vector<8x16x32xf32>
    %83 = tpu.matmul %82, %71, %cst_25 {dimension_numbers = #tpu.dot_dimension_numbers<[2], [1], [1], [2], [0, 0, 0, 1, 1, 2], [0], [0]>} : vector<8x16x16xf32>, vector<8x16x32xf32>, vector<8x16x32xf32> -> vector<8x16x32xf32>
    "tpu.trace_stop"() : () -> ()
    %84 = arith.addf %65, %83 : vector<8x16x32xf32>
    %85 = vector.shape_cast %84 : vector<8x16x32xf32> to vector<128x32xf32>
    %c0_26 = arith.constant 0 : index
    %c0_27 = arith.constant 0 : index
    %86 = vector.load %arg6[%c0_26, %c0_27] : memref<1x32xf32, #tpu.memory_space<vmem>>, vector<1x32xf32>
    %87 = vector.broadcast %86 : vector<1x32xf32> to vector<128x32xf32>
    %88 = arith.addf %85, %87 : vector<128x32xf32>
    %c0_28 = arith.constant 0 : index
    %c0_29 = arith.constant 0 : index
    %89 = vector.load %arg7[%c0_28, %c0_29] : memref<128x32xf32, #tpu.memory_space<vmem>>, vector<128x32xf32>
    tpu.vector_store %arg7[%c0_28, %c0_29], %88 {strides = array<i32>} : memref<128x32xf32, #tpu.memory_space<vmem>>, vector<128x32xf32>,
    return
  }
  func.func @transform_0(%arg0: i32) -> (i32, i32) {
    %c0_i32 = arith.constant 0 : i32
    %c0_i32_0 = arith.constant 0 : i32
    return %arg0, %c0_i32 : i32, i32
  }
  func.func @transform_1(%arg0: i32) -> (i32, i32) {
    %c0_i32 = arith.constant 0 : i32
    %c0_i32_0 = arith.constant 0 : i32
    return %arg0, %c0_i32 : i32, i32
  }
  func.func @transform_2(%arg0: i32) -> (i32, i32) {
    %c0_i32 = arith.constant 0 : i32
    %c0_i32_0 = arith.constant 0 : i32
    %c0_i32_1 = arith.constant 0 : i32
    return %c0_i32, %c0_i32_0 : i32, i32
  }
  func.func @transform_3(%arg0: i32) -> (i32, i32) {
    %c0_i32 = arith.constant 0 : i32
    %c0_i32_0 = arith.constant 0 : i32
    %c0_i32_1 = arith.constant 0 : i32
    return %c0_i32, %c0_i32_0 : i32, i32
  }
  func.func @transform_4(%arg0: i32) -> (i32, i32) {
    %c0_i32 = arith.constant 0 : i32
    %c0_i32_0 = arith.constant 0 : i32
    %c0_i32_1 = arith.constant 0 : i32
    return %c0_i32, %c0_i32_0 : i32, i32
  }
  func.func @transform_5(%arg0: i32) -> (i32, i32) {
    %c0_i32 = arith.constant 0 : i32
    %c0_i32_0 = arith.constant 0 : i32
    %c0_i32_1 = arith.constant 0 : i32
    return %c0_i32, %c0_i32_0 : i32, i32
  }
  func.func @transform_6(%arg0: i32) -> (i32, i32) {
    %c0_i32 = arith.constant 0 : i32
    %c0_i32_0 = arith.constant 0 : i32
    return %arg0, %c0_i32 : i32, i32
  }
}

</mosaic_0001>

<llo_original>
// kernel: tpu_custom_call.1
$region0: #{tpu_custom_call.1}
  #allocation0 [shape = 'u32[]', space=smem, size = 0x4, offset = 0x4, fixed_abs, tag = 'smem constant byte address 0x4 - core index']
  #allocation1 [shape = 'u32[144,128]{1,0:T(1,128)}', space=vmem, size = 0x12000, scoped, tag = 'internal scratch']
  %s0 = inlined_call_operand.vmem [shape: f32[256,32], index: 0, kind: input, shape index: {}]
  %s1 = inlined_call_operand.vmem [shape: f32[256,32], index: 1, kind: input, shape index: {}]
  %s2 = inlined_call_operand.vmem [shape: f32[32,64], index: 2, kind: input, shape index: {}]
  %s3 = inlined_call_operand.vmem [shape: f32[1,64], index: 3, kind: input, shape index: {}]
  %s4 = inlined_call_operand.vmem [shape: f32[32,128], index: 4, kind: input, shape index: {}]
  %s5 = inlined_call_operand.vmem [shape: f32[1,32], index: 5, kind: input, shape index: {}]
  %s6 = inlined_call_operand.vmem [shape: f32[256,32], index: 6, kind: output, shape index: {}]
  %s7 = sld [smem:[#allocation0]]
  $region57: #{tpu_custom_call.1} parent=0
    _
  %s9 = ssub.s32 1, %s7
  %s10 = scalar_select 0, %s9, %s7
  loop: start=0, step=1, limit=4
  $region2: #{tpu_custom_call.1} parent=0 // loop_pre_header
    _
  $region3: #{tpu_custom_call.1} parent=0 // loop_header
    %s12 = sphi 0, %s16
    %p13 = scmp.ge.s32.totalorder %s12, 4
    %s22 = sphi 0, %s24
    %s25 = sphi 0, %s22
    %s26 = sphi 0, %s25
    %s42 = sphi 0, %s26
    %s48 = sphi 0, %s50
    %s51 = sphi 0, %s48
    %s52 = sphi 0, %s51
    %s68 = sphi 0, %s52
    %s72 = sphi 0, %s72
    %s74 = sphi 0, %s72
    %s75 = sphi 0, %s74
    %s89 = sphi 0, %s75
    %s93 = sphi 0, %s93
    %s95 = sphi 0, %s93
    %s96 = sphi 0, %s95
    %s110 = sphi 0, %s96
    %s114 = sphi 0, %s114
    %s116 = sphi 0, %s114
    %s117 = sphi 0, %s116
    %s131 = sphi 0, %s117
    %s135 = sphi 0, %s135
    %s137 = sphi 0, %s135
    %s138 = sphi 0, %s137
    %s152 = sphi 0, %s138
    %s158 = sphi 0, %s160
    %s161 = sphi 0, %s158
    %s162 = sphi 0, %s161
    %s178 = sphi 0, %s162
  $region4: #{tpu_custom_call.1} parent=0 // loop_header_branch
    %15 = sbr.rel (%p13) target = $region8
  $region5: #{tpu_custom_call.1} parent=0 // loop_body
    %s17 = ssub.s32 %s12, 1
    %s18 = ssub.s32 %s12, 2
    %s19 = sadd.s32 %s12, 1
    %s20 = ssub.s32 %s12, %s19
    %p21 = scmp.eq.s32.totalorder %s20, 0
    %s23 = sadd.s32 %s22, 1
    %s24 = scalar_select %p21, %s22, %s23
    %p27 = pneg %p21
    %p28 = scmp.eq.s32.totalorder %s12, 1
    %p29 = por %p27, %p28
    %p30 = scmp.ne.s32.totalorder %s22, %s25
    %p31 = scmp.eq.s32.totalorder %s12, 0
    %p32 = por %p30, %p31
    %p33 = scmp.ne.s32.totalorder %s22, %s25
    %p34 = scmp.eq.s32.totalorder %s17, 1
    %p35 = por %p33, %p34
    %p36 = scmp.ne.s32.totalorder %s25, %s26
    %p37 = scmp.eq.s32.totalorder %s17, 0
    %p38 = por %p36, %p37
    %p39 = scmp.ne.s32.totalorder %s25, %s26
    %p40 = scmp.eq.s32.totalorder %s18, 1
    %p41 = por %p39, %p40
    %p43 = scmp.ne.s32.totalorder %s26, %s42
    %p44 = scmp.eq.s32.totalorder %s18, 0
    %p45 = por %p43, %p44
    %s46 = ssub.s32 %s12, %s19
    %p47 = scmp.eq.s32.totalorder %s46, 0
    %s49 = sadd.s32 %s48, 1
    %s50 = scalar_select %p47, %s48, %s49
    %p53 = pneg %p47
    %p54 = scmp.eq.s32.totalorder %s12, 1
    %p55 = por %p53, %p54
    %p56 = scmp.ne.s32.totalorder %s48, %s51
    %p57 = scmp.eq.s32.totalorder %s12, 0
    %p58 = por %p56, %p57
    %p59 = scmp.ne.s32.totalorder %s48, %s51
    %p60 = scmp.eq.s32.totalorder %s17, 1
    %p61 = por %p59, %p60
    %p62 = scmp.ne.s32.totalorder %s51, %s52
    %p63 = scmp.eq.s32.totalorder %s17, 0
    %p64 = por %p62, %p63
    %p65 = scmp.ne.s32.totalorder %s51, %s52
    %p66 = scmp.eq.s32.totalorder %s18, 1
    %p67 = por %p65, %p66
    %p69 = scmp.ne.s32.totalorder %s52, %s68
    %p70 = scmp.eq.s32.totalorder %s18, 0
    %p71 = por %p69, %p70
    %s73 = sadd.s32 %s72, 1
    %p76 = scmp.eq.s32.totalorder %s12, 1
    %p77 = scmp.ne.s32.totalorder %s72, %s74
    %p78 = scmp.eq.s32.totalorder %s12, 0
    %p79 = por %p77, %p78
    %p80 = scmp.ne.s32.totalorder %s72, %s74
    %p81 = scmp.eq.s32.totalorder %s17, 1
    %p82 = por %p80, %p81
    %p83 = scmp.ne.s32.totalorder %s74, %s75
    %p84 = scmp.eq.s32.totalorder %s17, 0
    %p85 = por %p83, %p84
    %p86 = scmp.ne.s32.totalorder %s74, %s75
    %p87 = scmp.eq.s32.totalorder %s18, 1
    %p88 = por %p86, %p87
    %p90 = scmp.ne.s32.totalorder %s75, %s89
    %p91 = scmp.eq.s32.totalorder %s18, 0
    %p92 = por %p90, %p91
    %s94 = sadd.s32 %s93, 1
    %p97 = scmp.eq.s32.totalorder %s12, 1
    %p98 = scmp.ne.s32.totalorder %s93, %s95
    %p99 = scmp.eq.s32.totalorder %s12, 0
    %p100 = por %p98, %p99
    %p101 = scmp.ne.s32.totalorder %s93, %s95
    %p102 = scmp.eq.s32.totalorder %s17, 1
    %p103 = por %p101, %p102
    %p104 = scmp.ne.s32.totalorder %s95, %s96
    %p105 = scmp.eq.s32.totalorder %s17, 0
    %p106 = por %p104, %p105
    %p107 = scmp.ne.s32.totalorder %s95, %s96
    %p108 = scmp.eq.s32.totalorder %s18, 1
    %p109 = por %p107, %p108
    %p111 = scmp.ne.s32.totalorder %s96, %s110
    %p112 = scmp.eq.s32.totalorder %s18, 0
    %p113 = por %p111, %p112
    %s115 = sadd.s32 %s114, 1
    %p118 = scmp.eq.s32.totalorder %s12, 1
    %p119 = scmp.ne.s32.totalorder %s114, %s116
    %p120 = scmp.eq.s32.totalorder %s12, 0
    %p121 = por %p119, %p120
    %p122 = scmp.ne.s32.totalorder %s114, %s116
    %p123 = scmp.eq.s32.totalorder %s17, 1
    %p124 = por %p122, %p123
    %p125 = scmp.ne.s32.totalorder %s116, %s117
    %p126 = scmp.eq.s32.totalorder %s17, 0
    %p127 = por %p125, %p126
    %p128 = scmp.ne.s32.totalorder %s116, %s117
    %p129 = scmp.eq.s32.totalorder %s18, 1
    %p130 = por %p128, %p129
    %p132 = scmp.ne.s32.totalorder %s117, %s131
    %p133 = scmp.eq.s32.totalorder %s18, 0
    %p134 = por %p132, %p133
    %s136 = sadd.s32 %s135, 1
    %p139 = scmp.eq.s32.totalorder %s12, 1
    %p140 = scmp.ne.s32.totalorder %s135, %s137
    %p141 = scmp.eq.s32.totalorder %s12, 0
    %p142 = por %p140, %p141
    %p143 = scmp.ne.s32.totalorder %s135, %s137
    %p144 = scmp.eq.s32.totalorder %s17, 1
    %p145 = por %p143, %p144
    %p146 = scmp.ne.s32.totalorder %s137, %s138
    %p147 = scmp.eq.s32.totalorder %s17, 0
    %p148 = por %p146, %p147
    %p149 = scmp.ne.s32.totalorder %s137, %s138
    %p150 = scmp.eq.s32.totalorder %s18, 1
    %p151 = por %p149, %p150
    %p153 = scmp.ne.s32.totalorder %s138, %s152
    %p154 = scmp.eq.s32.totalorder %s18, 0
    %p155 = por %p153, %p154
    %s156 = ssub.s32 %s12, %s19
    %p157 = scmp.eq.s32.totalorder %s156, 0
    %s159 = sadd.s32 %s158, 1
    %s160 = scalar_select %p157, %s158, %s159
    %p163 = pneg %p157
    %p164 = scmp.eq.s32.totalorder %s12, 1
    %p165 = por %p163, %p164
    %p166 = scmp.ne.s32.totalorder %s158, %s161
    %p167 = scmp.eq.s32.totalorder %s12, 0
    %p168 = por %p166, %p167
    %p169 = scmp.ne.s32.totalorder %s158, %s161
    %p170 = scmp.eq.s32.totalorder %s17, 1
    %p171 = por %p169, %p170
    %p172 = scmp.ne.s32.totalorder %s161, %s162
    %p173 = scmp.eq.s32.totalorder %s17, 0
    %p174 = por %p172, %p173
    %p175 = scmp.ne.s32.totalorder %s161, %s162
    %p176 = scmp.eq.s32.totalorder %s18, 1
    %p177 = por %p175, %p176
    %p179 = scmp.ne.s32.totalorder %s162, %s178
    %p180 = scmp.eq.s32.totalorder %s18, 0
    %p181 = por %p179, %p180
    %p182 = scmp.le.s32.totalorder 1, %s12
    %p183 = scmp.lt.s32.totalorder %s12, 3
    %p184 = pnand %p182, %p183
    %p185 = pneg %p184
    // Predicated region
    $region9: #{tpu_custom_call.1} parent=5 // pred_check
      _
    $region10: #{tpu_custom_call.1} parent=5 // pred_check_branch
      %187 = sbr.rel (%p184) target = $region12
    $region11: #{tpu_custom_call.1} parent=5 // pred_region
      %s188 = ssub.s32 %s12, 1
      // Predicated region
      $region13: #{tpu_custom_call.1} parent=11 // pred_check
        %p189 = pneg %p85
      $region14: #{tpu_custom_call.1} parent=11 // pred_check_branch
        %191 = sbr.rel (%p189) target = $region16
      $region15: #{tpu_custom_call.1} parent=11 // pred_region
        _
      $region16: #{tpu_custom_call.1} parent=11 // pred_fallthru
        _
      // Predicated region
      $region17: #{tpu_custom_call.1} parent=11 // pred_check
        %p192 = pneg %p106
      $region18: #{tpu_custom_call.1} parent=11 // pred_check_branch
        %194 = sbr.rel (%p192) target = $region20
      $region19: #{tpu_custom_call.1} parent=11 // pred_region
        _
      $region20: #{tpu_custom_call.1} parent=11 // pred_fallthru
        _
      // Predicated region
      $region21: #{tpu_custom_call.1} parent=11 // pred_check
        %p195 = pneg %p127
      $region22: #{tpu_custom_call.1} parent=11 // pred_check_branch
        %197 = sbr.rel (%p195) target = $region24
      $region23: #{tpu_custom_call.1} parent=11 // pred_region
        _
      $region24: #{tpu_custom_call.1} parent=11 // pred_fallthru
        _
      // Predicated region
      $region25: #{tpu_custom_call.1} parent=11 // pred_check
        %p198 = pneg %p148
      $region26: #{tpu_custom_call.1} parent=11 // pred_check_branch
        %200 = sbr.rel (%p198) target = $region28
      $region27: #{tpu_custom_call.1} parent=11 // pred_region
        _
      $region28: #{tpu_custom_call.1} parent=11 // pred_fallthru
        _
    $region12: #{tpu_custom_call.1} parent=5 // pred_fallthru
      _
    %p201 = scmp.lt.s32.totalorder %s12, 2
    // Predicated region
    $region29: #{tpu_custom_call.1} parent=5 // pred_check
      %p202 = pneg %p201
    $region30: #{tpu_custom_call.1} parent=5 // pred_check_branch
      %204 = sbr.rel (%p202) target = $region32
    $region31: #{tpu_custom_call.1} parent=5 // pred_region
      // Predicated region
      $region33: #{tpu_custom_call.1} parent=31 // pred_check
        %p205 = pneg %p32
      $region34: #{tpu_custom_call.1} parent=31 // pred_check_branch
        %207 = sbr.rel (%p205) target = $region36
      $region35: #{tpu_custom_call.1} parent=31 // pred_region
        %s208 = smul.u32 16, %s12
        %p209 = scmp.lt.s32.totalorder %s208, 31
        %s210 = scalar_select %p209, %s208, 31
        %s211 = smul.addr %s210, 8
        %s212 = scalar_lea.vmem %s0, %s211
        %s213 = smul.u32 16, %s12
      $region36: #{tpu_custom_call.1} parent=31 // pred_fallthru
        _
      // Predicated region
      $region37: #{tpu_custom_call.1} parent=31 // pred_check
        %p214 = pneg %p58
      $region38: #{tpu_custom_call.1} parent=31 // pred_check_branch
        %216 = sbr.rel (%p214) target = $region40
      $region39: #{tpu_custom_call.1} parent=31 // pred_region
        %s217 = smul.u32 16, %s12
        %p218 = scmp.lt.s32.totalorder %s217, 31
        %s219 = scalar_select %p218, %s217, 31
        %s220 = smul.addr %s219, 8
        %s221 = scalar_lea.vmem %s1, %s220
        %s222 = smul.u32 16, %s12
      $region40: #{tpu_custom_call.1} parent=31 // pred_fallthru
        _
    $region32: #{tpu_custom_call.1} parent=5 // pred_fallthru
      _
    %p223 = scmp.le.s32.totalorder 1, %s12
    %p224 = scmp.lt.s32.totalorder %s12, 3
    %p225 = pnand %p223, %p224
    %p226 = pneg %p225
    // Predicated region
    $region41: #{tpu_custom_call.1} parent=5 // pred_check
      _
    $region42: #{tpu_custom_call.1} parent=5 // pred_check_branch
      %228 = sbr.rel (%p225) target = $region44
    $region43: #{tpu_custom_call.1} parent=5 // pred_region
      %s229 = ssub.s32 %s12, 1
      %s230 = smul.u32 16, %s17
      %p231 = scmp.lt.s32.totalorder %s230, 31
      %s232 = scalar_select %p231, %s230, 31
      %s233 = smul.addr %s232, 8
      %s234 = scalar_lea.vmem %s0, %s233
      %p235 = pneg %p38
      %p236 = pneg %p35
      %s237 = smul.u32 16, %s17
      %p238 = scmp.lt.s32.totalorder %s237, 31
      %s239 = scalar_select %p238, %s237, 31
      %s240 = smul.addr %s239, 8
      %s241 = scalar_lea.vmem %s1, %s240
      %p242 = pneg %p64
      %p243 = pneg %p61
      %p244 = pneg %p85
      %p245 = pneg %p82
      %p246 = pneg %p106
      %p247 = pneg %p103
      %p248 = pneg %p127
      %p249 = pneg %p124
      %p250 = pneg %p148
      %p251 = pneg %p145
      %p252 = pneg %p174
      %p253 = pneg %p171
      %s254 = smul.u32 16, %s17
      %p255 = scmp.lt.s32.totalorder %s254, 31
      %s256 = scalar_select %p255, %s254, 31
      %s257 = smul.addr %s256, 8
      %s258 = scalar_lea.vmem %s6, %s257
      %s259 = smul.u32 16, %s17
      %p260 = scmp.lt.s32.totalorder %s259, 31
      %s261 = scalar_select %p260, %s259, 31
      %s262 = smul.addr %s261, 8
      %s263 = scalar_lea.vmem %s0, %s262
      %s264 = smul.u32 16, %s17
      %s265 = smul.u32 16, %s17
      %p266 = scmp.lt.s32.totalorder %s265, 31
      %s267 = scalar_select %p266, %s265, 31
      %s268 = smul.addr %s267, 8
      %s269 = scalar_lea.vmem %s1, %s268
      %s270 = smul.u32 16, %s17
      %s271 = smul.u32 16, %s17
      %p272 = scmp.lt.s32.totalorder %s271, 31
      %s273 = scalar_select %p272, %s271, 31
      %s274 = smul.addr %s273, 8
      %s275 = scalar_lea.vmem %s6, %s274
      %s276 = smul.u32 16, %s17
      %v277 = vld [vmem:[%s263] sm:$0xff]
      %v278 = vld [vmem:[%s263 + $0x8] sm:$0xff]
      %v279 = vld [vmem:[%s263 + $0x10] sm:$0xff]
      %v280 = vld [vmem:[%s263 + $0x18] sm:$0xff]
      %v281 = vld [vmem:[%s263 + $0x20] sm:$0xff]
      %v282 = vld [vmem:[%s263 + $0x28] sm:$0xff]
      %v283 = vld [vmem:[%s263 + $0x30] sm:$0xff]
      %v284 = vld [vmem:[%s263 + $0x38] sm:$0xff]
      %v285 = vld [vmem:[%s263 + $0x40] sm:$0xff]
      %v286 = vld [vmem:[%s263 + $0x48] sm:$0xff]
      %v287 = vld [vmem:[%s263 + $0x50] sm:$0xff]
      %v288 = vld [vmem:[%s263 + $0x58] sm:$0xff]
      %v289 = vld [vmem:[%s263 + $0x60] sm:$0xff]
      %v290 = vld [vmem:[%s263 + $0x68] sm:$0xff]
      %v291 = vld [vmem:[%s263 + $0x70] sm:$0xff]
      %v292 = vld [vmem:[%s263 + $0x78] sm:$0xff]
      %v293 = vld [vmem:[%s269] sm:$0xff]
      %v294 = vld [vmem:[%s269 + $0x8] sm:$0xff]
      %v295 = vld [vmem:[%s269 + $0x10] sm:$0xff]
      %v296 = vld [vmem:[%s269 + $0x18] sm:$0xff]
      %v297 = vld [vmem:[%s269 + $0x20] sm:$0xff]
      %v298 = vld [vmem:[%s269 + $0x28] sm:$0xff]
      %v299 = vld [vmem:[%s269 + $0x30] sm:$0xff]
      %v300 = vld [vmem:[%s269 + $0x38] sm:$0xff]
      %v301 = vld [vmem:[%s269 + $0x40] sm:$0xff]
      %v302 = vld [vmem:[%s269 + $0x48] sm:$0xff]
      %v303 = vld [vmem:[%s269 + $0x50] sm:$0xff]
      %v304 = vld [vmem:[%s269 + $0x58] sm:$0xff]
      %v305 = vld [vmem:[%s269 + $0x60] sm:$0xff]
      %v306 = vld [vmem:[%s269 + $0x68] sm:$0xff]
      %v307 = vld [vmem:[%s269 + $0x70] sm:$0xff]
      %v308 = vld [vmem:[%s269 + $0x78] sm:$0xff]
      %v309 = vadd.f32 %v277, %v293
      %v310 = vadd.f32 %v278, %v294
      %v311 = vadd.f32 %v279, %v295
      %v312 = vadd.f32 %v280, %v296
      %v313 = vadd.f32 %v281, %v297
      %v314 = vadd.f32 %v282, %v298
      %v315 = vadd.f32 %v283, %v299
      %v316 = vadd.f32 %v284, %v300
      %v317 = vadd.f32 %v285, %v301
      %v318 = vadd.f32 %v286, %v302
      %v319 = vadd.f32 %v287, %v303
      %v320 = vadd.f32 %v288, %v304
      %v321 = vadd.f32 %v289, %v305
      %v322 = vadd.f32 %v290, %v306
      %v323 = vadd.f32 %v291, %v307
      %v324 = vadd.f32 %v292, %v308
      %v325 = vld [vmem:[%s2] sm:$0xff]
      %v326 = vld [vmem:[%s2 + $0x8] sm:$0xff]
      %v327 = vld [vmem:[%s2 + $0x10] sm:$0xff]
      %v328 = vld [vmem:[%s2 + $0x18] sm:$0xff]
      %v329 = vld [vmem:[%s3] sm:$0x1]
      %v331 = vlaneseq
      %v332 = vshrl.u32 %v331, 7
      %v333 = vsub.s32 0, %v332
      %v334 = vrot.slane %v329, %v333
      %vm336 = vcmask 261120
      %v338 = vsel %vm336, %v309, 0
      %v341 = vsel %vm336, %v310, 0
      %v344 = vsel %vm336, %v311, 0
      %v347 = vsel %vm336, %v312, 0
      %v350 = vsel %vm336, %v313, 0
      %v353 = vsel %vm336, %v314, 0
      %v356 = vsel %vm336, %v315, 0
      %v359 = vsel %vm336, %v316, 0
      %v362 = vsel %vm336, %v317, 0
      %v365 = vsel %vm336, %v318, 0
      %v368 = vsel %vm336, %v319, 0
      %v371 = vsel %vm336, %v320, 0
      %v374 = vsel %vm336, %v321, 0
      %v377 = vsel %vm336, %v322, 0
      %v380 = vsel %vm336, %v323, 0
      %v383 = vsel %vm336, %v324, 0
      %385 = vmatprep.subr.mxu0 0.0
      %386 = vmatpush1.msra.mxu0 %v325
      %387 = vmatprep.subr.mxu0 0.0
      %388 = vmatpush1.msra.mxu0 %v326
      %389 = vmatprep.subr.mxu0 0.0
      %390 = vmatpush1.msra.mxu0 %v327
      %391 = vmatprep.subr.mxu0 0.0
      %392 = vmatpush1.msra.mxu0 %v328
      %393 = vmatprep.subr.mxu0 0.0
      %394 = vmatpush1.msra.mxu0 0.0
      %395 = vmatprep.subr.mxu0 0.0
      %396 = vmatpush1.msra.mxu0 0.0
      %397 = vmatprep.subr.mxu0 0.0
      %398 = vmatpush1.msra.mxu0 0.0
      %399 = vmatprep.subr.mxu0 0.0
      %400 = vmatpush1.msra.mxu0 0.0
      %401 = vmatprep.subr.mxu0 0.0
      %402 = vmatpush1.msra.mxu0 0.0
      %403 = vmatprep.subr.mxu0 0.0
      %404 = vmatpush1.msra.mxu0 0.0
      %405 = vmatprep.subr.mxu0 0.0
      %406 = vmatpush1.msra.mxu0 0.0
      %407 = vmatprep.subr.mxu0 0.0
      %408 = vmatpush1.msra.mxu0 0.0
      %409 = vmatprep.subr.mxu0 0.0
      %410 = vmatpush1.msra.mxu0 0.0
      %411 = vmatprep.subr.mxu0 0.0
      %412 = vmatpush1.msra.mxu0 0.0
      %413 = vmatprep.subr.mxu0 0.0
      %414 = vmatpush1.msra.mxu0 0.0
      %415 = vmatprep.subr.mxu0 0.0
      %416 = vmatpush1.msra.mxu0 0.0
      %417 = vmatprep.subr.mxu0 0.0
      %418 = vmatpush1.msra.mxu0 0.0
      %419 = vmatprep.subr.mxu0 0.0
      %420 = vmatpush1.msra.mxu0 0.0
      %421 = vmatprep.subr.mxu0 0.0
      %422 = vmatpush1.msra.mxu0 0.0
      %423 = vmatprep.subr.mxu0 0.0
      %424 = vmatpush1.msra.mxu0 0.0
      %425 = vmatprep.subr.mxu0 0.0
      %426 = vmatpush1.msra.mxu0 0.0
      %427 = vmatprep.subr.mxu0 0.0
      %428 = vmatpush1.msra.mxu0 0.0
      %429 = vmatprep.subr.mxu0 0.0
      %430 = vmatpush1.msra.mxu0 0.0
      %431 = vmatprep.subr.mxu0 0.0
      %432 = vmatpush1.msra.mxu0 0.0
      %433 = vmatprep.subr.mxu0 0.0
      %434 = vmatpush1.msra.mxu0 0.0
      %435 = vmatprep.subr.mxu0 0.0
      %436 = vmatpush1.msra.mxu0 0.0
      %437 = vmatprep.subr.mxu0 0.0
      %438 = vmatpush1.msra.mxu0 0.0
      %439 = vmatprep.subr.mxu0 0.0
      %440 = vmatpush1.msra.mxu0 0.0
      %441 = vmatprep.subr.mxu0 0.0
      %442 = vmatpush1.msra.mxu0 0.0
      %443 = vmatprep.subr.mxu0 0.0
      %444 = vmatpush1.msra.mxu0 0.0
      %445 = vmatprep.subr.mxu0 0.0
      %446 = vmatpush1.msra.mxu0 0.0
      %447 = vmatprep.subr.mxu0 0.0
      %448 = vmatpush1.msra.mxu0 0.0
      %449 = vmatprep.mubr.f32.mxu0 0.0
      %450 = vmatmul.mubr.f32.gmra.mrb[0].mxu0 %v338
      %v451 = vpop.f32.mrb[0].mxu0
      %v452 = vadd.f32 %v334, %v451
      %v453 = vpop.f32.mrb[0].mxu0
      %454 = vmatprep.mubr.f32.mxu0 0.0
      %455 = vmatmul.mubr.f32.gmra.mrb[0].mxu0 %v341
      %v456 = vpop.f32.mrb[0].mxu0
      %v457 = vadd.f32 %v334, %v456
      %v458 = vpop.f32.mrb[0].mxu0
      %459 = vmatprep.mubr.f32.mxu0 0.0
      %460 = vmatmul.mubr.f32.gmra.mrb[0].mxu0 %v344
      %v461 = vpop.f32.mrb[0].mxu0
      %v462 = vadd.f32 %v334, %v461
      %v463 = vpop.f32.mrb[0].mxu0
      %464 = vmatprep.mubr.f32.mxu0 0.0
      %465 = vmatmul.mubr.f32.gmra.mrb[0].mxu0 %v347
      %v466 = vpop.f32.mrb[0].mxu0
      %v467 = vadd.f32 %v334, %v466
      %v468 = vpop.f32.mrb[0].mxu0
      %469 = vmatprep.mubr.f32.mxu0 0.0
      %470 = vmatmul.mubr.f32.gmra.mrb[0].mxu0 %v350
      %v471 = vpop.f32.mrb[0].mxu0
      %v472 = vadd.f32 %v334, %v471
      %v473 = vpop.f32.mrb[0].mxu0
      %474 = vmatprep.mubr.f32.mxu0 0.0
      %475 = vmatmul.mubr.f32.gmra.mrb[0].mxu0 %v353
      %v476 = vpop.f32.mrb[0].mxu0
      %v477 = vadd.f32 %v334, %v476
      %v478 = vpop.f32.mrb[0].mxu0
      %479 = vmatprep.mubr.f32.mxu0 0.0
      %480 = vmatmul.mubr.f32.gmra.mrb[0].mxu0 %v356
      %v481 = vpop.f32.mrb[0].mxu0
      %v482 = vadd.f32 %v334, %v481
      %v483 = vpop.f32.mrb[0].mxu0
      %484 = vmatprep.mubr.f32.mxu0 0.0
      %485 = vmatmul.mubr.f32.gmra.mrb[0].mxu0 %v359
      %v486 = vpop.f32.mrb[0].mxu0
      %v487 = vadd.f32 %v334, %v486
      %v488 = vpop.f32.mrb[0].mxu0
      %489 = vmatprep.mubr.f32.mxu0 0.0
      %490 = vmatmul.mubr.f32.gmra.mrb[0].mxu0 %v362
      %v491 = vpop.f32.mrb[0].mxu0
      %v492 = vadd.f32 %v334, %v491
      %v493 = vpop.f32.mrb[0].mxu0
      %494 = vmatprep.mubr.f32.mxu0 0.0
      %495 = vmatmul.mubr.f32.gmra.mrb[0].mxu0 %v365
      %v496 = vpop.f32.mrb[0].mxu0
      %v497 = vadd.f32 %v334, %v496
      %v498 = vpop.f32.mrb[0].mxu0
      %499 = vmatprep.mubr.f32.mxu0 0.0
      %500 = vmatmul.mubr.f32.gmra.mrb[0].mxu0 %v368
      %v501 = vpop.f32.mrb[0].mxu0
      %v502 = vadd.f32 %v334, %v501
      %v503 = vpop.f32.mrb[0].mxu0
      %504 = vmatprep.mubr.f32.mxu0 0.0
      %505 = vmatmul.mubr.f32.gmra.mrb[0].mxu0 %v371
      %v506 = vpop.f32.mrb[0].mxu0
      %v507 = vadd.f32 %v334, %v506
      %v508 = vpop.f32.mrb[0].mxu0
      %509 = vmatprep.mubr.f32.mxu0 0.0
      %510 = vmatmul.mubr.f32.gmra.mrb[0].mxu0 %v374
      %v511 = vpop.f32.mrb[0].mxu0
      %v512 = vadd.f32 %v334, %v511
      %v513 = vpop.f32.mrb[0].mxu0
      %514 = vmatprep.mubr.f32.mxu0 0.0
      %515 = vmatmul.mubr.f32.gmra.mrb[0].mxu0 %v377
      %v516 = vpop.f32.mrb[0].mxu0
      %v517 = vadd.f32 %v334, %v516
      %v518 = vpop.f32.mrb[0].mxu0
      %519 = vmatprep.mubr.f32.mxu0 0.0
      %520 = vmatmul.mubr.f32.gmra.mrb[0].mxu0 %v380
      %v521 = vpop.f32.mrb[0].mxu0
      %v522 = vadd.f32 %v334, %v521
      %v523 = vpop.f32.mrb[0].mxu0
      %524 = vmatprep.mubr.f32.mxu0 0.0
      %525 = vmatmul.mubr.f32.gmra.mrb[0].mxu0 %v383
      %v526 = vpop.f32.mrb[0].mxu0
      %v527 = vadd.f32 %v334, %v526
      %v528 = vpop.f32.mrb[0].mxu0
      %529 = vdwg.mxu0
      %v530 = vld [vmem:[%s4] sm:$0xff]
      %v531 = vld [vmem:[%s4 + $0x8] sm:$0xff]
      %v532 = vld [vmem:[%s4 + $0x10] sm:$0xff]
      %v533 = vld [vmem:[%s4 + $0x18] sm:$0xff]
      %v535 = vsel %vm336, %v277, 0
      %v538 = vsel %vm336, %v278, 0
      %v541 = vsel %vm336, %v279, 0
      %v544 = vsel %vm336, %v280, 0
      %v547 = vsel %vm336, %v281, 0
      %v550 = vsel %vm336, %v282, 0
      %v553 = vsel %vm336, %v283, 0
      %v556 = vsel %vm336, %v284, 0
      %v559 = vsel %vm336, %v285, 0
      %v562 = vsel %vm336, %v286, 0
      %v565 = vsel %vm336, %v287, 0
      %v568 = vsel %vm336, %v288, 0
      %v571 = vsel %vm336, %v289, 0
      %v574 = vsel %vm336, %v290, 0
      %v577 = vsel %vm336, %v291, 0
      %v580 = vsel %vm336, %v292, 0
      %582 = vmatprep.subr.mxu0 0.0
      %583 = vmatpush1.msra.mxu0 %v530
      %584 = vmatprep.subr.mxu0 0.0
      %585 = vmatpush1.msra.mxu0 %v531
      %586 = vmatprep.subr.mxu0 0.0
      %587 = vmatpush1.msra.mxu0 %v532
      %588 = vmatprep.subr.mxu0 0.0
      %589 = vmatpush1.msra.mxu0 %v533
      %590 = vmatprep.subr.mxu0 0.0
      %591 = vmatpush1.msra.mxu0 0.0
      %592 = vmatprep.subr.mxu0 0.0
      %593 = vmatpush1.msra.mxu0 0.0
      %594 = vmatprep.subr.mxu0 0.0
      %595 = vmatpush1.msra.mxu0 0.0
      %596 = vmatprep.subr.mxu0 0.0
      %597 = vmatpush1.msra.mxu0 0.0
      %598 = vmatprep.subr.mxu0 0.0
      %599 = vmatpush1.msra.mxu0 0.0
      %600 = vmatprep.subr.mxu0 0.0
      %601 = vmatpush1.msra.mxu0 0.0
      %602 = vmatprep.subr.mxu0 0.0
      %603 = vmatpush1.msra.mxu0 0.0
      %604 = vmatprep.subr.mxu0 0.0
      %605 = vmatpush1.msra.mxu0 0.0
      %606 = vmatprep.subr.mxu0 0.0
      %607 = vmatpush1.msra.mxu0 0.0
      %608 = vmatprep.subr.mxu0 0.0
      %609 = vmatpush1.msra.mxu0 0.0
      %610 = vmatprep.subr.mxu0 0.0
      %611 = vmatpush1.msra.mxu0 0.0
      %612 = vmatprep.subr.mxu0 0.0
      %613 = vmatpush1.msra.mxu0 0.0
      %614 = vmatprep.subr.mxu0 0.0
      %615 = vmatpush1.msra.mxu0 0.0
      %616 = vmatprep.subr.mxu0 0.0
      %617 = vmatpush1.msra.mxu0 0.0
      %618 = vmatprep.subr.mxu0 0.0
      %619 = vmatpush1.msra.mxu0 0.0
      %620 = vmatprep.subr.mxu0 0.0
      %621 = vmatpush1.msra.mxu0 0.0
      %622 = vmatprep.subr.mxu0 0.0
      %623 = vmatpush1.msra.mxu0 0.0
      %624 = vmatprep.subr.mxu0 0.0
      %625 = vmatpush1.msra.mxu0 0.0
      %626 = vmatprep.subr.mxu0 0.0
      %627 = vmatpush1.msra.mxu0 0.0
      %628 = vmatprep.subr.mxu0 0.0
      %629 = vmatpush1.msra.mxu0 0.0
      %630 = vmatprep.subr.mxu0 0.0
      %631 = vmatpush1.msra.mxu0 0.0
      %632 = vmatprep.subr.mxu0 0.0
      %633 = vmatpush1.msra.mxu0 0.0
      %634 = vmatprep.subr.mxu0 0.0
      %635 = vmatpush1.msra.mxu0 0.0
      %636 = vmatprep.subr.mxu0 0.0
      %637 = vmatpush1.msra.mxu0 0.0
      %638 = vmatprep.subr.mxu0 0.0
      %639 = vmatpush1.msra.mxu0 0.0
      %640 = vmatprep.subr.mxu0 0.0
      %641 = vmatpush1.msra.mxu0 0.0
      %642 = vmatprep.subr.mxu0 0.0
      %643 = vmatpush1.msra.mxu0 0.0
      %644 = vmatprep.subr.mxu0 0.0
      %645 = vmatpush1.msra.mxu0 0.0
      %646 = vmatprep.mubr.f32.mxu0 0.0
      %647 = vmatmul.mubr.f32.gmra.mrb[0].mxu0 %v535
      %v648 = vpop.f32.mrb[0].mxu0
      %v649 = vadd.f32 0.0, %v648
      %v650 = vpop.f32.mrb[0].mxu0
      %651 = vmatprep.mubr.f32.mxu0 0.0
      %652 = vmatmul.mubr.f32.gmra.mrb[0].mxu0 %v538
      %v653 = vpop.f32.mrb[0].mxu0
      %v654 = vadd.f32 0.0, %v653
      %v655 = vpop.f32.mrb[0].mxu0
      %656 = vmatprep.mubr.f32.mxu0 0.0
      %657 = vmatmul.mubr.f32.gmra.mrb[0].mxu0 %v541
      %v658 = vpop.f32.mrb[0].mxu0
      %v659 = vadd.f32 0.0, %v658
      %v660 = vpop.f32.mrb[0].mxu0
      %661 = vmatprep.mubr.f32.mxu0 0.0
      %662 = vmatmul.mubr.f32.gmra.mrb[0].mxu0 %v544
      %v663 = vpop.f32.mrb[0].mxu0
      %v664 = vadd.f32 0.0, %v663
      %v665 = vpop.f32.mrb[0].mxu0
      %666 = vmatprep.mubr.f32.mxu0 0.0
      %667 = vmatmul.mubr.f32.gmra.mrb[0].mxu0 %v547
      %v668 = vpop.f32.mrb[0].mxu0
      %v669 = vadd.f32 0.0, %v668
      %v670 = vpop.f32.mrb[0].mxu0
      %671 = vmatprep.mubr.f32.mxu0 0.0
      %672 = vmatmul.mubr.f32.gmra.mrb[0].mxu0 %v550
      %v673 = vpop.f32.mrb[0].mxu0
      %v674 = vadd.f32 0.0, %v673
      %v675 = vpop.f32.mrb[0].mxu0
      %676 = vmatprep.mubr.f32.mxu0 0.0
      %677 = vmatmul.mubr.f32.gmra.mrb[0].mxu0 %v553
      %v678 = vpop.f32.mrb[0].mxu0
      %v679 = vadd.f32 0.0, %v678
      %v680 = vpop.f32.mrb[0].mxu0
      %681 = vmatprep.mubr.f32.mxu0 0.0
      %682 = vmatmul.mubr.f32.gmra.mrb[0].mxu0 %v556
      %v683 = vpop.f32.mrb[0].mxu0
      %v684 = vadd.f32 0.0, %v683
      %v685 = vpop.f32.mrb[0].mxu0
      %686 = vmatprep.mubr.f32.mxu0 0.0
      %687 = vmatmul.mubr.f32.gmra.mrb[0].mxu0 %v559
      %v688 = vpop.f32.mrb[0].mxu0
      %v689 = vadd.f32 0.0, %v688
      %v690 = vpop.f32.mrb[0].mxu0
      %691 = vmatprep.mubr.f32.mxu0 0.0
      %692 = vmatmul.mubr.f32.gmra.mrb[0].mxu0 %v562
      %v693 = vpop.f32.mrb[0].mxu0
      %v694 = vadd.f32 0.0, %v693
      %v695 = vpop.f32.mrb[0].mxu0
      %696 = vmatprep.mubr.f32.mxu0 0.0
      %697 = vmatmul.mubr.f32.gmra.mrb[0].mxu0 %v565
      %v698 = vpop.f32.mrb[0].mxu0
      %v699 = vadd.f32 0.0, %v698
      %v700 = vpop.f32.mrb[0].mxu0
      %701 = vmatprep.mubr.f32.mxu0 0.0
      %702 = vmatmul.mubr.f32.gmra.mrb[0].mxu0 %v568
      %v703 = vpop.f32.mrb[0].mxu0
      %v704 = vadd.f32 0.0, %v703
      %v705 = vpop.f32.mrb[0].mxu0
      %706 = vmatprep.mubr.f32.mxu0 0.0
      %707 = vmatmul.mubr.f32.gmra.mrb[0].mxu0 %v571
      %v708 = vpop.f32.mrb[0].mxu0
      %v709 = vadd.f32 0.0, %v708
      %v710 = vpop.f32.mrb[0].mxu0
      %711 = vmatprep.mubr.f32.mxu0 0.0
      %712 = vmatmul.mubr.f32.gmra.mrb[0].mxu0 %v574
      %v713 = vpop.f32.mrb[0].mxu0
      %v714 = vadd.f32 0.0, %v713
      %v715 = vpop.f32.mrb[0].mxu0
      %716 = vmatprep.mubr.f32.mxu0 0.0
      %717 = vmatmul.mubr.f32.gmra.mrb[0].mxu0 %v577
      %v718 = vpop.f32.mrb[0].mxu0
      %v719 = vadd.f32 0.0, %v718
      %v720 = vpop.f32.mrb[0].mxu0
      %721 = vmatprep.mubr.f32.mxu0 0.0
      %722 = vmatmul.mubr.f32.gmra.mrb[0].mxu0 %v580
      %v723 = vpop.f32.mrb[0].mxu0
      %v724 = vadd.f32 0.0, %v723
      %v725 = vpop.f32.mrb[0].mxu0
      %726 = vdwg.mxu0
      %729 = vrot.lane.b32.xlu0 %v452, 96
      %v730 = vpop.permute.xlu0 %729
      %731 = vrot.lane.b32.xlu0 %v457, 96
      %v732 = vpop.permute.xlu0 %731
      %vm733 = vcmask 64512
      %v734 = vsel %vm733, %v452, 0
      %v736 = vsel %vm733, %v457, 0
      %v738 = vsel %vm733, %v730, 0
      %v740 = vsel %vm733, %v732, 0
      %742 = vmatprep.subr.mxu0 0.0
      %743 = vmatpush1.xpose.msra.mxu0 %v738
      %744 = vmatprep.subr.mxu0 0.0
      %745 = vmatpush1.xpose.msra.mxu0 %v740
      %746 = vmatprep.subr.mxu0 0.0
      %747 = vmatpush1.xpose.msra.mxu0 0.0
      %748 = vmatprep.subr.mxu0 0.0
      %749 = vmatpush1.xpose.msra.mxu0 0.0
      %750 = vmatprep.subr.mxu0 0.0
      %751 = vmatpush1.xpose.msra.mxu0 0.0
      %752 = vmatprep.subr.mxu0 0.0
      %753 = vmatpush1.xpose.msra.mxu0 0.0
      %754 = vmatprep.subr.mxu0 0.0
      %755 = vmatpush1.xpose.msra.mxu0 0.0
      %756 = vmatprep.subr.mxu0 0.0
      %757 = vmatpush1.xpose.msra.mxu0 0.0
      %758 = vmatprep.subr.mxu0 0.0
      %759 = vmatpush1.xpose.msra.mxu0 0.0
      %760 = vmatprep.subr.mxu0 0.0
      %761 = vmatpush1.xpose.msra.mxu0 0.0
      %762 = vmatprep.subr.mxu0 0.0
      %763 = vmatpush1.xpose.msra.mxu0 0.0
      %764 = vmatprep.subr.mxu0 0.0
      %765 = vmatpush1.xpose.msra.mxu0 0.0
      %766 = vmatprep.subr.mxu0 0.0
      %767 = vmatpush1.xpose.msra.mxu0 0.0
      %768 = vmatprep.subr.mxu0 0.0
      %769 = vmatpush1.xpose.msra.mxu0 0.0
      %770 = vmatprep.subr.mxu0 0.0
      %771 = vmatpush1.xpose.msra.mxu0 0.0
      %772 = vmatprep.subr.mxu0 0.0
      %773 = vmatpush1.xpose.msra.mxu0 0.0
      %774 = vmatprep.subr.mxu0 0.0
      %775 = vmatpush1.xpose.msra.mxu0 0.0
      %776 = vmatprep.subr.mxu0 0.0
      %777 = vmatpush1.xpose.msra.mxu0 0.0
      %778 = vmatprep.subr.mxu0 0.0
      %779 = vmatpush1.xpose.msra.mxu0 0.0
      %780 = vmatprep.subr.mxu0 0.0
      %781 = vmatpush1.xpose.msra.mxu0 0.0
      %782 = vmatprep.subr.mxu0 0.0
      %783 = vmatpush1.xpose.msra.mxu0 0.0
      %784 = vmatprep.subr.mxu0 0.0
      %785 = vmatpush1.xpose.msra.mxu0 0.0
      %786 = vmatprep.subr.mxu0 0.0
      %787 = vmatpush1.xpose.msra.mxu0 0.0
      %788 = vmatprep.subr.mxu0 0.0
      %789 = vmatpush1.xpose.msra.mxu0 0.0
      %790 = vmatprep.subr.mxu0 0.0
      %791 = vmatpush1.xpose.msra.mxu0 0.0
      %792 = vmatprep.subr.mxu0 0.0
      %793 = vmatpush1.xpose.msra.mxu0 0.0
      %794 = vmatprep.subr.mxu0 0.0
      %795 = vmatpush1.xpose.msra.mxu0 0.0
      %796 = vmatprep.subr.mxu0 0.0
      %797 = vmatpush1.xpose.msra.mxu0 0.0
      %798 = vmatprep.subr.mxu0 0.0
      %799 = vmatpush1.xpose.msra.mxu0 0.0
      %800 = vmatprep.subr.mxu0 0.0
      %801 = vmatpush1.xpose.msra.mxu0 0.0
      %802 = vmatprep.subr.mxu0 0.0
      %803 = vmatpush1.xpose.msra.mxu0 0.0
      %804 = vmatprep.subr.mxu0 0.0
      %805 = vmatpush1.xpose.msra.mxu0 0.0
      %806 = vmatprep.mubr.f32.mxu0 0.0
      %807 = vmatmul.mubr.f32.gmra.mrb[0].mxu0 %v734
      %v808 = vpop.f32.mrb[0].mxu0
      %v809 = vadd.f32 0.0, %v808
      %v810 = vpop.f32.mrb[0].mxu0
      %811 = vmatprep.mubr.f32.mxu0 0.0
      %812 = vmatmul.mubr.f32.gmra.mrb[0].mxu0 %v736
      %v813 = vpop.f32.mrb[0].mxu0
      %v814 = vadd.f32 0.0, %v813
      %v815 = vpop.f32.mrb[0].mxu0
      %816 = vdwg.mxu0
      %819 = vrot.lane.b32.xlu0 %v462, 96
      %v820 = vpop.permute.xlu0 %819
      %821 = vrot.lane.b32.xlu0 %v467, 96
      %v822 = vpop.permute.xlu0 %821
      %v823 = vsel %vm733, %v462, 0
      %v825 = vsel %vm733, %v467, 0
      %v827 = vsel %vm733, %v820, 0
      %v829 = vsel %vm733, %v822, 0
      %831 = vmatprep.subr.mxu0 0.0
      %832 = vmatpush1.xpose.msra.mxu0 %v827
      %833 = vmatprep.subr.mxu0 0.0
      %834 = vmatpush1.xpose.msra.mxu0 %v829
      %835 = vmatprep.subr.mxu0 0.0
      %836 = vmatpush1.xpose.msra.mxu0 0.0
      %837 = vmatprep.subr.mxu0 0.0
      %838 = vmatpush1.xpose.msra.mxu0 0.0
      %839 = vmatprep.subr.mxu0 0.0
      %840 = vmatpush1.xpose.msra.mxu0 0.0
      %841 = vmatprep.subr.mxu0 0.0
      %842 = vmatpush1.xpose.msra.mxu0 0.0
      %843 = vmatprep.subr.mxu0 0.0
      %844 = vmatpush1.xpose.msra.mxu0 0.0
      %845 = vmatprep.subr.mxu0 0.0
      %846 = vmatpush1.xpose.msra.mxu0 0.0
      %847 = vmatprep.subr.mxu0 0.0
      %848 = vmatpush1.xpose.msra.mxu0 0.0
      %849 = vmatprep.subr.mxu0 0.0
      %850 = vmatpush1.xpose.msra.mxu0 0.0
      %851 = vmatprep.subr.mxu0 0.0
      %852 = vmatpush1.xpose.msra.mxu0 0.0
      %853 = vmatprep.subr.mxu0 0.0
      %854 = vmatpush1.xpose.msra.mxu0 0.0
      %855 = vmatprep.subr.mxu0 0.0
      %856 = vmatpush1.xpose.msra.mxu0 0.0
      %857 = vmatprep.subr.mxu0 0.0
      %858 = vmatpush1.xpose.msra.mxu0 0.0
      %859 = vmatprep.subr.mxu0 0.0
      %860 = vmatpush1.xpose.msra.mxu0 0.0
      %861 = vmatprep.subr.mxu0 0.0
      %862 = vmatpush1.xpose.msra.mxu0 0.0
      %863 = vmatprep.subr.mxu0 0.0
      %864 = vmatpush1.xpose.msra.mxu0 0.0
      %865 = vmatprep.subr.mxu0 0.0
      %866 = vmatpush1.xpose.msra.mxu0 0.0
      %867 = vmatprep.subr.mxu0 0.0
      %868 = vmatpush1.xpose.msra.mxu0 0.0
      %869 = vmatprep.subr.mxu0 0.0
      %870 = vmatpush1.xpose.msra.mxu0 0.0
      %871 = vmatprep.subr.mxu0 0.0
      %872 = vmatpush1.xpose.msra.mxu0 0.0
      %873 = vmatprep.subr.mxu0 0.0
      %874 = vmatpush1.xpose.msra.mxu0 0.0
      %875 = vmatprep.subr.mxu0 0.0
      %876 = vmatpush1.xpose.msra.mxu0 0.0
      %877 = vmatprep.subr.mxu0 0.0
      %878 = vmatpush1.xpose.msra.mxu0 0.0
      %879 = vmatprep.subr.mxu0 0.0
      %880 = vmatpush1.xpose.msra.mxu0 0.0
      %881 = vmatprep.subr.mxu0 0.0
      %882 = vmatpush1.xpose.msra.mxu0 0.0
      %883 = vmatprep.subr.mxu0 0.0
      %884 = vmatpush1.xpose.msra.mxu0 0.0
      %885 = vmatprep.subr.mxu0 0.0
      %886 = vmatpush1.xpose.msra.mxu0 0.0
      %887 = vmatprep.subr.mxu0 0.0
      %888 = vmatpush1.xpose.msra.mxu0 0.0
      %889 = vmatprep.subr.mxu0 0.0
      %890 = vmatpush1.xpose.msra.mxu0 0.0
      %891 = vmatprep.subr.mxu0 0.0
      %892 = vmatpush1.xpose.msra.mxu0 0.0
      %893 = vmatprep.subr.mxu0 0.0
      %894 = vmatpush1.xpose.msra.mxu0 0.0
      %895 = vmatprep.mubr.f32.mxu0 0.0
      %896 = vmatmul.mubr.f32.gmra.mrb[0].mxu0 %v823
      %v897 = vpop.f32.mrb[0].mxu0
      %v898 = vadd.f32 0.0, %v897
      %v899 = vpop.f32.mrb[0].mxu0
      %900 = vmatprep.mubr.f32.mxu0 0.0
      %901 = vmatmul.mubr.f32.gmra.mrb[0].mxu0 %v825
      %v902 = vpop.f32.mrb[0].mxu0
      %v903 = vadd.f32 0.0, %v902
      %v904 = vpop.f32.mrb[0].mxu0
      %905 = vdwg.mxu0
      %908 = vrot.lane.b32.xlu0 %v472, 96
      %v909 = vpop.permute.xlu0 %908
      %910 = vrot.lane.b32.xlu0 %v477, 96
      %v911 = vpop.permute.xlu0 %910
      %v912 = vsel %vm733, %v472, 0
      %v914 = vsel %vm733, %v477, 0
      %v916 = vsel %vm733, %v909, 0
      %v918 = vsel %vm733, %v911, 0
      %920 = vmatprep.subr.mxu0 0.0
      %921 = vmatpush1.xpose.msra.mxu0 %v916
      %922 = vmatprep.subr.mxu0 0.0
      %923 = vmatpush1.xpose.msra.mxu0 %v918
      %924 = vmatprep.subr.mxu0 0.0
      %925 = vmatpush1.xpose.msra.mxu0 0.0
      %926 = vmatprep.subr.mxu0 0.0
      %927 = vmatpush1.xpose.msra.mxu0 0.0
      %928 = vmatprep.subr.mxu0 0.0
      %929 = vmatpush1.xpose.msra.mxu0 0.0
      %930 = vmatprep.subr.mxu0 0.0
      %931 = vmatpush1.xpose.msra.mxu0 0.0
      %932 = vmatprep.subr.mxu0 0.0
      %933 = vmatpush1.xpose.msra.mxu0 0.0
      %934 = vmatprep.subr.mxu0 0.0
      %935 = vmatpush1.xpose.msra.mxu0 0.0
      %936 = vmatprep.subr.mxu0 0.0
      %937 = vmatpush1.xpose.msra.mxu0 0.0
      %938 = vmatprep.subr.mxu0 0.0
      %939 = vmatpush1.xpose.msra.mxu0 0.0
      %940 = vmatprep.subr.mxu0 0.0
      %941 = vmatpush1.xpose.msra.mxu0 0.0
      %942 = vmatprep.subr.mxu0 0.0
      %943 = vmatpush1.xpose.msra.mxu0 0.0
      %944 = vmatprep.subr.mxu0 0.0
      %945 = vmatpush1.xpose.msra.mxu0 0.0
      %946 = vmatprep.subr.mxu0 0.0
      %947 = vmatpush1.xpose.msra.mxu0 0.0
      %948 = vmatprep.subr.mxu0 0.0
      %949 = vmatpush1.xpose.msra.mxu0 0.0
      %950 = vmatprep.subr.mxu0 0.0
      %951 = vmatpush1.xpose.msra.mxu0 0.0
      %952 = vmatprep.subr.mxu0 0.0
      %953 = vmatpush1.xpose.msra.mxu0 0.0
      %954 = vmatprep.subr.mxu0 0.0
      %955 = vmatpush1.xpose.msra.mxu0 0.0
      %956 = vmatprep.subr.mxu0 0.0
      %957 = vmatpush1.xpose.msra.mxu0 0.0
      %958 = vmatprep.subr.mxu0 0.0
      %959 = vmatpush1.xpose.msra.mxu0 0.0
      %960 = vmatprep.subr.mxu0 0.0
      %961 = vmatpush1.xpose.msra.mxu0 0.0
      %962 = vmatprep.subr.mxu0 0.0
      %963 = vmatpush1.xpose.msra.mxu0 0.0
      %964 = vmatprep.subr.mxu0 0.0
      %965 = vmatpush1.xpose.msra.mxu0 0.0
      %966 = vmatprep.subr.mxu0 0.0
      %967 = vmatpush1.xpose.msra.mxu0 0.0
      %968 = vmatprep.subr.mxu0 0.0
      %969 = vmatpush1.xpose.msra.mxu0 0.0
      %970 = vmatprep.subr.mxu0 0.0
      %971 = vmatpush1.xpose.msra.mxu0 0.0
      %972 = vmatprep.subr.mxu0 0.0
      %973 = vmatpush1.xpose.msra.mxu0 0.0
      %974 = vmatprep.subr.mxu0 0.0
      %975 = vmatpush1.xpose.msra.mxu0 0.0
      %976 = vmatprep.subr.mxu0 0.0
      %977 = vmatpush1.xpose.msra.mxu0 0.0
      %978 = vmatprep.subr.mxu0 0.0
      %979 = vmatpush1.xpose.msra.mxu0 0.0
      %980 = vmatprep.subr.mxu0 0.0
      %981 = vmatpush1.xpose.msra.mxu0 0.0
      %982 = vmatprep.subr.mxu0 0.0
      %983 = vmatpush1.xpose.msra.mxu0 0.0
      %984 = vmatprep.mubr.f32.mxu0 0.0
      %985 = vmatmul.mubr.f32.gmra.mrb[0].mxu0 %v912
      %v986 = vpop.f32.mrb[0].mxu0
      %v987 = vadd.f32 0.0, %v986
      %v988 = vpop.f32.mrb[0].mxu0
      %989 = vmatprep.mubr.f32.mxu0 0.0
      %990 = vmatmul.mubr.f32.gmra.mrb[0].mxu0 %v914
      %v991 = vpop.f32.mrb[0].mxu0
      %v992 = vadd.f32 0.0, %v991
      %v993 = vpop.f32.mrb[0].mxu0
      %994 = vdwg.mxu0
      %997 = vrot.lane.b32.xlu0 %v482, 96
      %v998 = vpop.permute.xlu0 %997
      %999 = vrot.lane.b32.xlu0 %v487, 96
      %v1000 = vpop.permute.xlu0 %999
      %v1001 = vsel %vm733, %v482, 0
      %v1003 = vsel %vm733, %v487, 0
      %v1005 = vsel %vm733, %v998, 0
      %v1007 = vsel %vm733, %v1000, 0
      %1009 = vmatprep.subr.mxu0 0.0
      %1010 = vmatpush1.xpose.msra.mxu0 %v1005
      %1011 = vmatprep.subr.mxu0 0.0
      %1012 = vmatpush1.xpose.msra.mxu0 %v1007
      %1013 = vmatprep.subr.mxu0 0.0
      %1014 = vmatpush1.xpose.msra.mxu0 0.0
      %1015 = vmatprep.subr.mxu0 0.0
      %1016 = vmatpush1.xpose.msra.mxu0 0.0
      %1017 = vmatprep.subr.mxu0 0.0
      %1018 = vmatpush1.xpose.msra.mxu0 0.0
      %1019 = vmatprep.subr.mxu0 0.0
      %1020 = vmatpush1.xpose.msra.mxu0 0.0
      %1021 = vmatprep.subr.mxu0 0.0
      %1022 = vmatpush1.xpose.msra.mxu0 0.0
      %1023 = vmatprep.subr.mxu0 0.0
      %1024 = vmatpush1.xpose.msra.mxu0 0.0
      %1025 = vmatprep.subr.mxu0 0.0
      %1026 = vmatpush1.xpose.msra.mxu0 0.0
      %1027 = vmatprep.subr.mxu0 0.0
      %1028 = vmatpush1.xpose.msra.mxu0 0.0
      %1029 = vmatprep.subr.mxu0 0.0
      %1030 = vmatpush1.xpose.msra.mxu0 0.0
      %1031 = vmatprep.subr.mxu0 0.0
      %1032 = vmatpush1.xpose.msra.mxu0 0.0
      %1033 = vmatprep.subr.mxu0 0.0
      %1034 = vmatpush1.xpose.msra.mxu0 0.0
      %1035 = vmatprep.subr.mxu0 0.0
      %1036 = vmatpush1.xpose.msra.mxu0 0.0
      %1037 = vmatprep.subr.mxu0 0.0
      %1038 = vmatpush1.xpose.msra.mxu0 0.0
      %1039 = vmatprep.subr.mxu0 0.0
      %1040 = vmatpush1.xpose.msra.mxu0 0.0
      %1041 = vmatprep.subr.mxu0 0.0
      %1042 = vmatpush1.xpose.msra.mxu0 0.0
      %1043 = vmatprep.subr.mxu0 0.0
      %1044 = vmatpush1.xpose.msra.mxu0 0.0
      %1045 = vmatprep.subr.mxu0 0.0
      %1046 = vmatpush1.xpose.msra.mxu0 0.0
      %1047 = vmatprep.subr.mxu0 0.0
      %1048 = vmatpush1.xpose.msra.mxu0 0.0
      %1049 = vmatprep.subr.mxu0 0.0
      %1050 = vmatpush1.xpose.msra.mxu0 0.0
      %1051 = vmatprep.subr.mxu0 0.0
      %1052 = vmatpush1.xpose.msra.mxu0 0.0
      %1053 = vmatprep.subr.mxu0 0.0
      %1054 = vmatpush1.xpose.msra.mxu0 0.0
      %1055 = vmatprep.subr.mxu0 0.0
      %1056 = vmatpush1.xpose.msra.mxu0 0.0
      %1057 = vmatprep.subr.mxu0 0.0
      %1058 = vmatpush1.xpose.msra.mxu0 0.0
      %1059 = vmatprep.subr.mxu0 0.0
      %1060 = vmatpush1.xpose.msra.mxu0 0.0
      %1061 = vmatprep.subr.mxu0 0.0
      %1062 = vmatpush1.xpose.msra.mxu0 0.0
      %1063 = vmatprep.subr.mxu0 0.0
      %1064 = vmatpush1.xpose.msra.mxu0 0.0
      %1065 = vmatprep.subr.mxu0 0.0
      %1066 = vmatpush1.xpose.msra.mxu0 0.0
      %1067 = vmatprep.subr.mxu0 0.0
      %1068 = vmatpush1.xpose.msra.mxu0 0.0
      %1069 = vmatprep.subr.mxu0 0.0
      %1070 = vmatpush1.xpose.msra.mxu0 0.0
      %1071 = vmatprep.subr.mxu0 0.0
      %1072 = vmatpush1.xpose.msra.mxu0 0.0
      %1073 = vmatprep.mubr.f32.mxu0 0.0
      %1074 = vmatmul.mubr.f32.gmra.mrb[0].mxu0 %v1001
      %v1075 = vpop.f32.mrb[0].mxu0
      %v1076 = vadd.f32 0.0, %v1075
      %v1077 = vpop.f32.mrb[0].mxu0
      %1078 = vmatprep.mubr.f32.mxu0 0.0
      %1079 = vmatmul.mubr.f32.gmra.mrb[0].mxu0 %v1003
      %v1080 = vpop.f32.mrb[0].mxu0
      %v1081 = vadd.f32 0.0, %v1080
      %v1082 = vpop.f32.mrb[0].mxu0
      %1083 = vdwg.mxu0
      %1086 = vrot.lane.b32.xlu0 %v492, 96
      %v1087 = vpop.permute.xlu0 %1086
      %1088 = vrot.lane.b32.xlu0 %v497, 96
      %v1089 = vpop.permute.xlu0 %1088
      %v1090 = vsel %vm733, %v492, 0
      %v1092 = vsel %vm733, %v497, 0
      %v1094 = vsel %vm733, %v1087, 0
      %v1096 = vsel %vm733, %v1089, 0
      %1098 = vmatprep.subr.mxu0 0.0
      %1099 = vmatpush1.xpose.msra.mxu0 %v1094
      %1100 = vmatprep.subr.mxu0 0.0
      %1101 = vmatpush1.xpose.msra.mxu0 %v1096
      %1102 = vmatprep.subr.mxu0 0.0
      %1103 = vmatpush1.xpose.msra.mxu0 0.0
      %1104 = vmatprep.subr.mxu0 0.0
      %1105 = vmatpush1.xpose.msra.mxu0 0.0
      %1106 = vmatprep.subr.mxu0 0.0
      %1107 = vmatpush1.xpose.msra.mxu0 0.0
      %1108 = vmatprep.subr.mxu0 0.0
      %1109 = vmatpush1.xpose.msra.mxu0 0.0
      %1110 = vmatprep.subr.mxu0 0.0
      %1111 = vmatpush1.xpose.msra.mxu0 0.0
      %1112 = vmatprep.subr.mxu0 0.0
      %1113 = vmatpush1.xpose.msra.mxu0 0.0
      %1114 = vmatprep.subr.mxu0 0.0
      %1115 = vmatpush1.xpose.msra.mxu0 0.0
      %1116 = vmatprep.subr.mxu0 0.0
      %1117 = vmatpush1.xpose.msra.mxu0 0.0
      %1118 = vmatprep.subr.mxu0 0.0
      %1119 = vmatpush1.xpose.msra.mxu0 0.0
      %1120 = vmatprep.subr.mxu0 0.0
      %1121 = vmatpush1.xpose.msra.mxu0 0.0
      %1122 = vmatprep.subr.mxu0 0.0
      %1123 = vmatpush1.xpose.msra.mxu0 0.0
      %1124 = vmatprep.subr.mxu0 0.0
      %1125 = vmatpush1.xpose.msra.mxu0 0.0
      %1126 = vmatprep.subr.mxu0 0.0
      %1127 = vmatpush1.xpose.msra.mxu0 0.0
      %1128 = vmatprep.subr.mxu0 0.0
      %1129 = vmatpush1.xpose.msra.mxu0 0.0
      %1130 = vmatprep.subr.mxu0 0.0
      %1131 = vmatpush1.xpose.msra.mxu0 0.0
      %1132 = vmatprep.subr.mxu0 0.0
      %1133 = vmatpush1.xpose.msra.mxu0 0.0
      %1134 = vmatprep.subr.mxu0 0.0
      %1135 = vmatpush1.xpose.msra.mxu0 0.0
      %1136 = vmatprep.subr.mxu0 0.0
      %1137 = vmatpush1.xpose.msra.mxu0 0.0
      %1138 = vmatprep.subr.mxu0 0.0
      %1139 = vmatpush1.xpose.msra.mxu0 0.0
      %1140 = vmatprep.subr.mxu0 0.0
      %1141 = vmatpush1.xpose.msra.mxu0 0.0
      %1142 = vmatprep.subr.mxu0 0.0
      %1143 = vmatpush1.xpose.msra.mxu0 0.0
      %1144 = vmatprep.subr.mxu0 0.0
      %1145 = vmatpush1.xpose.msra.mxu0 0.0
      %1146 = vmatprep.subr.mxu0 0.0
      %1147 = vmatpush1.xpose.msra.mxu0 0.0
      %1148 = vmatprep.subr.mxu0 0.0
      %1149 = vmatpush1.xpose.msra.mxu0 0.0
      %1150 = vmatprep.subr.mxu0 0.0
      %1151 = vmatpush1.xpose.msra.mxu0 0.0
      %1152 = vmatprep.subr.mxu0 0.0
      %1153 = vmatpush1.xpose.msra.mxu0 0.0
      %1154 = vmatprep.subr.mxu0 0.0
      %1155 = vmatpush1.xpose.msra.mxu0 0.0
      %1156 = vmatprep.subr.mxu0 0.0
      %1157 = vmatpush1.xpose.msra.mxu0 0.0
      %1158 = vmatprep.subr.mxu0 0.0
      %1159 = vmatpush1.xpose.msra.mxu0 0.0
      %1160 = vmatprep.subr.mxu0 0.0
      %1161 = vmatpush1.xpose.msra.mxu0 0.0
      %1162 = vmatprep.mubr.f32.mxu0 0.0
      %1163 = vmatmul.mubr.f32.gmra.mrb[0].mxu0 %v1090
      %v1164 = vpop.f32.mrb[0].mxu0
      %v1165 = vadd.f32 0.0, %v1164
      %v1166 = vpop.f32.mrb[0].mxu0
      %1167 = vmatprep.mubr.f32.mxu0 0.0
      %1168 = vmatmul.mubr.f32.gmra.mrb[0].mxu0 %v1092
      %v1169 = vpop.f32.mrb[0].mxu0
      %v1170 = vadd.f32 0.0, %v1169
      %v1171 = vpop.f32.mrb[0].mxu0
      %1172 = vdwg.mxu0
      %1175 = vrot.lane.b32.xlu0 %v502, 96
      %v1176 = vpop.permute.xlu0 %1175
      %1177 = vrot.lane.b32.xlu0 %v507, 96
      %v1178 = vpop.permute.xlu0 %1177
      %v1179 = vsel %vm733, %v502, 0
      %v1181 = vsel %vm733, %v507, 0
      %v1183 = vsel %vm733, %v1176, 0
      %v1185 = vsel %vm733, %v1178, 0
      %1187 = vmatprep.subr.mxu0 0.0
      %1188 = vmatpush1.xpose.msra.mxu0 %v1183
      %1189 = vmatprep.subr.mxu0 0.0
      %1190 = vmatpush1.xpose.msra.mxu0 %v1185
      %1191 = vmatprep.subr.mxu0 0.0
      %1192 = vmatpush1.xpose.msra.mxu0 0.0
      %1193 = vmatprep.subr.mxu0 0.0
      %1194 = vmatpush1.xpose.msra.mxu0 0.0
      %1195 = vmatprep.subr.mxu0 0.0
      %1196 = vmatpush1.xpose.msra.mxu0 0.0
      %1197 = vmatprep.subr.mxu0 0.0
      %1198 = vmatpush1.xpose.msra.mxu0 0.0
      %1199 = vmatprep.subr.mxu0 0.0
      %1200 = vmatpush1.xpose.msra.mxu0 0.0
      %1201 = vmatprep.subr.mxu0 0.0
      %1202 = vmatpush1.xpose.msra.mxu0 0.0
      %1203 = vmatprep.subr.mxu0 0.0
      %1204 = vmatpush1.xpose.msra.mxu0 0.0
      %1205 = vmatprep.subr.mxu0 0.0
      %1206 = vmatpush1.xpose.msra.mxu0 0.0
      %1207 = vmatprep.subr.mxu0 0.0
      %1208 = vmatpush1.xpose.msra.mxu0 0.0
      %1209 = vmatprep.subr.mxu0 0.0
      %1210 = vmatpush1.xpose.msra.mxu0 0.0
      %1211 = vmatprep.subr.mxu0 0.0
      %1212 = vmatpush1.xpose.msra.mxu0 0.0
      %1213 = vmatprep.subr.mxu0 0.0
      %1214 = vmatpush1.xpose.msra.mxu0 0.0
      %1215 = vmatprep.subr.mxu0 0.0
      %1216 = vmatpush1.xpose.msra.mxu0 0.0
      %1217 = vmatprep.subr.mxu0 0.0
      %1218 = vmatpush1.xpose.msra.mxu0 0.0
      %1219 = vmatprep.subr.mxu0 0.0
      %1220 = vmatpush1.xpose.msra.mxu0 0.0
      %1221 = vmatprep.subr.mxu0 0.0
      %1222 = vmatpush1.xpose.msra.mxu0 0.0
      %1223 = vmatprep.subr.mxu0 0.0
      %1224 = vmatpush1.xpose.msra.mxu0 0.0
      %1225 = vmatprep.subr.mxu0 0.0
      %1226 = vmatpush1.xpose.msra.mxu0 0.0
      %1227 = vmatprep.subr.mxu0 0.0
      %1228 = vmatpush1.xpose.msra.mxu0 0.0
      %1229 = vmatprep.subr.mxu0 0.0
      %1230 = vmatpush1.xpose.msra.mxu0 0.0
      %1231 = vmatprep.subr.mxu0 0.0
      %1232 = vmatpush1.xpose.msra.mxu0 0.0
      %1233 = vmatprep.subr.mxu0 0.0
      %1234 = vmatpush1.xpose.msra.mxu0 0.0
      %1235 = vmatprep.subr.mxu0 0.0
      %1236 = vmatpush1.xpose.msra.mxu0 0.0
      %1237 = vmatprep.subr.mxu0 0.0
      %1238 = vmatpush1.xpose.msra.mxu0 0.0
      %1239 = vmatprep.subr.mxu0 0.0
      %1240 = vmatpush1.xpose.msra.mxu0 0.0
      %1241 = vmatprep.subr.mxu0 0.0
      %1242 = vmatpush1.xpose.msra.mxu0 0.0
      %1243 = vmatprep.subr.mxu0 0.0
      %1244 = vmatpush1.xpose.msra.mxu0 0.0
      %1245 = vmatprep.subr.mxu0 0.0
      %1246 = vmatpush1.xpose.msra.mxu0 0.0
      %1247 = vmatprep.subr.mxu0 0.0
      %1248 = vmatpush1.xpose.msra.mxu0 0.0
      %1249 = vmatprep.subr.mxu0 0.0
      %1250 = vmatpush1.xpose.msra.mxu0 0.0
      %1251 = vmatprep.mubr.f32.mxu0 0.0
      %1252 = vmatmul.mubr.f32.gmra.mrb[0].mxu0 %v1179
      %v1253 = vpop.f32.mrb[0].mxu0
      %v1254 = vadd.f32 0.0, %v1253
      %v1255 = vpop.f32.mrb[0].mxu0
      %1256 = vmatprep.mubr.f32.mxu0 0.0
      %1257 = vmatmul.mubr.f32.gmra.mrb[0].mxu0 %v1181
      %v1258 = vpop.f32.mrb[0].mxu0
      %v1259 = vadd.f32 0.0, %v1258
      %v1260 = vpop.f32.mrb[0].mxu0
      %1261 = vdwg.mxu0
      %1264 = vrot.lane.b32.xlu0 %v512, 96
      %v1265 = vpop.permute.xlu0 %1264
      %1266 = vrot.lane.b32.xlu0 %v517, 96
      %v1267 = vpop.permute.xlu0 %1266
      %v1268 = vsel %vm733, %v512, 0
      %v1270 = vsel %vm733, %v517, 0
      %v1272 = vsel %vm733, %v1265, 0
      %v1274 = vsel %vm733, %v1267, 0
      %1276 = vmatprep.subr.mxu0 0.0
      %1277 = vmatpush1.xpose.msra.mxu0 %v1272
      %1278 = vmatprep.subr.mxu0 0.0
      %1279 = vmatpush1.xpose.msra.mxu0 %v1274
      %1280 = vmatprep.subr.mxu0 0.0
      %1281 = vmatpush1.xpose.msra.mxu0 0.0
      %1282 = vmatprep.subr.mxu0 0.0
      %1283 = vmatpush1.xpose.msra.mxu0 0.0
      %1284 = vmatprep.subr.mxu0 0.0
      %1285 = vmatpush1.xpose.msra.mxu0 0.0
      %1286 = vmatprep.subr.mxu0 0.0
      %1287 = vmatpush1.xpose.msra.mxu0 0.0
      %1288 = vmatprep.subr.mxu0 0.0
      %1289 = vmatpush1.xpose.msra.mxu0 0.0
      %1290 = vmatprep.subr.mxu0 0.0
      %1291 = vmatpush1.xpose.msra.mxu0 0.0
      %1292 = vmatprep.subr.mxu0 0.0
      %1293 = vmatpush1.xpose.msra.mxu0 0.0
      %1294 = vmatprep.subr.mxu0 0.0
      %1295 = vmatpush1.xpose.msra.mxu0 0.0
      %1296 = vmatprep.subr.mxu0 0.0
      %1297 = vmatpush1.xpose.msra.mxu0 0.0
      %1298 = vmatprep.subr.mxu0 0.0
      %1299 = vmatpush1.xpose.msra.mxu0 0.0
      %1300 = vmatprep.subr.mxu0 0.0
      %1301 = vmatpush1.xpose.msra.mxu0 0.0
      %1302 = vmatprep.subr.mxu0 0.0
      %1303 = vmatpush1.xpose.msra.mxu0 0.0
      %1304 = vmatprep.subr.mxu0 0.0
      %1305 = vmatpush1.xpose.msra.mxu0 0.0
      %1306 = vmatprep.subr.mxu0 0.0
      %1307 = vmatpush1.xpose.msra.mxu0 0.0
      %1308 = vmatprep.subr.mxu0 0.0
      %1309 = vmatpush1.xpose.msra.mxu0 0.0
      %1310 = vmatprep.subr.mxu0 0.0
      %1311 = vmatpush1.xpose.msra.mxu0 0.0
      %1312 = vmatprep.subr.mxu0 0.0
      %1313 = vmatpush1.xpose.msra.mxu0 0.0
      %1314 = vmatprep.subr.mxu0 0.0
      %1315 = vmatpush1.xpose.msra.mxu0 0.0
      %1316 = vmatprep.subr.mxu0 0.0
      %1317 = vmatpush1.xpose.msra.mxu0 0.0
      %1318 = vmatprep.subr.mxu0 0.0
      %1319 = vmatpush1.xpose.msra.mxu0 0.0
      %1320 = vmatprep.subr.mxu0 0.0
      %1321 = vmatpush1.xpose.msra.mxu0 0.0
      %1322 = vmatprep.subr.mxu0 0.0
      %1323 = vmatpush1.xpose.msra.mxu0 0.0
      %1324 = vmatprep.subr.mxu0 0.0
      %1325 = vmatpush1.xpose.msra.mxu0 0.0
      %1326 = vmatprep.subr.mxu0 0.0
      %1327 = vmatpush1.xpose.msra.mxu0 0.0
      %1328 = vmatprep.subr.mxu0 0.0
      %1329 = vmatpush1.xpose.msra.mxu0 0.0
      %1330 = vmatprep.subr.mxu0 0.0
      %1331 = vmatpush1.xpose.msra.mxu0 0.0
      %1332 = vmatprep.subr.mxu0 0.0
      %1333 = vmatpush1.xpose.msra.mxu0 0.0
      %1334 = vmatprep.subr.mxu0 0.0
      %1335 = vmatpush1.xpose.msra.mxu0 0.0
      %1336 = vmatprep.subr.mxu0 0.0
      %1337 = vmatpush1.xpose.msra.mxu0 0.0
      %1338 = vmatprep.subr.mxu0 0.0
      %1339 = vmatpush1.xpose.msra.mxu0 0.0
      %1340 = vmatprep.mubr.f32.mxu0 0.0
      %1341 = vmatmul.mubr.f32.gmra.mrb[0].mxu0 %v1268
      %v1342 = vpop.f32.mrb[0].mxu0
      %v1343 = vadd.f32 0.0, %v1342
      %v1344 = vpop.f32.mrb[0].mxu0
      %1345 = vmatprep.mubr.f32.mxu0 0.0
      %1346 = vmatmul.mubr.f32.gmra.mrb[0].mxu0 %v1270
      %v1347 = vpop.f32.mrb[0].mxu0
      %v1348 = vadd.f32 0.0, %v1347
      %v1349 = vpop.f32.mrb[0].mxu0
      %1350 = vdwg.mxu0
      %1353 = vrot.lane.b32.xlu0 %v522, 96
      %v1354 = vpop.permute.xlu0 %1353
      %1355 = vrot.lane.b32.xlu0 %v527, 96
      %v1356 = vpop.permute.xlu0 %1355
      %v1357 = vsel %vm733, %v522, 0
      %v1359 = vsel %vm733, %v527, 0
      %v1361 = vsel %vm733, %v1354, 0
      %v1363 = vsel %vm733, %v1356, 0
      %1365 = vmatprep.subr.mxu0 0.0
      %1366 = vmatpush1.xpose.msra.mxu0 %v1361
      %1367 = vmatprep.subr.mxu0 0.0
      %1368 = vmatpush1.xpose.msra.mxu0 %v1363
      %1369 = vmatprep.subr.mxu0 0.0
      %1370 = vmatpush1.xpose.msra.mxu0 0.0
      %1371 = vmatprep.subr.mxu0 0.0
      %1372 = vmatpush1.xpose.msra.mxu0 0.0
      %1373 = vmatprep.subr.mxu0 0.0
      %1374 = vmatpush1.xpose.msra.mxu0 0.0
      %1375 = vmatprep.subr.mxu0 0.0
      %1376 = vmatpush1.xpose.msra.mxu0 0.0
      %1377 = vmatprep.subr.mxu0 0.0
      %1378 = vmatpush1.xpose.msra.mxu0 0.0
      %1379 = vmatprep.subr.mxu0 0.0
      %1380 = vmatpush1.xpose.msra.mxu0 0.0
      %1381 = vmatprep.subr.mxu0 0.0
      %1382 = vmatpush1.xpose.msra.mxu0 0.0
      %1383 = vmatprep.subr.mxu0 0.0
      %1384 = vmatpush1.xpose.msra.mxu0 0.0
      %1385 = vmatprep.subr.mxu0 0.0
      %1386 = vmatpush1.xpose.msra.mxu0 0.0
      %1387 = vmatprep.subr.mxu0 0.0
      %1388 = vmatpush1.xpose.msra.mxu0 0.0
      %1389 = vmatprep.subr.mxu0 0.0
      %1390 = vmatpush1.xpose.msra.mxu0 0.0
      %1391 = vmatprep.subr.mxu0 0.0
      %1392 = vmatpush1.xpose.msra.mxu0 0.0
      %1393 = vmatprep.subr.mxu0 0.0
      %1394 = vmatpush1.xpose.msra.mxu0 0.0
      %1395 = vmatprep.subr.mxu0 0.0
      %1396 = vmatpush1.xpose.msra.mxu0 0.0
      %1397 = vmatprep.subr.mxu0 0.0
      %1398 = vmatpush1.xpose.msra.mxu0 0.0
      %1399 = vmatprep.subr.mxu0 0.0
      %1400 = vmatpush1.xpose.msra.mxu0 0.0
      %1401 = vmatprep.subr.mxu0 0.0
      %1402 = vmatpush1.xpose.msra.mxu0 0.0
      %1403 = vmatprep.subr.mxu0 0.0
      %1404 = vmatpush1.xpose.msra.mxu0 0.0
      %1405 = vmatprep.subr.mxu0 0.0
      %1406 = vmatpush1.xpose.msra.mxu0 0.0
      %1407 = vmatprep.subr.mxu0 0.0
      %1408 = vmatpush1.xpose.msra.mxu0 0.0
      %1409 = vmatprep.subr.mxu0 0.0
      %1410 = vmatpush1.xpose.msra.mxu0 0.0
      %1411 = vmatprep.subr.mxu0 0.0
      %1412 = vmatpush1.xpose.msra.mxu0 0.0
      %1413 = vmatprep.subr.mxu0 0.0
      %1414 = vmatpush1.xpose.msra.mxu0 0.0
      %1415 = vmatprep.subr.mxu0 0.0
      %1416 = vmatpush1.xpose.msra.mxu0 0.0
      %1417 = vmatprep.subr.mxu0 0.0
      %1418 = vmatpush1.xpose.msra.mxu0 0.0
      %1419 = vmatprep.subr.mxu0 0.0
      %1420 = vmatpush1.xpose.msra.mxu0 0.0
      %1421 = vmatprep.subr.mxu0 0.0
      %1422 = vmatpush1.xpose.msra.mxu0 0.0
      %1423 = vmatprep.subr.mxu0 0.0
      %1424 = vmatpush1.xpose.msra.mxu0 0.0
      %1425 = vmatprep.subr.mxu0 0.0
      %1426 = vmatpush1.xpose.msra.mxu0 0.0
      %1427 = vmatprep.subr.mxu0 0.0
      %1428 = vmatpush1.xpose.msra.mxu0 0.0
      %1429 = vmatprep.mubr.f32.mxu0 0.0
      %1430 = vmatmul.mubr.f32.gmra.mrb[0].mxu0 %v1357
      %v1431 = vpop.f32.mrb[0].mxu0
      %v1432 = vadd.f32 0.0, %v1431
      %v1433 = vpop.f32.mrb[0].mxu0
      %1434 = vmatprep.mubr.f32.mxu0 0.0
      %1435 = vmatmul.mubr.f32.gmra.mrb[0].mxu0 %v1359
      %v1436 = vpop.f32.mrb[0].mxu0
      %v1437 = vadd.f32 0.0, %v1436
      %v1438 = vpop.f32.mrb[0].mxu0
      %1439 = vdwg.mxu0
      %vm1440 = vcmask 130048
      %v1441 = vsel %vm1440, %v809, -inf
      %1442 = vmax.xlane.f32.xlu0 %v1441
      %v1443 = vpop.xlane.xlu0 %1442
      %v1444 = vsel %vm1440, %v814, -inf
      %1445 = vmax.xlane.f32.xlu0 %v1444
      %v1446 = vpop.xlane.xlu0 %1445
      %v1447 = vsel %vm1440, %v898, -inf
      %1448 = vmax.xlane.f32.xlu0 %v1447
      %v1449 = vpop.xlane.xlu0 %1448
      %v1450 = vsel %vm1440, %v903, -inf
      %1451 = vmax.xlane.f32.xlu0 %v1450
      %v1452 = vpop.xlane.xlu0 %1451
      %v1453 = vsel %vm1440, %v987, -inf
      %1454 = vmax.xlane.f32.xlu0 %v1453
      %v1455 = vpop.xlane.xlu0 %1454
      %v1456 = vsel %vm1440, %v992, -inf
      %1457 = vmax.xlane.f32.xlu0 %v1456
      %v1458 = vpop.xlane.xlu0 %1457
      %v1459 = vsel %vm1440, %v1076, -inf
      %1460 = vmax.xlane.f32.xlu0 %v1459
      %v1461 = vpop.xlane.xlu0 %1460
      %v1462 = vsel %vm1440, %v1081, -inf
      %1463 = vmax.xlane.f32.xlu0 %v1462
      %v1464 = vpop.xlane.xlu0 %1463
      %v1465 = vsel %vm1440, %v1165, -inf
      %1466 = vmax.xlane.f32.xlu0 %v1465
      %v1467 = vpop.xlane.xlu0 %1466
      %v1468 = vsel %vm1440, %v1170, -inf
      %1469 = vmax.xlane.f32.xlu0 %v1468
      %v1470 = vpop.xlane.xlu0 %1469
      %v1471 = vsel %vm1440, %v1254, -inf
      %1472 = vmax.xlane.f32.xlu0 %v1471
      %v1473 = vpop.xlane.xlu0 %1472
      %v1474 = vsel %vm1440, %v1259, -inf
      %1475 = vmax.xlane.f32.xlu0 %v1474
      %v1476 = vpop.xlane.xlu0 %1475
      %v1477 = vsel %vm1440, %v1343, -inf
      %1478 = vmax.xlane.f32.xlu0 %v1477
      %v1479 = vpop.xlane.xlu0 %1478
      %v1480 = vsel %vm1440, %v1348, -inf
      %1481 = vmax.xlane.f32.xlu0 %v1480
      %v1482 = vpop.xlane.xlu0 %1481
      %v1483 = vsel %vm1440, %v1432, -inf
      %1484 = vmax.xlane.f32.xlu0 %v1483
      %v1485 = vpop.xlane.xlu0 %1484
      %v1486 = vsel %vm1440, %v1437, -inf
      %1487 = vmax.xlane.f32.xlu0 %v1486
      %v1488 = vpop.xlane.xlu0 %1487
      %v1489 = vsub.f32 %v809, %v1443
      %v1490 = vsub.f32 %v814, %v1446
      %v1491 = vsub.f32 %v898, %v1449
      %v1492 = vsub.f32 %v903, %v1452
      %v1493 = vsub.f32 %v987, %v1455
      %v1494 = vsub.f32 %v992, %v1458
      %v1495 = vsub.f32 %v1076, %v1461
      %v1496 = vsub.f32 %v1081, %v1464
      %v1497 = vsub.f32 %v1165, %v1467
      %v1498 = vsub.f32 %v1170, %v1470
      %v1499 = vsub.f32 %v1254, %v1473
      %v1500 = vsub.f32 %v1259, %v1476
      %v1501 = vsub.f32 %v1343, %v1479
      %v1502 = vsub.f32 %v1348, %v1482
      %v1503 = vsub.f32 %v1432, %v1485
      %v1504 = vsub.f32 %v1437, %v1488
      %v1505 = vmul.f32 %v1489, 1.442695
      %v1506 = vpow.pop %v1505
      %v1507 = vmul.f32 %v1490, 1.442695
      %v1508 = vpow.pop %v1507
      %v1509 = vmul.f32 %v1491, 1.442695
      %v1510 = vpow.pop %v1509
      %v1511 = vmul.f32 %v1492, 1.442695
      %v1512 = vpow.pop %v1511
      %v1513 = vmul.f32 %v1493, 1.442695
      %v1514 = vpow.pop %v1513
      %v1515 = vmul.f32 %v1494, 1.442695
      %v1516 = vpow.pop %v1515
      %v1517 = vmul.f32 %v1495, 1.442695
      %v1518 = vpow.pop %v1517
      %v1519 = vmul.f32 %v1496, 1.442695
      %v1520 = vpow.pop %v1519
      %v1521 = vmul.f32 %v1497, 1.442695
      %v1522 = vpow.pop %v1521
      %v1523 = vmul.f32 %v1498, 1.442695
      %v1524 = vpow.pop %v1523
      %v1525 = vmul.f32 %v1499, 1.442695
      %v1526 = vpow.pop %v1525
      %v1527 = vmul.f32 %v1500, 1.442695
      %v1528 = vpow.pop %v1527
      %v1529 = vmul.f32 %v1501, 1.442695
      %v1530 = vpow.pop %v1529
      %v1531 = vmul.f32 %v1502, 1.442695
      %v1532 = vpow.pop %v1531
      %v1533 = vmul.f32 %v1503, 1.442695
      %v1534 = vpow.pop %v1533
      %v1535 = vmul.f32 %v1504, 1.442695
      %v1536 = vpow.pop %v1535
      %v1537 = vsel %vm1440, %v1506, 0.0
      %1538 = vadd.xlane.f32.xlu0 %v1537
      %v1539 = vpop.xlane.xlu0 %1538
      %v1540 = vsel %vm1440, %v1508, 0.0
      %1541 = vadd.xlane.f32.xlu0 %v1540
      %v1542 = vpop.xlane.xlu0 %1541
      %v1543 = vsel %vm1440, %v1510, 0.0
      %1544 = vadd.xlane.f32.xlu0 %v1543
      %v1545 = vpop.xlane.xlu0 %1544
      %v1546 = vsel %vm1440, %v1512, 0.0
      %1547 = vadd.xlane.f32.xlu0 %v1546
      %v1548 = vpop.xlane.xlu0 %1547
      %v1549 = vsel %vm1440, %v1514, 0.0
      %1550 = vadd.xlane.f32.xlu0 %v1549
      %v1551 = vpop.xlane.xlu0 %1550
      %v1552 = vsel %vm1440, %v1516, 0.0
      %1553 = vadd.xlane.f32.xlu0 %v1552
      %v1554 = vpop.xlane.xlu0 %1553
      %v1555 = vsel %vm1440, %v1518, 0.0
      %1556 = vadd.xlane.f32.xlu0 %v1555
      %v1557 = vpop.xlane.xlu0 %1556
      %v1558 = vsel %vm1440, %v1520, 0.0
      %1559 = vadd.xlane.f32.xlu0 %v1558
      %v1560 = vpop.xlane.xlu0 %1559
      %v1561 = vsel %vm1440, %v1522, 0.0
      %1562 = vadd.xlane.f32.xlu0 %v1561
      %v1563 = vpop.xlane.xlu0 %1562
      %v1564 = vsel %vm1440, %v1524, 0.0
      %1565 = vadd.xlane.f32.xlu0 %v1564
      %v1566 = vpop.xlane.xlu0 %1565
      %v1567 = vsel %vm1440, %v1526, 0.0
      %1568 = vadd.xlane.f32.xlu0 %v1567
      %v1569 = vpop.xlane.xlu0 %1568
      %v1570 = vsel %vm1440, %v1528, 0.0
      %1571 = vadd.xlane.f32.xlu0 %v1570
      %v1572 = vpop.xlane.xlu0 %1571
      %v1573 = vsel %vm1440, %v1530, 0.0
      %1574 = vadd.xlane.f32.xlu0 %v1573
      %v1575 = vpop.xlane.xlu0 %1574
      %v1576 = vsel %vm1440, %v1532, 0.0
      %1577 = vadd.xlane.f32.xlu0 %v1576
      %v1578 = vpop.xlane.xlu0 %1577
      %v1579 = vsel %vm1440, %v1534, 0.0
      %1580 = vadd.xlane.f32.xlu0 %v1579
      %v1581 = vpop.xlane.xlu0 %1580
      %v1582 = vsel %vm1440, %v1536, 0.0
      %1583 = vadd.xlane.f32.xlu0 %v1582
      %v1584 = vpop.xlane.xlu0 %1583
      %v1585 = vrcp.pop %v1539
      %v1586 = vrcp.pop %v1542
      %v1587 = vrcp.pop %v1545
      %v1588 = vrcp.pop %v1548
      %v1589 = vrcp.pop %v1551
      %v1590 = vrcp.pop %v1554
      %v1591 = vrcp.pop %v1557
      %v1592 = vrcp.pop %v1560
      %v1593 = vrcp.pop %v1563
      %v1594 = vrcp.pop %v1566
      %v1595 = vrcp.pop %v1569
      %v1596 = vrcp.pop %v1572
      %v1597 = vrcp.pop %v1575
      %v1598 = vrcp.pop %v1578
      %v1599 = vrcp.pop %v1581
      %v1600 = vrcp.pop %v1584
      %v1601 = vmul.f32 %v1506, %v1585
      %v1602 = vmul.f32 %v1508, %v1586
      %v1603 = vmul.f32 %v1510, %v1587
      %v1604 = vmul.f32 %v1512, %v1588
      %v1605 = vmul.f32 %v1514, %v1589
      %v1606 = vmul.f32 %v1516, %v1590
      %v1607 = vmul.f32 %v1518, %v1591
      %v1608 = vmul.f32 %v1520, %v1592
      %v1609 = vmul.f32 %v1522, %v1593
      %v1610 = vmul.f32 %v1524, %v1594
      %v1611 = vmul.f32 %v1526, %v1595
      %v1612 = vmul.f32 %v1528, %v1596
      %v1613 = vmul.f32 %v1530, %v1597
      %v1614 = vmul.f32 %v1532, %v1598
      %v1615 = vmul.f32 %v1534, %v1599
      %v1616 = vmul.f32 %v1536, %v1600
      %1617 = vrot.lane.b32.xlu0 %v452, 120
      %v1618 = vpop.permute.xlu0 %1617
      %1619 = vrot.lane.b32.xlu0 %v457, 120
      %v1620 = vpop.permute.xlu0 %1619
      %1621 = vrot.lane.b32.xlu0 %v452, 88
      %v1622 = vpop.permute.xlu0 %1621
      %1623 = vrot.lane.b32.xlu0 %v457, 88
      %v1624 = vpop.permute.xlu0 %1623
      %v1625 = vsel %vm733, %v1618, 0
      %v1627 = vsel %vm733, %v1620, 0
      %v1629 = vsel %vm733, %v1622, 0
      %v1631 = vsel %vm733, %v1624, 0
      %1633 = vmatprep.subr.mxu0 0.0
      %1634 = vmatpush1.xpose.msra.mxu0 %v1629
      %1635 = vmatprep.subr.mxu0 0.0
      %1636 = vmatpush1.xpose.msra.mxu0 %v1631
      %1637 = vmatprep.subr.mxu0 0.0
      %1638 = vmatpush1.xpose.msra.mxu0 0.0
      %1639 = vmatprep.subr.mxu0 0.0
      %1640 = vmatpush1.xpose.msra.mxu0 0.0
      %1641 = vmatprep.subr.mxu0 0.0
      %1642 = vmatpush1.xpose.msra.mxu0 0.0
      %1643 = vmatprep.subr.mxu0 0.0
      %1644 = vmatpush1.xpose.msra.mxu0 0.0
      %1645 = vmatprep.subr.mxu0 0.0
      %1646 = vmatpush1.xpose.msra.mxu0 0.0
      %1647 = vmatprep.subr.mxu0 0.0
      %1648 = vmatpush1.xpose.msra.mxu0 0.0
      %1649 = vmatprep.subr.mxu0 0.0
      %1650 = vmatpush1.xpose.msra.mxu0 0.0
      %1651 = vmatprep.subr.mxu0 0.0
      %1652 = vmatpush1.xpose.msra.mxu0 0.0
      %1653 = vmatprep.subr.mxu0 0.0
      %1654 = vmatpush1.xpose.msra.mxu0 0.0
      %1655 = vmatprep.subr.mxu0 0.0
      %1656 = vmatpush1.xpose.msra.mxu0 0.0
      %1657 = vmatprep.subr.mxu0 0.0
      %1658 = vmatpush1.xpose.msra.mxu0 0.0
      %1659 = vmatprep.subr.mxu0 0.0
      %1660 = vmatpush1.xpose.msra.mxu0 0.0
      %1661 = vmatprep.subr.mxu0 0.0
      %1662 = vmatpush1.xpose.msra.mxu0 0.0
      %1663 = vmatprep.subr.mxu0 0.0
      %1664 = vmatpush1.xpose.msra.mxu0 0.0
      %1665 = vmatprep.subr.mxu0 0.0
      %1666 = vmatpush1.xpose.msra.mxu0 0.0
      %1667 = vmatprep.subr.mxu0 0.0
      %1668 = vmatpush1.xpose.msra.mxu0 0.0
      %1669 = vmatprep.subr.mxu0 0.0
      %1670 = vmatpush1.xpose.msra.mxu0 0.0
      %1671 = vmatprep.subr.mxu0 0.0
      %1672 = vmatpush1.xpose.msra.mxu0 0.0
      %1673 = vmatprep.subr.mxu0 0.0
      %1674 = vmatpush1.xpose.msra.mxu0 0.0
      %1675 = vmatprep.subr.mxu0 0.0
      %1676 = vmatpush1.xpose.msra.mxu0 0.0
      %1677 = vmatprep.subr.mxu0 0.0
      %1678 = vmatpush1.xpose.msra.mxu0 0.0
      %1679 = vmatprep.subr.mxu0 0.0
      %1680 = vmatpush1.xpose.msra.mxu0 0.0
      %1681 = vmatprep.subr.mxu0 0.0
      %1682 = vmatpush1.xpose.msra.mxu0 0.0
      %1683 = vmatprep.subr.mxu0 0.0
      %1684 = vmatpush1.xpose.msra.mxu0 0.0
      %1685 = vmatprep.subr.mxu0 0.0
      %1686 = vmatpush1.xpose.msra.mxu0 0.0
      %1687 = vmatprep.subr.mxu0 0.0
      %1688 = vmatpush1.xpose.msra.mxu0 0.0
      %1689 = vmatprep.subr.mxu0 0.0
      %1690 = vmatpush1.xpose.msra.mxu0 0.0
      %1691 = vmatprep.subr.mxu0 0.0
      %1692 = vmatpush1.xpose.msra.mxu0 0.0
      %1693 = vmatprep.subr.mxu0 0.0
      %1694 = vmatpush1.xpose.msra.mxu0 0.0
      %1695 = vmatprep.subr.mxu0 0.0
      %1696 = vmatpush1.xpose.msra.mxu0 0.0
      %1697 = vmatprep.mubr.f32.mxu0 0.0
      %1698 = vmatmul.mubr.f32.gmra.mrb[0].mxu0 %v1625
      %v1699 = vpop.f32.mrb[0].mxu0
      %v1700 = vadd.f32 0.0, %v1699
      %v1701 = vpop.f32.mrb[0].mxu0
      %1702 = vmatprep.mubr.f32.mxu0 0.0
      %1703 = vmatmul.mubr.f32.gmra.mrb[0].mxu0 %v1627
      %v1704 = vpop.f32.mrb[0].mxu0
      %v1705 = vadd.f32 0.0, %v1704
      %v1706 = vpop.f32.mrb[0].mxu0
      %1707 = vdwg.mxu0
      %1708 = vrot.lane.b32.xlu0 %v462, 120
      %v1709 = vpop.permute.xlu0 %1708
      %1710 = vrot.lane.b32.xlu0 %v467, 120
      %v1711 = vpop.permute.xlu0 %1710
      %1712 = vrot.lane.b32.xlu0 %v462, 88
      %v1713 = vpop.permute.xlu0 %1712
      %1714 = vrot.lane.b32.xlu0 %v467, 88
      %v1715 = vpop.permute.xlu0 %1714
      %v1716 = vsel %vm733, %v1709, 0
      %v1718 = vsel %vm733, %v1711, 0
      %v1720 = vsel %vm733, %v1713, 0
      %v1722 = vsel %vm733, %v1715, 0
      %1724 = vmatprep.subr.mxu0 0.0
      %1725 = vmatpush1.xpose.msra.mxu0 %v1720
      %1726 = vmatprep.subr.mxu0 0.0
      %1727 = vmatpush1.xpose.msra.mxu0 %v1722
      %1728 = vmatprep.subr.mxu0 0.0
      %1729 = vmatpush1.xpose.msra.mxu0 0.0
      %1730 = vmatprep.subr.mxu0 0.0
      %1731 = vmatpush1.xpose.msra.mxu0 0.0
      %1732 = vmatprep.subr.mxu0 0.0
      %1733 = vmatpush1.xpose.msra.mxu0 0.0
      %1734 = vmatprep.subr.mxu0 0.0
      %1735 = vmatpush1.xpose.msra.mxu0 0.0
      %1736 = vmatprep.subr.mxu0 0.0
      %1737 = vmatpush1.xpose.msra.mxu0 0.0
      %1738 = vmatprep.subr.mxu0 0.0
      %1739 = vmatpush1.xpose.msra.mxu0 0.0
      %1740 = vmatprep.subr.mxu0 0.0
      %1741 = vmatpush1.xpose.msra.mxu0 0.0
      %1742 = vmatprep.subr.mxu0 0.0
      %1743 = vmatpush1.xpose.msra.mxu0 0.0
      %1744 = vmatprep.subr.mxu0 0.0
      %1745 = vmatpush1.xpose.msra.mxu0 0.0
      %1746 = vmatprep.subr.mxu0 0.0
      %1747 = vmatpush1.xpose.msra.mxu0 0.0
      %1748 = vmatprep.subr.mxu0 0.0
      %1749 = vmatpush1.xpose.msra.mxu0 0.0
      %1750 = vmatprep.subr.mxu0 0.0
      %1751 = vmatpush1.xpose.msra.mxu0 0.0
      %1752 = vmatprep.subr.mxu0 0.0
      %1753 = vmatpush1.xpose.msra.mxu0 0.0
      %1754 = vmatprep.subr.mxu0 0.0
      %1755 = vmatpush1.xpose.msra.mxu0 0.0
      %1756 = vmatprep.subr.mxu0 0.0
      %1757 = vmatpush1.xpose.msra.mxu0 0.0
      %1758 = vmatprep.subr.mxu0 0.0
      %1759 = vmatpush1.xpose.msra.mxu0 0.0
      %1760 = vmatprep.subr.mxu0 0.0
      %1761 = vmatpush1.xpose.msra.mxu0 0.0
      %1762 = vmatprep.subr.mxu0 0.0
      %1763 = vmatpush1.xpose.msra.mxu0 0.0
      %1764 = vmatprep.subr.mxu0 0.0
      %1765 = vmatpush1.xpose.msra.mxu0 0.0
      %1766 = vmatprep.subr.mxu0 0.0
      %1767 = vmatpush1.xpose.msra.mxu0 0.0
      %1768 = vmatprep.subr.mxu0 0.0
      %1769 = vmatpush1.xpose.msra.mxu0 0.0
      %1770 = vmatprep.subr.mxu0 0.0
      %1771 = vmatpush1.xpose.msra.mxu0 0.0
      %1772 = vmatprep.subr.mxu0 0.0
      %1773 = vmatpush1.xpose.msra.mxu0 0.0
      %1774 = vmatprep.subr.mxu0 0.0
      %1775 = vmatpush1.xpose.msra.mxu0 0.0
      %1776 = vmatprep.subr.mxu0 0.0
      %1777 = vmatpush1.xpose.msra.mxu0 0.0
      %1778 = vmatprep.subr.mxu0 0.0
      %1779 = vmatpush1.xpose.msra.mxu0 0.0
      %1780 = vmatprep.subr.mxu0 0.0
      %1781 = vmatpush1.xpose.msra.mxu0 0.0
      %1782 = vmatprep.subr.mxu0 0.0
      %1783 = vmatpush1.xpose.msra.mxu0 0.0
      %1784 = vmatprep.subr.mxu0 0.0
      %1785 = vmatpush1.xpose.msra.mxu0 0.0
      %1786 = vmatprep.subr.mxu0 0.0
      %1787 = vmatpush1.xpose.msra.mxu0 0.0
      %1788 = vmatprep.mubr.f32.mxu0 0.0
      %1789 = vmatmul.mubr.f32.gmra.mrb[0].mxu0 %v1716
      %v1790 = vpop.f32.mrb[0].mxu0
      %v1791 = vadd.f32 0.0, %v1790
      %v1792 = vpop.f32.mrb[0].mxu0
      %1793 = vmatprep.mubr.f32.mxu0 0.0
      %1794 = vmatmul.mubr.f32.gmra.mrb[0].mxu0 %v1718
      %v1795 = vpop.f32.mrb[0].mxu0
      %v1796 = vadd.f32 0.0, %v1795
      %v1797 = vpop.f32.mrb[0].mxu0
      %1798 = vdwg.mxu0
      %1799 = vrot.lane.b32.xlu0 %v472, 120
      %v1800 = vpop.permute.xlu0 %1799
      %1801 = vrot.lane.b32.xlu0 %v477, 120
      %v1802 = vpop.permute.xlu0 %1801
      %1803 = vrot.lane.b32.xlu0 %v472, 88
      %v1804 = vpop.permute.xlu0 %1803
      %1805 = vrot.lane.b32.xlu0 %v477, 88
      %v1806 = vpop.permute.xlu0 %1805
      %v1807 = vsel %vm733, %v1800, 0
      %v1809 = vsel %vm733, %v1802, 0
      %v1811 = vsel %vm733, %v1804, 0
      %v1813 = vsel %vm733, %v1806, 0
      %1815 = vmatprep.subr.mxu0 0.0
      %1816 = vmatpush1.xpose.msra.mxu0 %v1811
      %1817 = vmatprep.subr.mxu0 0.0
      %1818 = vmatpush1.xpose.msra.mxu0 %v1813
      %1819 = vmatprep.subr.mxu0 0.0
      %1820 = vmatpush1.xpose.msra.mxu0 0.0
      %1821 = vmatprep.subr.mxu0 0.0
      %1822 = vmatpush1.xpose.msra.mxu0 0.0
      %1823 = vmatprep.subr.mxu0 0.0
      %1824 = vmatpush1.xpose.msra.mxu0 0.0
      %1825 = vmatprep.subr.mxu0 0.0
      %1826 = vmatpush1.xpose.msra.mxu0 0.0
      %1827 = vmatprep.subr.mxu0 0.0
      %1828 = vmatpush1.xpose.msra.mxu0 0.0
      %1829 = vmatprep.subr.mxu0 0.0
      %1830 = vmatpush1.xpose.msra.mxu0 0.0
      %1831 = vmatprep.subr.mxu0 0.0
      %1832 = vmatpush1.xpose.msra.mxu0 0.0
      %1833 = vmatprep.subr.mxu0 0.0
      %1834 = vmatpush1.xpose.msra.mxu0 0.0
      %1835 = vmatprep.subr.mxu0 0.0
      %1836 = vmatpush1.xpose.msra.mxu0 0.0
      %1837 = vmatprep.subr.mxu0 0.0
      %1838 = vmatpush1.xpose.msra.mxu0 0.0
      %1839 = vmatprep.subr.mxu0 0.0
      %1840 = vmatpush1.xpose.msra.mxu0 0.0
      %1841 = vmatprep.subr.mxu0 0.0
      %1842 = vmatpush1.xpose.msra.mxu0 0.0
      %1843 = vmatprep.subr.mxu0 0.0
      %1844 = vmatpush1.xpose.msra.mxu0 0.0
      %1845 = vmatprep.subr.mxu0 0.0
      %1846 = vmatpush1.xpose.msra.mxu0 0.0
      %1847 = vmatprep.subr.mxu0 0.0
      %1848 = vmatpush1.xpose.msra.mxu0 0.0
      %1849 = vmatprep.subr.mxu0 0.0
      %1850 = vmatpush1.xpose.msra.mxu0 0.0
      %1851 = vmatprep.subr.mxu0 0.0
      %1852 = vmatpush1.xpose.msra.mxu0 0.0
      %1853 = vmatprep.subr.mxu0 0.0
      %1854 = vmatpush1.xpose.msra.mxu0 0.0
      %1855 = vmatprep.subr.mxu0 0.0
      %1856 = vmatpush1.xpose.msra.mxu0 0.0
      %1857 = vmatprep.subr.mxu0 0.0
      %1858 = vmatpush1.xpose.msra.mxu0 0.0
      %1859 = vmatprep.subr.mxu0 0.0
      %1860 = vmatpush1.xpose.msra.mxu0 0.0
      %1861 = vmatprep.subr.mxu0 0.0
      %1862 = vmatpush1.xpose.msra.mxu0 0.0
      %1863 = vmatprep.subr.mxu0 0.0
      %1864 = vmatpush1.xpose.msra.mxu0 0.0
      %1865 = vmatprep.subr.mxu0 0.0
      %1866 = vmatpush1.xpose.msra.mxu0 0.0
      %1867 = vmatprep.subr.mxu0 0.0
      %1868 = vmatpush1.xpose.msra.mxu0 0.0
      %1869 = vmatprep.subr.mxu0 0.0
      %1870 = vmatpush1.xpose.msra.mxu0 0.0
      %1871 = vmatprep.subr.mxu0 0.0
      %1872 = vmatpush1.xpose.msra.mxu0 0.0
      %1873 = vmatprep.subr.mxu0 0.0
      %1874 = vmatpush1.xpose.msra.mxu0 0.0
      %1875 = vmatprep.subr.mxu0 0.0
      %1876 = vmatpush1.xpose.msra.mxu0 0.0
      %1877 = vmatprep.subr.mxu0 0.0
      %1878 = vmatpush1.xpose.msra.mxu0 0.0
      %1879 = vmatprep.mubr.f32.mxu0 0.0
      %1880 = vmatmul.mubr.f32.gmra.mrb[0].mxu0 %v1807
      %v1881 = vpop.f32.mrb[0].mxu0
      %v1882 = vadd.f32 0.0, %v1881
      %v1883 = vpop.f32.mrb[0].mxu0
      %1884 = vmatprep.mubr.f32.mxu0 0.0
      %1885 = vmatmul.mubr.f32.gmra.mrb[0].mxu0 %v1809
      %v1886 = vpop.f32.mrb[0].mxu0
      %v1887 = vadd.f32 0.0, %v1886
      %v1888 = vpop.f32.mrb[0].mxu0
      %1889 = vdwg.mxu0
      %1890 = vrot.lane.b32.xlu0 %v482, 120
      %v1891 = vpop.permute.xlu0 %1890
      %1892 = vrot.lane.b32.xlu0 %v487, 120
      %v1893 = vpop.permute.xlu0 %1892
      %1894 = vrot.lane.b32.xlu0 %v482, 88
      %v1895 = vpop.permute.xlu0 %1894
      %1896 = vrot.lane.b32.xlu0 %v487, 88
      %v1897 = vpop.permute.xlu0 %1896
      %v1898 = vsel %vm733, %v1891, 0
      %v1900 = vsel %vm733, %v1893, 0
      %v1902 = vsel %vm733, %v1895, 0
      %v1904 = vsel %vm733, %v1897, 0
      %1906 = vmatprep.subr.mxu0 0.0
      %1907 = vmatpush1.xpose.msra.mxu0 %v1902
      %1908 = vmatprep.subr.mxu0 0.0
      %1909 = vmatpush1.xpose.msra.mxu0 %v1904
      %1910 = vmatprep.subr.mxu0 0.0
      %1911 = vmatpush1.xpose.msra.mxu0 0.0
      %1912 = vmatprep.subr.mxu0 0.0
      %1913 = vmatpush1.xpose.msra.mxu0 0.0
      %1914 = vmatprep.subr.mxu0 0.0
      %1915 = vmatpush1.xpose.msra.mxu0 0.0
      %1916 = vmatprep.subr.mxu0 0.0
      %1917 = vmatpush1.xpose.msra.mxu0 0.0
      %1918 = vmatprep.subr.mxu0 0.0
      %1919 = vmatpush1.xpose.msra.mxu0 0.0
      %1920 = vmatprep.subr.mxu0 0.0
      %1921 = vmatpush1.xpose.msra.mxu0 0.0
      %1922 = vmatprep.subr.mxu0 0.0
      %1923 = vmatpush1.xpose.msra.mxu0 0.0
      %1924 = vmatprep.subr.mxu0 0.0
      %1925 = vmatpush1.xpose.msra.mxu0 0.0
      %1926 = vmatprep.subr.mxu0 0.0
      %1927 = vmatpush1.xpose.msra.mxu0 0.0
      %1928 = vmatprep.subr.mxu0 0.0
      %1929 = vmatpush1.xpose.msra.mxu0 0.0
      %1930 = vmatprep.subr.mxu0 0.0
      %1931 = vmatpush1.xpose.msra.mxu0 0.0
      %1932 = vmatprep.subr.mxu0 0.0
      %1933 = vmatpush1.xpose.msra.mxu0 0.0
      %1934 = vmatprep.subr.mxu0 0.0
      %1935 = vmatpush1.xpose.msra.mxu0 0.0
      %1936 = vmatprep.subr.mxu0 0.0
      %1937 = vmatpush1.xpose.msra.mxu0 0.0
      %1938 = vmatprep.subr.mxu0 0.0
      %1939 = vmatpush1.xpose.msra.mxu0 0.0
      %1940 = vmatprep.subr.mxu0 0.0
      %1941 = vmatpush1.xpose.msra.mxu0 0.0
      %1942 = vmatprep.subr.mxu0 0.0
      %1943 = vmatpush1.xpose.msra.mxu0 0.0
      %1944 = vmatprep.subr.mxu0 0.0
      %1945 = vmatpush1.xpose.msra.mxu0 0.0
      %1946 = vmatprep.subr.mxu0 0.0
      %1947 = vmatpush1.xpose.msra.mxu0 0.0
      %1948 = vmatprep.subr.mxu0 0.0
      %1949 = vmatpush1.xpose.msra.mxu0 0.0
      %1950 = vmatprep.subr.mxu0 0.0
      %1951 = vmatpush1.xpose.msra.mxu0 0.0
      %1952 = vmatprep.subr.mxu0 0.0
      %1953 = vmatpush1.xpose.msra.mxu0 0.0
      %1954 = vmatprep.subr.mxu0 0.0
      %1955 = vmatpush1.xpose.msra.mxu0 0.0
      %1956 = vmatprep.subr.mxu0 0.0
      %1957 = vmatpush1.xpose.msra.mxu0 0.0
      %1958 = vmatprep.subr.mxu0 0.0
      %1959 = vmatpush1.xpose.msra.mxu0 0.0
      %1960 = vmatprep.subr.mxu0 0.0
      %1961 = vmatpush1.xpose.msra.mxu0 0.0
      %1962 = vmatprep.subr.mxu0 0.0
      %1963 = vmatpush1.xpose.msra.mxu0 0.0
      %1964 = vmatprep.subr.mxu0 0.0
      %1965 = vmatpush1.xpose.msra.mxu0 0.0
      %1966 = vmatprep.subr.mxu0 0.0
      %1967 = vmatpush1.xpose.msra.mxu0 0.0
      %1968 = vmatprep.subr.mxu0 0.0
      %1969 = vmatpush1.xpose.msra.mxu0 0.0
      %1970 = vmatprep.mubr.f32.mxu0 0.0
      %1971 = vmatmul.mubr.f32.gmra.mrb[0].mxu0 %v1898
      %v1972 = vpop.f32.mrb[0].mxu0
      %v1973 = vadd.f32 0.0, %v1972
      %v1974 = vpop.f32.mrb[0].mxu0
      %1975 = vmatprep.mubr.f32.mxu0 0.0
      %1976 = vmatmul.mubr.f32.gmra.mrb[0].mxu0 %v1900
      %v1977 = vpop.f32.mrb[0].mxu0
      %v1978 = vadd.f32 0.0, %v1977
      %v1979 = vpop.f32.mrb[0].mxu0
      %1980 = vdwg.mxu0
      %1981 = vrot.lane.b32.xlu0 %v492, 120
      %v1982 = vpop.permute.xlu0 %1981
      %1983 = vrot.lane.b32.xlu0 %v497, 120
      %v1984 = vpop.permute.xlu0 %1983
      %1985 = vrot.lane.b32.xlu0 %v492, 88
      %v1986 = vpop.permute.xlu0 %1985
      %1987 = vrot.lane.b32.xlu0 %v497, 88
      %v1988 = vpop.permute.xlu0 %1987
      %v1989 = vsel %vm733, %v1982, 0
      %v1991 = vsel %vm733, %v1984, 0
      %v1993 = vsel %vm733, %v1986, 0
      %v1995 = vsel %vm733, %v1988, 0
      %1997 = vmatprep.subr.mxu0 0.0
      %1998 = vmatpush1.xpose.msra.mxu0 %v1993
      %1999 = vmatprep.subr.mxu0 0.0
      %2000 = vmatpush1.xpose.msra.mxu0 %v1995
      %2001 = vmatprep.subr.mxu0 0.0
      %2002 = vmatpush1.xpose.msra.mxu0 0.0
      %2003 = vmatprep.subr.mxu0 0.0
      %2004 = vmatpush1.xpose.msra.mxu0 0.0
      %2005 = vmatprep.subr.mxu0 0.0
      %2006 = vmatpush1.xpose.msra.mxu0 0.0
      %2007 = vmatprep.subr.mxu0 0.0
      %2008 = vmatpush1.xpose.msra.mxu0 0.0
      %2009 = vmatprep.subr.mxu0 0.0
      %2010 = vmatpush1.xpose.msra.mxu0 0.0
      %2011 = vmatprep.subr.mxu0 0.0
      %2012 = vmatpush1.xpose.msra.mxu0 0.0
      %2013 = vmatprep.subr.mxu0 0.0
      %2014 = vmatpush1.xpose.msra.mxu0 0.0
      %2015 = vmatprep.subr.mxu0 0.0
      %2016 = vmatpush1.xpose.msra.mxu0 0.0
      %2017 = vmatprep.subr.mxu0 0.0
      %2018 = vmatpush1.xpose.msra.mxu0 0.0
      %2019 = vmatprep.subr.mxu0 0.0
      %2020 = vmatpush1.xpose.msra.mxu0 0.0
      %2021 = vmatprep.subr.mxu0 0.0
      %2022 = vmatpush1.xpose.msra.mxu0 0.0
      %2023 = vmatprep.subr.mxu0 0.0
      %2024 = vmatpush1.xpose.msra.mxu0 0.0
      %2025 = vmatprep.subr.mxu0 0.0
      %2026 = vmatpush1.xpose.msra.mxu0 0.0
      %2027 = vmatprep.subr.mxu0 0.0
      %2028 = vmatpush1.xpose.msra.mxu0 0.0
      %2029 = vmatprep.subr.mxu0 0.0
      %2030 = vmatpush1.xpose.msra.mxu0 0.0
      %2031 = vmatprep.subr.mxu0 0.0
      %2032 = vmatpush1.xpose.msra.mxu0 0.0
      %2033 = vmatprep.subr.mxu0 0.0
      %2034 = vmatpush1.xpose.msra.mxu0 0.0
      %2035 = vmatprep.subr.mxu0 0.0
      %2036 = vmatpush1.xpose.msra.mxu0 0.0
      %2037 = vmatprep.subr.mxu0 0.0
      %2038 = vmatpush1.xpose.msra.mxu0 0.0
      %2039 = vmatprep.subr.mxu0 0.0
      %2040 = vmatpush1.xpose.msra.mxu0 0.0
      %2041 = vmatprep.subr.mxu0 0.0
      %2042 = vmatpush1.xpose.msra.mxu0 0.0
      %2043 = vmatprep.subr.mxu0 0.0
      %2044 = vmatpush1.xpose.msra.mxu0 0.0
      %2045 = vmatprep.subr.mxu0 0.0
      %2046 = vmatpush1.xpose.msra.mxu0 0.0
      %2047 = vmatprep.subr.mxu0 0.0
      %2048 = vmatpush1.xpose.msra.mxu0 0.0
      %2049 = vmatprep.subr.mxu0 0.0
      %2050 = vmatpush1.xpose.msra.mxu0 0.0
      %2051 = vmatprep.subr.mxu0 0.0
      %2052 = vmatpush1.xpose.msra.mxu0 0.0
      %2053 = vmatprep.subr.mxu0 0.0
      %2054 = vmatpush1.xpose.msra.mxu0 0.0
      %2055 = vmatprep.subr.mxu0 0.0
      %2056 = vmatpush1.xpose.msra.mxu0 0.0
      %2057 = vmatprep.subr.mxu0 0.0
      %2058 = vmatpush1.xpose.msra.mxu0 0.0
      %2059 = vmatprep.subr.mxu0 0.0
      %2060 = vmatpush1.xpose.msra.mxu0 0.0
      %2061 = vmatprep.mubr.f32.mxu0 0.0
      %2062 = vmatmul.mubr.f32.gmra.mrb[0].mxu0 %v1989
      %v2063 = vpop.f32.mrb[0].mxu0
      %v2064 = vadd.f32 0.0, %v2063
      %v2065 = vpop.f32.mrb[0].mxu0
      %2066 = vmatprep.mubr.f32.mxu0 0.0
      %2067 = vmatmul.mubr.f32.gmra.mrb[0].mxu0 %v1991
      %v2068 = vpop.f32.mrb[0].mxu0
      %v2069 = vadd.f32 0.0, %v2068
      %v2070 = vpop.f32.mrb[0].mxu0
      %2071 = vdwg.mxu0
      %2072 = vrot.lane.b32.xlu0 %v502, 120
      %v2073 = vpop.permute.xlu0 %2072
      %2074 = vrot.lane.b32.xlu0 %v507, 120
      %v2075 = vpop.permute.xlu0 %2074
      %2076 = vrot.lane.b32.xlu0 %v502, 88
      %v2077 = vpop.permute.xlu0 %2076
      %2078 = vrot.lane.b32.xlu0 %v507, 88
      %v2079 = vpop.permute.xlu0 %2078
      %v2080 = vsel %vm733, %v2073, 0
      %v2082 = vsel %vm733, %v2075, 0
      %v2084 = vsel %vm733, %v2077, 0
      %v2086 = vsel %vm733, %v2079, 0
      %2088 = vmatprep.subr.mxu0 0.0
      %2089 = vmatpush1.xpose.msra.mxu0 %v2084
      %2090 = vmatprep.subr.mxu0 0.0
      %2091 = vmatpush1.xpose.msra.mxu0 %v2086
      %2092 = vmatprep.subr.mxu0 0.0
      %2093 = vmatpush1.xpose.msra.mxu0 0.0
      %2094 = vmatprep.subr.mxu0 0.0
      %2095 = vmatpush1.xpose.msra.mxu0 0.0
      %2096 = vmatprep.subr.mxu0 0.0
      %2097 = vmatpush1.xpose.msra.mxu0 0.0
      %2098 = vmatprep.subr.mxu0 0.0
      %2099 = vmatpush1.xpose.msra.mxu0 0.0
      %2100 = vmatprep.subr.mxu0 0.0
      %2101 = vmatpush1.xpose.msra.mxu0 0.0
      %2102 = vmatprep.subr.mxu0 0.0
      %2103 = vmatpush1.xpose.msra.mxu0 0.0
      %2104 = vmatprep.subr.mxu0 0.0
      %2105 = vmatpush1.xpose.msra.mxu0 0.0
      %2106 = vmatprep.subr.mxu0 0.0
      %2107 = vmatpush1.xpose.msra.mxu0 0.0
      %2108 = vmatprep.subr.mxu0 0.0
      %2109 = vmatpush1.xpose.msra.mxu0 0.0
      %2110 = vmatprep.subr.mxu0 0.0
      %2111 = vmatpush1.xpose.msra.mxu0 0.0
      %2112 = vmatprep.subr.mxu0 0.0
      %2113 = vmatpush1.xpose.msra.mxu0 0.0
      %2114 = vmatprep.subr.mxu0 0.0
      %2115 = vmatpush1.xpose.msra.mxu0 0.0
      %2116 = vmatprep.subr.mxu0 0.0
      %2117 = vmatpush1.xpose.msra.mxu0 0.0
      %2118 = vmatprep.subr.mxu0 0.0
      %2119 = vmatpush1.xpose.msra.mxu0 0.0
      %2120 = vmatprep.subr.mxu0 0.0
      %2121 = vmatpush1.xpose.msra.mxu0 0.0
      %2122 = vmatprep.subr.mxu0 0.0
      %2123 = vmatpush1.xpose.msra.mxu0 0.0
      %2124 = vmatprep.subr.mxu0 0.0
      %2125 = vmatpush1.xpose.msra.mxu0 0.0
      %2126 = vmatprep.subr.mxu0 0.0
      %2127 = vmatpush1.xpose.msra.mxu0 0.0
      %2128 = vmatprep.subr.mxu0 0.0
      %2129 = vmatpush1.xpose.msra.mxu0 0.0
      %2130 = vmatprep.subr.mxu0 0.0
      %2131 = vmatpush1.xpose.msra.mxu0 0.0
      %2132 = vmatprep.subr.mxu0 0.0
      %2133 = vmatpush1.xpose.msra.mxu0 0.0
      %2134 = vmatprep.subr.mxu0 0.0
      %2135 = vmatpush1.xpose.msra.mxu0 0.0
      %2136 = vmatprep.subr.mxu0 0.0
      %2137 = vmatpush1.xpose.msra.mxu0 0.0
      %2138 = vmatprep.subr.mxu0 0.0
      %2139 = vmatpush1.xpose.msra.mxu0 0.0
      %2140 = vmatprep.subr.mxu0 0.0
      %2141 = vmatpush1.xpose.msra.mxu0 0.0
      %2142 = vmatprep.subr.mxu0 0.0
      %2143 = vmatpush1.xpose.msra.mxu0 0.0
      %2144 = vmatprep.subr.mxu0 0.0
      %2145 = vmatpush1.xpose.msra.mxu0 0.0
      %2146 = vmatprep.subr.mxu0 0.0
      %2147 = vmatpush1.xpose.msra.mxu0 0.0
      %2148 = vmatprep.subr.mxu0 0.0
      %2149 = vmatpush1.xpose.msra.mxu0 0.0
      %2150 = vmatprep.subr.mxu0 0.0
      %2151 = vmatpush1.xpose.msra.mxu0 0.0
      %2152 = vmatprep.mubr.f32.mxu0 0.0
      %2153 = vmatmul.mubr.f32.gmra.mrb[0].mxu0 %v2080
      %v2154 = vpop.f32.mrb[0].mxu0
      %v2155 = vadd.f32 0.0, %v2154
      %v2156 = vpop.f32.mrb[0].mxu0
      %2157 = vmatprep.mubr.f32.mxu0 0.0
      %2158 = vmatmul.mubr.f32.gmra.mrb[0].mxu0 %v2082
      %v2159 = vpop.f32.mrb[0].mxu0
      %v2160 = vadd.f32 0.0, %v2159
      %v2161 = vpop.f32.mrb[0].mxu0
      %2162 = vdwg.mxu0
      %2163 = vrot.lane.b32.xlu0 %v512, 120
      %v2164 = vpop.permute.xlu0 %2163
      %2165 = vrot.lane.b32.xlu0 %v517, 120
      %v2166 = vpop.permute.xlu0 %2165
      %2167 = vrot.lane.b32.xlu0 %v512, 88
      %v2168 = vpop.permute.xlu0 %2167
      %2169 = vrot.lane.b32.xlu0 %v517, 88
      %v2170 = vpop.permute.xlu0 %2169
      %v2171 = vsel %vm733, %v2164, 0
      %v2173 = vsel %vm733, %v2166, 0
      %v2175 = vsel %vm733, %v2168, 0
      %v2177 = vsel %vm733, %v2170, 0
      %2179 = vmatprep.subr.mxu0 0.0
      %2180 = vmatpush1.xpose.msra.mxu0 %v2175
      %2181 = vmatprep.subr.mxu0 0.0
      %2182 = vmatpush1.xpose.msra.mxu0 %v2177
      %2183 = vmatprep.subr.mxu0 0.0
      %2184 = vmatpush1.xpose.msra.mxu0 0.0
      %2185 = vmatprep.subr.mxu0 0.0
      %2186 = vmatpush1.xpose.msra.mxu0 0.0
      %2187 = vmatprep.subr.mxu0 0.0
      %2188 = vmatpush1.xpose.msra.mxu0 0.0
      %2189 = vmatprep.subr.mxu0 0.0
      %2190 = vmatpush1.xpose.msra.mxu0 0.0
      %2191 = vmatprep.subr.mxu0 0.0
      %2192 = vmatpush1.xpose.msra.mxu0 0.0
      %2193 = vmatprep.subr.mxu0 0.0
      %2194 = vmatpush1.xpose.msra.mxu0 0.0
      %2195 = vmatprep.subr.mxu0 0.0
      %2196 = vmatpush1.xpose.msra.mxu0 0.0
      %2197 = vmatprep.subr.mxu0 0.0
      %2198 = vmatpush1.xpose.msra.mxu0 0.0
      %2199 = vmatprep.subr.mxu0 0.0
      %2200 = vmatpush1.xpose.msra.mxu0 0.0
      %2201 = vmatprep.subr.mxu0 0.0
      %2202 = vmatpush1.xpose.msra.mxu0 0.0
      %2203 = vmatprep.subr.mxu0 0.0
      %2204 = vmatpush1.xpose.msra.mxu0 0.0
      %2205 = vmatprep.subr.mxu0 0.0
      %2206 = vmatpush1.xpose.msra.mxu0 0.0
      %2207 = vmatprep.subr.mxu0 0.0
      %2208 = vmatpush1.xpose.msra.mxu0 0.0
      %2209 = vmatprep.subr.mxu0 0.0
      %2210 = vmatpush1.xpose.msra.mxu0 0.0
      %2211 = vmatprep.subr.mxu0 0.0
      %2212 = vmatpush1.xpose.msra.mxu0 0.0
      %2213 = vmatprep.subr.mxu0 0.0
      %2214 = vmatpush1.xpose.msra.mxu0 0.0
      %2215 = vmatprep.subr.mxu0 0.0
      %2216 = vmatpush1.xpose.msra.mxu0 0.0
      %2217 = vmatprep.subr.mxu0 0.0
      %2218 = vmatpush1.xpose.msra.mxu0 0.0
      %2219 = vmatprep.subr.mxu0 0.0
      %2220 = vmatpush1.xpose.msra.mxu0 0.0
      %2221 = vmatprep.subr.mxu0 0.0
      %2222 = vmatpush1.xpose.msra.mxu0 0.0
      %2223 = vmatprep.subr.mxu0 0.0
      %2224 = vmatpush1.xpose.msra.mxu0 0.0
      %2225 = vmatprep.subr.mxu0 0.0
      %2226 = vmatpush1.xpose.msra.mxu0 0.0
      %2227 = vmatprep.subr.mxu0 0.0
      %2228 = vmatpush1.xpose.msra.mxu0 0.0
      %2229 = vmatprep.subr.mxu0 0.0
      %2230 = vmatpush1.xpose.msra.mxu0 0.0
      %2231 = vmatprep.subr.mxu0 0.0
      %2232 = vmatpush1.xpose.msra.mxu0 0.0
      %2233 = vmatprep.subr.mxu0 0.0
      %2234 = vmatpush1.xpose.msra.mxu0 0.0
      %2235 = vmatprep.subr.mxu0 0.0
      %2236 = vmatpush1.xpose.msra.mxu0 0.0
      %2237 = vmatprep.subr.mxu0 0.0
      %2238 = vmatpush1.xpose.msra.mxu0 0.0
      %2239 = vmatprep.subr.mxu0 0.0
      %2240 = vmatpush1.xpose.msra.mxu0 0.0
      %2241 = vmatprep.subr.mxu0 0.0
      %2242 = vmatpush1.xpose.msra.mxu0 0.0
      %2243 = vmatprep.mubr.f32.mxu0 0.0
      %2244 = vmatmul.mubr.f32.gmra.mrb[0].mxu0 %v2171
      %v2245 = vpop.f32.mrb[0].mxu0
      %v2246 = vadd.f32 0.0, %v2245
      %v2247 = vpop.f32.mrb[0].mxu0
      %2248 = vmatprep.mubr.f32.mxu0 0.0
      %2249 = vmatmul.mubr.f32.gmra.mrb[0].mxu0 %v2173
      %v2250 = vpop.f32.mrb[0].mxu0
      %v2251 = vadd.f32 0.0, %v2250
      %v2252 = vpop.f32.mrb[0].mxu0
      %2253 = vdwg.mxu0
      %2254 = vrot.lane.b32.xlu0 %v522, 120
      %v2255 = vpop.permute.xlu0 %2254
      %2256 = vrot.lane.b32.xlu0 %v527, 120
      %v2257 = vpop.permute.xlu0 %2256
      %2258 = vrot.lane.b32.xlu0 %v522, 88
      %v2259 = vpop.permute.xlu0 %2258
      %2260 = vrot.lane.b32.xlu0 %v527, 88
      %v2261 = vpop.permute.xlu0 %2260
      %v2262 = vsel %vm733, %v2255, 0
      %v2264 = vsel %vm733, %v2257, 0
      %v2266 = vsel %vm733, %v2259, 0
      %v2268 = vsel %vm733, %v2261, 0
      %2270 = vmatprep.subr.mxu0 0.0
      %2271 = vmatpush1.xpose.msra.mxu0 %v2266
      %2272 = vmatprep.subr.mxu0 0.0
      %2273 = vmatpush1.xpose.msra.mxu0 %v2268
      %2274 = vmatprep.subr.mxu0 0.0
      %2275 = vmatpush1.xpose.msra.mxu0 0.0
      %2276 = vmatprep.subr.mxu0 0.0
      %2277 = vmatpush1.xpose.msra.mxu0 0.0
      %2278 = vmatprep.subr.mxu0 0.0
      %2279 = vmatpush1.xpose.msra.mxu0 0.0
      %2280 = vmatprep.subr.mxu0 0.0
      %2281 = vmatpush1.xpose.msra.mxu0 0.0
      %2282 = vmatprep.subr.mxu0 0.0
      %2283 = vmatpush1.xpose.msra.mxu0 0.0
      %2284 = vmatprep.subr.mxu0 0.0
      %2285 = vmatpush1.xpose.msra.mxu0 0.0
      %2286 = vmatprep.subr.mxu0 0.0
      %2287 = vmatpush1.xpose.msra.mxu0 0.0
      %2288 = vmatprep.subr.mxu0 0.0
      %2289 = vmatpush1.xpose.msra.mxu0 0.0
      %2290 = vmatprep.subr.mxu0 0.0
      %2291 = vmatpush1.xpose.msra.mxu0 0.0
      %2292 = vmatprep.subr.mxu0 0.0
      %2293 = vmatpush1.xpose.msra.mxu0 0.0
      %2294 = vmatprep.subr.mxu0 0.0
      %2295 = vmatpush1.xpose.msra.mxu0 0.0
      %2296 = vmatprep.subr.mxu0 0.0
      %2297 = vmatpush1.xpose.msra.mxu0 0.0
      %2298 = vmatprep.subr.mxu0 0.0
      %2299 = vmatpush1.xpose.msra.mxu0 0.0
      %2300 = vmatprep.subr.mxu0 0.0
      %2301 = vmatpush1.xpose.msra.mxu0 0.0
      %2302 = vmatprep.subr.mxu0 0.0
      %2303 = vmatpush1.xpose.msra.mxu0 0.0
      %2304 = vmatprep.subr.mxu0 0.0
      %2305 = vmatpush1.xpose.msra.mxu0 0.0
      %2306 = vmatprep.subr.mxu0 0.0
      %2307 = vmatpush1.xpose.msra.mxu0 0.0
      %2308 = vmatprep.subr.mxu0 0.0
      %2309 = vmatpush1.xpose.msra.mxu0 0.0
      %2310 = vmatprep.subr.mxu0 0.0
      %2311 = vmatpush1.xpose.msra.mxu0 0.0
      %2312 = vmatprep.subr.mxu0 0.0
      %2313 = vmatpush1.xpose.msra.mxu0 0.0
      %2314 = vmatprep.subr.mxu0 0.0
      %2315 = vmatpush1.xpose.msra.mxu0 0.0
      %2316 = vmatprep.subr.mxu0 0.0
      %2317 = vmatpush1.xpose.msra.mxu0 0.0
      %2318 = vmatprep.subr.mxu0 0.0
      %2319 = vmatpush1.xpose.msra.mxu0 0.0
      %2320 = vmatprep.subr.mxu0 0.0
      %2321 = vmatpush1.xpose.msra.mxu0 0.0
      %2322 = vmatprep.subr.mxu0 0.0
      %2323 = vmatpush1.xpose.msra.mxu0 0.0
      %2324 = vmatprep.subr.mxu0 0.0
      %2325 = vmatpush1.xpose.msra.mxu0 0.0
      %2326 = vmatprep.subr.mxu0 0.0
      %2327 = vmatpush1.xpose.msra.mxu0 0.0
      %2328 = vmatprep.subr.mxu0 0.0
      %2329 = vmatpush1.xpose.msra.mxu0 0.0
      %2330 = vmatprep.subr.mxu0 0.0
      %2331 = vmatpush1.xpose.msra.mxu0 0.0
      %2332 = vmatprep.subr.mxu0 0.0
      %2333 = vmatpush1.xpose.msra.mxu0 0.0
      %2334 = vmatprep.mubr.f32.mxu0 0.0
      %2335 = vmatmul.mubr.f32.gmra.mrb[0].mxu0 %v2262
      %v2336 = vpop.f32.mrb[0].mxu0
      %v2337 = vadd.f32 0.0, %v2336
      %v2338 = vpop.f32.mrb[0].mxu0
      %2339 = vmatprep.mubr.f32.mxu0 0.0
      %2340 = vmatmul.mubr.f32.gmra.mrb[0].mxu0 %v2264
      %v2341 = vpop.f32.mrb[0].mxu0
      %v2342 = vadd.f32 0.0, %v2341
      %v2343 = vpop.f32.mrb[0].mxu0
      %2344 = vdwg.mxu0
      %v2345 = vsel %vm1440, %v1700, -inf
      %2346 = vmax.xlane.f32.xlu0 %v2345
      %v2347 = vpop.xlane.xlu0 %2346
      %v2348 = vsel %vm1440, %v1705, -inf
      %2349 = vmax.xlane.f32.xlu0 %v2348
      %v2350 = vpop.xlane.xlu0 %2349
      %v2351 = vsel %vm1440, %v1791, -inf
      %2352 = vmax.xlane.f32.xlu0 %v2351
      %v2353 = vpop.xlane.xlu0 %2352
      %v2354 = vsel %vm1440, %v1796, -inf
      %2355 = vmax.xlane.f32.xlu0 %v2354
      %v2356 = vpop.xlane.xlu0 %2355
      %v2357 = vsel %vm1440, %v1882, -inf
      %2358 = vmax.xlane.f32.xlu0 %v2357
      %v2359 = vpop.xlane.xlu0 %2358
      %v2360 = vsel %vm1440, %v1887, -inf
      %2361 = vmax.xlane.f32.xlu0 %v2360
      %v2362 = vpop.xlane.xlu0 %2361
      %v2363 = vsel %vm1440, %v1973, -inf
      %2364 = vmax.xlane.f32.xlu0 %v2363
      %v2365 = vpop.xlane.xlu0 %2364
      %v2366 = vsel %vm1440, %v1978, -inf
      %2367 = vmax.xlane.f32.xlu0 %v2366
      %v2368 = vpop.xlane.xlu0 %2367
      %v2369 = vsel %vm1440, %v2064, -inf
      %2370 = vmax.xlane.f32.xlu0 %v2369
      %v2371 = vpop.xlane.xlu0 %2370
      %v2372 = vsel %vm1440, %v2069, -inf
      %2373 = vmax.xlane.f32.xlu0 %v2372
      %v2374 = vpop.xlane.xlu0 %2373
      %v2375 = vsel %vm1440, %v2155, -inf
      %2376 = vmax.xlane.f32.xlu0 %v2375
      %v2377 = vpop.xlane.xlu0 %2376
      %v2378 = vsel %vm1440, %v2160, -inf
      %2379 = vmax.xlane.f32.xlu0 %v2378
      %v2380 = vpop.xlane.xlu0 %2379
      %v2381 = vsel %vm1440, %v2246, -inf
      %2382 = vmax.xlane.f32.xlu0 %v2381
      %v2383 = vpop.xlane.xlu0 %2382
      %v2384 = vsel %vm1440, %v2251, -inf
      %2385 = vmax.xlane.f32.xlu0 %v2384
      %v2386 = vpop.xlane.xlu0 %2385
      %v2387 = vsel %vm1440, %v2337, -inf
      %2388 = vmax.xlane.f32.xlu0 %v2387
      %v2389 = vpop.xlane.xlu0 %2388
      %v2390 = vsel %vm1440, %v2342, -inf
      %2391 = vmax.xlane.f32.xlu0 %v2390
      %v2392 = vpop.xlane.xlu0 %2391
      %v2393 = vsub.f32 %v1700, %v2347
      %v2394 = vsub.f32 %v1705, %v2350
      %v2395 = vsub.f32 %v1791, %v2353
      %v2396 = vsub.f32 %v1796, %v2356
      %v2397 = vsub.f32 %v1882, %v2359
      %v2398 = vsub.f32 %v1887, %v2362
      %v2399 = vsub.f32 %v1973, %v2365
      %v2400 = vsub.f32 %v1978, %v2368
      %v2401 = vsub.f32 %v2064, %v2371
      %v2402 = vsub.f32 %v2069, %v2374
      %v2403 = vsub.f32 %v2155, %v2377
      %v2404 = vsub.f32 %v2160, %v2380
      %v2405 = vsub.f32 %v2246, %v2383
      %v2406 = vsub.f32 %v2251, %v2386
      %v2407 = vsub.f32 %v2337, %v2389
      %v2408 = vsub.f32 %v2342, %v2392
      %v2409 = vmul.f32 %v2393, 1.442695
      %v2410 = vpow.pop %v2409
      %v2411 = vmul.f32 %v2394, 1.442695
      %v2412 = vpow.pop %v2411
      %v2413 = vmul.f32 %v2395, 1.442695
      %v2414 = vpow.pop %v2413
      %v2415 = vmul.f32 %v2396, 1.442695
      %v2416 = vpow.pop %v2415
      %v2417 = vmul.f32 %v2397, 1.442695
      %v2418 = vpow.pop %v2417
      %v2419 = vmul.f32 %v2398, 1.442695
      %v2420 = vpow.pop %v2419
      %v2421 = vmul.f32 %v2399, 1.442695
      %v2422 = vpow.pop %v2421
      %v2423 = vmul.f32 %v2400, 1.442695
      %v2424 = vpow.pop %v2423
      %v2425 = vmul.f32 %v2401, 1.442695
      %v2426 = vpow.pop %v2425
      %v2427 = vmul.f32 %v2402, 1.442695
      %v2428 = vpow.pop %v2427
      %v2429 = vmul.f32 %v2403, 1.442695
      %v2430 = vpow.pop %v2429
      %v2431 = vmul.f32 %v2404, 1.442695
      %v2432 = vpow.pop %v2431
      %v2433 = vmul.f32 %v2405, 1.442695
      %v2434 = vpow.pop %v2433
      %v2435 = vmul.f32 %v2406, 1.442695
      %v2436 = vpow.pop %v2435
      %v2437 = vmul.f32 %v2407, 1.442695
      %v2438 = vpow.pop %v2437
      %v2439 = vmul.f32 %v2408, 1.442695
      %v2440 = vpow.pop %v2439
      %v2441 = vsel %vm1440, %v2410, 0.0
      %2442 = vadd.xlane.f32.xlu0 %v2441
      %v2443 = vpop.xlane.xlu0 %2442
      %v2444 = vsel %vm1440, %v2412, 0.0
      %2445 = vadd.xlane.f32.xlu0 %v2444
      %v2446 = vpop.xlane.xlu0 %2445
      %v2447 = vsel %vm1440, %v2414, 0.0
      %2448 = vadd.xlane.f32.xlu0 %v2447
      %v2449 = vpop.xlane.xlu0 %2448
      %v2450 = vsel %vm1440, %v2416, 0.0
      %2451 = vadd.xlane.f32.xlu0 %v2450
      %v2452 = vpop.xlane.xlu0 %2451
      %v2453 = vsel %vm1440, %v2418, 0.0
      %2454 = vadd.xlane.f32.xlu0 %v2453
      %v2455 = vpop.xlane.xlu0 %2454
      %v2456 = vsel %vm1440, %v2420, 0.0
      %2457 = vadd.xlane.f32.xlu0 %v2456
      %v2458 = vpop.xlane.xlu0 %2457
      %v2459 = vsel %vm1440, %v2422, 0.0
      %2460 = vadd.xlane.f32.xlu0 %v2459
      %v2461 = vpop.xlane.xlu0 %2460
      %v2462 = vsel %vm1440, %v2424, 0.0
      %2463 = vadd.xlane.f32.xlu0 %v2462
      %v2464 = vpop.xlane.xlu0 %2463
      %v2465 = vsel %vm1440, %v2426, 0.0
      %2466 = vadd.xlane.f32.xlu0 %v2465
      %v2467 = vpop.xlane.xlu0 %2466
      %v2468 = vsel %vm1440, %v2428, 0.0
      %2469 = vadd.xlane.f32.xlu0 %v2468
      %v2470 = vpop.xlane.xlu0 %2469
      %v2471 = vsel %vm1440, %v2430, 0.0
      %2472 = vadd.xlane.f32.xlu0 %v2471
      %v2473 = vpop.xlane.xlu0 %2472
      %v2474 = vsel %vm1440, %v2432, 0.0
      %2475 = vadd.xlane.f32.xlu0 %v2474
      %v2476 = vpop.xlane.xlu0 %2475
      %v2477 = vsel %vm1440, %v2434, 0.0
      %2478 = vadd.xlane.f32.xlu0 %v2477
      %v2479 = vpop.xlane.xlu0 %2478
      %v2480 = vsel %vm1440, %v2436, 0.0
      %2481 = vadd.xlane.f32.xlu0 %v2480
      %v2482 = vpop.xlane.xlu0 %2481
      %v2483 = vsel %vm1440, %v2438, 0.0
      %2484 = vadd.xlane.f32.xlu0 %v2483
      %v2485 = vpop.xlane.xlu0 %2484
      %v2486 = vsel %vm1440, %v2440, 0.0
      %2487 = vadd.xlane.f32.xlu0 %v2486
      %v2488 = vpop.xlane.xlu0 %2487
      %v2489 = vrcp.pop %v2443
      %v2490 = vrcp.pop %v2446
      %v2491 = vrcp.pop %v2449
      %v2492 = vrcp.pop %v2452
      %v2493 = vrcp.pop %v2455
      %v2494 = vrcp.pop %v2458
      %v2495 = vrcp.pop %v2461
      %v2496 = vrcp.pop %v2464
      %v2497 = vrcp.pop %v2467
      %v2498 = vrcp.pop %v2470
      %v2499 = vrcp.pop %v2473
      %v2500 = vrcp.pop %v2476
      %v2501 = vrcp.pop %v2479
      %v2502 = vrcp.pop %v2482
      %v2503 = vrcp.pop %v2485
      %v2504 = vrcp.pop %v2488
      %v2505 = vmul.f32 %v2410, %v2489
      %v2506 = vmul.f32 %v2412, %v2490
      %v2507 = vmul.f32 %v2414, %v2491
      %v2508 = vmul.f32 %v2416, %v2492
      %v2509 = vmul.f32 %v2418, %v2493
      %v2510 = vmul.f32 %v2420, %v2494
      %v2511 = vmul.f32 %v2422, %v2495
      %v2512 = vmul.f32 %v2424, %v2496
      %v2513 = vmul.f32 %v2426, %v2497
      %v2514 = vmul.f32 %v2428, %v2498
      %v2515 = vmul.f32 %v2430, %v2499
      %v2516 = vmul.f32 %v2432, %v2500
      %v2517 = vmul.f32 %v2434, %v2501
      %v2518 = vmul.f32 %v2436, %v2502
      %v2519 = vmul.f32 %v2438, %v2503
      %v2520 = vmul.f32 %v2440, %v2504
      %2523 = vrot.lane.b32.xlu0 %v649, 96
      %v2524 = vpop.permute.xlu0 %2523
      %2525 = vrot.lane.b32.xlu0 %v654, 96
      %v2526 = vpop.permute.xlu0 %2525
      %v2530 = vsel %vm1440, %v2505, 0
      %v2533 = vsel %vm1440, %v2506, 0
      %2535 = vmatprep.subr.mxu0 0.0
      %2536 = vmatpush1.msra.mxu0 %v2524
      %2537 = vmatprep.subr.mxu0 0.0
      %2538 = vmatpush1.msra.mxu0 %v2526
      %2539 = vmatprep.subr.mxu0 0.0
      %2540 = vmatpush1.msra.mxu0 0.0
      %2541 = vmatprep.subr.mxu0 0.0
      %2542 = vmatpush1.msra.mxu0 0.0
      %2543 = vmatprep.subr.mxu0 0.0
      %2544 = vmatpush1.msra.mxu0 0.0
      %2545 = vmatprep.subr.mxu0 0.0
      %2546 = vmatpush1.msra.mxu0 0.0
      %2547 = vmatprep.subr.mxu0 0.0
      %2548 = vmatpush1.msra.mxu0 0.0
      %2549 = vmatprep.subr.mxu0 0.0
      %2550 = vmatpush1.msra.mxu0 0.0
      %2551 = vmatprep.subr.mxu0 0.0
      %2552 = vmatpush1.msra.mxu0 0.0
      %2553 = vmatprep.subr.mxu0 0.0
      %2554 = vmatpush1.msra.mxu0 0.0
      %2555 = vmatprep.subr.mxu0 0.0
      %2556 = vmatpush1.msra.mxu0 0.0
      %2557 = vmatprep.subr.mxu0 0.0
      %2558 = vmatpush1.msra.mxu0 0.0
      %2559 = vmatprep.subr.mxu0 0.0
      %2560 = vmatpush1.msra.mxu0 0.0
      %2561 = vmatprep.subr.mxu0 0.0
      %2562 = vmatpush1.msra.mxu0 0.0
      %2563 = vmatprep.subr.mxu0 0.0
      %2564 = vmatpush1.msra.mxu0 0.0
      %2565 = vmatprep.subr.mxu0 0.0
      %2566 = vmatpush1.msra.mxu0 0.0
      %2567 = vmatprep.subr.mxu0 0.0
      %2568 = vmatpush1.msra.mxu0 0.0
      %2569 = vmatprep.subr.mxu0 0.0
      %2570 = vmatpush1.msra.mxu0 0.0
      %2571 = vmatprep.subr.mxu0 0.0
      %2572 = vmatpush1.msra.mxu0 0.0
      %2573 = vmatprep.subr.mxu0 0.0
      %2574 = vmatpush1.msra.mxu0 0.0
      %2575 = vmatprep.subr.mxu0 0.0
      %2576 = vmatpush1.msra.mxu0 0.0
      %2577 = vmatprep.subr.mxu0 0.0
      %2578 = vmatpush1.msra.mxu0 0.0
      %2579 = vmatprep.subr.mxu0 0.0
      %2580 = vmatpush1.msra.mxu0 0.0
      %2581 = vmatprep.subr.mxu0 0.0
      %2582 = vmatpush1.msra.mxu0 0.0
      %2583 = vmatprep.subr.mxu0 0.0
      %2584 = vmatpush1.msra.mxu0 0.0
      %2585 = vmatprep.subr.mxu0 0.0
      %2586 = vmatpush1.msra.mxu0 0.0
      %2587 = vmatprep.subr.mxu0 0.0
      %2588 = vmatpush1.msra.mxu0 0.0
      %2589 = vmatprep.subr.mxu0 0.0
      %2590 = vmatpush1.msra.mxu0 0.0
      %2591 = vmatprep.subr.mxu0 0.0
      %2592 = vmatpush1.msra.mxu0 0.0
      %2593 = vmatprep.subr.mxu0 0.0
      %2594 = vmatpush1.msra.mxu0 0.0
      %2595 = vmatprep.subr.mxu0 0.0
      %2596 = vmatpush1.msra.mxu0 0.0
      %2597 = vmatprep.subr.mxu0 0.0
      %2598 = vmatpush1.msra.mxu0 0.0
      %2599 = vmatprep.mubr.f32.mxu0 0.0
      %2600 = vmatmul.mubr.f32.gmra.mrb[0].mxu0 %v2530
      %v2601 = vpop.f32.mrb[0].mxu0
      %v2602 = vadd.f32 0.0, %v2601
      %v2603 = vpop.f32.mrb[0].mxu0
      %2604 = vmatprep.mubr.f32.mxu0 0.0
      %2605 = vmatmul.mubr.f32.gmra.mrb[0].mxu0 %v2533
      %v2606 = vpop.f32.mrb[0].mxu0
      %v2607 = vadd.f32 0.0, %v2606
      %v2608 = vpop.f32.mrb[0].mxu0
      %2609 = vdwg.mxu0
      %2612 = vrot.lane.b32.xlu0 %v659, 96
      %v2613 = vpop.permute.xlu0 %2612
      %2614 = vrot.lane.b32.xlu0 %v664, 96
      %v2615 = vpop.permute.xlu0 %2614
      %v2619 = vsel %vm1440, %v2507, 0
      %v2622 = vsel %vm1440, %v2508, 0
      %2624 = vmatprep.subr.mxu0 0.0
      %2625 = vmatpush1.msra.mxu0 %v2613
      %2626 = vmatprep.subr.mxu0 0.0
      %2627 = vmatpush1.msra.mxu0 %v2615
      %2628 = vmatprep.subr.mxu0 0.0
      %2629 = vmatpush1.msra.mxu0 0.0
      %2630 = vmatprep.subr.mxu0 0.0
      %2631 = vmatpush1.msra.mxu0 0.0
      %2632 = vmatprep.subr.mxu0 0.0
      %2633 = vmatpush1.msra.mxu0 0.0
      %2634 = vmatprep.subr.mxu0 0.0
      %2635 = vmatpush1.msra.mxu0 0.0
      %2636 = vmatprep.subr.mxu0 0.0
      %2637 = vmatpush1.msra.mxu0 0.0
      %2638 = vmatprep.subr.mxu0 0.0
      %2639 = vmatpush1.msra.mxu0 0.0
      %2640 = vmatprep.subr.mxu0 0.0
      %2641 = vmatpush1.msra.mxu0 0.0
      %2642 = vmatprep.subr.mxu0 0.0
      %2643 = vmatpush1.msra.mxu0 0.0
      %2644 = vmatprep.subr.mxu0 0.0
      %2645 = vmatpush1.msra.mxu0 0.0
      %2646 = vmatprep.subr.mxu0 0.0
      %2647 = vmatpush1.msra.mxu0 0.0
      %2648 = vmatprep.subr.mxu0 0.0
      %2649 = vmatpush1.msra.mxu0 0.0
      %2650 = vmatprep.subr.mxu0 0.0
      %2651 = vmatpush1.msra.mxu0 0.0
      %2652 = vmatprep.subr.mxu0 0.0
      %2653 = vmatpush1.msra.mxu0 0.0
      %2654 = vmatprep.subr.mxu0 0.0
      %2655 = vmatpush1.msra.mxu0 0.0
      %2656 = vmatprep.subr.mxu0 0.0
      %2657 = vmatpush1.msra.mxu0 0.0
      %2658 = vmatprep.subr.mxu0 0.0
      %2659 = vmatpush1.msra.mxu0 0.0
      %2660 = vmatprep.subr.mxu0 0.0
      %2661 = vmatpush1.msra.mxu0 0.0
      %2662 = vmatprep.subr.mxu0 0.0
      %2663 = vmatpush1.msra.mxu0 0.0
      %2664 = vmatprep.subr.mxu0 0.0
      %2665 = vmatpush1.msra.mxu0 0.0
      %2666 = vmatprep.subr.mxu0 0.0
      %2667 = vmatpush1.msra.mxu0 0.0
      %2668 = vmatprep.subr.mxu0 0.0
      %2669 = vmatpush1.msra.mxu0 0.0
      %2670 = vmatprep.subr.mxu0 0.0
      %2671 = vmatpush1.msra.mxu0 0.0
      %2672 = vmatprep.subr.mxu0 0.0
      %2673 = vmatpush1.msra.mxu0 0.0
      %2674 = vmatprep.subr.mxu0 0.0
      %2675 = vmatpush1.msra.mxu0 0.0
      %2676 = vmatprep.subr.mxu0 0.0
      %2677 = vmatpush1.msra.mxu0 0.0
      %2678 = vmatprep.subr.mxu0 0.0
      %2679 = vmatpush1.msra.mxu0 0.0
      %2680 = vmatprep.subr.mxu0 0.0
      %2681 = vmatpush1.msra.mxu0 0.0
      %2682 = vmatprep.subr.mxu0 0.0
      %2683 = vmatpush1.msra.mxu0 0.0
      %2684 = vmatprep.subr.mxu0 0.0
      %2685 = vmatpush1.msra.mxu0 0.0
      %2686 = vmatprep.subr.mxu0 0.0
      %2687 = vmatpush1.msra.mxu0 0.0
      %2688 = vmatprep.mubr.f32.mxu0 0.0
      %2689 = vmatmul.mubr.f32.gmra.mrb[0].mxu0 %v2619
      %v2690 = vpop.f32.mrb[0].mxu0
      %v2691 = vadd.f32 0.0, %v2690
      %v2692 = vpop.f32.mrb[0].mxu0
      %2693 = vmatprep.mubr.f32.mxu0 0.0
      %2694 = vmatmul.mubr.f32.gmra.mrb[0].mxu0 %v2622
      %v2695 = vpop.f32.mrb[0].mxu0
      %v2696 = vadd.f32 0.0, %v2695
      %v2697 = vpop.f32.mrb[0].mxu0
      %2698 = vdwg.mxu0
      %2701 = vrot.lane.b32.xlu0 %v669, 96
      %v2702 = vpop.permute.xlu0 %2701
      %2703 = vrot.lane.b32.xlu0 %v674, 96
      %v2704 = vpop.permute.xlu0 %2703
      %v2708 = vsel %vm1440, %v2509, 0
      %v2711 = vsel %vm1440, %v2510, 0
      %2713 = vmatprep.subr.mxu0 0.0
      %2714 = vmatpush1.msra.mxu0 %v2702
      %2715 = vmatprep.subr.mxu0 0.0
      %2716 = vmatpush1.msra.mxu0 %v2704
      %2717 = vmatprep.subr.mxu0 0.0
      %2718 = vmatpush1.msra.mxu0 0.0
      %2719 = vmatprep.subr.mxu0 0.0
      %2720 = vmatpush1.msra.mxu0 0.0
      %2721 = vmatprep.subr.mxu0 0.0
      %2722 = vmatpush1.msra.mxu0 0.0
      %2723 = vmatprep.subr.mxu0 0.0
      %2724 = vmatpush1.msra.mxu0 0.0
      %2725 = vmatprep.subr.mxu0 0.0
      %2726 = vmatpush1.msra.mxu0 0.0
      %2727 = vmatprep.subr.mxu0 0.0
      %2728 = vmatpush1.msra.mxu0 0.0
      %2729 = vmatprep.subr.mxu0 0.0
      %2730 = vmatpush1.msra.mxu0 0.0
      %2731 = vmatprep.subr.mxu0 0.0
      %2732 = vmatpush1.msra.mxu0 0.0
      %2733 = vmatprep.subr.mxu0 0.0
      %2734 = vmatpush1.msra.mxu0 0.0
      %2735 = vmatprep.subr.mxu0 0.0
      %2736 = vmatpush1.msra.mxu0 0.0
      %2737 = vmatprep.subr.mxu0 0.0
      %2738 = vmatpush1.msra.mxu0 0.0
      %2739 = vmatprep.subr.mxu0 0.0
      %2740 = vmatpush1.msra.mxu0 0.0
      %2741 = vmatprep.subr.mxu0 0.0
      %2742 = vmatpush1.msra.mxu0 0.0
      %2743 = vmatprep.subr.mxu0 0.0
      %2744 = vmatpush1.msra.mxu0 0.0
      %2745 = vmatprep.subr.mxu0 0.0
      %2746 = vmatpush1.msra.mxu0 0.0
      %2747 = vmatprep.subr.mxu0 0.0
      %2748 = vmatpush1.msra.mxu0 0.0
      %2749 = vmatprep.subr.mxu0 0.0
      %2750 = vmatpush1.msra.mxu0 0.0
      %2751 = vmatprep.subr.mxu0 0.0
      %2752 = vmatpush1.msra.mxu0 0.0
      %2753 = vmatprep.subr.mxu0 0.0
      %2754 = vmatpush1.msra.mxu0 0.0
      %2755 = vmatprep.subr.mxu0 0.0
      %2756 = vmatpush1.msra.mxu0 0.0
      %2757 = vmatprep.subr.mxu0 0.0
      %2758 = vmatpush1.msra.mxu0 0.0
      %2759 = vmatprep.subr.mxu0 0.0
      %2760 = vmatpush1.msra.mxu0 0.0
      %2761 = vmatprep.subr.mxu0 0.0
      %2762 = vmatpush1.msra.mxu0 0.0
      %2763 = vmatprep.subr.mxu0 0.0
      %2764 = vmatpush1.msra.mxu0 0.0
      %2765 = vmatprep.subr.mxu0 0.0
      %2766 = vmatpush1.msra.mxu0 0.0
      %2767 = vmatprep.subr.mxu0 0.0
      %2768 = vmatpush1.msra.mxu0 0.0
      %2769 = vmatprep.subr.mxu0 0.0
      %2770 = vmatpush1.msra.mxu0 0.0
      %2771 = vmatprep.subr.mxu0 0.0
      %2772 = vmatpush1.msra.mxu0 0.0
      %2773 = vmatprep.subr.mxu0 0.0
      %2774 = vmatpush1.msra.mxu0 0.0
      %2775 = vmatprep.subr.mxu0 0.0
      %2776 = vmatpush1.msra.mxu0 0.0
      %2777 = vmatprep.mubr.f32.mxu0 0.0
      %2778 = vmatmul.mubr.f32.gmra.mrb[0].mxu0 %v2708
      %v2779 = vpop.f32.mrb[0].mxu0
      %v2780 = vadd.f32 0.0, %v2779
      %v2781 = vpop.f32.mrb[0].mxu0
      %2782 = vmatprep.mubr.f32.mxu0 0.0
      %2783 = vmatmul.mubr.f32.gmra.mrb[0].mxu0 %v2711
      %v2784 = vpop.f32.mrb[0].mxu0
      %v2785 = vadd.f32 0.0, %v2784
      %v2786 = vpop.f32.mrb[0].mxu0
      %2787 = vdwg.mxu0
      %2790 = vrot.lane.b32.xlu0 %v679, 96
      %v2791 = vpop.permute.xlu0 %2790
      %2792 = vrot.lane.b32.xlu0 %v684, 96
      %v2793 = vpop.permute.xlu0 %2792
      %v2797 = vsel %vm1440, %v2511, 0
      %v2800 = vsel %vm1440, %v2512, 0
      %2802 = vmatprep.subr.mxu0 0.0
      %2803 = vmatpush1.msra.mxu0 %v2791
      %2804 = vmatprep.subr.mxu0 0.0
      %2805 = vmatpush1.msra.mxu0 %v2793
      %2806 = vmatprep.subr.mxu0 0.0
      %2807 = vmatpush1.msra.mxu0 0.0
      %2808 = vmatprep.subr.mxu0 0.0
      %2809 = vmatpush1.msra.mxu0 0.0
      %2810 = vmatprep.subr.mxu0 0.0
      %2811 = vmatpush1.msra.mxu0 0.0
      %2812 = vmatprep.subr.mxu0 0.0
      %2813 = vmatpush1.msra.mxu0 0.0
      %2814 = vmatprep.subr.mxu0 0.0
      %2815 = vmatpush1.msra.mxu0 0.0
      %2816 = vmatprep.subr.mxu0 0.0
      %2817 = vmatpush1.msra.mxu0 0.0
      %2818 = vmatprep.subr.mxu0 0.0
      %2819 = vmatpush1.msra.mxu0 0.0
      %2820 = vmatprep.subr.mxu0 0.0
      %2821 = vmatpush1.msra.mxu0 0.0
      %2822 = vmatprep.subr.mxu0 0.0
      %2823 = vmatpush1.msra.mxu0 0.0
      %2824 = vmatprep.subr.mxu0 0.0
      %2825 = vmatpush1.msra.mxu0 0.0
      %2826 = vmatprep.subr.mxu0 0.0
      %2827 = vmatpush1.msra.mxu0 0.0
      %2828 = vmatprep.subr.mxu0 0.0
      %2829 = vmatpush1.msra.mxu0 0.0
      %2830 = vmatprep.subr.mxu0 0.0
      %2831 = vmatpush1.msra.mxu0 0.0
      %2832 = vmatprep.subr.mxu0 0.0
      %2833 = vmatpush1.msra.mxu0 0.0
      %2834 = vmatprep.subr.mxu0 0.0
      %2835 = vmatpush1.msra.mxu0 0.0
      %2836 = vmatprep.subr.mxu0 0.0
      %2837 = vmatpush1.msra.mxu0 0.0
      %2838 = vmatprep.subr.mxu0 0.0
      %2839 = vmatpush1.msra.mxu0 0.0
      %2840 = vmatprep.subr.mxu0 0.0
      %2841 = vmatpush1.msra.mxu0 0.0
      %2842 = vmatprep.subr.mxu0 0.0
      %2843 = vmatpush1.msra.mxu0 0.0
      %2844 = vmatprep.subr.mxu0 0.0
      %2845 = vmatpush1.msra.mxu0 0.0
      %2846 = vmatprep.subr.mxu0 0.0
      %2847 = vmatpush1.msra.mxu0 0.0
      %2848 = vmatprep.subr.mxu0 0.0
      %2849 = vmatpush1.msra.mxu0 0.0
      %2850 = vmatprep.subr.mxu0 0.0
      %2851 = vmatpush1.msra.mxu0 0.0
      %2852 = vmatprep.subr.mxu0 0.0
      %2853 = vmatpush1.msra.mxu0 0.0
      %2854 = vmatprep.subr.mxu0 0.0
      %2855 = vmatpush1.msra.mxu0 0.0
      %2856 = vmatprep.subr.mxu0 0.0
      %2857 = vmatpush1.msra.mxu0 0.0
      %2858 = vmatprep.subr.mxu0 0.0
      %2859 = vmatpush1.msra.mxu0 0.0
      %2860 = vmatprep.subr.mxu0 0.0
      %2861 = vmatpush1.msra.mxu0 0.0
      %2862 = vmatprep.subr.mxu0 0.0
      %2863 = vmatpush1.msra.mxu0 0.0
      %2864 = vmatprep.subr.mxu0 0.0
      %2865 = vmatpush1.msra.mxu0 0.0
      %2866 = vmatprep.mubr.f32.mxu0 0.0
      %2867 = vmatmul.mubr.f32.gmra.mrb[0].mxu0 %v2797
      %v2868 = vpop.f32.mrb[0].mxu0
      %v2869 = vadd.f32 0.0, %v2868
      %v2870 = vpop.f32.mrb[0].mxu0
      %2871 = vmatprep.mubr.f32.mxu0 0.0
      %2872 = vmatmul.mubr.f32.gmra.mrb[0].mxu0 %v2800
      %v2873 = vpop.f32.mrb[0].mxu0
      %v2874 = vadd.f32 0.0, %v2873
      %v2875 = vpop.f32.mrb[0].mxu0
      %2876 = vdwg.mxu0
      %2879 = vrot.lane.b32.xlu0 %v689, 96
      %v2880 = vpop.permute.xlu0 %2879
      %2881 = vrot.lane.b32.xlu0 %v694, 96
      %v2882 = vpop.permute.xlu0 %2881
      %v2886 = vsel %vm1440, %v2513, 0
      %v2889 = vsel %vm1440, %v2514, 0
      %2891 = vmatprep.subr.mxu0 0.0
      %2892 = vmatpush1.msra.mxu0 %v2880
      %2893 = vmatprep.subr.mxu0 0.0
      %2894 = vmatpush1.msra.mxu0 %v2882
      %2895 = vmatprep.subr.mxu0 0.0
      %2896 = vmatpush1.msra.mxu0 0.0
      %2897 = vmatprep.subr.mxu0 0.0
      %2898 = vmatpush1.msra.mxu0 0.0
      %2899 = vmatprep.subr.mxu0 0.0
      %2900 = vmatpush1.msra.mxu0 0.0
      %2901 = vmatprep.subr.mxu0 0.0
      %2902 = vmatpush1.msra.mxu0 0.0
      %2903 = vmatprep.subr.mxu0 0.0
      %2904 = vmatpush1.msra.mxu0 0.0
      %2905 = vmatprep.subr.mxu0 0.0
      %2906 = vmatpush1.msra.mxu0 0.0
      %2907 = vmatprep.subr.mxu0 0.0
      %2908 = vmatpush1.msra.mxu0 0.0
      %2909 = vmatprep.subr.mxu0 0.0
      %2910 = vmatpush1.msra.mxu0 0.0
      %2911 = vmatprep.subr.mxu0 0.0
      %2912 = vmatpush1.msra.mxu0 0.0
      %2913 = vmatprep.subr.mxu0 0.0
      %2914 = vmatpush1.msra.mxu0 0.0
      %2915 = vmatprep.subr.mxu0 0.0
      %2916 = vmatpush1.msra.mxu0 0.0
      %2917 = vmatprep.subr.mxu0 0.0
      %2918 = vmatpush1.msra.mxu0 0.0
      %2919 = vmatprep.subr.mxu0 0.0
      %2920 = vmatpush1.msra.mxu0 0.0
      %2921 = vmatprep.subr.mxu0 0.0
      %2922 = vmatpush1.msra.mxu0 0.0
      %2923 = vmatprep.subr.mxu0 0.0
      %2924 = vmatpush1.msra.mxu0 0.0
      %2925 = vmatprep.subr.mxu0 0.0
      %2926 = vmatpush1.msra.mxu0 0.0
      %2927 = vmatprep.subr.mxu0 0.0
      %2928 = vmatpush1.msra.mxu0 0.0
      %2929 = vmatprep.subr.mxu0 0.0
      %2930 = vmatpush1.msra.mxu0 0.0
      %2931 = vmatprep.subr.mxu0 0.0
      %2932 = vmatpush1.msra.mxu0 0.0
      %2933 = vmatprep.subr.mxu0 0.0
      %2934 = vmatpush1.msra.mxu0 0.0
      %2935 = vmatprep.subr.mxu0 0.0
      %2936 = vmatpush1.msra.mxu0 0.0
      %2937 = vmatprep.subr.mxu0 0.0
      %2938 = vmatpush1.msra.mxu0 0.0
      %2939 = vmatprep.subr.mxu0 0.0
      %2940 = vmatpush1.msra.mxu0 0.0
      %2941 = vmatprep.subr.mxu0 0.0
      %2942 = vmatpush1.msra.mxu0 0.0
      %2943 = vmatprep.subr.mxu0 0.0
      %2944 = vmatpush1.msra.mxu0 0.0
      %2945 = vmatprep.subr.mxu0 0.0
      %2946 = vmatpush1.msra.mxu0 0.0
      %2947 = vmatprep.subr.mxu0 0.0
      %2948 = vmatpush1.msra.mxu0 0.0
      %2949 = vmatprep.subr.mxu0 0.0
      %2950 = vmatpush1.msra.mxu0 0.0
      %2951 = vmatprep.subr.mxu0 0.0
      %2952 = vmatpush1.msra.mxu0 0.0
      %2953 = vmatprep.subr.mxu0 0.0
      %2954 = vmatpush1.msra.mxu0 0.0
      %2955 = vmatprep.mubr.f32.mxu0 0.0
      %2956 = vmatmul.mubr.f32.gmra.mrb[0].mxu0 %v2886
      %v2957 = vpop.f32.mrb[0].mxu0
      %v2958 = vadd.f32 0.0, %v2957
      %v2959 = vpop.f32.mrb[0].mxu0
      %2960 = vmatprep.mubr.f32.mxu0 0.0
      %2961 = vmatmul.mubr.f32.gmra.mrb[0].mxu0 %v2889
      %v2962 = vpop.f32.mrb[0].mxu0
      %v2963 = vadd.f32 0.0, %v2962
      %v2964 = vpop.f32.mrb[0].mxu0
      %2965 = vdwg.mxu0
      %2968 = vrot.lane.b32.xlu0 %v699, 96
      %v2969 = vpop.permute.xlu0 %2968
      %2970 = vrot.lane.b32.xlu0 %v704, 96
      %v2971 = vpop.permute.xlu0 %2970
      %v2975 = vsel %vm1440, %v2515, 0
      %v2978 = vsel %vm1440, %v2516, 0
      %2980 = vmatprep.subr.mxu0 0.0
      %2981 = vmatpush1.msra.mxu0 %v2969
      %2982 = vmatprep.subr.mxu0 0.0
      %2983 = vmatpush1.msra.mxu0 %v2971
      %2984 = vmatprep.subr.mxu0 0.0
      %2985 = vmatpush1.msra.mxu0 0.0
      %2986 = vmatprep.subr.mxu0 0.0
      %2987 = vmatpush1.msra.mxu0 0.0
      %2988 = vmatprep.subr.mxu0 0.0
      %2989 = vmatpush1.msra.mxu0 0.0
      %2990 = vmatprep.subr.mxu0 0.0
      %2991 = vmatpush1.msra.mxu0 0.0
      %2992 = vmatprep.subr.mxu0 0.0
      %2993 = vmatpush1.msra.mxu0 0.0
      %2994 = vmatprep.subr.mxu0 0.0
      %2995 = vmatpush1.msra.mxu0 0.0
      %2996 = vmatprep.subr.mxu0 0.0
      %2997 = vmatpush1.msra.mxu0 0.0
      %2998 = vmatprep.subr.mxu0 0.0
      %2999 = vmatpush1.msra.mxu0 0.0
      %3000 = vmatprep.subr.mxu0 0.0
      %3001 = vmatpush1.msra.mxu0 0.0
      %3002 = vmatprep.subr.mxu0 0.0
      %3003 = vmatpush1.msra.mxu0 0.0
      %3004 = vmatprep.subr.mxu0 0.0
      %3005 = vmatpush1.msra.mxu0 0.0
      %3006 = vmatprep.subr.mxu0 0.0
      %3007 = vmatpush1.msra.mxu0 0.0
      %3008 = vmatprep.subr.mxu0 0.0
      %3009 = vmatpush1.msra.mxu0 0.0
      %3010 = vmatprep.subr.mxu0 0.0
      %3011 = vmatpush1.msra.mxu0 0.0
      %3012 = vmatprep.subr.mxu0 0.0
      %3013 = vmatpush1.msra.mxu0 0.0
      %3014 = vmatprep.subr.mxu0 0.0
      %3015 = vmatpush1.msra.mxu0 0.0
      %3016 = vmatprep.subr.mxu0 0.0
      %3017 = vmatpush1.msra.mxu0 0.0
      %3018 = vmatprep.subr.mxu0 0.0
      %3019 = vmatpush1.msra.mxu0 0.0
      %3020 = vmatprep.subr.mxu0 0.0
      %3021 = vmatpush1.msra.mxu0 0.0
      %3022 = vmatprep.subr.mxu0 0.0
      %3023 = vmatpush1.msra.mxu0 0.0
      %3024 = vmatprep.subr.mxu0 0.0
      %3025 = vmatpush1.msra.mxu0 0.0
      %3026 = vmatprep.subr.mxu0 0.0
      %3027 = vmatpush1.msra.mxu0 0.0
      %3028 = vmatprep.subr.mxu0 0.0
      %3029 = vmatpush1.msra.mxu0 0.0
      %3030 = vmatprep.subr.mxu0 0.0
      %3031 = vmatpush1.msra.mxu0 0.0
      %3032 = vmatprep.subr.mxu0 0.0
      %3033 = vmatpush1.msra.mxu0 0.0
      %3034 = vmatprep.subr.mxu0 0.0
      %3035 = vmatpush1.msra.mxu0 0.0
      %3036 = vmatprep.subr.mxu0 0.0
      %3037 = vmatpush1.msra.mxu0 0.0
      %3038 = vmatprep.subr.mxu0 0.0
      %3039 = vmatpush1.msra.mxu0 0.0
      %3040 = vmatprep.subr.mxu0 0.0
      %3041 = vmatpush1.msra.mxu0 0.0
      %3042 = vmatprep.subr.mxu0 0.0
      %3043 = vmatpush1.msra.mxu0 0.0
      %3044 = vmatprep.mubr.f32.mxu0 0.0
      %3045 = vmatmul.mubr.f32.gmra.mrb[0].mxu0 %v2975
      %v3046 = vpop.f32.mrb[0].mxu0
      %v3047 = vadd.f32 0.0, %v3046
      %v3048 = vpop.f32.mrb[0].mxu0
      %3049 = vmatprep.mubr.f32.mxu0 0.0
      %3050 = vmatmul.mubr.f32.gmra.mrb[0].mxu0 %v2978
      %v3051 = vpop.f32.mrb[0].mxu0
      %v3052 = vadd.f32 0.0, %v3051
      %v3053 = vpop.f32.mrb[0].mxu0
      %3054 = vdwg.mxu0
      %3057 = vrot.lane.b32.xlu0 %v709, 96
      %v3058 = vpop.permute.xlu0 %3057
      %3059 = vrot.lane.b32.xlu0 %v714, 96
      %v3060 = vpop.permute.xlu0 %3059
      %v3064 = vsel %vm1440, %v2517, 0
      %v3067 = vsel %vm1440, %v2518, 0
      %3069 = vmatprep.subr.mxu0 0.0
      %3070 = vmatpush1.msra.mxu0 %v3058
      %3071 = vmatprep.subr.mxu0 0.0
      %3072 = vmatpush1.msra.mxu0 %v3060
      %3073 = vmatprep.subr.mxu0 0.0
      %3074 = vmatpush1.msra.mxu0 0.0
      %3075 = vmatprep.subr.mxu0 0.0
      %3076 = vmatpush1.msra.mxu0 0.0
      %3077 = vmatprep.subr.mxu0 0.0
      %3078 = vmatpush1.msra.mxu0 0.0
      %3079 = vmatprep.subr.mxu0 0.0
      %3080 = vmatpush1.msra.mxu0 0.0
      %3081 = vmatprep.subr.mxu0 0.0
      %3082 = vmatpush1.msra.mxu0 0.0
      %3083 = vmatprep.subr.mxu0 0.0
      %3084 = vmatpush1.msra.mxu0 0.0
      %3085 = vmatprep.subr.mxu0 0.0
      %3086 = vmatpush1.msra.mxu0 0.0
      %3087 = vmatprep.subr.mxu0 0.0
      %3088 = vmatpush1.msra.mxu0 0.0
      %3089 = vmatprep.subr.mxu0 0.0
      %3090 = vmatpush1.msra.mxu0 0.0
      %3091 = vmatprep.subr.mxu0 0.0
      %3092 = vmatpush1.msra.mxu0 0.0
      %3093 = vmatprep.subr.mxu0 0.0
      %3094 = vmatpush1.msra.mxu0 0.0
      %3095 = vmatprep.subr.mxu0 0.0
      %3096 = vmatpush1.msra.mxu0 0.0
      %3097 = vmatprep.subr.mxu0 0.0
      %3098 = vmatpush1.msra.mxu0 0.0
      %3099 = vmatprep.subr.mxu0 0.0
      %3100 = vmatpush1.msra.mxu0 0.0
      %3101 = vmatprep.subr.mxu0 0.0
      %3102 = vmatpush1.msra.mxu0 0.0
      %3103 = vmatprep.subr.mxu0 0.0
      %3104 = vmatpush1.msra.mxu0 0.0
      %3105 = vmatprep.subr.mxu0 0.0
      %3106 = vmatpush1.msra.mxu0 0.0
      %3107 = vmatprep.subr.mxu0 0.0
      %3108 = vmatpush1.msra.mxu0 0.0
      %3109 = vmatprep.subr.mxu0 0.0
      %3110 = vmatpush1.msra.mxu0 0.0
      %3111 = vmatprep.subr.mxu0 0.0
      %3112 = vmatpush1.msra.mxu0 0.0
      %3113 = vmatprep.subr.mxu0 0.0
      %3114 = vmatpush1.msra.mxu0 0.0
      %3115 = vmatprep.subr.mxu0 0.0
      %3116 = vmatpush1.msra.mxu0 0.0
      %3117 = vmatprep.subr.mxu0 0.0
      %3118 = vmatpush1.msra.mxu0 0.0
      %3119 = vmatprep.subr.mxu0 0.0
      %3120 = vmatpush1.msra.mxu0 0.0
      %3121 = vmatprep.subr.mxu0 0.0
      %3122 = vmatpush1.msra.mxu0 0.0
      %3123 = vmatprep.subr.mxu0 0.0
      %3124 = vmatpush1.msra.mxu0 0.0
      %3125 = vmatprep.subr.mxu0 0.0
      %3126 = vmatpush1.msra.mxu0 0.0
      %3127 = vmatprep.subr.mxu0 0.0
      %3128 = vmatpush1.msra.mxu0 0.0
      %3129 = vmatprep.subr.mxu0 0.0
      %3130 = vmatpush1.msra.mxu0 0.0
      %3131 = vmatprep.subr.mxu0 0.0
      %3132 = vmatpush1.msra.mxu0 0.0
      %3133 = vmatprep.mubr.f32.mxu0 0.0
      %3134 = vmatmul.mubr.f32.gmra.mrb[0].mxu0 %v3064
      %v3135 = vpop.f32.mrb[0].mxu0
      %v3136 = vadd.f32 0.0, %v3135
      %v3137 = vpop.f32.mrb[0].mxu0
      %3138 = vmatprep.mubr.f32.mxu0 0.0
      %3139 = vmatmul.mubr.f32.gmra.mrb[0].mxu0 %v3067
      %v3140 = vpop.f32.mrb[0].mxu0
      %v3141 = vadd.f32 0.0, %v3140
      %v3142 = vpop.f32.mrb[0].mxu0
      %3143 = vdwg.mxu0
      %3146 = vrot.lane.b32.xlu0 %v719, 96
      %v3147 = vpop.permute.xlu0 %3146
      %3148 = vrot.lane.b32.xlu0 %v724, 96
      %v3149 = vpop.permute.xlu0 %3148
      %v3153 = vsel %vm1440, %v2519, 0
      %v3156 = vsel %vm1440, %v2520, 0
      %3158 = vmatprep.subr.mxu0 0.0
      %3159 = vmatpush1.msra.mxu0 %v3147
      %3160 = vmatprep.subr.mxu0 0.0
      %3161 = vmatpush1.msra.mxu0 %v3149
      %3162 = vmatprep.subr.mxu0 0.0
      %3163 = vmatpush1.msra.mxu0 0.0
      %3164 = vmatprep.subr.mxu0 0.0
      %3165 = vmatpush1.msra.mxu0 0.0
      %3166 = vmatprep.subr.mxu0 0.0
      %3167 = vmatpush1.msra.mxu0 0.0
      %3168 = vmatprep.subr.mxu0 0.0
      %3169 = vmatpush1.msra.mxu0 0.0
      %3170 = vmatprep.subr.mxu0 0.0
      %3171 = vmatpush1.msra.mxu0 0.0
      %3172 = vmatprep.subr.mxu0 0.0
      %3173 = vmatpush1.msra.mxu0 0.0
      %3174 = vmatprep.subr.mxu0 0.0
      %3175 = vmatpush1.msra.mxu0 0.0
      %3176 = vmatprep.subr.mxu0 0.0
      %3177 = vmatpush1.msra.mxu0 0.0
      %3178 = vmatprep.subr.mxu0 0.0
      %3179 = vmatpush1.msra.mxu0 0.0
      %3180 = vmatprep.subr.mxu0 0.0
      %3181 = vmatpush1.msra.mxu0 0.0
      %3182 = vmatprep.subr.mxu0 0.0
      %3183 = vmatpush1.msra.mxu0 0.0
      %3184 = vmatprep.subr.mxu0 0.0
      %3185 = vmatpush1.msra.mxu0 0.0
      %3186 = vmatprep.subr.mxu0 0.0
      %3187 = vmatpush1.msra.mxu0 0.0
      %3188 = vmatprep.subr.mxu0 0.0
      %3189 = vmatpush1.msra.mxu0 0.0
      %3190 = vmatprep.subr.mxu0 0.0
      %3191 = vmatpush1.msra.mxu0 0.0
      %3192 = vmatprep.subr.mxu0 0.0
      %3193 = vmatpush1.msra.mxu0 0.0
      %3194 = vmatprep.subr.mxu0 0.0
      %3195 = vmatpush1.msra.mxu0 0.0
      %3196 = vmatprep.subr.mxu0 0.0
      %3197 = vmatpush1.msra.mxu0 0.0
      %3198 = vmatprep.subr.mxu0 0.0
      %3199 = vmatpush1.msra.mxu0 0.0
      %3200 = vmatprep.subr.mxu0 0.0
      %3201 = vmatpush1.msra.mxu0 0.0
      %3202 = vmatprep.subr.mxu0 0.0
      %3203 = vmatpush1.msra.mxu0 0.0
      %3204 = vmatprep.subr.mxu0 0.0
      %3205 = vmatpush1.msra.mxu0 0.0
      %3206 = vmatprep.subr.mxu0 0.0
      %3207 = vmatpush1.msra.mxu0 0.0
      %3208 = vmatprep.subr.mxu0 0.0
      %3209 = vmatpush1.msra.mxu0 0.0
      %3210 = vmatprep.subr.mxu0 0.0
      %3211 = vmatpush1.msra.mxu0 0.0
      %3212 = vmatprep.subr.mxu0 0.0
      %3213 = vmatpush1.msra.mxu0 0.0
      %3214 = vmatprep.subr.mxu0 0.0
      %3215 = vmatpush1.msra.mxu0 0.0
      %3216 = vmatprep.subr.mxu0 0.0
      %3217 = vmatpush1.msra.mxu0 0.0
      %3218 = vmatprep.subr.mxu0 0.0
      %3219 = vmatpush1.msra.mxu0 0.0
      %3220 = vmatprep.subr.mxu0 0.0
      %3221 = vmatpush1.msra.mxu0 0.0
      %3222 = vmatprep.mubr.f32.mxu0 0.0
      %3223 = vmatmul.mubr.f32.gmra.mrb[0].mxu0 %v3153
      %v3224 = vpop.f32.mrb[0].mxu0
      %v3225 = vadd.f32 0.0, %v3224
      %v3226 = vpop.f32.mrb[0].mxu0
      %3227 = vmatprep.mubr.f32.mxu0 0.0
      %3228 = vmatmul.mubr.f32.gmra.mrb[0].mxu0 %v3156
      %v3229 = vpop.f32.mrb[0].mxu0
      %v3230 = vadd.f32 0.0, %v3229
      %v3231 = vpop.f32.mrb[0].mxu0
      %3232 = vdwg.mxu0
      %v3234 = vsel %vm1440, %v1601, 0
      %v3237 = vsel %vm1440, %v1602, 0
      %3239 = vmatprep.subr.mxu0 0.0
      %3240 = vmatpush1.msra.mxu0 %v649
      %3241 = vmatprep.subr.mxu0 0.0
      %3242 = vmatpush1.msra.mxu0 %v654
      %3243 = vmatprep.subr.mxu0 0.0
      %3244 = vmatpush1.msra.mxu0 0.0
      %3245 = vmatprep.subr.mxu0 0.0
      %3246 = vmatpush1.msra.mxu0 0.0
      %3247 = vmatprep.subr.mxu0 0.0
      %3248 = vmatpush1.msra.mxu0 0.0
      %3249 = vmatprep.subr.mxu0 0.0
      %3250 = vmatpush1.msra.mxu0 0.0
      %3251 = vmatprep.subr.mxu0 0.0
      %3252 = vmatpush1.msra.mxu0 0.0
      %3253 = vmatprep.subr.mxu0 0.0
      %3254 = vmatpush1.msra.mxu0 0.0
      %3255 = vmatprep.subr.mxu0 0.0
      %3256 = vmatpush1.msra.mxu0 0.0
      %3257 = vmatprep.subr.mxu0 0.0
      %3258 = vmatpush1.msra.mxu0 0.0
      %3259 = vmatprep.subr.mxu0 0.0
      %3260 = vmatpush1.msra.mxu0 0.0
      %3261 = vmatprep.subr.mxu0 0.0
      %3262 = vmatpush1.msra.mxu0 0.0
      %3263 = vmatprep.subr.mxu0 0.0
      %3264 = vmatpush1.msra.mxu0 0.0
      %3265 = vmatprep.subr.mxu0 0.0
      %3266 = vmatpush1.msra.mxu0 0.0
      %3267 = vmatprep.subr.mxu0 0.0
      %3268 = vmatpush1.msra.mxu0 0.0
      %3269 = vmatprep.subr.mxu0 0.0
      %3270 = vmatpush1.msra.mxu0 0.0
      %3271 = vmatprep.subr.mxu0 0.0
      %3272 = vmatpush1.msra.mxu0 0.0
      %3273 = vmatprep.subr.mxu0 0.0
      %3274 = vmatpush1.msra.mxu0 0.0
      %3275 = vmatprep.subr.mxu0 0.0
      %3276 = vmatpush1.msra.mxu0 0.0
      %3277 = vmatprep.subr.mxu0 0.0
      %3278 = vmatpush1.msra.mxu0 0.0
      %3279 = vmatprep.subr.mxu0 0.0
      %3280 = vmatpush1.msra.mxu0 0.0
      %3281 = vmatprep.subr.mxu0 0.0
      %3282 = vmatpush1.msra.mxu0 0.0
      %3283 = vmatprep.subr.mxu0 0.0
      %3284 = vmatpush1.msra.mxu0 0.0
      %3285 = vmatprep.subr.mxu0 0.0
      %3286 = vmatpush1.msra.mxu0 0.0
      %3287 = vmatprep.subr.mxu0 0.0
      %3288 = vmatpush1.msra.mxu0 0.0
      %3289 = vmatprep.subr.mxu0 0.0
      %3290 = vmatpush1.msra.mxu0 0.0
      %3291 = vmatprep.subr.mxu0 0.0
      %3292 = vmatpush1.msra.mxu0 0.0
      %3293 = vmatprep.subr.mxu0 0.0
      %3294 = vmatpush1.msra.mxu0 0.0
      %3295 = vmatprep.subr.mxu0 0.0
      %3296 = vmatpush1.msra.mxu0 0.0
      %3297 = vmatprep.subr.mxu0 0.0
      %3298 = vmatpush1.msra.mxu0 0.0
      %3299 = vmatprep.subr.mxu0 0.0
      %3300 = vmatpush1.msra.mxu0 0.0
      %3301 = vmatprep.subr.mxu0 0.0
      %3302 = vmatpush1.msra.mxu0 0.0
      %3303 = vmatprep.mubr.f32.mxu0 0.0
      %3304 = vmatmul.mubr.f32.gmra.mrb[0].mxu0 %v3234
      %v3305 = vpop.f32.mrb[0].mxu0
      %v3306 = vadd.f32 %v2602, %v3305
      %v3307 = vpop.f32.mrb[0].mxu0
      %3308 = vmatprep.mubr.f32.mxu0 0.0
      %3309 = vmatmul.mubr.f32.gmra.mrb[0].mxu0 %v3237
      %v3310 = vpop.f32.mrb[0].mxu0
      %v3311 = vadd.f32 %v2607, %v3310
      %v3312 = vpop.f32.mrb[0].mxu0
      %3313 = vdwg.mxu0
      %v3315 = vsel %vm1440, %v1603, 0
      %v3318 = vsel %vm1440, %v1604, 0
      %3320 = vmatprep.subr.mxu0 0.0
      %3321 = vmatpush1.msra.mxu0 %v659
      %3322 = vmatprep.subr.mxu0 0.0
      %3323 = vmatpush1.msra.mxu0 %v664
      %3324 = vmatprep.subr.mxu0 0.0
      %3325 = vmatpush1.msra.mxu0 0.0
      %3326 = vmatprep.subr.mxu0 0.0
      %3327 = vmatpush1.msra.mxu0 0.0
      %3328 = vmatprep.subr.mxu0 0.0
      %3329 = vmatpush1.msra.mxu0 0.0
      %3330 = vmatprep.subr.mxu0 0.0
      %3331 = vmatpush1.msra.mxu0 0.0
      %3332 = vmatprep.subr.mxu0 0.0
      %3333 = vmatpush1.msra.mxu0 0.0
      %3334 = vmatprep.subr.mxu0 0.0
      %3335 = vmatpush1.msra.mxu0 0.0
      %3336 = vmatprep.subr.mxu0 0.0
      %3337 = vmatpush1.msra.mxu0 0.0
      %3338 = vmatprep.subr.mxu0 0.0
      %3339 = vmatpush1.msra.mxu0 0.0
      %3340 = vmatprep.subr.mxu0 0.0
      %3341 = vmatpush1.msra.mxu0 0.0
      %3342 = vmatprep.subr.mxu0 0.0
      %3343 = vmatpush1.msra.mxu0 0.0
      %3344 = vmatprep.subr.mxu0 0.0
      %3345 = vmatpush1.msra.mxu0 0.0
      %3346 = vmatprep.subr.mxu0 0.0
      %3347 = vmatpush1.msra.mxu0 0.0
      %3348 = vmatprep.subr.mxu0 0.0
      %3349 = vmatpush1.msra.mxu0 0.0
      %3350 = vmatprep.subr.mxu0 0.0
      %3351 = vmatpush1.msra.mxu0 0.0
      %3352 = vmatprep.subr.mxu0 0.0
      %3353 = vmatpush1.msra.mxu0 0.0
      %3354 = vmatprep.subr.mxu0 0.0
      %3355 = vmatpush1.msra.mxu0 0.0
      %3356 = vmatprep.subr.mxu0 0.0
      %3357 = vmatpush1.msra.mxu0 0.0
      %3358 = vmatprep.subr.mxu0 0.0
      %3359 = vmatpush1.msra.mxu0 0.0
      %3360 = vmatprep.subr.mxu0 0.0
      %3361 = vmatpush1.msra.mxu0 0.0
      %3362 = vmatprep.subr.mxu0 0.0
      %3363 = vmatpush1.msra.mxu0 0.0
      %3364 = vmatprep.subr.mxu0 0.0
      %3365 = vmatpush1.msra.mxu0 0.0
      %3366 = vmatprep.subr.mxu0 0.0
      %3367 = vmatpush1.msra.mxu0 0.0
      %3368 = vmatprep.subr.mxu0 0.0
      %3369 = vmatpush1.msra.mxu0 0.0
      %3370 = vmatprep.subr.mxu0 0.0
      %3371 = vmatpush1.msra.mxu0 0.0
      %3372 = vmatprep.subr.mxu0 0.0
      %3373 = vmatpush1.msra.mxu0 0.0
      %3374 = vmatprep.subr.mxu0 0.0
      %3375 = vmatpush1.msra.mxu0 0.0
      %3376 = vmatprep.subr.mxu0 0.0
      %3377 = vmatpush1.msra.mxu0 0.0
      %3378 = vmatprep.subr.mxu0 0.0
      %3379 = vmatpush1.msra.mxu0 0.0
      %3380 = vmatprep.subr.mxu0 0.0
      %3381 = vmatpush1.msra.mxu0 0.0
      %3382 = vmatprep.subr.mxu0 0.0
      %3383 = vmatpush1.msra.mxu0 0.0
      %3384 = vmatprep.mubr.f32.mxu0 0.0
      %3385 = vmatmul.mubr.f32.gmra.mrb[0].mxu0 %v3315
      %v3386 = vpop.f32.mrb[0].mxu0
      %v3387 = vadd.f32 %v2691, %v3386
      %v3388 = vpop.f32.mrb[0].mxu0
      %3389 = vmatprep.mubr.f32.mxu0 0.0
      %3390 = vmatmul.mubr.f32.gmra.mrb[0].mxu0 %v3318
      %v3391 = vpop.f32.mrb[0].mxu0
      %v3392 = vadd.f32 %v2696, %v3391
      %v3393 = vpop.f32.mrb[0].mxu0
      %3394 = vdwg.mxu0
      %v3396 = vsel %vm1440, %v1605, 0
      %v3399 = vsel %vm1440, %v1606, 0
      %3401 = vmatprep.subr.mxu0 0.0
      %3402 = vmatpush1.msra.mxu0 %v669
      %3403 = vmatprep.subr.mxu0 0.0
      %3404 = vmatpush1.msra.mxu0 %v674
      %3405 = vmatprep.subr.mxu0 0.0
      %3406 = vmatpush1.msra.mxu0 0.0
      %3407 = vmatprep.subr.mxu0 0.0
      %3408 = vmatpush1.msra.mxu0 0.0
      %3409 = vmatprep.subr.mxu0 0.0
      %3410 = vmatpush1.msra.mxu0 0.0
      %3411 = vmatprep.subr.mxu0 0.0
      %3412 = vmatpush1.msra.mxu0 0.0
      %3413 = vmatprep.subr.mxu0 0.0
      %3414 = vmatpush1.msra.mxu0 0.0
      %3415 = vmatprep.subr.mxu0 0.0
      %3416 = vmatpush1.msra.mxu0 0.0
      %3417 = vmatprep.subr.mxu0 0.0
      %3418 = vmatpush1.msra.mxu0 0.0
      %3419 = vmatprep.subr.mxu0 0.0
      %3420 = vmatpush1.msra.mxu0 0.0
      %3421 = vmatprep.subr.mxu0 0.0
      %3422 = vmatpush1.msra.mxu0 0.0
      %3423 = vmatprep.subr.mxu0 0.0
      %3424 = vmatpush1.msra.mxu0 0.0
      %3425 = vmatprep.subr.mxu0 0.0
      %3426 = vmatpush1.msra.mxu0 0.0
      %3427 = vmatprep.subr.mxu0 0.0
      %3428 = vmatpush1.msra.mxu0 0.0
      %3429 = vmatprep.subr.mxu0 0.0
      %3430 = vmatpush1.msra.mxu0 0.0
      %3431 = vmatprep.subr.mxu0 0.0
      %3432 = vmatpush1.msra.mxu0 0.0
      %3433 = vmatprep.subr.mxu0 0.0
      %3434 = vmatpush1.msra.mxu0 0.0
      %3435 = vmatprep.subr.mxu0 0.0
      %3436 = vmatpush1.msra.mxu0 0.0
      %3437 = vmatprep.subr.mxu0 0.0
      %3438 = vmatpush1.msra.mxu0 0.0
      %3439 = vmatprep.subr.mxu0 0.0
      %3440 = vmatpush1.msra.mxu0 0.0
      %3441 = vmatprep.subr.mxu0 0.0
      %3442 = vmatpush1.msra.mxu0 0.0
      %3443 = vmatprep.subr.mxu0 0.0
      %3444 = vmatpush1.msra.mxu0 0.0
      %3445 = vmatprep.subr.mxu0 0.0
      %3446 = vmatpush1.msra.mxu0 0.0
      %3447 = vmatprep.subr.mxu0 0.0
      %3448 = vmatpush1.msra.mxu0 0.0
      %3449 = vmatprep.subr.mxu0 0.0
      %3450 = vmatpush1.msra.mxu0 0.0
      %3451 = vmatprep.subr.mxu0 0.0
      %3452 = vmatpush1.msra.mxu0 0.0
      %3453 = vmatprep.subr.mxu0 0.0
      %3454 = vmatpush1.msra.mxu0 0.0
      %3455 = vmatprep.subr.mxu0 0.0
      %3456 = vmatpush1.msra.mxu0 0.0
      %3457 = vmatprep.subr.mxu0 0.0
      %3458 = vmatpush1.msra.mxu0 0.0
      %3459 = vmatprep.subr.mxu0 0.0
      %3460 = vmatpush1.msra.mxu0 0.0
      %3461 = vmatprep.subr.mxu0 0.0
      %3462 = vmatpush1.msra.mxu0 0.0
      %3463 = vmatprep.subr.mxu0 0.0
      %3464 = vmatpush1.msra.mxu0 0.0
      %3465 = vmatprep.mubr.f32.mxu0 0.0
      %3466 = vmatmul.mubr.f32.gmra.mrb[0].mxu0 %v3396
      %v3467 = vpop.f32.mrb[0].mxu0
      %v3468 = vadd.f32 %v2780, %v3467
      %v3469 = vpop.f32.mrb[0].mxu0
      %3470 = vmatprep.mubr.f32.mxu0 0.0
      %3471 = vmatmul.mubr.f32.gmra.mrb[0].mxu0 %v3399
      %v3472 = vpop.f32.mrb[0].mxu0
      %v3473 = vadd.f32 %v2785, %v3472
      %v3474 = vpop.f32.mrb[0].mxu0
      %3475 = vdwg.mxu0
      %v3477 = vsel %vm1440, %v1607, 0
      %v3480 = vsel %vm1440, %v1608, 0
      %3482 = vmatprep.subr.mxu0 0.0
      %3483 = vmatpush1.msra.mxu0 %v679
      %3484 = vmatprep.subr.mxu0 0.0
      %3485 = vmatpush1.msra.mxu0 %v684
      %3486 = vmatprep.subr.mxu0 0.0
      %3487 = vmatpush1.msra.mxu0 0.0
      %3488 = vmatprep.subr.mxu0 0.0
      %3489 = vmatpush1.msra.mxu0 0.0
      %3490 = vmatprep.subr.mxu0 0.0
      %3491 = vmatpush1.msra.mxu0 0.0
      %3492 = vmatprep.subr.mxu0 0.0
      %3493 = vmatpush1.msra.mxu0 0.0
      %3494 = vmatprep.subr.mxu0 0.0
      %3495 = vmatpush1.msra.mxu0 0.0
      %3496 = vmatprep.subr.mxu0 0.0
      %3497 = vmatpush1.msra.mxu0 0.0
      %3498 = vmatprep.subr.mxu0 0.0
      %3499 = vmatpush1.msra.mxu0 0.0
      %3500 = vmatprep.subr.mxu0 0.0
      %3501 = vmatpush1.msra.mxu0 0.0
      %3502 = vmatprep.subr.mxu0 0.0
      %3503 = vmatpush1.msra.mxu0 0.0
      %3504 = vmatprep.subr.mxu0 0.0
      %3505 = vmatpush1.msra.mxu0 0.0
      %3506 = vmatprep.subr.mxu0 0.0
      %3507 = vmatpush1.msra.mxu0 0.0
      %3508 = vmatprep.subr.mxu0 0.0
      %3509 = vmatpush1.msra.mxu0 0.0
      %3510 = vmatprep.subr.mxu0 0.0
      %3511 = vmatpush1.msra.mxu0 0.0
      %3512 = vmatprep.subr.mxu0 0.0
      %3513 = vmatpush1.msra.mxu0 0.0
      %3514 = vmatprep.subr.mxu0 0.0
      %3515 = vmatpush1.msra.mxu0 0.0
      %3516 = vmatprep.subr.mxu0 0.0
      %3517 = vmatpush1.msra.mxu0 0.0
      %3518 = vmatprep.subr.mxu0 0.0
      %3519 = vmatpush1.msra.mxu0 0.0
      %3520 = vmatprep.subr.mxu0 0.0
      %3521 = vmatpush1.msra.mxu0 0.0
      %3522 = vmatprep.subr.mxu0 0.0
      %3523 = vmatpush1.msra.mxu0 0.0
      %3524 = vmatprep.subr.mxu0 0.0
      %3525 = vmatpush1.msra.mxu0 0.0
      %3526 = vmatprep.subr.mxu0 0.0
      %3527 = vmatpush1.msra.mxu0 0.0
      %3528 = vmatprep.subr.mxu0 0.0
      %3529 = vmatpush1.msra.mxu0 0.0
      %3530 = vmatprep.subr.mxu0 0.0
      %3531 = vmatpush1.msra.mxu0 0.0
      %3532 = vmatprep.subr.mxu0 0.0
      %3533 = vmatpush1.msra.mxu0 0.0
      %3534 = vmatprep.subr.mxu0 0.0
      %3535 = vmatpush1.msra.mxu0 0.0
      %3536 = vmatprep.subr.mxu0 0.0
      %3537 = vmatpush1.msra.mxu0 0.0
      %3538 = vmatprep.subr.mxu0 0.0
      %3539 = vmatpush1.msra.mxu0 0.0
      %3540 = vmatprep.subr.mxu0 0.0
      %3541 = vmatpush1.msra.mxu0 0.0
      %3542 = vmatprep.subr.mxu0 0.0
      %3543 = vmatpush1.msra.mxu0 0.0
      %3544 = vmatprep.subr.mxu0 0.0
      %3545 = vmatpush1.msra.mxu0 0.0
      %3546 = vmatprep.mubr.f32.mxu0 0.0
      %3547 = vmatmul.mubr.f32.gmra.mrb[0].mxu0 %v3477
      %v3548 = vpop.f32.mrb[0].mxu0
      %v3549 = vadd.f32 %v2869, %v3548
      %v3550 = vpop.f32.mrb[0].mxu0
      %3551 = vmatprep.mubr.f32.mxu0 0.0
      %3552 = vmatmul.mubr.f32.gmra.mrb[0].mxu0 %v3480
      %v3553 = vpop.f32.mrb[0].mxu0
      %v3554 = vadd.f32 %v2874, %v3553
      %v3555 = vpop.f32.mrb[0].mxu0
      %3556 = vdwg.mxu0
      %v3558 = vsel %vm1440, %v1609, 0
      %v3561 = vsel %vm1440, %v1610, 0
      %3563 = vmatprep.subr.mxu0 0.0
      %3564 = vmatpush1.msra.mxu0 %v689
      %3565 = vmatprep.subr.mxu0 0.0
      %3566 = vmatpush1.msra.mxu0 %v694
      %3567 = vmatprep.subr.mxu0 0.0
      %3568 = vmatpush1.msra.mxu0 0.0
      %3569 = vmatprep.subr.mxu0 0.0
      %3570 = vmatpush1.msra.mxu0 0.0
      %3571 = vmatprep.subr.mxu0 0.0
      %3572 = vmatpush1.msra.mxu0 0.0
      %3573 = vmatprep.subr.mxu0 0.0
      %3574 = vmatpush1.msra.mxu0 0.0
      %3575 = vmatprep.subr.mxu0 0.0
      %3576 = vmatpush1.msra.mxu0 0.0
      %3577 = vmatprep.subr.mxu0 0.0
      %3578 = vmatpush1.msra.mxu0 0.0
      %3579 = vmatprep.subr.mxu0 0.0
      %3580 = vmatpush1.msra.mxu0 0.0
      %3581 = vmatprep.subr.mxu0 0.0
      %3582 = vmatpush1.msra.mxu0 0.0
      %3583 = vmatprep.subr.mxu0 0.0
      %3584 = vmatpush1.msra.mxu0 0.0
      %3585 = vmatprep.subr.mxu0 0.0
      %3586 = vmatpush1.msra.mxu0 0.0
      %3587 = vmatprep.subr.mxu0 0.0
      %3588 = vmatpush1.msra.mxu0 0.0
      %3589 = vmatprep.subr.mxu0 0.0
      %3590 = vmatpush1.msra.mxu0 0.0
      %3591 = vmatprep.subr.mxu0 0.0
      %3592 = vmatpush1.msra.mxu0 0.0
      %3593 = vmatprep.subr.mxu0 0.0
      %3594 = vmatpush1.msra.mxu0 0.0
      %3595 = vmatprep.subr.mxu0 0.0
      %3596 = vmatpush1.msra.mxu0 0.0
      %3597 = vmatprep.subr.mxu0 0.0
      %3598 = vmatpush1.msra.mxu0 0.0
      %3599 = vmatprep.subr.mxu0 0.0
      %3600 = vmatpush1.msra.mxu0 0.0
      %3601 = vmatprep.subr.mxu0 0.0
      %3602 = vmatpush1.msra.mxu0 0.0
      %3603 = vmatprep.subr.mxu0 0.0
      %3604 = vmatpush1.msra.mxu0 0.0
      %3605 = vmatprep.subr.mxu0 0.0
      %3606 = vmatpush1.msra.mxu0 0.0
      %3607 = vmatprep.subr.mxu0 0.0
      %3608 = vmatpush1.msra.mxu0 0.0
      %3609 = vmatprep.subr.mxu0 0.0
      %3610 = vmatpush1.msra.mxu0 0.0
      %3611 = vmatprep.subr.mxu0 0.0
      %3612 = vmatpush1.msra.mxu0 0.0
      %3613 = vmatprep.subr.mxu0 0.0
      %3614 = vmatpush1.msra.mxu0 0.0
      %3615 = vmatprep.subr.mxu0 0.0
      %3616 = vmatpush1.msra.mxu0 0.0
      %3617 = vmatprep.subr.mxu0 0.0
      %3618 = vmatpush1.msra.mxu0 0.0
      %3619 = vmatprep.subr.mxu0 0.0
      %3620 = vmatpush1.msra.mxu0 0.0
      %3621 = vmatprep.subr.mxu0 0.0
      %3622 = vmatpush1.msra.mxu0 0.0
      %3623 = vmatprep.subr.mxu0 0.0
      %3624 = vmatpush1.msra.mxu0 0.0
      %3625 = vmatprep.subr.mxu0 0.0
      %3626 = vmatpush1.msra.mxu0 0.0
      %3627 = vmatprep.mubr.f32.mxu0 0.0
      %3628 = vmatmul.mubr.f32.gmra.mrb[0].mxu0 %v3558
      %v3629 = vpop.f32.mrb[0].mxu0
      %v3630 = vadd.f32 %v2958, %v3629
      %v3631 = vpop.f32.mrb[0].mxu0
      %3632 = vmatprep.mubr.f32.mxu0 0.0
      %3633 = vmatmul.mubr.f32.gmra.mrb[0].mxu0 %v3561
      %v3634 = vpop.f32.mrb[0].mxu0
      %v3635 = vadd.f32 %v2963, %v3634
      %v3636 = vpop.f32.mrb[0].mxu0
      %3637 = vdwg.mxu0
      %v3639 = vsel %vm1440, %v1611, 0
      %v3642 = vsel %vm1440, %v1612, 0
      %3644 = vmatprep.subr.mxu0 0.0
      %3645 = vmatpush1.msra.mxu0 %v699
      %3646 = vmatprep.subr.mxu0 0.0
      %3647 = vmatpush1.msra.mxu0 %v704
      %3648 = vmatprep.subr.mxu0 0.0
      %3649 = vmatpush1.msra.mxu0 0.0
      %3650 = vmatprep.subr.mxu0 0.0
      %3651 = vmatpush1.msra.mxu0 0.0
      %3652 = vmatprep.subr.mxu0 0.0
      %3653 = vmatpush1.msra.mxu0 0.0
      %3654 = vmatprep.subr.mxu0 0.0
      %3655 = vmatpush1.msra.mxu0 0.0
      %3656 = vmatprep.subr.mxu0 0.0
      %3657 = vmatpush1.msra.mxu0 0.0
      %3658 = vmatprep.subr.mxu0 0.0
      %3659 = vmatpush1.msra.mxu0 0.0
      %3660 = vmatprep.subr.mxu0 0.0
      %3661 = vmatpush1.msra.mxu0 0.0
      %3662 = vmatprep.subr.mxu0 0.0
      %3663 = vmatpush1.msra.mxu0 0.0
      %3664 = vmatprep.subr.mxu0 0.0
      %3665 = vmatpush1.msra.mxu0 0.0
      %3666 = vmatprep.subr.mxu0 0.0
      %3667 = vmatpush1.msra.mxu0 0.0
      %3668 = vmatprep.subr.mxu0 0.0
      %3669 = vmatpush1.msra.mxu0 0.0
      %3670 = vmatprep.subr.mxu0 0.0
      %3671 = vmatpush1.msra.mxu0 0.0
      %3672 = vmatprep.subr.mxu0 0.0
      %3673 = vmatpush1.msra.mxu0 0.0
      %3674 = vmatprep.subr.mxu0 0.0
      %3675 = vmatpush1.msra.mxu0 0.0
      %3676 = vmatprep.subr.mxu0 0.0
      %3677 = vmatpush1.msra.mxu0 0.0
      %3678 = vmatprep.subr.mxu0 0.0
      %3679 = vmatpush1.msra.mxu0 0.0
      %3680 = vmatprep.subr.mxu0 0.0
      %3681 = vmatpush1.msra.mxu0 0.0
      %3682 = vmatprep.subr.mxu0 0.0
      %3683 = vmatpush1.msra.mxu0 0.0
      %3684 = vmatprep.subr.mxu0 0.0
      %3685 = vmatpush1.msra.mxu0 0.0
      %3686 = vmatprep.subr.mxu0 0.0
      %3687 = vmatpush1.msra.mxu0 0.0
      %3688 = vmatprep.subr.mxu0 0.0
      %3689 = vmatpush1.msra.mxu0 0.0
      %3690 = vmatprep.subr.mxu0 0.0
      %3691 = vmatpush1.msra.mxu0 0.0
      %3692 = vmatprep.subr.mxu0 0.0
      %3693 = vmatpush1.msra.mxu0 0.0
      %3694 = vmatprep.subr.mxu0 0.0
      %3695 = vmatpush1.msra.mxu0 0.0
      %3696 = vmatprep.subr.mxu0 0.0
      %3697 = vmatpush1.msra.mxu0 0.0
      %3698 = vmatprep.subr.mxu0 0.0
      %3699 = vmatpush1.msra.mxu0 0.0
      %3700 = vmatprep.subr.mxu0 0.0
      %3701 = vmatpush1.msra.mxu0 0.0
      %3702 = vmatprep.subr.mxu0 0.0
      %3703 = vmatpush1.msra.mxu0 0.0
      %3704 = vmatprep.subr.mxu0 0.0
      %3705 = vmatpush1.msra.mxu0 0.0
      %3706 = vmatprep.subr.mxu0 0.0
      %3707 = vmatpush1.msra.mxu0 0.0
      %3708 = vmatprep.mubr.f32.mxu0 0.0
      %3709 = vmatmul.mubr.f32.gmra.mrb[0].mxu0 %v3639
      %v3710 = vpop.f32.mrb[0].mxu0
      %v3711 = vadd.f32 %v3047, %v3710
      %v3712 = vpop.f32.mrb[0].mxu0
      %3713 = vmatprep.mubr.f32.mxu0 0.0
      %3714 = vmatmul.mubr.f32.gmra.mrb[0].mxu0 %v3642
      %v3715 = vpop.f32.mrb[0].mxu0
      %v3716 = vadd.f32 %v3052, %v3715
      %v3717 = vpop.f32.mrb[0].mxu0
      %3718 = vdwg.mxu0
      %v3720 = vsel %vm1440, %v1613, 0
      %v3723 = vsel %vm1440, %v1614, 0
      %3725 = vmatprep.subr.mxu0 0.0
      %3726 = vmatpush1.msra.mxu0 %v709
      %3727 = vmatprep.subr.mxu0 0.0
      %3728 = vmatpush1.msra.mxu0 %v714
      %3729 = vmatprep.subr.mxu0 0.0
      %3730 = vmatpush1.msra.mxu0 0.0
      %3731 = vmatprep.subr.mxu0 0.0
      %3732 = vmatpush1.msra.mxu0 0.0
      %3733 = vmatprep.subr.mxu0 0.0
      %3734 = vmatpush1.msra.mxu0 0.0
      %3735 = vmatprep.subr.mxu0 0.0
      %3736 = vmatpush1.msra.mxu0 0.0
      %3737 = vmatprep.subr.mxu0 0.0
      %3738 = vmatpush1.msra.mxu0 0.0
      %3739 = vmatprep.subr.mxu0 0.0
      %3740 = vmatpush1.msra.mxu0 0.0
      %3741 = vmatprep.subr.mxu0 0.0
      %3742 = vmatpush1.msra.mxu0 0.0
      %3743 = vmatprep.subr.mxu0 0.0
      %3744 = vmatpush1.msra.mxu0 0.0
      %3745 = vmatprep.subr.mxu0 0.0
      %3746 = vmatpush1.msra.mxu0 0.0
      %3747 = vmatprep.subr.mxu0 0.0
      %3748 = vmatpush1.msra.mxu0 0.0
      %3749 = vmatprep.subr.mxu0 0.0
      %3750 = vmatpush1.msra.mxu0 0.0
      %3751 = vmatprep.subr.mxu0 0.0
      %3752 = vmatpush1.msra.mxu0 0.0
      %3753 = vmatprep.subr.mxu0 0.0
      %3754 = vmatpush1.msra.mxu0 0.0
      %3755 = vmatprep.subr.mxu0 0.0
      %3756 = vmatpush1.msra.mxu0 0.0
      %3757 = vmatprep.subr.mxu0 0.0
      %3758 = vmatpush1.msra.mxu0 0.0
      %3759 = vmatprep.subr.mxu0 0.0
      %3760 = vmatpush1.msra.mxu0 0.0
      %3761 = vmatprep.subr.mxu0 0.0
      %3762 = vmatpush1.msra.mxu0 0.0
      %3763 = vmatprep.subr.mxu0 0.0
      %3764 = vmatpush1.msra.mxu0 0.0
      %3765 = vmatprep.subr.mxu0 0.0
      %3766 = vmatpush1.msra.mxu0 0.0
      %3767 = vmatprep.subr.mxu0 0.0
      %3768 = vmatpush1.msra.mxu0 0.0
      %3769 = vmatprep.subr.mxu0 0.0
      %3770 = vmatpush1.msra.mxu0 0.0
      %3771 = vmatprep.subr.mxu0 0.0
      %3772 = vmatpush1.msra.mxu0 0.0
      %3773 = vmatprep.subr.mxu0 0.0
      %3774 = vmatpush1.msra.mxu0 0.0
      %3775 = vmatprep.subr.mxu0 0.0
      %3776 = vmatpush1.msra.mxu0 0.0
      %3777 = vmatprep.subr.mxu0 0.0
      %3778 = vmatpush1.msra.mxu0 0.0
      %3779 = vmatprep.subr.mxu0 0.0
      %3780 = vmatpush1.msra.mxu0 0.0
      %3781 = vmatprep.subr.mxu0 0.0
      %3782 = vmatpush1.msra.mxu0 0.0
      %3783 = vmatprep.subr.mxu0 0.0
      %3784 = vmatpush1.msra.mxu0 0.0
      %3785 = vmatprep.subr.mxu0 0.0
      %3786 = vmatpush1.msra.mxu0 0.0
      %3787 = vmatprep.subr.mxu0 0.0
      %3788 = vmatpush1.msra.mxu0 0.0
      %3789 = vmatprep.mubr.f32.mxu0 0.0
      %3790 = vmatmul.mubr.f32.gmra.mrb[0].mxu0 %v3720
      %v3791 = vpop.f32.mrb[0].mxu0
      %v3792 = vadd.f32 %v3136, %v3791
      %v3793 = vpop.f32.mrb[0].mxu0
      %3794 = vmatprep.mubr.f32.mxu0 0.0
      %3795 = vmatmul.mubr.f32.gmra.mrb[0].mxu0 %v3723
      %v3796 = vpop.f32.mrb[0].mxu0
      %v3797 = vadd.f32 %v3141, %v3796
      %v3798 = vpop.f32.mrb[0].mxu0
      %3799 = vdwg.mxu0
      %v3801 = vsel %vm1440, %v1615, 0
      %v3804 = vsel %vm1440, %v1616, 0
      %3806 = vmatprep.subr.mxu0 0.0
      %3807 = vmatpush1.msra.mxu0 %v719
      %3808 = vmatprep.subr.mxu0 0.0
      %3809 = vmatpush1.msra.mxu0 %v724
      %3810 = vmatprep.subr.mxu0 0.0
      %3811 = vmatpush1.msra.mxu0 0.0
      %3812 = vmatprep.subr.mxu0 0.0
      %3813 = vmatpush1.msra.mxu0 0.0
      %3814 = vmatprep.subr.mxu0 0.0
      %3815 = vmatpush1.msra.mxu0 0.0
      %3816 = vmatprep.subr.mxu0 0.0
      %3817 = vmatpush1.msra.mxu0 0.0
      %3818 = vmatprep.subr.mxu0 0.0
      %3819 = vmatpush1.msra.mxu0 0.0
      %3820 = vmatprep.subr.mxu0 0.0
      %3821 = vmatpush1.msra.mxu0 0.0
      %3822 = vmatprep.subr.mxu0 0.0
      %3823 = vmatpush1.msra.mxu0 0.0
      %3824 = vmatprep.subr.mxu0 0.0
      %3825 = vmatpush1.msra.mxu0 0.0
      %3826 = vmatprep.subr.mxu0 0.0
      %3827 = vmatpush1.msra.mxu0 0.0
      %3828 = vmatprep.subr.mxu0 0.0
      %3829 = vmatpush1.msra.mxu0 0.0
      %3830 = vmatprep.subr.mxu0 0.0
      %3831 = vmatpush1.msra.mxu0 0.0
      %3832 = vmatprep.subr.mxu0 0.0
      %3833 = vmatpush1.msra.mxu0 0.0
      %3834 = vmatprep.subr.mxu0 0.0
      %3835 = vmatpush1.msra.mxu0 0.0
      %3836 = vmatprep.subr.mxu0 0.0
      %3837 = vmatpush1.msra.mxu0 0.0
      %3838 = vmatprep.subr.mxu0 0.0
      %3839 = vmatpush1.msra.mxu0 0.0
      %3840 = vmatprep.subr.mxu0 0.0
      %3841 = vmatpush1.msra.mxu0 0.0
      %3842 = vmatprep.subr.mxu0 0.0
      %3843 = vmatpush1.msra.mxu0 0.0
      %3844 = vmatprep.subr.mxu0 0.0
      %3845 = vmatpush1.msra.mxu0 0.0
      %3846 = vmatprep.subr.mxu0 0.0
      %3847 = vmatpush1.msra.mxu0 0.0
      %3848 = vmatprep.subr.mxu0 0.0
      %3849 = vmatpush1.msra.mxu0 0.0
      %3850 = vmatprep.subr.mxu0 0.0
      %3851 = vmatpush1.msra.mxu0 0.0
      %3852 = vmatprep.subr.mxu0 0.0
      %3853 = vmatpush1.msra.mxu0 0.0
      %3854 = vmatprep.subr.mxu0 0.0
      %3855 = vmatpush1.msra.mxu0 0.0
      %3856 = vmatprep.subr.mxu0 0.0
      %3857 = vmatpush1.msra.mxu0 0.0
      %3858 = vmatprep.subr.mxu0 0.0
      %3859 = vmatpush1.msra.mxu0 0.0
      %3860 = vmatprep.subr.mxu0 0.0
      %3861 = vmatpush1.msra.mxu0 0.0
      %3862 = vmatprep.subr.mxu0 0.0
      %3863 = vmatpush1.msra.mxu0 0.0
      %3864 = vmatprep.subr.mxu0 0.0
      %3865 = vmatpush1.msra.mxu0 0.0
      %3866 = vmatprep.subr.mxu0 0.0
      %3867 = vmatpush1.msra.mxu0 0.0
      %3868 = vmatprep.subr.mxu0 0.0
      %3869 = vmatpush1.msra.mxu0 0.0
      %3870 = vmatprep.mubr.f32.mxu0 0.0
      %3871 = vmatmul.mubr.f32.gmra.mrb[0].mxu0 %v3801
      %v3872 = vpop.f32.mrb[0].mxu0
      %v3873 = vadd.f32 %v3225, %v3872
      %v3874 = vpop.f32.mrb[0].mxu0
      %3875 = vmatprep.mubr.f32.mxu0 0.0
      %3876 = vmatmul.mubr.f32.gmra.mrb[0].mxu0 %v3804
      %v3877 = vpop.f32.mrb[0].mxu0
      %v3878 = vadd.f32 %v3230, %v3877
      %v3879 = vpop.f32.mrb[0].mxu0
      %3880 = vdwg.mxu0
      %3881 = vrot.lane.b32.xlu0 %v452, 112
      %v3882 = vpop.permute.xlu0 %3881
      %3883 = vrot.lane.b32.xlu0 %v457, 112
      %v3884 = vpop.permute.xlu0 %3883
      %3885 = vrot.lane.b32.xlu0 %v452, 80
      %v3886 = vpop.permute.xlu0 %3885
      %3887 = vrot.lane.b32.xlu0 %v457, 80
      %v3888 = vpop.permute.xlu0 %3887
      %v3889 = vsel %vm733, %v3882, 0
      %v3891 = vsel %vm733, %v3884, 0
      %v3893 = vsel %vm733, %v3886, 0
      %v3895 = vsel %vm733, %v3888, 0
      %3897 = vmatprep.subr.mxu0 0.0
      %3898 = vmatpush1.xpose.msra.mxu0 %v3893
      %3899 = vmatprep.subr.mxu0 0.0
      %3900 = vmatpush1.xpose.msra.mxu0 %v3895
      %3901 = vmatprep.subr.mxu0 0.0
      %3902 = vmatpush1.xpose.msra.mxu0 0.0
      %3903 = vmatprep.subr.mxu0 0.0
      %3904 = vmatpush1.xpose.msra.mxu0 0.0
      %3905 = vmatprep.subr.mxu0 0.0
      %3906 = vmatpush1.xpose.msra.mxu0 0.0
      %3907 = vmatprep.subr.mxu0 0.0
      %3908 = vmatpush1.xpose.msra.mxu0 0.0
      %3909 = vmatprep.subr.mxu0 0.0
      %3910 = vmatpush1.xpose.msra.mxu0 0.0
      %3911 = vmatprep.subr.mxu0 0.0
      %3912 = vmatpush1.xpose.msra.mxu0 0.0
      %3913 = vmatprep.subr.mxu0 0.0
      %3914 = vmatpush1.xpose.msra.mxu0 0.0
      %3915 = vmatprep.subr.mxu0 0.0
      %3916 = vmatpush1.xpose.msra.mxu0 0.0
      %3917 = vmatprep.subr.mxu0 0.0
      %3918 = vmatpush1.xpose.msra.mxu0 0.0
      %3919 = vmatprep.subr.mxu0 0.0
      %3920 = vmatpush1.xpose.msra.mxu0 0.0
      %3921 = vmatprep.subr.mxu0 0.0
      %3922 = vmatpush1.xpose.msra.mxu0 0.0
      %3923 = vmatprep.subr.mxu0 0.0
      %3924 = vmatpush1.xpose.msra.mxu0 0.0
      %3925 = vmatprep.subr.mxu0 0.0
      %3926 = vmatpush1.xpose.msra.mxu0 0.0
      %3927 = vmatprep.subr.mxu0 0.0
      %3928 = vmatpush1.xpose.msra.mxu0 0.0
      %3929 = vmatprep.subr.mxu0 0.0
      %3930 = vmatpush1.xpose.msra.mxu0 0.0
      %3931 = vmatprep.subr.mxu0 0.0
      %3932 = vmatpush1.xpose.msra.mxu0 0.0
      %3933 = vmatprep.subr.mxu0 0.0
      %3934 = vmatpush1.xpose.msra.mxu0 0.0
      %3935 = vmatprep.subr.mxu0 0.0
      %3936 = vmatpush1.xpose.msra.mxu0 0.0
      %3937 = vmatprep.subr.mxu0 0.0
      %3938 = vmatpush1.xpose.msra.mxu0 0.0
      %3939 = vmatprep.subr.mxu0 0.0
      %3940 = vmatpush1.xpose.msra.mxu0 0.0
      %3941 = vmatprep.subr.mxu0 0.0
      %3942 = vmatpush1.xpose.msra.mxu0 0.0
      %3943 = vmatprep.subr.mxu0 0.0
      %3944 = vmatpush1.xpose.msra.mxu0 0.0
      %3945 = vmatprep.subr.mxu0 0.0
      %3946 = vmatpush1.xpose.msra.mxu0 0.0
      %3947 = vmatprep.subr.mxu0 0.0
      %3948 = vmatpush1.xpose.msra.mxu0 0.0
      %3949 = vmatprep.subr.mxu0 0.0
      %3950 = vmatpush1.xpose.msra.mxu0 0.0
      %3951 = vmatprep.subr.mxu0 0.0
      %3952 = vmatpush1.xpose.msra.mxu0 0.0
      %3953 = vmatprep.subr.mxu0 0.0
      %3954 = vmatpush1.xpose.msra.mxu0 0.0
      %3955 = vmatprep.subr.mxu0 0.0
      %3956 = vmatpush1.xpose.msra.mxu0 0.0
      %3957 = vmatprep.subr.mxu0 0.0
      %3958 = vmatpush1.xpose.msra.mxu0 0.0
      %3959 = vmatprep.subr.mxu0 0.0
      %3960 = vmatpush1.xpose.msra.mxu0 0.0
      %3961 = vmatprep.mubr.f32.mxu0 0.0
      %3962 = vmatmul.mubr.f32.gmra.mrb[0].mxu0 %v3889
      %v3963 = vpop.f32.mrb[0].mxu0
      %v3964 = vadd.f32 0.0, %v3963
      %v3965 = vpop.f32.mrb[0].mxu0
      %3966 = vmatprep.mubr.f32.mxu0 0.0
      %3967 = vmatmul.mubr.f32.gmra.mrb[0].mxu0 %v3891
      %v3968 = vpop.f32.mrb[0].mxu0
      %v3969 = vadd.f32 0.0, %v3968
      %v3970 = vpop.f32.mrb[0].mxu0
      %3971 = vdwg.mxu0
      %3972 = vrot.lane.b32.xlu0 %v462, 112
      %v3973 = vpop.permute.xlu0 %3972
      %3974 = vrot.lane.b32.xlu0 %v467, 112
      %v3975 = vpop.permute.xlu0 %3974
      %3976 = vrot.lane.b32.xlu0 %v462, 80
      %v3977 = vpop.permute.xlu0 %3976
      %3978 = vrot.lane.b32.xlu0 %v467, 80
      %v3979 = vpop.permute.xlu0 %3978
      %v3980 = vsel %vm733, %v3973, 0
      %v3982 = vsel %vm733, %v3975, 0
      %v3984 = vsel %vm733, %v3977, 0
      %v3986 = vsel %vm733, %v3979, 0
      %3988 = vmatprep.subr.mxu0 0.0
      %3989 = vmatpush1.xpose.msra.mxu0 %v3984
      %3990 = vmatprep.subr.mxu0 0.0
      %3991 = vmatpush1.xpose.msra.mxu0 %v3986
      %3992 = vmatprep.subr.mxu0 0.0
      %3993 = vmatpush1.xpose.msra.mxu0 0.0
      %3994 = vmatprep.subr.mxu0 0.0
      %3995 = vmatpush1.xpose.msra.mxu0 0.0
      %3996 = vmatprep.subr.mxu0 0.0
      %3997 = vmatpush1.xpose.msra.mxu0 0.0
      %3998 = vmatprep.subr.mxu0 0.0
      %3999 = vmatpush1.xpose.msra.mxu0 0.0
      %4000 = vmatprep.subr.mxu0 0.0
      %4001 = vmatpush1.xpose.msra.mxu0 0.0
      %4002 = vmatprep.subr.mxu0 0.0
      %4003 = vmatpush1.xpose.msra.mxu0 0.0
      %4004 = vmatprep.subr.mxu0 0.0
      %4005 = vmatpush1.xpose.msra.mxu0 0.0
      %4006 = vmatprep.subr.mxu0 0.0
      %4007 = vmatpush1.xpose.msra.mxu0 0.0
      %4008 = vmatprep.subr.mxu0 0.0
      %4009 = vmatpush1.xpose.msra.mxu0 0.0
      %4010 = vmatprep.subr.mxu0 0.0
      %4011 = vmatpush1.xpose.msra.mxu0 0.0
      %4012 = vmatprep.subr.mxu0 0.0
      %4013 = vmatpush1.xpose.msra.mxu0 0.0
      %4014 = vmatprep.subr.mxu0 0.0
      %4015 = vmatpush1.xpose.msra.mxu0 0.0
      %4016 = vmatprep.subr.mxu0 0.0
      %4017 = vmatpush1.xpose.msra.mxu0 0.0
      %4018 = vmatprep.subr.mxu0 0.0
      %4019 = vmatpush1.xpose.msra.mxu0 0.0
      %4020 = vmatprep.subr.mxu0 0.0
      %4021 = vmatpush1.xpose.msra.mxu0 0.0
      %4022 = vmatprep.subr.mxu0 0.0
      %4023 = vmatpush1.xpose.msra.mxu0 0.0
      %4024 = vmatprep.subr.mxu0 0.0
      %4025 = vmatpush1.xpose.msra.mxu0 0.0
      %4026 = vmatprep.subr.mxu0 0.0
      %4027 = vmatpush1.xpose.msra.mxu0 0.0
      %4028 = vmatprep.subr.mxu0 0.0
      %4029 = vmatpush1.xpose.msra.mxu0 0.0
      %4030 = vmatprep.subr.mxu0 0.0
      %4031 = vmatpush1.xpose.msra.mxu0 0.0
      %4032 = vmatprep.subr.mxu0 0.0
      %4033 = vmatpush1.xpose.msra.mxu0 0.0
      %4034 = vmatprep.subr.mxu0 0.0
      %4035 = vmatpush1.xpose.msra.mxu0 0.0
      %4036 = vmatprep.subr.mxu0 0.0
      %4037 = vmatpush1.xpose.msra.mxu0 0.0
      %4038 = vmatprep.subr.mxu0 0.0
      %4039 = vmatpush1.xpose.msra.mxu0 0.0
      %4040 = vmatprep.subr.mxu0 0.0
      %4041 = vmatpush1.xpose.msra.mxu0 0.0
      %4042 = vmatprep.subr.mxu0 0.0
      %4043 = vmatpush1.xpose.msra.mxu0 0.0
      %4044 = vmatprep.subr.mxu0 0.0
      %4045 = vmatpush1.xpose.msra.mxu0 0.0
      %4046 = vmatprep.subr.mxu0 0.0
      %4047 = vmatpush1.xpose.msra.mxu0 0.0
      %4048 = vmatprep.subr.mxu0 0.0
      %4049 = vmatpush1.xpose.msra.mxu0 0.0
      %4050 = vmatprep.subr.mxu0 0.0
      %4051 = vmatpush1.xpose.msra.mxu0 0.0
      %4052 = vmatprep.mubr.f32.mxu0 0.0
      %4053 = vmatmul.mubr.f32.gmra.mrb[0].mxu0 %v3980
      %v4054 = vpop.f32.mrb[0].mxu0
      %v4055 = vadd.f32 0.0, %v4054
      %v4056 = vpop.f32.mrb[0].mxu0
      %4057 = vmatprep.mubr.f32.mxu0 0.0
      %4058 = vmatmul.mubr.f32.gmra.mrb[0].mxu0 %v3982
      %v4059 = vpop.f32.mrb[0].mxu0
      %v4060 = vadd.f32 0.0, %v4059
      %v4061 = vpop.f32.mrb[0].mxu0
      %4062 = vdwg.mxu0
      %4063 = vrot.lane.b32.xlu0 %v472, 112
      %v4064 = vpop.permute.xlu0 %4063
      %4065 = vrot.lane.b32.xlu0 %v477, 112
      %v4066 = vpop.permute.xlu0 %4065
      %4067 = vrot.lane.b32.xlu0 %v472, 80
      %v4068 = vpop.permute.xlu0 %4067
      %4069 = vrot.lane.b32.xlu0 %v477, 80
      %v4070 = vpop.permute.xlu0 %4069
      %v4071 = vsel %vm733, %v4064, 0
      %v4073 = vsel %vm733, %v4066, 0
      %v4075 = vsel %vm733, %v4068, 0
      %v4077 = vsel %vm733, %v4070, 0
      %4079 = vmatprep.subr.mxu0 0.0
      %4080 = vmatpush1.xpose.msra.mxu0 %v4075
      %4081 = vmatprep.subr.mxu0 0.0
      %4082 = vmatpush1.xpose.msra.mxu0 %v4077
      %4083 = vmatprep.subr.mxu0 0.0
      %4084 = vmatpush1.xpose.msra.mxu0 0.0
      %4085 = vmatprep.subr.mxu0 0.0
      %4086 = vmatpush1.xpose.msra.mxu0 0.0
      %4087 = vmatprep.subr.mxu0 0.0
      %4088 = vmatpush1.xpose.msra.mxu0 0.0
      %4089 = vmatprep.subr.mxu0 0.0
      %4090 = vmatpush1.xpose.msra.mxu0 0.0
      %4091 = vmatprep.subr.mxu0 0.0
      %4092 = vmatpush1.xpose.msra.mxu0 0.0
      %4093 = vmatprep.subr.mxu0 0.0
      %4094 = vmatpush1.xpose.msra.mxu0 0.0
      %4095 = vmatprep.subr.mxu0 0.0
      %4096 = vmatpush1.xpose.msra.mxu0 0.0
      %4097 = vmatprep.subr.mxu0 0.0
      %4098 = vmatpush1.xpose.msra.mxu0 0.0
      %4099 = vmatprep.subr.mxu0 0.0
      %4100 = vmatpush1.xpose.msra.mxu0 0.0
      %4101 = vmatprep.subr.mxu0 0.0
      %4102 = vmatpush1.xpose.msra.mxu0 0.0
      %4103 = vmatprep.subr.mxu0 0.0
      %4104 = vmatpush1.xpose.msra.mxu0 0.0
      %4105 = vmatprep.subr.mxu0 0.0
      %4106 = vmatpush1.xpose.msra.mxu0 0.0
      %4107 = vmatprep.subr.mxu0 0.0
      %4108 = vmatpush1.xpose.msra.mxu0 0.0
      %4109 = vmatprep.subr.mxu0 0.0
      %4110 = vmatpush1.xpose.msra.mxu0 0.0
      %4111 = vmatprep.subr.mxu0 0.0
      %4112 = vmatpush1.xpose.msra.mxu0 0.0
      %4113 = vmatprep.subr.mxu0 0.0
      %4114 = vmatpush1.xpose.msra.mxu0 0.0
      %4115 = vmatprep.subr.mxu0 0.0
      %4116 = vmatpush1.xpose.msra.mxu0 0.0
      %4117 = vmatprep.subr.mxu0 0.0
      %4118 = vmatpush1.xpose.msra.mxu0 0.0
      %4119 = vmatprep.subr.mxu0 0.0
      %4120 = vmatpush1.xpose.msra.mxu0 0.0
      %4121 = vmatprep.subr.mxu0 0.0
      %4122 = vmatpush1.xpose.msra.mxu0 0.0
      %4123 = vmatprep.subr.mxu0 0.0
      %4124 = vmatpush1.xpose.msra.mxu0 0.0
      %4125 = vmatprep.subr.mxu0 0.0
      %4126 = vmatpush1.xpose.msra.mxu0 0.0
      %4127 = vmatprep.subr.mxu0 0.0
      %4128 = vmatpush1.xpose.msra.mxu0 0.0
      %4129 = vmatprep.subr.mxu0 0.0
      %4130 = vmatpush1.xpose.msra.mxu0 0.0
      %4131 = vmatprep.subr.mxu0 0.0
      %4132 = vmatpush1.xpose.msra.mxu0 0.0
      %4133 = vmatprep.subr.mxu0 0.0
      %4134 = vmatpush1.xpose.msra.mxu0 0.0
      %4135 = vmatprep.subr.mxu0 0.0
      %4136 = vmatpush1.xpose.msra.mxu0 0.0
      %4137 = vmatprep.subr.mxu0 0.0
      %4138 = vmatpush1.xpose.msra.mxu0 0.0
      %4139 = vmatprep.subr.mxu0 0.0
      %4140 = vmatpush1.xpose.msra.mxu0 0.0
      %4141 = vmatprep.subr.mxu0 0.0
      %4142 = vmatpush1.xpose.msra.mxu0 0.0
      %4143 = vmatprep.mubr.f32.mxu0 0.0
      %4144 = vmatmul.mubr.f32.gmra.mrb[0].mxu0 %v4071
      %v4145 = vpop.f32.mrb[0].mxu0
      %v4146 = vadd.f32 0.0, %v4145
      %v4147 = vpop.f32.mrb[0].mxu0
      %4148 = vmatprep.mubr.f32.mxu0 0.0
      %4149 = vmatmul.mubr.f32.gmra.mrb[0].mxu0 %v4073
      %v4150 = vpop.f32.mrb[0].mxu0
      %v4151 = vadd.f32 0.0, %v4150
      %v4152 = vpop.f32.mrb[0].mxu0
      %4153 = vdwg.mxu0
      %4154 = vrot.lane.b32.xlu0 %v482, 112
      %v4155 = vpop.permute.xlu0 %4154
      %4156 = vrot.lane.b32.xlu0 %v487, 112
      %v4157 = vpop.permute.xlu0 %4156
      %4158 = vrot.lane.b32.xlu0 %v482, 80
      %v4159 = vpop.permute.xlu0 %4158
      %4160 = vrot.lane.b32.xlu0 %v487, 80
      %v4161 = vpop.permute.xlu0 %4160
      %v4162 = vsel %vm733, %v4155, 0
      %v4164 = vsel %vm733, %v4157, 0
      %v4166 = vsel %vm733, %v4159, 0
      %v4168 = vsel %vm733, %v4161, 0
      %4170 = vmatprep.subr.mxu0 0.0
      %4171 = vmatpush1.xpose.msra.mxu0 %v4166
      %4172 = vmatprep.subr.mxu0 0.0
      %4173 = vmatpush1.xpose.msra.mxu0 %v4168
      %4174 = vmatprep.subr.mxu0 0.0
      %4175 = vmatpush1.xpose.msra.mxu0 0.0
      %4176 = vmatprep.subr.mxu0 0.0
      %4177 = vmatpush1.xpose.msra.mxu0 0.0
      %4178 = vmatprep.subr.mxu0 0.0
      %4179 = vmatpush1.xpose.msra.mxu0 0.0
      %4180 = vmatprep.subr.mxu0 0.0
      %4181 = vmatpush1.xpose.msra.mxu0 0.0
      %4182 = vmatprep.subr.mxu0 0.0
      %4183 = vmatpush1.xpose.msra.mxu0 0.0
      %4184 = vmatprep.subr.mxu0 0.0
      %4185 = vmatpush1.xpose.msra.mxu0 0.0
      %4186 = vmatprep.subr.mxu0 0.0
      %4187 = vmatpush1.xpose.msra.mxu0 0.0
      %4188 = vmatprep.subr.mxu0 0.0
      %4189 = vmatpush1.xpose.msra.mxu0 0.0
      %4190 = vmatprep.subr.mxu0 0.0
      %4191 = vmatpush1.xpose.msra.mxu0 0.0
      %4192 = vmatprep.subr.mxu0 0.0
      %4193 = vmatpush1.xpose.msra.mxu0 0.0
      %4194 = vmatprep.subr.mxu0 0.0
      %4195 = vmatpush1.xpose.msra.mxu0 0.0
      %4196 = vmatprep.subr.mxu0 0.0
      %4197 = vmatpush1.xpose.msra.mxu0 0.0
      %4198 = vmatprep.subr.mxu0 0.0
      %4199 = vmatpush1.xpose.msra.mxu0 0.0
      %4200 = vmatprep.subr.mxu0 0.0
      %4201 = vmatpush1.xpose.msra.mxu0 0.0
      %4202 = vmatprep.subr.mxu0 0.0
      %4203 = vmatpush1.xpose.msra.mxu0 0.0
      %4204 = vmatprep.subr.mxu0 0.0
      %4205 = vmatpush1.xpose.msra.mxu0 0.0
      %4206 = vmatprep.subr.mxu0 0.0
      %4207 = vmatpush1.xpose.msra.mxu0 0.0
      %4208 = vmatprep.subr.mxu0 0.0
      %4209 = vmatpush1.xpose.msra.mxu0 0.0
      %4210 = vmatprep.subr.mxu0 0.0
      %4211 = vmatpush1.xpose.msra.mxu0 0.0
      %4212 = vmatprep.subr.mxu0 0.0
      %4213 = vmatpush1.xpose.msra.mxu0 0.0
      %4214 = vmatprep.subr.mxu0 0.0
      %4215 = vmatpush1.xpose.msra.mxu0 0.0
      %4216 = vmatprep.subr.mxu0 0.0
      %4217 = vmatpush1.xpose.msra.mxu0 0.0
      %4218 = vmatprep.subr.mxu0 0.0
      %4219 = vmatpush1.xpose.msra.mxu0 0.0
      %4220 = vmatprep.subr.mxu0 0.0
      %4221 = vmatpush1.xpose.msra.mxu0 0.0
      %4222 = vmatprep.subr.mxu0 0.0
      %4223 = vmatpush1.xpose.msra.mxu0 0.0
      %4224 = vmatprep.subr.mxu0 0.0
      %4225 = vmatpush1.xpose.msra.mxu0 0.0
      %4226 = vmatprep.subr.mxu0 0.0
      %4227 = vmatpush1.xpose.msra.mxu0 0.0
      %4228 = vmatprep.subr.mxu0 0.0
      %4229 = vmatpush1.xpose.msra.mxu0 0.0
      %4230 = vmatprep.subr.mxu0 0.0
      %4231 = vmatpush1.xpose.msra.mxu0 0.0
      %4232 = vmatprep.subr.mxu0 0.0
      %4233 = vmatpush1.xpose.msra.mxu0 0.0
      %4234 = vmatprep.mubr.f32.mxu0 0.0
      %4235 = vmatmul.mubr.f32.gmra.mrb[0].mxu0 %v4162
      %v4236 = vpop.f32.mrb[0].mxu0
      %v4237 = vadd.f32 0.0, %v4236
      %v4238 = vpop.f32.mrb[0].mxu0
      %4239 = vmatprep.mubr.f32.mxu0 0.0
      %4240 = vmatmul.mubr.f32.gmra.mrb[0].mxu0 %v4164
      %v4241 = vpop.f32.mrb[0].mxu0
      %v4242 = vadd.f32 0.0, %v4241
      %v4243 = vpop.f32.mrb[0].mxu0
      %4244 = vdwg.mxu0
      %4245 = vrot.lane.b32.xlu0 %v492, 112
      %v4246 = vpop.permute.xlu0 %4245
      %4247 = vrot.lane.b32.xlu0 %v497, 112
      %v4248 = vpop.permute.xlu0 %4247
      %4249 = vrot.lane.b32.xlu0 %v492, 80
      %v4250 = vpop.permute.xlu0 %4249
      %4251 = vrot.lane.b32.xlu0 %v497, 80
      %v4252 = vpop.permute.xlu0 %4251
      %v4253 = vsel %vm733, %v4246, 0
      %v4255 = vsel %vm733, %v4248, 0
      %v4257 = vsel %vm733, %v4250, 0
      %v4259 = vsel %vm733, %v4252, 0
      %4261 = vmatprep.subr.mxu0 0.0
      %4262 = vmatpush1.xpose.msra.mxu0 %v4257
      %4263 = vmatprep.subr.mxu0 0.0
      %4264 = vmatpush1.xpose.msra.mxu0 %v4259
      %4265 = vmatprep.subr.mxu0 0.0
      %4266 = vmatpush1.xpose.msra.mxu0 0.0
      %4267 = vmatprep.subr.mxu0 0.0
      %4268 = vmatpush1.xpose.msra.mxu0 0.0
      %4269 = vmatprep.subr.mxu0 0.0
      %4270 = vmatpush1.xpose.msra.mxu0 0.0
      %4271 = vmatprep.subr.mxu0 0.0
      %4272 = vmatpush1.xpose.msra.mxu0 0.0
      %4273 = vmatprep.subr.mxu0 0.0
      %4274 = vmatpush1.xpose.msra.mxu0 0.0
      %4275 = vmatprep.subr.mxu0 0.0
      %4276 = vmatpush1.xpose.msra.mxu0 0.0
      %4277 = vmatprep.subr.mxu0 0.0
      %4278 = vmatpush1.xpose.msra.mxu0 0.0
      %4279 = vmatprep.subr.mxu0 0.0
      %4280 = vmatpush1.xpose.msra.mxu0 0.0
      %4281 = vmatprep.subr.mxu0 0.0
      %4282 = vmatpush1.xpose.msra.mxu0 0.0
      %4283 = vmatprep.subr.mxu0 0.0
      %4284 = vmatpush1.xpose.msra.mxu0 0.0
      %4285 = vmatprep.subr.mxu0 0.0
      %4286 = vmatpush1.xpose.msra.mxu0 0.0
      %4287 = vmatprep.subr.mxu0 0.0
      %4288 = vmatpush1.xpose.msra.mxu0 0.0
      %4289 = vmatprep.subr.mxu0 0.0
      %4290 = vmatpush1.xpose.msra.mxu0 0.0
      %4291 = vmatprep.subr.mxu0 0.0
      %4292 = vmatpush1.xpose.msra.mxu0 0.0
      %4293 = vmatprep.subr.mxu0 0.0
      %4294 = vmatpush1.xpose.msra.mxu0 0.0
      %4295 = vmatprep.subr.mxu0 0.0
      %4296 = vmatpush1.xpose.msra.mxu0 0.0
      %4297 = vmatprep.subr.mxu0 0.0
      %4298 = vmatpush1.xpose.msra.mxu0 0.0
      %4299 = vmatprep.subr.mxu0 0.0
      %4300 = vmatpush1.xpose.msra.mxu0 0.0
      %4301 = vmatprep.subr.mxu0 0.0
      %4302 = vmatpush1.xpose.msra.mxu0 0.0
      %4303 = vmatprep.subr.mxu0 0.0
      %4304 = vmatpush1.xpose.msra.mxu0 0.0
      %4305 = vmatprep.subr.mxu0 0.0
      %4306 = vmatpush1.xpose.msra.mxu0 0.0
      %4307 = vmatprep.subr.mxu0 0.0
      %4308 = vmatpush1.xpose.msra.mxu0 0.0
      %4309 = vmatprep.subr.mxu0 0.0
      %4310 = vmatpush1.xpose.msra.mxu0 0.0
      %4311 = vmatprep.subr.mxu0 0.0
      %4312 = vmatpush1.xpose.msra.mxu0 0.0
      %4313 = vmatprep.subr.mxu0 0.0
      %4314 = vmatpush1.xpose.msra.mxu0 0.0
      %4315 = vmatprep.subr.mxu0 0.0
      %4316 = vmatpush1.xpose.msra.mxu0 0.0
      %4317 = vmatprep.subr.mxu0 0.0
      %4318 = vmatpush1.xpose.msra.mxu0 0.0
      %4319 = vmatprep.subr.mxu0 0.0
      %4320 = vmatpush1.xpose.msra.mxu0 0.0
      %4321 = vmatprep.subr.mxu0 0.0
      %4322 = vmatpush1.xpose.msra.mxu0 0.0
      %4323 = vmatprep.subr.mxu0 0.0
      %4324 = vmatpush1.xpose.msra.mxu0 0.0
      %4325 = vmatprep.mubr.f32.mxu0 0.0
      %4326 = vmatmul.mubr.f32.gmra.mrb[0].mxu0 %v4253
      %v4327 = vpop.f32.mrb[0].mxu0
      %v4328 = vadd.f32 0.0, %v4327
      %v4329 = vpop.f32.mrb[0].mxu0
      %4330 = vmatprep.mubr.f32.mxu0 0.0
      %4331 = vmatmul.mubr.f32.gmra.mrb[0].mxu0 %v4255
      %v4332 = vpop.f32.mrb[0].mxu0
      %v4333 = vadd.f32 0.0, %v4332
      %v4334 = vpop.f32.mrb[0].mxu0
      %4335 = vdwg.mxu0
      %4336 = vrot.lane.b32.xlu0 %v502, 112
      %v4337 = vpop.permute.xlu0 %4336
      %4338 = vrot.lane.b32.xlu0 %v507, 112
      %v4339 = vpop.permute.xlu0 %4338
      %4340 = vrot.lane.b32.xlu0 %v502, 80
      %v4341 = vpop.permute.xlu0 %4340
      %4342 = vrot.lane.b32.xlu0 %v507, 80
      %v4343 = vpop.permute.xlu0 %4342
      %v4344 = vsel %vm733, %v4337, 0
      %v4346 = vsel %vm733, %v4339, 0
      %v4348 = vsel %vm733, %v4341, 0
      %v4350 = vsel %vm733, %v4343, 0
      %4352 = vmatprep.subr.mxu0 0.0
      %4353 = vmatpush1.xpose.msra.mxu0 %v4348
      %4354 = vmatprep.subr.mxu0 0.0
      %4355 = vmatpush1.xpose.msra.mxu0 %v4350
      %4356 = vmatprep.subr.mxu0 0.0
      %4357 = vmatpush1.xpose.msra.mxu0 0.0
      %4358 = vmatprep.subr.mxu0 0.0
      %4359 = vmatpush1.xpose.msra.mxu0 0.0
      %4360 = vmatprep.subr.mxu0 0.0
      %4361 = vmatpush1.xpose.msra.mxu0 0.0
      %4362 = vmatprep.subr.mxu0 0.0
      %4363 = vmatpush1.xpose.msra.mxu0 0.0
      %4364 = vmatprep.subr.mxu0 0.0
      %4365 = vmatpush1.xpose.msra.mxu0 0.0
      %4366 = vmatprep.subr.mxu0 0.0
      %4367 = vmatpush1.xpose.msra.mxu0 0.0
      %4368 = vmatprep.subr.mxu0 0.0
      %4369 = vmatpush1.xpose.msra.mxu0 0.0
      %4370 = vmatprep.subr.mxu0 0.0
      %4371 = vmatpush1.xpose.msra.mxu0 0.0
      %4372 = vmatprep.subr.mxu0 0.0
      %4373 = vmatpush1.xpose.msra.mxu0 0.0
      %4374 = vmatprep.subr.mxu0 0.0
      %4375 = vmatpush1.xpose.msra.mxu0 0.0
      %4376 = vmatprep.subr.mxu0 0.0
      %4377 = vmatpush1.xpose.msra.mxu0 0.0
      %4378 = vmatprep.subr.mxu0 0.0
      %4379 = vmatpush1.xpose.msra.mxu0 0.0
      %4380 = vmatprep.subr.mxu0 0.0
      %4381 = vmatpush1.xpose.msra.mxu0 0.0
      %4382 = vmatprep.subr.mxu0 0.0
      %4383 = vmatpush1.xpose.msra.mxu0 0.0
      %4384 = vmatprep.subr.mxu0 0.0
      %4385 = vmatpush1.xpose.msra.mxu0 0.0
      %4386 = vmatprep.subr.mxu0 0.0
      %4387 = vmatpush1.xpose.msra.mxu0 0.0
      %4388 = vmatprep.subr.mxu0 0.0
      %4389 = vmatpush1.xpose.msra.mxu0 0.0
      %4390 = vmatprep.subr.mxu0 0.0
      %4391 = vmatpush1.xpose.msra.mxu0 0.0
      %4392 = vmatprep.subr.mxu0 0.0
      %4393 = vmatpush1.xpose.msra.mxu0 0.0
      %4394 = vmatprep.subr.mxu0 0.0
      %4395 = vmatpush1.xpose.msra.mxu0 0.0
      %4396 = vmatprep.subr.mxu0 0.0
      %4397 = vmatpush1.xpose.msra.mxu0 0.0
      %4398 = vmatprep.subr.mxu0 0.0
      %4399 = vmatpush1.xpose.msra.mxu0 0.0
      %4400 = vmatprep.subr.mxu0 0.0
      %4401 = vmatpush1.xpose.msra.mxu0 0.0
      %4402 = vmatprep.subr.mxu0 0.0
      %4403 = vmatpush1.xpose.msra.mxu0 0.0
      %4404 = vmatprep.subr.mxu0 0.0
      %4405 = vmatpush1.xpose.msra.mxu0 0.0
      %4406 = vmatprep.subr.mxu0 0.0
      %4407 = vmatpush1.xpose.msra.mxu0 0.0
      %4408 = vmatprep.subr.mxu0 0.0
      %4409 = vmatpush1.xpose.msra.mxu0 0.0
      %4410 = vmatprep.subr.mxu0 0.0
      %4411 = vmatpush1.xpose.msra.mxu0 0.0
      %4412 = vmatprep.subr.mxu0 0.0
      %4413 = vmatpush1.xpose.msra.mxu0 0.0
      %4414 = vmatprep.subr.mxu0 0.0
      %4415 = vmatpush1.xpose.msra.mxu0 0.0
      %4416 = vmatprep.mubr.f32.mxu0 0.0
      %4417 = vmatmul.mubr.f32.gmra.mrb[0].mxu0 %v4344
      %v4418 = vpop.f32.mrb[0].mxu0
      %v4419 = vadd.f32 0.0, %v4418
      %v4420 = vpop.f32.mrb[0].mxu0
      %4421 = vmatprep.mubr.f32.mxu0 0.0
      %4422 = vmatmul.mubr.f32.gmra.mrb[0].mxu0 %v4346
      %v4423 = vpop.f32.mrb[0].mxu0
      %v4424 = vadd.f32 0.0, %v4423
      %v4425 = vpop.f32.mrb[0].mxu0
      %4426 = vdwg.mxu0
      %4427 = vrot.lane.b32.xlu0 %v512, 112
      %v4428 = vpop.permute.xlu0 %4427
      %4429 = vrot.lane.b32.xlu0 %v517, 112
      %v4430 = vpop.permute.xlu0 %4429
      %4431 = vrot.lane.b32.xlu0 %v512, 80
      %v4432 = vpop.permute.xlu0 %4431
      %4433 = vrot.lane.b32.xlu0 %v517, 80
      %v4434 = vpop.permute.xlu0 %4433
      %v4435 = vsel %vm733, %v4428, 0
      %v4437 = vsel %vm733, %v4430, 0
      %v4439 = vsel %vm733, %v4432, 0
      %v4441 = vsel %vm733, %v4434, 0
      %4443 = vmatprep.subr.mxu0 0.0
      %4444 = vmatpush1.xpose.msra.mxu0 %v4439
      %4445 = vmatprep.subr.mxu0 0.0
      %4446 = vmatpush1.xpose.msra.mxu0 %v4441
      %4447 = vmatprep.subr.mxu0 0.0
      %4448 = vmatpush1.xpose.msra.mxu0 0.0
      %4449 = vmatprep.subr.mxu0 0.0
      %4450 = vmatpush1.xpose.msra.mxu0 0.0
      %4451 = vmatprep.subr.mxu0 0.0
      %4452 = vmatpush1.xpose.msra.mxu0 0.0
      %4453 = vmatprep.subr.mxu0 0.0
      %4454 = vmatpush1.xpose.msra.mxu0 0.0
      %4455 = vmatprep.subr.mxu0 0.0
      %4456 = vmatpush1.xpose.msra.mxu0 0.0
      %4457 = vmatprep.subr.mxu0 0.0
      %4458 = vmatpush1.xpose.msra.mxu0 0.0
      %4459 = vmatprep.subr.mxu0 0.0
      %4460 = vmatpush1.xpose.msra.mxu0 0.0
      %4461 = vmatprep.subr.mxu0 0.0
      %4462 = vmatpush1.xpose.msra.mxu0 0.0
      %4463 = vmatprep.subr.mxu0 0.0
      %4464 = vmatpush1.xpose.msra.mxu0 0.0
      %4465 = vmatprep.subr.mxu0 0.0
      %4466 = vmatpush1.xpose.msra.mxu0 0.0
      %4467 = vmatprep.subr.mxu0 0.0
      %4468 = vmatpush1.xpose.msra.mxu0 0.0
      %4469 = vmatprep.subr.mxu0 0.0
      %4470 = vmatpush1.xpose.msra.mxu0 0.0
      %4471 = vmatprep.subr.mxu0 0.0
      %4472 = vmatpush1.xpose.msra.mxu0 0.0
      %4473 = vmatprep.subr.mxu0 0.0
      %4474 = vmatpush1.xpose.msra.mxu0 0.0
      %4475 = vmatprep.subr.mxu0 0.0
      %4476 = vmatpush1.xpose.msra.mxu0 0.0
      %4477 = vmatprep.subr.mxu0 0.0
      %4478 = vmatpush1.xpose.msra.mxu0 0.0
      %4479 = vmatprep.subr.mxu0 0.0
      %4480 = vmatpush1.xpose.msra.mxu0 0.0
      %4481 = vmatprep.subr.mxu0 0.0
      %4482 = vmatpush1.xpose.msra.mxu0 0.0
      %4483 = vmatprep.subr.mxu0 0.0
      %4484 = vmatpush1.xpose.msra.mxu0 0.0
      %4485 = vmatprep.subr.mxu0 0.0
      %4486 = vmatpush1.xpose.msra.mxu0 0.0
      %4487 = vmatprep.subr.mxu0 0.0
      %4488 = vmatpush1.xpose.msra.mxu0 0.0
      %4489 = vmatprep.subr.mxu0 0.0
      %4490 = vmatpush1.xpose.msra.mxu0 0.0
      %4491 = vmatprep.subr.mxu0 0.0
      %4492 = vmatpush1.xpose.msra.mxu0 0.0
      %4493 = vmatprep.subr.mxu0 0.0
      %4494 = vmatpush1.xpose.msra.mxu0 0.0
      %4495 = vmatprep.subr.mxu0 0.0
      %4496 = vmatpush1.xpose.msra.mxu0 0.0
      %4497 = vmatprep.subr.mxu0 0.0
      %4498 = vmatpush1.xpose.msra.mxu0 0.0
      %4499 = vmatprep.subr.mxu0 0.0
      %4500 = vmatpush1.xpose.msra.mxu0 0.0
      %4501 = vmatprep.subr.mxu0 0.0
      %4502 = vmatpush1.xpose.msra.mxu0 0.0
      %4503 = vmatprep.subr.mxu0 0.0
      %4504 = vmatpush1.xpose.msra.mxu0 0.0
      %4505 = vmatprep.subr.mxu0 0.0
      %4506 = vmatpush1.xpose.msra.mxu0 0.0
      %4507 = vmatprep.mubr.f32.mxu0 0.0
      %4508 = vmatmul.mubr.f32.gmra.mrb[0].mxu0 %v4435
      %v4509 = vpop.f32.mrb[0].mxu0
      %v4510 = vadd.f32 0.0, %v4509
      %v4511 = vpop.f32.mrb[0].mxu0
      %4512 = vmatprep.mubr.f32.mxu0 0.0
      %4513 = vmatmul.mubr.f32.gmra.mrb[0].mxu0 %v4437
      %v4514 = vpop.f32.mrb[0].mxu0
      %v4515 = vadd.f32 0.0, %v4514
      %v4516 = vpop.f32.mrb[0].mxu0
      %4517 = vdwg.mxu0
      %4518 = vrot.lane.b32.xlu0 %v522, 112
      %v4519 = vpop.permute.xlu0 %4518
      %4520 = vrot.lane.b32.xlu0 %v527, 112
      %v4521 = vpop.permute.xlu0 %4520
      %4522 = vrot.lane.b32.xlu0 %v522, 80
      %v4523 = vpop.permute.xlu0 %4522
      %4524 = vrot.lane.b32.xlu0 %v527, 80
      %v4525 = vpop.permute.xlu0 %4524
      %v4526 = vsel %vm733, %v4519, 0
      %v4528 = vsel %vm733, %v4521, 0
      %v4530 = vsel %vm733, %v4523, 0
      %v4532 = vsel %vm733, %v4525, 0
      %4534 = vmatprep.subr.mxu0 0.0
      %4535 = vmatpush1.xpose.msra.mxu0 %v4530
      %4536 = vmatprep.subr.mxu0 0.0
      %4537 = vmatpush1.xpose.msra.mxu0 %v4532
      %4538 = vmatprep.subr.mxu0 0.0
      %4539 = vmatpush1.xpose.msra.mxu0 0.0
      %4540 = vmatprep.subr.mxu0 0.0
      %4541 = vmatpush1.xpose.msra.mxu0 0.0
      %4542 = vmatprep.subr.mxu0 0.0
      %4543 = vmatpush1.xpose.msra.mxu0 0.0
      %4544 = vmatprep.subr.mxu0 0.0
      %4545 = vmatpush1.xpose.msra.mxu0 0.0
      %4546 = vmatprep.subr.mxu0 0.0
      %4547 = vmatpush1.xpose.msra.mxu0 0.0
      %4548 = vmatprep.subr.mxu0 0.0
      %4549 = vmatpush1.xpose.msra.mxu0 0.0
      %4550 = vmatprep.subr.mxu0 0.0
      %4551 = vmatpush1.xpose.msra.mxu0 0.0
      %4552 = vmatprep.subr.mxu0 0.0
      %4553 = vmatpush1.xpose.msra.mxu0 0.0
      %4554 = vmatprep.subr.mxu0 0.0
      %4555 = vmatpush1.xpose.msra.mxu0 0.0
      %4556 = vmatprep.subr.mxu0 0.0
      %4557 = vmatpush1.xpose.msra.mxu0 0.0
      %4558 = vmatprep.subr.mxu0 0.0
      %4559 = vmatpush1.xpose.msra.mxu0 0.0
      %4560 = vmatprep.subr.mxu0 0.0
      %4561 = vmatpush1.xpose.msra.mxu0 0.0
      %4562 = vmatprep.subr.mxu0 0.0
      %4563 = vmatpush1.xpose.msra.mxu0 0.0
      %4564 = vmatprep.subr.mxu0 0.0
      %4565 = vmatpush1.xpose.msra.mxu0 0.0
      %4566 = vmatprep.subr.mxu0 0.0
      %4567 = vmatpush1.xpose.msra.mxu0 0.0
      %4568 = vmatprep.subr.mxu0 0.0
      %4569 = vmatpush1.xpose.msra.mxu0 0.0
      %4570 = vmatprep.subr.mxu0 0.0
      %4571 = vmatpush1.xpose.msra.mxu0 0.0
      %4572 = vmatprep.subr.mxu0 0.0
      %4573 = vmatpush1.xpose.msra.mxu0 0.0
      %4574 = vmatprep.subr.mxu0 0.0
      %4575 = vmatpush1.xpose.msra.mxu0 0.0
      %4576 = vmatprep.subr.mxu0 0.0
      %4577 = vmatpush1.xpose.msra.mxu0 0.0
      %4578 = vmatprep.subr.mxu0 0.0
      %4579 = vmatpush1.xpose.msra.mxu0 0.0
      %4580 = vmatprep.subr.mxu0 0.0
      %4581 = vmatpush1.xpose.msra.mxu0 0.0
      %4582 = vmatprep.subr.mxu0 0.0
      %4583 = vmatpush1.xpose.msra.mxu0 0.0
      %4584 = vmatprep.subr.mxu0 0.0
      %4585 = vmatpush1.xpose.msra.mxu0 0.0
      %4586 = vmatprep.subr.mxu0 0.0
      %4587 = vmatpush1.xpose.msra.mxu0 0.0
      %4588 = vmatprep.subr.mxu0 0.0
      %4589 = vmatpush1.xpose.msra.mxu0 0.0
      %4590 = vmatprep.subr.mxu0 0.0
      %4591 = vmatpush1.xpose.msra.mxu0 0.0
      %4592 = vmatprep.subr.mxu0 0.0
      %4593 = vmatpush1.xpose.msra.mxu0 0.0
      %4594 = vmatprep.subr.mxu0 0.0
      %4595 = vmatpush1.xpose.msra.mxu0 0.0
      %4596 = vmatprep.subr.mxu0 0.0
      %4597 = vmatpush1.xpose.msra.mxu0 0.0
      %4598 = vmatprep.mubr.f32.mxu0 0.0
      %4599 = vmatmul.mubr.f32.gmra.mrb[0].mxu0 %v4526
      %v4600 = vpop.f32.mrb[0].mxu0
      %v4601 = vadd.f32 0.0, %v4600
      %v4602 = vpop.f32.mrb[0].mxu0
      %4603 = vmatprep.mubr.f32.mxu0 0.0
      %4604 = vmatmul.mubr.f32.gmra.mrb[0].mxu0 %v4528
      %v4605 = vpop.f32.mrb[0].mxu0
      %v4606 = vadd.f32 0.0, %v4605
      %v4607 = vpop.f32.mrb[0].mxu0
      %4608 = vdwg.mxu0
      %v4609 = vsel %vm1440, %v3964, -inf
      %4610 = vmax.xlane.f32.xlu0 %v4609
      %v4611 = vpop.xlane.xlu0 %4610
      %v4612 = vsel %vm1440, %v3969, -inf
      %4613 = vmax.xlane.f32.xlu0 %v4612
      %v4614 = vpop.xlane.xlu0 %4613
      %v4615 = vsel %vm1440, %v4055, -inf
      %4616 = vmax.xlane.f32.xlu0 %v4615
      %v4617 = vpop.xlane.xlu0 %4616
      %v4618 = vsel %vm1440, %v4060, -inf
      %4619 = vmax.xlane.f32.xlu0 %v4618
      %v4620 = vpop.xlane.xlu0 %4619
      %v4621 = vsel %vm1440, %v4146, -inf
      %4622 = vmax.xlane.f32.xlu0 %v4621
      %v4623 = vpop.xlane.xlu0 %4622
      %v4624 = vsel %vm1440, %v4151, -inf
      %4625 = vmax.xlane.f32.xlu0 %v4624
      %v4626 = vpop.xlane.xlu0 %4625
      %v4627 = vsel %vm1440, %v4237, -inf
      %4628 = vmax.xlane.f32.xlu0 %v4627
      %v4629 = vpop.xlane.xlu0 %4628
      %v4630 = vsel %vm1440, %v4242, -inf
      %4631 = vmax.xlane.f32.xlu0 %v4630
      %v4632 = vpop.xlane.xlu0 %4631
      %v4633 = vsel %vm1440, %v4328, -inf
      %4634 = vmax.xlane.f32.xlu0 %v4633
      %v4635 = vpop.xlane.xlu0 %4634
      %v4636 = vsel %vm1440, %v4333, -inf
      %4637 = vmax.xlane.f32.xlu0 %v4636
      %v4638 = vpop.xlane.xlu0 %4637
      %v4639 = vsel %vm1440, %v4419, -inf
      %4640 = vmax.xlane.f32.xlu0 %v4639
      %v4641 = vpop.xlane.xlu0 %4640
      %v4642 = vsel %vm1440, %v4424, -inf
      %4643 = vmax.xlane.f32.xlu0 %v4642
      %v4644 = vpop.xlane.xlu0 %4643
      %v4645 = vsel %vm1440, %v4510, -inf
      %4646 = vmax.xlane.f32.xlu0 %v4645
      %v4647 = vpop.xlane.xlu0 %4646
      %v4648 = vsel %vm1440, %v4515, -inf
      %4649 = vmax.xlane.f32.xlu0 %v4648
      %v4650 = vpop.xlane.xlu0 %4649
      %v4651 = vsel %vm1440, %v4601, -inf
      %4652 = vmax.xlane.f32.xlu0 %v4651
      %v4653 = vpop.xlane.xlu0 %4652
      %v4654 = vsel %vm1440, %v4606, -inf
      %4655 = vmax.xlane.f32.xlu0 %v4654
      %v4656 = vpop.xlane.xlu0 %4655
      %v4657 = vsub.f32 %v3964, %v4611
      %v4658 = vsub.f32 %v3969, %v4614
      %v4659 = vsub.f32 %v4055, %v4617
      %v4660 = vsub.f32 %v4060, %v4620
      %v4661 = vsub.f32 %v4146, %v4623
      %v4662 = vsub.f32 %v4151, %v4626
      %v4663 = vsub.f32 %v4237, %v4629
      %v4664 = vsub.f32 %v4242, %v4632
      %v4665 = vsub.f32 %v4328, %v4635
      %v4666 = vsub.f32 %v4333, %v4638
      %v4667 = vsub.f32 %v4419, %v4641
      %v4668 = vsub.f32 %v4424, %v4644
      %v4669 = vsub.f32 %v4510, %v4647
      %v4670 = vsub.f32 %v4515, %v4650
      %v4671 = vsub.f32 %v4601, %v4653
      %v4672 = vsub.f32 %v4606, %v4656
      %v4673 = vmul.f32 %v4657, 1.442695
      %v4674 = vpow.pop %v4673
      %v4675 = vmul.f32 %v4658, 1.442695
      %v4676 = vpow.pop %v4675
      %v4677 = vmul.f32 %v4659, 1.442695
      %v4678 = vpow.pop %v4677
      %v4679 = vmul.f32 %v4660, 1.442695
      %v4680 = vpow.pop %v4679
      %v4681 = vmul.f32 %v4661, 1.442695
      %v4682 = vpow.pop %v4681
      %v4683 = vmul.f32 %v4662, 1.442695
      %v4684 = vpow.pop %v4683
      %v4685 = vmul.f32 %v4663, 1.442695
      %v4686 = vpow.pop %v4685
      %v4687 = vmul.f32 %v4664, 1.442695
      %v4688 = vpow.pop %v4687
      %v4689 = vmul.f32 %v4665, 1.442695
      %v4690 = vpow.pop %v4689
      %v4691 = vmul.f32 %v4666, 1.442695
      %v4692 = vpow.pop %v4691
      %v4693 = vmul.f32 %v4667, 1.442695
      %v4694 = vpow.pop %v4693
      %v4695 = vmul.f32 %v4668, 1.442695
      %v4696 = vpow.pop %v4695
      %v4697 = vmul.f32 %v4669, 1.442695
      %v4698 = vpow.pop %v4697
      %v4699 = vmul.f32 %v4670, 1.442695
      %v4700 = vpow.pop %v4699
      %v4701 = vmul.f32 %v4671, 1.442695
      %v4702 = vpow.pop %v4701
      %v4703 = vmul.f32 %v4672, 1.442695
      %v4704 = vpow.pop %v4703
      %v4705 = vsel %vm1440, %v4674, 0.0
      %4706 = vadd.xlane.f32.xlu0 %v4705
      %v4707 = vpop.xlane.xlu0 %4706
      %v4708 = vsel %vm1440, %v4676, 0.0
      %4709 = vadd.xlane.f32.xlu0 %v4708
      %v4710 = vpop.xlane.xlu0 %4709
      %v4711 = vsel %vm1440, %v4678, 0.0
      %4712 = vadd.xlane.f32.xlu0 %v4711
      %v4713 = vpop.xlane.xlu0 %4712
      %v4714 = vsel %vm1440, %v4680, 0.0
      %4715 = vadd.xlane.f32.xlu0 %v4714
      %v4716 = vpop.xlane.xlu0 %4715
      %v4717 = vsel %vm1440, %v4682, 0.0
      %4718 = vadd.xlane.f32.xlu0 %v4717
      %v4719 = vpop.xlane.xlu0 %4718
      %v4720 = vsel %vm1440, %v4684, 0.0
      %4721 = vadd.xlane.f32.xlu0 %v4720
      %v4722 = vpop.xlane.xlu0 %4721
      %v4723 = vsel %vm1440, %v4686, 0.0
      %4724 = vadd.xlane.f32.xlu0 %v4723
      %v4725 = vpop.xlane.xlu0 %4724
      %v4726 = vsel %vm1440, %v4688, 0.0
      %4727 = vadd.xlane.f32.xlu0 %v4726
      %v4728 = vpop.xlane.xlu0 %4727
      %v4729 = vsel %vm1440, %v4690, 0.0
      %4730 = vadd.xlane.f32.xlu0 %v4729
      %v4731 = vpop.xlane.xlu0 %4730
      %v4732 = vsel %vm1440, %v4692, 0.0
      %4733 = vadd.xlane.f32.xlu0 %v4732
      %v4734 = vpop.xlane.xlu0 %4733
      %v4735 = vsel %vm1440, %v4694, 0.0
      %4736 = vadd.xlane.f32.xlu0 %v4735
      %v4737 = vpop.xlane.xlu0 %4736
      %v4738 = vsel %vm1440, %v4696, 0.0
      %4739 = vadd.xlane.f32.xlu0 %v4738
      %v4740 = vpop.xlane.xlu0 %4739
      %v4741 = vsel %vm1440, %v4698, 0.0
      %4742 = vadd.xlane.f32.xlu0 %v4741
      %v4743 = vpop.xlane.xlu0 %4742
      %v4744 = vsel %vm1440, %v4700, 0.0
      %4745 = vadd.xlane.f32.xlu0 %v4744
      %v4746 = vpop.xlane.xlu0 %4745
      %v4747 = vsel %vm1440, %v4702, 0.0
      %4748 = vadd.xlane.f32.xlu0 %v4747
      %v4749 = vpop.xlane.xlu0 %4748
      %v4750 = vsel %vm1440, %v4704, 0.0
      %4751 = vadd.xlane.f32.xlu0 %v4750
      %v4752 = vpop.xlane.xlu0 %4751
      %v4753 = vrcp.pop %v4707
      %v4754 = vrcp.pop %v4710
      %v4755 = vrcp.pop %v4713
      %v4756 = vrcp.pop %v4716
      %v4757 = vrcp.pop %v4719
      %v4758 = vrcp.pop %v4722
      %v4759 = vrcp.pop %v4725
      %v4760 = vrcp.pop %v4728
      %v4761 = vrcp.pop %v4731
      %v4762 = vrcp.pop %v4734
      %v4763 = vrcp.pop %v4737
      %v4764 = vrcp.pop %v4740
      %v4765 = vrcp.pop %v4743
      %v4766 = vrcp.pop %v4746
      %v4767 = vrcp.pop %v4749
      %v4768 = vrcp.pop %v4752
      %v4769 = vmul.f32 %v4674, %v4753
      %v4770 = vmul.f32 %v4676, %v4754
      %v4771 = vmul.f32 %v4678, %v4755
      %v4772 = vmul.f32 %v4680, %v4756
      %v4773 = vmul.f32 %v4682, %v4757
      %v4774 = vmul.f32 %v4684, %v4758
      %v4775 = vmul.f32 %v4686, %v4759
      %v4776 = vmul.f32 %v4688, %v4760
      %v4777 = vmul.f32 %v4690, %v4761
      %v4778 = vmul.f32 %v4692, %v4762
      %v4779 = vmul.f32 %v4694, %v4763
      %v4780 = vmul.f32 %v4696, %v4764
      %v4781 = vmul.f32 %v4698, %v4765
      %v4782 = vmul.f32 %v4700, %v4766
      %v4783 = vmul.f32 %v4702, %v4767
      %v4784 = vmul.f32 %v4704, %v4768
      %4785 = vrot.lane.b32.xlu0 %v649, 64
      %v4786 = vpop.permute.xlu0 %4785
      %4787 = vrot.lane.b32.xlu0 %v654, 64
      %v4788 = vpop.permute.xlu0 %4787
      %v4792 = vsel %vm1440, %v4769, 0
      %v4795 = vsel %vm1440, %v4770, 0
      %4797 = vmatprep.subr.mxu0 0.0
      %4798 = vmatpush1.msra.mxu0 %v4786
      %4799 = vmatprep.subr.mxu0 0.0
      %4800 = vmatpush1.msra.mxu0 %v4788
      %4801 = vmatprep.subr.mxu0 0.0
      %4802 = vmatpush1.msra.mxu0 0.0
      %4803 = vmatprep.subr.mxu0 0.0
      %4804 = vmatpush1.msra.mxu0 0.0
      %4805 = vmatprep.subr.mxu0 0.0
      %4806 = vmatpush1.msra.mxu0 0.0
      %4807 = vmatprep.subr.mxu0 0.0
      %4808 = vmatpush1.msra.mxu0 0.0
      %4809 = vmatprep.subr.mxu0 0.0
      %4810 = vmatpush1.msra.mxu0 0.0
      %4811 = vmatprep.subr.mxu0 0.0
      %4812 = vmatpush1.msra.mxu0 0.0
      %4813 = vmatprep.subr.mxu0 0.0
      %4814 = vmatpush1.msra.mxu0 0.0
      %4815 = vmatprep.subr.mxu0 0.0
      %4816 = vmatpush1.msra.mxu0 0.0
      %4817 = vmatprep.subr.mxu0 0.0
      %4818 = vmatpush1.msra.mxu0 0.0
      %4819 = vmatprep.subr.mxu0 0.0
      %4820 = vmatpush1.msra.mxu0 0.0
      %4821 = vmatprep.subr.mxu0 0.0
      %4822 = vmatpush1.msra.mxu0 0.0
      %4823 = vmatprep.subr.mxu0 0.0
      %4824 = vmatpush1.msra.mxu0 0.0
      %4825 = vmatprep.subr.mxu0 0.0
      %4826 = vmatpush1.msra.mxu0 0.0
      %4827 = vmatprep.subr.mxu0 0.0
      %4828 = vmatpush1.msra.mxu0 0.0
      %4829 = vmatprep.subr.mxu0 0.0
      %4830 = vmatpush1.msra.mxu0 0.0
      %4831 = vmatprep.subr.mxu0 0.0
      %4832 = vmatpush1.msra.mxu0 0.0
      %4833 = vmatprep.subr.mxu0 0.0
      %4834 = vmatpush1.msra.mxu0 0.0
      %4835 = vmatprep.subr.mxu0 0.0
      %4836 = vmatpush1.msra.mxu0 0.0
      %4837 = vmatprep.subr.mxu0 0.0
      %4838 = vmatpush1.msra.mxu0 0.0
      %4839 = vmatprep.subr.mxu0 0.0
      %4840 = vmatpush1.msra.mxu0 0.0
      %4841 = vmatprep.subr.mxu0 0.0
      %4842 = vmatpush1.msra.mxu0 0.0
      %4843 = vmatprep.subr.mxu0 0.0
      %4844 = vmatpush1.msra.mxu0 0.0
      %4845 = vmatprep.subr.mxu0 0.0
      %4846 = vmatpush1.msra.mxu0 0.0
      %4847 = vmatprep.subr.mxu0 0.0
      %4848 = vmatpush1.msra.mxu0 0.0
      %4849 = vmatprep.subr.mxu0 0.0
      %4850 = vmatpush1.msra.mxu0 0.0
      %4851 = vmatprep.subr.mxu0 0.0
      %4852 = vmatpush1.msra.mxu0 0.0
      %4853 = vmatprep.subr.mxu0 0.0
      %4854 = vmatpush1.msra.mxu0 0.0
      %4855 = vmatprep.subr.mxu0 0.0
      %4856 = vmatpush1.msra.mxu0 0.0
      %4857 = vmatprep.subr.mxu0 0.0
      %4858 = vmatpush1.msra.mxu0 0.0
      %4859 = vmatprep.subr.mxu0 0.0
      %4860 = vmatpush1.msra.mxu0 0.0
      %4861 = vmatprep.mubr.f32.mxu0 0.0
      %4862 = vmatmul.mubr.f32.gmra.mrb[0].mxu0 %v4792
      %v4863 = vpop.f32.mrb[0].mxu0
      %v4864 = vadd.f32 0.0, %v4863
      %v4865 = vpop.f32.mrb[0].mxu0
      %4866 = vmatprep.mubr.f32.mxu0 0.0
      %4867 = vmatmul.mubr.f32.gmra.mrb[0].mxu0 %v4795
      %v4868 = vpop.f32.mrb[0].mxu0
      %v4869 = vadd.f32 0.0, %v4868
      %v4870 = vpop.f32.mrb[0].mxu0
      %4871 = vdwg.mxu0
      %4872 = vrot.lane.b32.xlu0 %v659, 64
      %v4873 = vpop.permute.xlu0 %4872
      %4874 = vrot.lane.b32.xlu0 %v664, 64
      %v4875 = vpop.permute.xlu0 %4874
      %v4879 = vsel %vm1440, %v4771, 0
      %v4882 = vsel %vm1440, %v4772, 0
      %4884 = vmatprep.subr.mxu0 0.0
      %4885 = vmatpush1.msra.mxu0 %v4873
      %4886 = vmatprep.subr.mxu0 0.0
      %4887 = vmatpush1.msra.mxu0 %v4875
      %4888 = vmatprep.subr.mxu0 0.0
      %4889 = vmatpush1.msra.mxu0 0.0
      %4890 = vmatprep.subr.mxu0 0.0
      %4891 = vmatpush1.msra.mxu0 0.0
      %4892 = vmatprep.subr.mxu0 0.0
      %4893 = vmatpush1.msra.mxu0 0.0
      %4894 = vmatprep.subr.mxu0 0.0
      %4895 = vmatpush1.msra.mxu0 0.0
      %4896 = vmatprep.subr.mxu0 0.0
      %4897 = vmatpush1.msra.mxu0 0.0
      %4898 = vmatprep.subr.mxu0 0.0
      %4899 = vmatpush1.msra.mxu0 0.0
      %4900 = vmatprep.subr.mxu0 0.0
      %4901 = vmatpush1.msra.mxu0 0.0
      %4902 = vmatprep.subr.mxu0 0.0
      %4903 = vmatpush1.msra.mxu0 0.0
      %4904 = vmatprep.subr.mxu0 0.0
      %4905 = vmatpush1.msra.mxu0 0.0
      %4906 = vmatprep.subr.mxu0 0.0
      %4907 = vmatpush1.msra.mxu0 0.0
      %4908 = vmatprep.subr.mxu0 0.0
      %4909 = vmatpush1.msra.mxu0 0.0
      %4910 = vmatprep.subr.mxu0 0.0
      %4911 = vmatpush1.msra.mxu0 0.0
      %4912 = vmatprep.subr.mxu0 0.0
      %4913 = vmatpush1.msra.mxu0 0.0
      %4914 = vmatprep.subr.mxu0 0.0
      %4915 = vmatpush1.msra.mxu0 0.0
      %4916 = vmatprep.subr.mxu0 0.0
      %4917 = vmatpush1.msra.mxu0 0.0
      %4918 = vmatprep.subr.mxu0 0.0
      %4919 = vmatpush1.msra.mxu0 0.0
      %4920 = vmatprep.subr.mxu0 0.0
      %4921 = vmatpush1.msra.mxu0 0.0
      %4922 = vmatprep.subr.mxu0 0.0
      %4923 = vmatpush1.msra.mxu0 0.0
      %4924 = vmatprep.subr.mxu0 0.0
      %4925 = vmatpush1.msra.mxu0 0.0
      %4926 = vmatprep.subr.mxu0 0.0
      %4927 = vmatpush1.msra.mxu0 0.0
      %4928 = vmatprep.subr.mxu0 0.0
      %4929 = vmatpush1.msra.mxu0 0.0
      %4930 = vmatprep.subr.mxu0 0.0
      %4931 = vmatpush1.msra.mxu0 0.0
      %4932 = vmatprep.subr.mxu0 0.0
      %4933 = vmatpush1.msra.mxu0 0.0
      %4934 = vmatprep.subr.mxu0 0.0
      %4935 = vmatpush1.msra.mxu0 0.0
      %4936 = vmatprep.subr.mxu0 0.0
      %4937 = vmatpush1.msra.mxu0 0.0
      %4938 = vmatprep.subr.mxu0 0.0
      %4939 = vmatpush1.msra.mxu0 0.0
      %4940 = vmatprep.subr.mxu0 0.0
      %4941 = vmatpush1.msra.mxu0 0.0
      %4942 = vmatprep.subr.mxu0 0.0
      %4943 = vmatpush1.msra.mxu0 0.0
      %4944 = vmatprep.subr.mxu0 0.0
      %4945 = vmatpush1.msra.mxu0 0.0
      %4946 = vmatprep.subr.mxu0 0.0
      %4947 = vmatpush1.msra.mxu0 0.0
      %4948 = vmatprep.mubr.f32.mxu0 0.0
      %4949 = vmatmul.mubr.f32.gmra.mrb[0].mxu0 %v4879
      %v4950 = vpop.f32.mrb[0].mxu0
      %v4951 = vadd.f32 0.0, %v4950
      %v4952 = vpop.f32.mrb[0].mxu0
      %4953 = vmatprep.mubr.f32.mxu0 0.0
      %4954 = vmatmul.mubr.f32.gmra.mrb[0].mxu0 %v4882
      %v4955 = vpop.f32.mrb[0].mxu0
      %v4956 = vadd.f32 0.0, %v4955
      %v4957 = vpop.f32.mrb[0].mxu0
      %4958 = vdwg.mxu0
      %4959 = vrot.lane.b32.xlu0 %v669, 64
      %v4960 = vpop.permute.xlu0 %4959
      %4961 = vrot.lane.b32.xlu0 %v674, 64
      %v4962 = vpop.permute.xlu0 %4961
      %v4966 = vsel %vm1440, %v4773, 0
      %v4969 = vsel %vm1440, %v4774, 0
      %4971 = vmatprep.subr.mxu0 0.0
      %4972 = vmatpush1.msra.mxu0 %v4960
      %4973 = vmatprep.subr.mxu0 0.0
      %4974 = vmatpush1.msra.mxu0 %v4962
      %4975 = vmatprep.subr.mxu0 0.0
      %4976 = vmatpush1.msra.mxu0 0.0
      %4977 = vmatprep.subr.mxu0 0.0
      %4978 = vmatpush1.msra.mxu0 0.0
      %4979 = vmatprep.subr.mxu0 0.0
      %4980 = vmatpush1.msra.mxu0 0.0
      %4981 = vmatprep.subr.mxu0 0.0
      %4982 = vmatpush1.msra.mxu0 0.0
      %4983 = vmatprep.subr.mxu0 0.0
      %4984 = vmatpush1.msra.mxu0 0.0
      %4985 = vmatprep.subr.mxu0 0.0
      %4986 = vmatpush1.msra.mxu0 0.0
      %4987 = vmatprep.subr.mxu0 0.0
      %4988 = vmatpush1.msra.mxu0 0.0
      %4989 = vmatprep.subr.mxu0 0.0
      %4990 = vmatpush1.msra.mxu0 0.0
      %4991 = vmatprep.subr.mxu0 0.0
      %4992 = vmatpush1.msra.mxu0 0.0
      %4993 = vmatprep.subr.mxu0 0.0
      %4994 = vmatpush1.msra.mxu0 0.0
      %4995 = vmatprep.subr.mxu0 0.0
      %4996 = vmatpush1.msra.mxu0 0.0
      %4997 = vmatprep.subr.mxu0 0.0
      %4998 = vmatpush1.msra.mxu0 0.0
      %4999 = vmatprep.subr.mxu0 0.0
      %5000 = vmatpush1.msra.mxu0 0.0
      %5001 = vmatprep.subr.mxu0 0.0
      %5002 = vmatpush1.msra.mxu0 0.0
      %5003 = vmatprep.subr.mxu0 0.0
      %5004 = vmatpush1.msra.mxu0 0.0
      %5005 = vmatprep.subr.mxu0 0.0
      %5006 = vmatpush1.msra.mxu0 0.0
      %5007 = vmatprep.subr.mxu0 0.0
      %5008 = vmatpush1.msra.mxu0 0.0
      %5009 = vmatprep.subr.mxu0 0.0
      %5010 = vmatpush1.msra.mxu0 0.0
      %5011 = vmatprep.subr.mxu0 0.0
      %5012 = vmatpush1.msra.mxu0 0.0
      %5013 = vmatprep.subr.mxu0 0.0
      %5014 = vmatpush1.msra.mxu0 0.0
      %5015 = vmatprep.subr.mxu0 0.0
      %5016 = vmatpush1.msra.mxu0 0.0
      %5017 = vmatprep.subr.mxu0 0.0
      %5018 = vmatpush1.msra.mxu0 0.0
      %5019 = vmatprep.subr.mxu0 0.0
      %5020 = vmatpush1.msra.mxu0 0.0
      %5021 = vmatprep.subr.mxu0 0.0
      %5022 = vmatpush1.msra.mxu0 0.0
      %5023 = vmatprep.subr.mxu0 0.0
      %5024 = vmatpush1.msra.mxu0 0.0
      %5025 = vmatprep.subr.mxu0 0.0
      %5026 = vmatpush1.msra.mxu0 0.0
      %5027 = vmatprep.subr.mxu0 0.0
      %5028 = vmatpush1.msra.mxu0 0.0
      %5029 = vmatprep.subr.mxu0 0.0
      %5030 = vmatpush1.msra.mxu0 0.0
      %5031 = vmatprep.subr.mxu0 0.0
      %5032 = vmatpush1.msra.mxu0 0.0
      %5033 = vmatprep.subr.mxu0 0.0
      %5034 = vmatpush1.msra.mxu0 0.0
      %5035 = vmatprep.mubr.f32.mxu0 0.0
      %5036 = vmatmul.mubr.f32.gmra.mrb[0].mxu0 %v4966
      %v5037 = vpop.f32.mrb[0].mxu0
      %v5038 = vadd.f32 0.0, %v5037
      %v5039 = vpop.f32.mrb[0].mxu0
      %5040 = vmatprep.mubr.f32.mxu0 0.0
      %5041 = vmatmul.mubr.f32.gmra.mrb[0].mxu0 %v4969
      %v5042 = vpop.f32.mrb[0].mxu0
      %v5043 = vadd.f32 0.0, %v5042
      %v5044 = vpop.f32.mrb[0].mxu0
      %5045 = vdwg.mxu0
      %5046 = vrot.lane.b32.xlu0 %v679, 64
      %v5047 = vpop.permute.xlu0 %5046
      %5048 = vrot.lane.b32.xlu0 %v684, 64
      %v5049 = vpop.permute.xlu0 %5048
      %v5053 = vsel %vm1440, %v4775, 0
      %v5056 = vsel %vm1440, %v4776, 0
      %5058 = vmatprep.subr.mxu0 0.0
      %5059 = vmatpush1.msra.mxu0 %v5047
      %5060 = vmatprep.subr.mxu0 0.0
      %5061 = vmatpush1.msra.mxu0 %v5049
      %5062 = vmatprep.subr.mxu0 0.0
      %5063 = vmatpush1.msra.mxu0 0.0
      %5064 = vmatprep.subr.mxu0 0.0
      %5065 = vmatpush1.msra.mxu0 0.0
      %5066 = vmatprep.subr.mxu0 0.0
      %5067 = vmatpush1.msra.mxu0 0.0
      %5068 = vmatprep.subr.mxu0 0.0
      %5069 = vmatpush1.msra.mxu0 0.0
      %5070 = vmatprep.subr.mxu0 0.0
      %5071 = vmatpush1.msra.mxu0 0.0
      %5072 = vmatprep.subr.mxu0 0.0
      %5073 = vmatpush1.msra.mxu0 0.0
      %5074 = vmatprep.subr.mxu0 0.0
      %5075 = vmatpush1.msra.mxu0 0.0
      %5076 = vmatprep.subr.mxu0 0.0
      %5077 = vmatpush1.msra.mxu0 0.0
      %5078 = vmatprep.subr.mxu0 0.0
      %5079 = vmatpush1.msra.mxu0 0.0
      %5080 = vmatprep.subr.mxu0 0.0
      %5081 = vmatpush1.msra.mxu0 0.0
      %5082 = vmatprep.subr.mxu0 0.0
      %5083 = vmatpush1.msra.mxu0 0.0
      %5084 = vmatprep.subr.mxu0 0.0
      %5085 = vmatpush1.msra.mxu0 0.0
      %5086 = vmatprep.subr.mxu0 0.0
      %5087 = vmatpush1.msra.mxu0 0.0
      %5088 = vmatprep.subr.mxu0 0.0
      %5089 = vmatpush1.msra.mxu0 0.0
      %5090 = vmatprep.subr.mxu0 0.0
      %5091 = vmatpush1.msra.mxu0 0.0
      %5092 = vmatprep.subr.mxu0 0.0
      %5093 = vmatpush1.msra.mxu0 0.0
      %5094 = vmatprep.subr.mxu0 0.0
      %5095 = vmatpush1.msra.mxu0 0.0
      %5096 = vmatprep.subr.mxu0 0.0
      %5097 = vmatpush1.msra.mxu0 0.0
      %5098 = vmatprep.subr.mxu0 0.0
      %5099 = vmatpush1.msra.mxu0 0.0
      %5100 = vmatprep.subr.mxu0 0.0
      %5101 = vmatpush1.msra.mxu0 0.0
      %5102 = vmatprep.subr.mxu0 0.0
      %5103 = vmatpush1.msra.mxu0 0.0
      %5104 = vmatprep.subr.mxu0 0.0
      %5105 = vmatpush1.msra.mxu0 0.0
      %5106 = vmatprep.subr.mxu0 0.0
      %5107 = vmatpush1.msra.mxu0 0.0
      %5108 = vmatprep.subr.mxu0 0.0
      %5109 = vmatpush1.msra.mxu0 0.0
      %5110 = vmatprep.subr.mxu0 0.0
      %5111 = vmatpush1.msra.mxu0 0.0
      %5112 = vmatprep.subr.mxu0 0.0
      %5113 = vmatpush1.msra.mxu0 0.0
      %5114 = vmatprep.subr.mxu0 0.0
      %5115 = vmatpush1.msra.mxu0 0.0
      %5116 = vmatprep.subr.mxu0 0.0
      %5117 = vmatpush1.msra.mxu0 0.0
      %5118 = vmatprep.subr.mxu0 0.0
      %5119 = vmatpush1.msra.mxu0 0.0
      %5120 = vmatprep.subr.mxu0 0.0
      %5121 = vmatpush1.msra.mxu0 0.0
      %5122 = vmatprep.mubr.f32.mxu0 0.0
      %5123 = vmatmul.mubr.f32.gmra.mrb[0].mxu0 %v5053
      %v5124 = vpop.f32.mrb[0].mxu0
      %v5125 = vadd.f32 0.0, %v5124
      %v5126 = vpop.f32.mrb[0].mxu0
      %5127 = vmatprep.mubr.f32.mxu0 0.0
      %5128 = vmatmul.mubr.f32.gmra.mrb[0].mxu0 %v5056
      %v5129 = vpop.f32.mrb[0].mxu0
      %v5130 = vadd.f32 0.0, %v5129
      %v5131 = vpop.f32.mrb[0].mxu0
      %5132 = vdwg.mxu0
      %5133 = vrot.lane.b32.xlu0 %v689, 64
      %v5134 = vpop.permute.xlu0 %5133
      %5135 = vrot.lane.b32.xlu0 %v694, 64
      %v5136 = vpop.permute.xlu0 %5135
      %v5140 = vsel %vm1440, %v4777, 0
      %v5143 = vsel %vm1440, %v4778, 0
      %5145 = vmatprep.subr.mxu0 0.0
      %5146 = vmatpush1.msra.mxu0 %v5134
      %5147 = vmatprep.subr.mxu0 0.0
      %5148 = vmatpush1.msra.mxu0 %v5136
      %5149 = vmatprep.subr.mxu0 0.0
      %5150 = vmatpush1.msra.mxu0 0.0
      %5151 = vmatprep.subr.mxu0 0.0
      %5152 = vmatpush1.msra.mxu0 0.0
      %5153 = vmatprep.subr.mxu0 0.0
      %5154 = vmatpush1.msra.mxu0 0.0
      %5155 = vmatprep.subr.mxu0 0.0
      %5156 = vmatpush1.msra.mxu0 0.0
      %5157 = vmatprep.subr.mxu0 0.0
      %5158 = vmatpush1.msra.mxu0 0.0
      %5159 = vmatprep.subr.mxu0 0.0
      %5160 = vmatpush1.msra.mxu0 0.0
      %5161 = vmatprep.subr.mxu0 0.0
      %5162 = vmatpush1.msra.mxu0 0.0
      %5163 = vmatprep.subr.mxu0 0.0
      %5164 = vmatpush1.msra.mxu0 0.0
      %5165 = vmatprep.subr.mxu0 0.0
      %5166 = vmatpush1.msra.mxu0 0.0
      %5167 = vmatprep.subr.mxu0 0.0
      %5168 = vmatpush1.msra.mxu0 0.0
      %5169 = vmatprep.subr.mxu0 0.0
      %5170 = vmatpush1.msra.mxu0 0.0
      %5171 = vmatprep.subr.mxu0 0.0
      %5172 = vmatpush1.msra.mxu0 0.0
      %5173 = vmatprep.subr.mxu0 0.0
      %5174 = vmatpush1.msra.mxu0 0.0
      %5175 = vmatprep.subr.mxu0 0.0
      %5176 = vmatpush1.msra.mxu0 0.0
      %5177 = vmatprep.subr.mxu0 0.0
      %5178 = vmatpush1.msra.mxu0 0.0
      %5179 = vmatprep.subr.mxu0 0.0
      %5180 = vmatpush1.msra.mxu0 0.0
      %5181 = vmatprep.subr.mxu0 0.0
      %5182 = vmatpush1.msra.mxu0 0.0
      %5183 = vmatprep.subr.mxu0 0.0
      %5184 = vmatpush1.msra.mxu0 0.0
      %5185 = vmatprep.subr.mxu0 0.0
      %5186 = vmatpush1.msra.mxu0 0.0
      %5187 = vmatprep.subr.mxu0 0.0
      %5188 = vmatpush1.msra.mxu0 0.0
      %5189 = vmatprep.subr.mxu0 0.0
      %5190 = vmatpush1.msra.mxu0 0.0
      %5191 = vmatprep.subr.mxu0 0.0
      %5192 = vmatpush1.msra.mxu0 0.0
      %5193 = vmatprep.subr.mxu0 0.0
      %5194 = vmatpush1.msra.mxu0 0.0
      %5195 = vmatprep.subr.mxu0 0.0
      %5196 = vmatpush1.msra.mxu0 0.0
      %5197 = vmatprep.subr.mxu0 0.0
      %5198 = vmatpush1.msra.mxu0 0.0
      %5199 = vmatprep.subr.mxu0 0.0
      %5200 = vmatpush1.msra.mxu0 0.0
      %5201 = vmatprep.subr.mxu0 0.0
      %5202 = vmatpush1.msra.mxu0 0.0
      %5203 = vmatprep.subr.mxu0 0.0
      %5204 = vmatpush1.msra.mxu0 0.0
      %5205 = vmatprep.subr.mxu0 0.0
      %5206 = vmatpush1.msra.mxu0 0.0
      %5207 = vmatprep.subr.mxu0 0.0
      %5208 = vmatpush1.msra.mxu0 0.0
      %5209 = vmatprep.mubr.f32.mxu0 0.0
      %5210 = vmatmul.mubr.f32.gmra.mrb[0].mxu0 %v5140
      %v5211 = vpop.f32.mrb[0].mxu0
      %v5212 = vadd.f32 0.0, %v5211
      %v5213 = vpop.f32.mrb[0].mxu0
      %5214 = vmatprep.mubr.f32.mxu0 0.0
      %5215 = vmatmul.mubr.f32.gmra.mrb[0].mxu0 %v5143
      %v5216 = vpop.f32.mrb[0].mxu0
      %v5217 = vadd.f32 0.0, %v5216
      %v5218 = vpop.f32.mrb[0].mxu0
      %5219 = vdwg.mxu0
      %5220 = vrot.lane.b32.xlu0 %v699, 64
      %v5221 = vpop.permute.xlu0 %5220
      %5222 = vrot.lane.b32.xlu0 %v704, 64
      %v5223 = vpop.permute.xlu0 %5222
      %v5227 = vsel %vm1440, %v4779, 0
      %v5230 = vsel %vm1440, %v4780, 0
      %5232 = vmatprep.subr.mxu0 0.0
      %5233 = vmatpush1.msra.mxu0 %v5221
      %5234 = vmatprep.subr.mxu0 0.0
      %5235 = vmatpush1.msra.mxu0 %v5223
      %5236 = vmatprep.subr.mxu0 0.0
      %5237 = vmatpush1.msra.mxu0 0.0
      %5238 = vmatprep.subr.mxu0 0.0
      %5239 = vmatpush1.msra.mxu0 0.0
      %5240 = vmatprep.subr.mxu0 0.0
      %5241 = vmatpush1.msra.mxu0 0.0
      %5242 = vmatprep.subr.mxu0 0.0
      %5243 = vmatpush1.msra.mxu0 0.0
      %5244 = vmatprep.subr.mxu0 0.0
      %5245 = vmatpush1.msra.mxu0 0.0
      %5246 = vmatprep.subr.mxu0 0.0
      %5247 = vmatpush1.msra.mxu0 0.0
      %5248 = vmatprep.subr.mxu0 0.0
      %5249 = vmatpush1.msra.mxu0 0.0
      %5250 = vmatprep.subr.mxu0 0.0
      %5251 = vmatpush1.msra.mxu0 0.0
      %5252 = vmatprep.subr.mxu0 0.0
      %5253 = vmatpush1.msra.mxu0 0.0
      %5254 = vmatprep.subr.mxu0 0.0
      %5255 = vmatpush1.msra.mxu0 0.0
      %5256 = vmatprep.subr.mxu0 0.0
      %5257 = vmatpush1.msra.mxu0 0.0
      %5258 = vmatprep.subr.mxu0 0.0
      %5259 = vmatpush1.msra.mxu0 0.0
      %5260 = vmatprep.subr.mxu0 0.0
      %5261 = vmatpush1.msra.mxu0 0.0
      %5262 = vmatprep.subr.mxu0 0.0
      %5263 = vmatpush1.msra.mxu0 0.0
      %5264 = vmatprep.subr.mxu0 0.0
      %5265 = vmatpush1.msra.mxu0 0.0
      %5266 = vmatprep.subr.mxu0 0.0
      %5267 = vmatpush1.msra.mxu0 0.0
      %5268 = vmatprep.subr.mxu0 0.0
      %5269 = vmatpush1.msra.mxu0 0.0
      %5270 = vmatprep.subr.mxu0 0.0
      %5271 = vmatpush1.msra.mxu0 0.0
      %5272 = vmatprep.subr.mxu0 0.0
      %5273 = vmatpush1.msra.mxu0 0.0
      %5274 = vmatprep.subr.mxu0 0.0
      %5275 = vmatpush1.msra.mxu0 0.0
      %5276 = vmatprep.subr.mxu0 0.0
      %5277 = vmatpush1.msra.mxu0 0.0
      %5278 = vmatprep.subr.mxu0 0.0
      %5279 = vmatpush1.msra.mxu0 0.0
      %5280 = vmatprep.subr.mxu0 0.0
      %5281 = vmatpush1.msra.mxu0 0.0
      %5282 = vmatprep.subr.mxu0 0.0
      %5283 = vmatpush1.msra.mxu0 0.0
      %5284 = vmatprep.subr.mxu0 0.0
      %5285 = vmatpush1.msra.mxu0 0.0
      %5286 = vmatprep.subr.mxu0 0.0
      %5287 = vmatpush1.msra.mxu0 0.0
      %5288 = vmatprep.subr.mxu0 0.0
      %5289 = vmatpush1.msra.mxu0 0.0
      %5290 = vmatprep.subr.mxu0 0.0
      %5291 = vmatpush1.msra.mxu0 0.0
      %5292 = vmatprep.subr.mxu0 0.0
      %5293 = vmatpush1.msra.mxu0 0.0
      %5294 = vmatprep.subr.mxu0 0.0
      %5295 = vmatpush1.msra.mxu0 0.0
      %5296 = vmatprep.mubr.f32.mxu0 0.0
      %5297 = vmatmul.mubr.f32.gmra.mrb[0].mxu0 %v5227
      %v5298 = vpop.f32.mrb[0].mxu0
      %v5299 = vadd.f32 0.0, %v5298
      %v5300 = vpop.f32.mrb[0].mxu0
      %5301 = vmatprep.mubr.f32.mxu0 0.0
      %5302 = vmatmul.mubr.f32.gmra.mrb[0].mxu0 %v5230
      %v5303 = vpop.f32.mrb[0].mxu0
      %v5304 = vadd.f32 0.0, %v5303
      %v5305 = vpop.f32.mrb[0].mxu0
      %5306 = vdwg.mxu0
      %5307 = vrot.lane.b32.xlu0 %v709, 64
      %v5308 = vpop.permute.xlu0 %5307
      %5309 = vrot.lane.b32.xlu0 %v714, 64
      %v5310 = vpop.permute.xlu0 %5309
      %v5314 = vsel %vm1440, %v4781, 0
      %v5317 = vsel %vm1440, %v4782, 0
      %5319 = vmatprep.subr.mxu0 0.0
      %5320 = vmatpush1.msra.mxu0 %v5308
      %5321 = vmatprep.subr.mxu0 0.0
      %5322 = vmatpush1.msra.mxu0 %v5310
      %5323 = vmatprep.subr.mxu0 0.0
      %5324 = vmatpush1.msra.mxu0 0.0
      %5325 = vmatprep.subr.mxu0 0.0
      %5326 = vmatpush1.msra.mxu0 0.0
      %5327 = vmatprep.subr.mxu0 0.0
      %5328 = vmatpush1.msra.mxu0 0.0
      %5329 = vmatprep.subr.mxu0 0.0
      %5330 = vmatpush1.msra.mxu0 0.0
      %5331 = vmatprep.subr.mxu0 0.0
      %5332 = vmatpush1.msra.mxu0 0.0
      %5333 = vmatprep.subr.mxu0 0.0
      %5334 = vmatpush1.msra.mxu0 0.0
      %5335 = vmatprep.subr.mxu0 0.0
      %5336 = vmatpush1.msra.mxu0 0.0
      %5337 = vmatprep.subr.mxu0 0.0
      %5338 = vmatpush1.msra.mxu0 0.0
      %5339 = vmatprep.subr.mxu0 0.0
      %5340 = vmatpush1.msra.mxu0 0.0
      %5341 = vmatprep.subr.mxu0 0.0
      %5342 = vmatpush1.msra.mxu0 0.0
      %5343 = vmatprep.subr.mxu0 0.0
      %5344 = vmatpush1.msra.mxu0 0.0
      %5345 = vmatprep.subr.mxu0 0.0
      %5346 = vmatpush1.msra.mxu0 0.0
      %5347 = vmatprep.subr.mxu0 0.0
      %5348 = vmatpush1.msra.mxu0 0.0
      %5349 = vmatprep.subr.mxu0 0.0
      %5350 = vmatpush1.msra.mxu0 0.0
      %5351 = vmatprep.subr.mxu0 0.0
      %5352 = vmatpush1.msra.mxu0 0.0
      %5353 = vmatprep.subr.mxu0 0.0
      %5354 = vmatpush1.msra.mxu0 0.0
      %5355 = vmatprep.subr.mxu0 0.0
      %5356 = vmatpush1.msra.mxu0 0.0
      %5357 = vmatprep.subr.mxu0 0.0
      %5358 = vmatpush1.msra.mxu0 0.0
      %5359 = vmatprep.subr.mxu0 0.0
      %5360 = vmatpush1.msra.mxu0 0.0
      %5361 = vmatprep.subr.mxu0 0.0
      %5362 = vmatpush1.msra.mxu0 0.0
      %5363 = vmatprep.subr.mxu0 0.0
      %5364 = vmatpush1.msra.mxu0 0.0
      %5365 = vmatprep.subr.mxu0 0.0
      %5366 = vmatpush1.msra.mxu0 0.0
      %5367 = vmatprep.subr.mxu0 0.0
      %5368 = vmatpush1.msra.mxu0 0.0
      %5369 = vmatprep.subr.mxu0 0.0
      %5370 = vmatpush1.msra.mxu0 0.0
      %5371 = vmatprep.subr.mxu0 0.0
      %5372 = vmatpush1.msra.mxu0 0.0
      %5373 = vmatprep.subr.mxu0 0.0
      %5374 = vmatpush1.msra.mxu0 0.0
      %5375 = vmatprep.subr.mxu0 0.0
      %5376 = vmatpush1.msra.mxu0 0.0
      %5377 = vmatprep.subr.mxu0 0.0
      %5378 = vmatpush1.msra.mxu0 0.0
      %5379 = vmatprep.subr.mxu0 0.0
      %5380 = vmatpush1.msra.mxu0 0.0
      %5381 = vmatprep.subr.mxu0 0.0
      %5382 = vmatpush1.msra.mxu0 0.0
      %5383 = vmatprep.mubr.f32.mxu0 0.0
      %5384 = vmatmul.mubr.f32.gmra.mrb[0].mxu0 %v5314
      %v5385 = vpop.f32.mrb[0].mxu0
      %v5386 = vadd.f32 0.0, %v5385
      %v5387 = vpop.f32.mrb[0].mxu0
      %5388 = vmatprep.mubr.f32.mxu0 0.0
      %5389 = vmatmul.mubr.f32.gmra.mrb[0].mxu0 %v5317
      %v5390 = vpop.f32.mrb[0].mxu0
      %v5391 = vadd.f32 0.0, %v5390
      %v5392 = vpop.f32.mrb[0].mxu0
      %5393 = vdwg.mxu0
      %5394 = vrot.lane.b32.xlu0 %v719, 64
      %v5395 = vpop.permute.xlu0 %5394
      %5396 = vrot.lane.b32.xlu0 %v724, 64
      %v5397 = vpop.permute.xlu0 %5396
      %v5401 = vsel %vm1440, %v4783, 0
      %v5404 = vsel %vm1440, %v4784, 0
      %5406 = vmatprep.subr.mxu0 0.0
      %5407 = vmatpush1.msra.mxu0 %v5395
      %5408 = vmatprep.subr.mxu0 0.0
      %5409 = vmatpush1.msra.mxu0 %v5397
      %5410 = vmatprep.subr.mxu0 0.0
      %5411 = vmatpush1.msra.mxu0 0.0
      %5412 = vmatprep.subr.mxu0 0.0
      %5413 = vmatpush1.msra.mxu0 0.0
      %5414 = vmatprep.subr.mxu0 0.0
      %5415 = vmatpush1.msra.mxu0 0.0
      %5416 = vmatprep.subr.mxu0 0.0
      %5417 = vmatpush1.msra.mxu0 0.0
      %5418 = vmatprep.subr.mxu0 0.0
      %5419 = vmatpush1.msra.mxu0 0.0
      %5420 = vmatprep.subr.mxu0 0.0
      %5421 = vmatpush1.msra.mxu0 0.0
      %5422 = vmatprep.subr.mxu0 0.0
      %5423 = vmatpush1.msra.mxu0 0.0
      %5424 = vmatprep.subr.mxu0 0.0
      %5425 = vmatpush1.msra.mxu0 0.0
      %5426 = vmatprep.subr.mxu0 0.0
      %5427 = vmatpush1.msra.mxu0 0.0
      %5428 = vmatprep.subr.mxu0 0.0
      %5429 = vmatpush1.msra.mxu0 0.0
      %5430 = vmatprep.subr.mxu0 0.0
      %5431 = vmatpush1.msra.mxu0 0.0
      %5432 = vmatprep.subr.mxu0 0.0
      %5433 = vmatpush1.msra.mxu0 0.0
      %5434 = vmatprep.subr.mxu0 0.0
      %5435 = vmatpush1.msra.mxu0 0.0
      %5436 = vmatprep.subr.mxu0 0.0
      %5437 = vmatpush1.msra.mxu0 0.0
      %5438 = vmatprep.subr.mxu0 0.0
      %5439 = vmatpush1.msra.mxu0 0.0
      %5440 = vmatprep.subr.mxu0 0.0
      %5441 = vmatpush1.msra.mxu0 0.0
      %5442 = vmatprep.subr.mxu0 0.0
      %5443 = vmatpush1.msra.mxu0 0.0
      %5444 = vmatprep.subr.mxu0 0.0
      %5445 = vmatpush1.msra.mxu0 0.0
      %5446 = vmatprep.subr.mxu0 0.0
      %5447 = vmatpush1.msra.mxu0 0.0
      %5448 = vmatprep.subr.mxu0 0.0
      %5449 = vmatpush1.msra.mxu0 0.0
      %5450 = vmatprep.subr.mxu0 0.0
      %5451 = vmatpush1.msra.mxu0 0.0
      %5452 = vmatprep.subr.mxu0 0.0
      %5453 = vmatpush1.msra.mxu0 0.0
      %5454 = vmatprep.subr.mxu0 0.0
      %5455 = vmatpush1.msra.mxu0 0.0
      %5456 = vmatprep.subr.mxu0 0.0
      %5457 = vmatpush1.msra.mxu0 0.0
      %5458 = vmatprep.subr.mxu0 0.0
      %5459 = vmatpush1.msra.mxu0 0.0
      %5460 = vmatprep.subr.mxu0 0.0
      %5461 = vmatpush1.msra.mxu0 0.0
      %5462 = vmatprep.subr.mxu0 0.0
      %5463 = vmatpush1.msra.mxu0 0.0
      %5464 = vmatprep.subr.mxu0 0.0
      %5465 = vmatpush1.msra.mxu0 0.0
      %5466 = vmatprep.subr.mxu0 0.0
      %5467 = vmatpush1.msra.mxu0 0.0
      %5468 = vmatprep.subr.mxu0 0.0
      %5469 = vmatpush1.msra.mxu0 0.0
      %5470 = vmatprep.mubr.f32.mxu0 0.0
      %5471 = vmatmul.mubr.f32.gmra.mrb[0].mxu0 %v5401
      %v5472 = vpop.f32.mrb[0].mxu0
      %v5473 = vadd.f32 0.0, %v5472
      %v5474 = vpop.f32.mrb[0].mxu0
      %5475 = vmatprep.mubr.f32.mxu0 0.0
      %5476 = vmatmul.mubr.f32.gmra.mrb[0].mxu0 %v5404
      %v5477 = vpop.f32.mrb[0].mxu0
      %v5478 = vadd.f32 0.0, %v5477
      %v5479 = vpop.f32.mrb[0].mxu0
      %5480 = vdwg.mxu0
      %v5481 = vadd.f32 %v3306, %v4864
      %v5482 = vadd.f32 %v3311, %v4869
      %v5483 = vadd.f32 %v3387, %v4951
      %v5484 = vadd.f32 %v3392, %v4956
      %v5485 = vadd.f32 %v3468, %v5038
      %v5486 = vadd.f32 %v3473, %v5043
      %v5487 = vadd.f32 %v3549, %v5125
      %v5488 = vadd.f32 %v3554, %v5130
      %v5489 = vadd.f32 %v3630, %v5212
      %v5490 = vadd.f32 %v3635, %v5217
      %v5491 = vadd.f32 %v3711, %v5299
      %v5492 = vadd.f32 %v3716, %v5304
      %v5493 = vadd.f32 %v3792, %v5386
      %v5494 = vadd.f32 %v3797, %v5391
      %v5495 = vadd.f32 %v3873, %v5473
      %v5496 = vadd.f32 %v3878, %v5478
      %5497 = vrot.lane.b32.xlu0 %v452, 104
      %v5498 = vpop.permute.xlu0 %5497
      %5499 = vrot.lane.b32.xlu0 %v457, 104
      %v5500 = vpop.permute.xlu0 %5499
      %5501 = vrot.lane.b32.xlu0 %v452, 72
      %v5502 = vpop.permute.xlu0 %5501
      %5503 = vrot.lane.b32.xlu0 %v457, 72
      %v5504 = vpop.permute.xlu0 %5503
      %v5505 = vsel %vm733, %v5498, 0
      %v5507 = vsel %vm733, %v5500, 0
      %v5509 = vsel %vm733, %v5502, 0
      %v5511 = vsel %vm733, %v5504, 0
      %5513 = vmatprep.subr.mxu0 0.0
      %5514 = vmatpush1.xpose.msra.mxu0 %v5509
      %5515 = vmatprep.subr.mxu0 0.0
      %5516 = vmatpush1.xpose.msra.mxu0 %v5511
      %5517 = vmatprep.subr.mxu0 0.0
      %5518 = vmatpush1.xpose.msra.mxu0 0.0
      %5519 = vmatprep.subr.mxu0 0.0
      %5520 = vmatpush1.xpose.msra.mxu0 0.0
      %5521 = vmatprep.subr.mxu0 0.0
      %5522 = vmatpush1.xpose.msra.mxu0 0.0
      %5523 = vmatprep.subr.mxu0 0.0
      %5524 = vmatpush1.xpose.msra.mxu0 0.0
      %5525 = vmatprep.subr.mxu0 0.0
      %5526 = vmatpush1.xpose.msra.mxu0 0.0
      %5527 = vmatprep.subr.mxu0 0.0
      %5528 = vmatpush1.xpose.msra.mxu0 0.0
      %5529 = vmatprep.subr.mxu0 0.0
      %5530 = vmatpush1.xpose.msra.mxu0 0.0
      %5531 = vmatprep.subr.mxu0 0.0
      %5532 = vmatpush1.xpose.msra.mxu0 0.0
      %5533 = vmatprep.subr.mxu0 0.0
      %5534 = vmatpush1.xpose.msra.mxu0 0.0
      %5535 = vmatprep.subr.mxu0 0.0
      %5536 = vmatpush1.xpose.msra.mxu0 0.0
      %5537 = vmatprep.subr.mxu0 0.0
      %5538 = vmatpush1.xpose.msra.mxu0 0.0
      %5539 = vmatprep.subr.mxu0 0.0
      %5540 = vmatpush1.xpose.msra.mxu0 0.0
      %5541 = vmatprep.subr.mxu0 0.0
      %5542 = vmatpush1.xpose.msra.mxu0 0.0
      %5543 = vmatprep.subr.mxu0 0.0
      %5544 = vmatpush1.xpose.msra.mxu0 0.0
      %5545 = vmatprep.subr.mxu0 0.0
      %5546 = vmatpush1.xpose.msra.mxu0 0.0
      %5547 = vmatprep.subr.mxu0 0.0
      %5548 = vmatpush1.xpose.msra.mxu0 0.0
      %5549 = vmatprep.subr.mxu0 0.0
      %5550 = vmatpush1.xpose.msra.mxu0 0.0
      %5551 = vmatprep.subr.mxu0 0.0
      %5552 = vmatpush1.xpose.msra.mxu0 0.0
      %5553 = vmatprep.subr.mxu0 0.0
      %5554 = vmatpush1.xpose.msra.mxu0 0.0
      %5555 = vmatprep.subr.mxu0 0.0
      %5556 = vmatpush1.xpose.msra.mxu0 0.0
      %5557 = vmatprep.subr.mxu0 0.0
      %5558 = vmatpush1.xpose.msra.mxu0 0.0
      %5559 = vmatprep.subr.mxu0 0.0
      %5560 = vmatpush1.xpose.msra.mxu0 0.0
      %5561 = vmatprep.subr.mxu0 0.0
      %5562 = vmatpush1.xpose.msra.mxu0 0.0
      %5563 = vmatprep.subr.mxu0 0.0
      %5564 = vmatpush1.xpose.msra.mxu0 0.0
      %5565 = vmatprep.subr.mxu0 0.0
      %5566 = vmatpush1.xpose.msra.mxu0 0.0
      %5567 = vmatprep.subr.mxu0 0.0
      %5568 = vmatpush1.xpose.msra.mxu0 0.0
      %5569 = vmatprep.subr.mxu0 0.0
      %5570 = vmatpush1.xpose.msra.mxu0 0.0
      %5571 = vmatprep.subr.mxu0 0.0
      %5572 = vmatpush1.xpose.msra.mxu0 0.0
      %5573 = vmatprep.subr.mxu0 0.0
      %5574 = vmatpush1.xpose.msra.mxu0 0.0
      %5575 = vmatprep.subr.mxu0 0.0
      %5576 = vmatpush1.xpose.msra.mxu0 0.0
      %5577 = vmatprep.mubr.f32.mxu0 0.0
      %5578 = vmatmul.mubr.f32.gmra.mrb[0].mxu0 %v5505
      %v5579 = vpop.f32.mrb[0].mxu0
      %v5580 = vadd.f32 0.0, %v5579
      %v5581 = vpop.f32.mrb[0].mxu0
      %5582 = vmatprep.mubr.f32.mxu0 0.0
      %5583 = vmatmul.mubr.f32.gmra.mrb[0].mxu0 %v5507
      %v5584 = vpop.f32.mrb[0].mxu0
      %v5585 = vadd.f32 0.0, %v5584
      %v5586 = vpop.f32.mrb[0].mxu0
      %5587 = vdwg.mxu0
      %5588 = vrot.lane.b32.xlu0 %v462, 104
      %v5589 = vpop.permute.xlu0 %5588
      %5590 = vrot.lane.b32.xlu0 %v467, 104
      %v5591 = vpop.permute.xlu0 %5590
      %5592 = vrot.lane.b32.xlu0 %v462, 72
      %v5593 = vpop.permute.xlu0 %5592
      %5594 = vrot.lane.b32.xlu0 %v467, 72
      %v5595 = vpop.permute.xlu0 %5594
      %v5596 = vsel %vm733, %v5589, 0
      %v5598 = vsel %vm733, %v5591, 0
      %v5600 = vsel %vm733, %v5593, 0
      %v5602 = vsel %vm733, %v5595, 0
      %5604 = vmatprep.subr.mxu0 0.0
      %5605 = vmatpush1.xpose.msra.mxu0 %v5600
      %5606 = vmatprep.subr.mxu0 0.0
      %5607 = vmatpush1.xpose.msra.mxu0 %v5602
      %5608 = vmatprep.subr.mxu0 0.0
      %5609 = vmatpush1.xpose.msra.mxu0 0.0
      %5610 = vmatprep.subr.mxu0 0.0
      %5611 = vmatpush1.xpose.msra.mxu0 0.0
      %5612 = vmatprep.subr.mxu0 0.0
      %5613 = vmatpush1.xpose.msra.mxu0 0.0
      %5614 = vmatprep.subr.mxu0 0.0
      %5615 = vmatpush1.xpose.msra.mxu0 0.0
      %5616 = vmatprep.subr.mxu0 0.0
      %5617 = vmatpush1.xpose.msra.mxu0 0.0
      %5618 = vmatprep.subr.mxu0 0.0
      %5619 = vmatpush1.xpose.msra.mxu0 0.0
      %5620 = vmatprep.subr.mxu0 0.0
      %5621 = vmatpush1.xpose.msra.mxu0 0.0
      %5622 = vmatprep.subr.mxu0 0.0
      %5623 = vmatpush1.xpose.msra.mxu0 0.0
      %5624 = vmatprep.subr.mxu0 0.0
      %5625 = vmatpush1.xpose.msra.mxu0 0.0
      %5626 = vmatprep.subr.mxu0 0.0
      %5627 = vmatpush1.xpose.msra.mxu0 0.0
      %5628 = vmatprep.subr.mxu0 0.0
      %5629 = vmatpush1.xpose.msra.mxu0 0.0
      %5630 = vmatprep.subr.mxu0 0.0
      %5631 = vmatpush1.xpose.msra.mxu0 0.0
      %5632 = vmatprep.subr.mxu0 0.0
      %5633 = vmatpush1.xpose.msra.mxu0 0.0
      %5634 = vmatprep.subr.mxu0 0.0
      %5635 = vmatpush1.xpose.msra.mxu0 0.0
      %5636 = vmatprep.subr.mxu0 0.0
      %5637 = vmatpush1.xpose.msra.mxu0 0.0
      %5638 = vmatprep.subr.mxu0 0.0
      %5639 = vmatpush1.xpose.msra.mxu0 0.0
      %5640 = vmatprep.subr.mxu0 0.0
      %5641 = vmatpush1.xpose.msra.mxu0 0.0
      %5642 = vmatprep.subr.mxu0 0.0
      %5643 = vmatpush1.xpose.msra.mxu0 0.0
      %5644 = vmatprep.subr.mxu0 0.0
      %5645 = vmatpush1.xpose.msra.mxu0 0.0
      %5646 = vmatprep.subr.mxu0 0.0
      %5647 = vmatpush1.xpose.msra.mxu0 0.0
      %5648 = vmatprep.subr.mxu0 0.0
      %5649 = vmatpush1.xpose.msra.mxu0 0.0
      %5650 = vmatprep.subr.mxu0 0.0
      %5651 = vmatpush1.xpose.msra.mxu0 0.0
      %5652 = vmatprep.subr.mxu0 0.0
      %5653 = vmatpush1.xpose.msra.mxu0 0.0
      %5654 = vmatprep.subr.mxu0 0.0
      %5655 = vmatpush1.xpose.msra.mxu0 0.0
      %5656 = vmatprep.subr.mxu0 0.0
      %5657 = vmatpush1.xpose.msra.mxu0 0.0
      %5658 = vmatprep.subr.mxu0 0.0
      %5659 = vmatpush1.xpose.msra.mxu0 0.0
      %5660 = vmatprep.subr.mxu0 0.0
      %5661 = vmatpush1.xpose.msra.mxu0 0.0
      %5662 = vmatprep.subr.mxu0 0.0
      %5663 = vmatpush1.xpose.msra.mxu0 0.0
      %5664 = vmatprep.subr.mxu0 0.0
      %5665 = vmatpush1.xpose.msra.mxu0 0.0
      %5666 = vmatprep.subr.mxu0 0.0
      %5667 = vmatpush1.xpose.msra.mxu0 0.0
      %5668 = vmatprep.mubr.f32.mxu0 0.0
      %5669 = vmatmul.mubr.f32.gmra.mrb[0].mxu0 %v5596
      %v5670 = vpop.f32.mrb[0].mxu0
      %v5671 = vadd.f32 0.0, %v5670
      %v5672 = vpop.f32.mrb[0].mxu0
      %5673 = vmatprep.mubr.f32.mxu0 0.0
      %5674 = vmatmul.mubr.f32.gmra.mrb[0].mxu0 %v5598
      %v5675 = vpop.f32.mrb[0].mxu0
      %v5676 = vadd.f32 0.0, %v5675
      %v5677 = vpop.f32.mrb[0].mxu0
      %5678 = vdwg.mxu0
      %5679 = vrot.lane.b32.xlu0 %v472, 104
      %v5680 = vpop.permute.xlu0 %5679
      %5681 = vrot.lane.b32.xlu0 %v477, 104
      %v5682 = vpop.permute.xlu0 %5681
      %5683 = vrot.lane.b32.xlu0 %v472, 72
      %v5684 = vpop.permute.xlu0 %5683
      %5685 = vrot.lane.b32.xlu0 %v477, 72
      %v5686 = vpop.permute.xlu0 %5685
      %v5687 = vsel %vm733, %v5680, 0
      %v5689 = vsel %vm733, %v5682, 0
      %v5691 = vsel %vm733, %v5684, 0
      %v5693 = vsel %vm733, %v5686, 0
      %5695 = vmatprep.subr.mxu0 0.0
      %5696 = vmatpush1.xpose.msra.mxu0 %v5691
      %5697 = vmatprep.subr.mxu0 0.0
      %5698 = vmatpush1.xpose.msra.mxu0 %v5693
      %5699 = vmatprep.subr.mxu0 0.0
      %5700 = vmatpush1.xpose.msra.mxu0 0.0
      %5701 = vmatprep.subr.mxu0 0.0
      %5702 = vmatpush1.xpose.msra.mxu0 0.0
      %5703 = vmatprep.subr.mxu0 0.0
      %5704 = vmatpush1.xpose.msra.mxu0 0.0
      %5705 = vmatprep.subr.mxu0 0.0
      %5706 = vmatpush1.xpose.msra.mxu0 0.0
      %5707 = vmatprep.subr.mxu0 0.0
      %5708 = vmatpush1.xpose.msra.mxu0 0.0
      %5709 = vmatprep.subr.mxu0 0.0
      %5710 = vmatpush1.xpose.msra.mxu0 0.0
      %5711 = vmatprep.subr.mxu0 0.0
      %5712 = vmatpush1.xpose.msra.mxu0 0.0
      %5713 = vmatprep.subr.mxu0 0.0
      %5714 = vmatpush1.xpose.msra.mxu0 0.0
      %5715 = vmatprep.subr.mxu0 0.0
      %5716 = vmatpush1.xpose.msra.mxu0 0.0
      %5717 = vmatprep.subr.mxu0 0.0
      %5718 = vmatpush1.xpose.msra.mxu0 0.0
      %5719 = vmatprep.subr.mxu0 0.0
      %5720 = vmatpush1.xpose.msra.mxu0 0.0
      %5721 = vmatprep.subr.mxu0 0.0
      %5722 = vmatpush1.xpose.msra.mxu0 0.0
      %5723 = vmatprep.subr.mxu0 0.0
      %5724 = vmatpush1.xpose.msra.mxu0 0.0
      %5725 = vmatprep.subr.mxu0 0.0
      %5726 = vmatpush1.xpose.msra.mxu0 0.0
      %5727 = vmatprep.subr.mxu0 0.0
      %5728 = vmatpush1.xpose.msra.mxu0 0.0
      %5729 = vmatprep.subr.mxu0 0.0
      %5730 = vmatpush1.xpose.msra.mxu0 0.0
      %5731 = vmatprep.subr.mxu0 0.0
      %5732 = vmatpush1.xpose.msra.mxu0 0.0
      %5733 = vmatprep.subr.mxu0 0.0
      %5734 = vmatpush1.xpose.msra.mxu0 0.0
      %5735 = vmatprep.subr.mxu0 0.0
      %5736 = vmatpush1.xpose.msra.mxu0 0.0
      %5737 = vmatprep.subr.mxu0 0.0
      %5738 = vmatpush1.xpose.msra.mxu0 0.0
      %5739 = vmatprep.subr.mxu0 0.0
      %5740 = vmatpush1.xpose.msra.mxu0 0.0
      %5741 = vmatprep.subr.mxu0 0.0
      %5742 = vmatpush1.xpose.msra.mxu0 0.0
      %5743 = vmatprep.subr.mxu0 0.0
      %5744 = vmatpush1.xpose.msra.mxu0 0.0
      %5745 = vmatprep.subr.mxu0 0.0
      %5746 = vmatpush1.xpose.msra.mxu0 0.0
      %5747 = vmatprep.subr.mxu0 0.0
      %5748 = vmatpush1.xpose.msra.mxu0 0.0
      %5749 = vmatprep.subr.mxu0 0.0
      %5750 = vmatpush1.xpose.msra.mxu0 0.0
      %5751 = vmatprep.subr.mxu0 0.0
      %5752 = vmatpush1.xpose.msra.mxu0 0.0
      %5753 = vmatprep.subr.mxu0 0.0
      %5754 = vmatpush1.xpose.msra.mxu0 0.0
      %5755 = vmatprep.subr.mxu0 0.0
      %5756 = vmatpush1.xpose.msra.mxu0 0.0
      %5757 = vmatprep.subr.mxu0 0.0
      %5758 = vmatpush1.xpose.msra.mxu0 0.0
      %5759 = vmatprep.mubr.f32.mxu0 0.0
      %5760 = vmatmul.mubr.f32.gmra.mrb[0].mxu0 %v5687
      %v5761 = vpop.f32.mrb[0].mxu0
      %v5762 = vadd.f32 0.0, %v5761
      %v5763 = vpop.f32.mrb[0].mxu0
      %5764 = vmatprep.mubr.f32.mxu0 0.0
      %5765 = vmatmul.mubr.f32.gmra.mrb[0].mxu0 %v5689
      %v5766 = vpop.f32.mrb[0].mxu0
      %v5767 = vadd.f32 0.0, %v5766
      %v5768 = vpop.f32.mrb[0].mxu0
      %5769 = vdwg.mxu0
      %5770 = vrot.lane.b32.xlu0 %v482, 104
      %v5771 = vpop.permute.xlu0 %5770
      %5772 = vrot.lane.b32.xlu0 %v487, 104
      %v5773 = vpop.permute.xlu0 %5772
      %5774 = vrot.lane.b32.xlu0 %v482, 72
      %v5775 = vpop.permute.xlu0 %5774
      %5776 = vrot.lane.b32.xlu0 %v487, 72
      %v5777 = vpop.permute.xlu0 %5776
      %v5778 = vsel %vm733, %v5771, 0
      %v5780 = vsel %vm733, %v5773, 0
      %v5782 = vsel %vm733, %v5775, 0
      %v5784 = vsel %vm733, %v5777, 0
      %5786 = vmatprep.subr.mxu0 0.0
      %5787 = vmatpush1.xpose.msra.mxu0 %v5782
      %5788 = vmatprep.subr.mxu0 0.0
      %5789 = vmatpush1.xpose.msra.mxu0 %v5784
      %5790 = vmatprep.subr.mxu0 0.0
      %5791 = vmatpush1.xpose.msra.mxu0 0.0
      %5792 = vmatprep.subr.mxu0 0.0
      %5793 = vmatpush1.xpose.msra.mxu0 0.0
      %5794 = vmatprep.subr.mxu0 0.0
      %5795 = vmatpush1.xpose.msra.mxu0 0.0
      %5796 = vmatprep.subr.mxu0 0.0
      %5797 = vmatpush1.xpose.msra.mxu0 0.0
      %5798 = vmatprep.subr.mxu0 0.0
      %5799 = vmatpush1.xpose.msra.mxu0 0.0
      %5800 = vmatprep.subr.mxu0 0.0
      %5801 = vmatpush1.xpose.msra.mxu0 0.0
      %5802 = vmatprep.subr.mxu0 0.0
      %5803 = vmatpush1.xpose.msra.mxu0 0.0
      %5804 = vmatprep.subr.mxu0 0.0
      %5805 = vmatpush1.xpose.msra.mxu0 0.0
      %5806 = vmatprep.subr.mxu0 0.0
      %5807 = vmatpush1.xpose.msra.mxu0 0.0
      %5808 = vmatprep.subr.mxu0 0.0
      %5809 = vmatpush1.xpose.msra.mxu0 0.0
      %5810 = vmatprep.subr.mxu0 0.0
      %5811 = vmatpush1.xpose.msra.mxu0 0.0
      %5812 = vmatprep.subr.mxu0 0.0
      %5813 = vmatpush1.xpose.msra.mxu0 0.0
      %5814 = vmatprep.subr.mxu0 0.0
      %5815 = vmatpush1.xpose.msra.mxu0 0.0
      %5816 = vmatprep.subr.mxu0 0.0
      %5817 = vmatpush1.xpose.msra.mxu0 0.0
      %5818 = vmatprep.subr.mxu0 0.0
      %5819 = vmatpush1.xpose.msra.mxu0 0.0
      %5820 = vmatprep.subr.mxu0 0.0
      %5821 = vmatpush1.xpose.msra.mxu0 0.0
      %5822 = vmatprep.subr.mxu0 0.0
      %5823 = vmatpush1.xpose.msra.mxu0 0.0
      %5824 = vmatprep.subr.mxu0 0.0
      %5825 = vmatpush1.xpose.msra.mxu0 0.0
      %5826 = vmatprep.subr.mxu0 0.0
      %5827 = vmatpush1.xpose.msra.mxu0 0.0
      %5828 = vmatprep.subr.mxu0 0.0
      %5829 = vmatpush1.xpose.msra.mxu0 0.0
      %5830 = vmatprep.subr.mxu0 0.0
      %5831 = vmatpush1.xpose.msra.mxu0 0.0
      %5832 = vmatprep.subr.mxu0 0.0
      %5833 = vmatpush1.xpose.msra.mxu0 0.0
      %5834 = vmatprep.subr.mxu0 0.0
      %5835 = vmatpush1.xpose.msra.mxu0 0.0
      %5836 = vmatprep.subr.mxu0 0.0
      %5837 = vmatpush1.xpose.msra.mxu0 0.0
      %5838 = vmatprep.subr.mxu0 0.0
      %5839 = vmatpush1.xpose.msra.mxu0 0.0
      %5840 = vmatprep.subr.mxu0 0.0
      %5841 = vmatpush1.xpose.msra.mxu0 0.0
      %5842 = vmatprep.subr.mxu0 0.0
      %5843 = vmatpush1.xpose.msra.mxu0 0.0
      %5844 = vmatprep.subr.mxu0 0.0
      %5845 = vmatpush1.xpose.msra.mxu0 0.0
      %5846 = vmatprep.subr.mxu0 0.0
      %5847 = vmatpush1.xpose.msra.mxu0 0.0
      %5848 = vmatprep.subr.mxu0 0.0
      %5849 = vmatpush1.xpose.msra.mxu0 0.0
      %5850 = vmatprep.mubr.f32.mxu0 0.0
      %5851 = vmatmul.mubr.f32.gmra.mrb[0].mxu0 %v5778
      %v5852 = vpop.f32.mrb[0].mxu0
      %v5853 = vadd.f32 0.0, %v5852
      %v5854 = vpop.f32.mrb[0].mxu0
      %5855 = vmatprep.mubr.f32.mxu0 0.0
      %5856 = vmatmul.mubr.f32.gmra.mrb[0].mxu0 %v5780
      %v5857 = vpop.f32.mrb[0].mxu0
      %v5858 = vadd.f32 0.0, %v5857
      %v5859 = vpop.f32.mrb[0].mxu0
      %5860 = vdwg.mxu0
      %5861 = vrot.lane.b32.xlu0 %v492, 104
      %v5862 = vpop.permute.xlu0 %5861
      %5863 = vrot.lane.b32.xlu0 %v497, 104
      %v5864 = vpop.permute.xlu0 %5863
      %5865 = vrot.lane.b32.xlu0 %v492, 72
      %v5866 = vpop.permute.xlu0 %5865
      %5867 = vrot.lane.b32.xlu0 %v497, 72
      %v5868 = vpop.permute.xlu0 %5867
      %v5869 = vsel %vm733, %v5862, 0
      %v5871 = vsel %vm733, %v5864, 0
      %v5873 = vsel %vm733, %v5866, 0
      %v5875 = vsel %vm733, %v5868, 0
      %5877 = vmatprep.subr.mxu0 0.0
      %5878 = vmatpush1.xpose.msra.mxu0 %v5873
      %5879 = vmatprep.subr.mxu0 0.0
      %5880 = vmatpush1.xpose.msra.mxu0 %v5875
      %5881 = vmatprep.subr.mxu0 0.0
      %5882 = vmatpush1.xpose.msra.mxu0 0.0
      %5883 = vmatprep.subr.mxu0 0.0
      %5884 = vmatpush1.xpose.msra.mxu0 0.0
      %5885 = vmatprep.subr.mxu0 0.0
      %5886 = vmatpush1.xpose.msra.mxu0 0.0
      %5887 = vmatprep.subr.mxu0 0.0
      %5888 = vmatpush1.xpose.msra.mxu0 0.0
      %5889 = vmatprep.subr.mxu0 0.0
      %5890 = vmatpush1.xpose.msra.mxu0 0.0
      %5891 = vmatprep.subr.mxu0 0.0
      %5892 = vmatpush1.xpose.msra.mxu0 0.0
      %5893 = vmatprep.subr.mxu0 0.0
      %5894 = vmatpush1.xpose.msra.mxu0 0.0
      %5895 = vmatprep.subr.mxu0 0.0
      %5896 = vmatpush1.xpose.msra.mxu0 0.0
      %5897 = vmatprep.subr.mxu0 0.0
      %5898 = vmatpush1.xpose.msra.mxu0 0.0
      %5899 = vmatprep.subr.mxu0 0.0
      %5900 = vmatpush1.xpose.msra.mxu0 0.0
      %5901 = vmatprep.subr.mxu0 0.0
      %5902 = vmatpush1.xpose.msra.mxu0 0.0
      %5903 = vmatprep.subr.mxu0 0.0
      %5904 = vmatpush1.xpose.msra.mxu0 0.0
      %5905 = vmatprep.subr.mxu0 0.0
      %5906 = vmatpush1.xpose.msra.mxu0 0.0
      %5907 = vmatprep.subr.mxu0 0.0
      %5908 = vmatpush1.xpose.msra.mxu0 0.0
      %5909 = vmatprep.subr.mxu0 0.0
      %5910 = vmatpush1.xpose.msra.mxu0 0.0
      %5911 = vmatprep.subr.mxu0 0.0
      %5912 = vmatpush1.xpose.msra.mxu0 0.0
      %5913 = vmatprep.subr.mxu0 0.0
      %5914 = vmatpush1.xpose.msra.mxu0 0.0
      %5915 = vmatprep.subr.mxu0 0.0
      %5916 = vmatpush1.xpose.msra.mxu0 0.0
      %5917 = vmatprep.subr.mxu0 0.0
      %5918 = vmatpush1.xpose.msra.mxu0 0.0
      %5919 = vmatprep.subr.mxu0 0.0
      %5920 = vmatpush1.xpose.msra.mxu0 0.0
      %5921 = vmatprep.subr.mxu0 0.0
      %5922 = vmatpush1.xpose.msra.mxu0 0.0
      %5923 = vmatprep.subr.mxu0 0.0
      %5924 = vmatpush1.xpose.msra.mxu0 0.0
      %5925 = vmatprep.subr.mxu0 0.0
      %5926 = vmatpush1.xpose.msra.mxu0 0.0
      %5927 = vmatprep.subr.mxu0 0.0
      %5928 = vmatpush1.xpose.msra.mxu0 0.0
      %5929 = vmatprep.subr.mxu0 0.0
      %5930 = vmatpush1.xpose.msra.mxu0 0.0
      %5931 = vmatprep.subr.mxu0 0.0
      %5932 = vmatpush1.xpose.msra.mxu0 0.0
      %5933 = vmatprep.subr.mxu0 0.0
      %5934 = vmatpush1.xpose.msra.mxu0 0.0
      %5935 = vmatprep.subr.mxu0 0.0
      %5936 = vmatpush1.xpose.msra.mxu0 0.0
      %5937 = vmatprep.subr.mxu0 0.0
      %5938 = vmatpush1.xpose.msra.mxu0 0.0
      %5939 = vmatprep.subr.mxu0 0.0
      %5940 = vmatpush1.xpose.msra.mxu0 0.0
      %5941 = vmatprep.mubr.f32.mxu0 0.0
      %5942 = vmatmul.mubr.f32.gmra.mrb[0].mxu0 %v5869
      %v5943 = vpop.f32.mrb[0].mxu0
      %v5944 = vadd.f32 0.0, %v5943
      %v5945 = vpop.f32.mrb[0].mxu0
      %5946 = vmatprep.mubr.f32.mxu0 0.0
      %5947 = vmatmul.mubr.f32.gmra.mrb[0].mxu0 %v5871
      %v5948 = vpop.f32.mrb[0].mxu0
      %v5949 = vadd.f32 0.0, %v5948
      %v5950 = vpop.f32.mrb[0].mxu0
      %5951 = vdwg.mxu0
      %5952 = vrot.lane.b32.xlu0 %v502, 104
      %v5953 = vpop.permute.xlu0 %5952
      %5954 = vrot.lane.b32.xlu0 %v507, 104
      %v5955 = vpop.permute.xlu0 %5954
      %5956 = vrot.lane.b32.xlu0 %v502, 72
      %v5957 = vpop.permute.xlu0 %5956
      %5958 = vrot.lane.b32.xlu0 %v507, 72
      %v5959 = vpop.permute.xlu0 %5958
      %v5960 = vsel %vm733, %v5953, 0
      %v5962 = vsel %vm733, %v5955, 0
      %v5964 = vsel %vm733, %v5957, 0
      %v5966 = vsel %vm733, %v5959, 0
      %5968 = vmatprep.subr.mxu0 0.0
      %5969 = vmatpush1.xpose.msra.mxu0 %v5964
      %5970 = vmatprep.subr.mxu0 0.0
      %5971 = vmatpush1.xpose.msra.mxu0 %v5966
      %5972 = vmatprep.subr.mxu0 0.0
      %5973 = vmatpush1.xpose.msra.mxu0 0.0
      %5974 = vmatprep.subr.mxu0 0.0
      %5975 = vmatpush1.xpose.msra.mxu0 0.0
      %5976 = vmatprep.subr.mxu0 0.0
      %5977 = vmatpush1.xpose.msra.mxu0 0.0
      %5978 = vmatprep.subr.mxu0 0.0
      %5979 = vmatpush1.xpose.msra.mxu0 0.0
      %5980 = vmatprep.subr.mxu0 0.0
      %5981 = vmatpush1.xpose.msra.mxu0 0.0
      %5982 = vmatprep.subr.mxu0 0.0
      %5983 = vmatpush1.xpose.msra.mxu0 0.0
      %5984 = vmatprep.subr.mxu0 0.0
      %5985 = vmatpush1.xpose.msra.mxu0 0.0
      %5986 = vmatprep.subr.mxu0 0.0
      %5987 = vmatpush1.xpose.msra.mxu0 0.0
      %5988 = vmatprep.subr.mxu0 0.0
      %5989 = vmatpush1.xpose.msra.mxu0 0.0
      %5990 = vmatprep.subr.mxu0 0.0
      %5991 = vmatpush1.xpose.msra.mxu0 0.0
      %5992 = vmatprep.subr.mxu0 0.0
      %5993 = vmatpush1.xpose.msra.mxu0 0.0
      %5994 = vmatprep.subr.mxu0 0.0
      %5995 = vmatpush1.xpose.msra.mxu0 0.0
      %5996 = vmatprep.subr.mxu0 0.0
      %5997 = vmatpush1.xpose.msra.mxu0 0.0
      %5998 = vmatprep.subr.mxu0 0.0
      %5999 = vmatpush1.xpose.msra.mxu0 0.0
      %6000 = vmatprep.subr.mxu0 0.0
      %6001 = vmatpush1.xpose.msra.mxu0 0.0
      %6002 = vmatprep.subr.mxu0 0.0
      %6003 = vmatpush1.xpose.msra.mxu0 0.0
      %6004 = vmatprep.subr.mxu0 0.0
      %6005 = vmatpush1.xpose.msra.mxu0 0.0
      %6006 = vmatprep.subr.mxu0 0.0
      %6007 = vmatpush1.xpose.msra.mxu0 0.0
      %6008 = vmatprep.subr.mxu0 0.0
      %6009 = vmatpush1.xpose.msra.mxu0 0.0
      %6010 = vmatprep.subr.mxu0 0.0
      %6011 = vmatpush1.xpose.msra.mxu0 0.0
      %6012 = vmatprep.subr.mxu0 0.0
      %6013 = vmatpush1.xpose.msra.mxu0 0.0
      %6014 = vmatprep.subr.mxu0 0.0
      %6015 = vmatpush1.xpose.msra.mxu0 0.0
      %6016 = vmatprep.subr.mxu0 0.0
      %6017 = vmatpush1.xpose.msra.mxu0 0.0
      %6018 = vmatprep.subr.mxu0 0.0
      %6019 = vmatpush1.xpose.msra.mxu0 0.0
      %6020 = vmatprep.subr.mxu0 0.0
      %6021 = vmatpush1.xpose.msra.mxu0 0.0
      %6022 = vmatprep.subr.mxu0 0.0
      %6023 = vmatpush1.xpose.msra.mxu0 0.0
      %6024 = vmatprep.subr.mxu0 0.0
      %6025 = vmatpush1.xpose.msra.mxu0 0.0
      %6026 = vmatprep.subr.mxu0 0.0
      %6027 = vmatpush1.xpose.msra.mxu0 0.0
      %6028 = vmatprep.subr.mxu0 0.0
      %6029 = vmatpush1.xpose.msra.mxu0 0.0
      %6030 = vmatprep.subr.mxu0 0.0
      %6031 = vmatpush1.xpose.msra.mxu0 0.0
      %6032 = vmatprep.mubr.f32.mxu0 0.0
      %6033 = vmatmul.mubr.f32.gmra.mrb[0].mxu0 %v5960
      %v6034 = vpop.f32.mrb[0].mxu0
      %v6035 = vadd.f32 0.0, %v6034
      %v6036 = vpop.f32.mrb[0].mxu0
      %6037 = vmatprep.mubr.f32.mxu0 0.0
      %6038 = vmatmul.mubr.f32.gmra.mrb[0].mxu0 %v5962
      %v6039 = vpop.f32.mrb[0].mxu0
      %v6040 = vadd.f32 0.0, %v6039
      %v6041 = vpop.f32.mrb[0].mxu0
      %6042 = vdwg.mxu0
      %6043 = vrot.lane.b32.xlu0 %v512, 104
      %v6044 = vpop.permute.xlu0 %6043
      %6045 = vrot.lane.b32.xlu0 %v517, 104
      %v6046 = vpop.permute.xlu0 %6045
      %6047 = vrot.lane.b32.xlu0 %v512, 72
      %v6048 = vpop.permute.xlu0 %6047
      %6049 = vrot.lane.b32.xlu0 %v517, 72
      %v6050 = vpop.permute.xlu0 %6049
      %v6051 = vsel %vm733, %v6044, 0
      %v6053 = vsel %vm733, %v6046, 0
      %v6055 = vsel %vm733, %v6048, 0
      %v6057 = vsel %vm733, %v6050, 0
      %6059 = vmatprep.subr.mxu0 0.0
      %6060 = vmatpush1.xpose.msra.mxu0 %v6055
      %6061 = vmatprep.subr.mxu0 0.0
      %6062 = vmatpush1.xpose.msra.mxu0 %v6057
      %6063 = vmatprep.subr.mxu0 0.0
      %6064 = vmatpush1.xpose.msra.mxu0 0.0
      %6065 = vmatprep.subr.mxu0 0.0
      %6066 = vmatpush1.xpose.msra.mxu0 0.0
      %6067 = vmatprep.subr.mxu0 0.0
      %6068 = vmatpush1.xpose.msra.mxu0 0.0
      %6069 = vmatprep.subr.mxu0 0.0
      %6070 = vmatpush1.xpose.msra.mxu0 0.0
      %6071 = vmatprep.subr.mxu0 0.0
      %6072 = vmatpush1.xpose.msra.mxu0 0.0
      %6073 = vmatprep.subr.mxu0 0.0
      %6074 = vmatpush1.xpose.msra.mxu0 0.0
      %6075 = vmatprep.subr.mxu0 0.0
      %6076 = vmatpush1.xpose.msra.mxu0 0.0
      %6077 = vmatprep.subr.mxu0 0.0
      %6078 = vmatpush1.xpose.msra.mxu0 0.0
      %6079 = vmatprep.subr.mxu0 0.0
      %6080 = vmatpush1.xpose.msra.mxu0 0.0
      %6081 = vmatprep.subr.mxu0 0.0
      %6082 = vmatpush1.xpose.msra.mxu0 0.0
      %6083 = vmatprep.subr.mxu0 0.0
      %6084 = vmatpush1.xpose.msra.mxu0 0.0
      %6085 = vmatprep.subr.mxu0 0.0
      %6086 = vmatpush1.xpose.msra.mxu0 0.0
      %6087 = vmatprep.subr.mxu0 0.0
      %6088 = vmatpush1.xpose.msra.mxu0 0.0
      %6089 = vmatprep.subr.mxu0 0.0
      %6090 = vmatpush1.xpose.msra.mxu0 0.0
      %6091 = vmatprep.subr.mxu0 0.0
      %6092 = vmatpush1.xpose.msra.mxu0 0.0
      %6093 = vmatprep.subr.mxu0 0.0
      %6094 = vmatpush1.xpose.msra.mxu0 0.0
      %6095 = vmatprep.subr.mxu0 0.0
      %6096 = vmatpush1.xpose.msra.mxu0 0.0
      %6097 = vmatprep.subr.mxu0 0.0
      %6098 = vmatpush1.xpose.msra.mxu0 0.0
      %6099 = vmatprep.subr.mxu0 0.0
      %6100 = vmatpush1.xpose.msra.mxu0 0.0
      %6101 = vmatprep.subr.mxu0 0.0
      %6102 = vmatpush1.xpose.msra.mxu0 0.0
      %6103 = vmatprep.subr.mxu0 0.0
      %6104 = vmatpush1.xpose.msra.mxu0 0.0
      %6105 = vmatprep.subr.mxu0 0.0
      %6106 = vmatpush1.xpose.msra.mxu0 0.0
      %6107 = vmatprep.subr.mxu0 0.0
      %6108 = vmatpush1.xpose.msra.mxu0 0.0
      %6109 = vmatprep.subr.mxu0 0.0
      %6110 = vmatpush1.xpose.msra.mxu0 0.0
      %6111 = vmatprep.subr.mxu0 0.0
      %6112 = vmatpush1.xpose.msra.mxu0 0.0
      %6113 = vmatprep.subr.mxu0 0.0
      %6114 = vmatpush1.xpose.msra.mxu0 0.0
      %6115 = vmatprep.subr.mxu0 0.0
      %6116 = vmatpush1.xpose.msra.mxu0 0.0
      %6117 = vmatprep.subr.mxu0 0.0
      %6118 = vmatpush1.xpose.msra.mxu0 0.0
      %6119 = vmatprep.subr.mxu0 0.0
      %6120 = vmatpush1.xpose.msra.mxu0 0.0
      %6121 = vmatprep.subr.mxu0 0.0
      %6122 = vmatpush1.xpose.msra.mxu0 0.0
      %6123 = vmatprep.mubr.f32.mxu0 0.0
      %6124 = vmatmul.mubr.f32.gmra.mrb[0].mxu0 %v6051
      %v6125 = vpop.f32.mrb[0].mxu0
      %v6126 = vadd.f32 0.0, %v6125
      %v6127 = vpop.f32.mrb[0].mxu0
      %6128 = vmatprep.mubr.f32.mxu0 0.0
      %6129 = vmatmul.mubr.f32.gmra.mrb[0].mxu0 %v6053
      %v6130 = vpop.f32.mrb[0].mxu0
      %v6131 = vadd.f32 0.0, %v6130
      %v6132 = vpop.f32.mrb[0].mxu0
      %6133 = vdwg.mxu0
      %6134 = vrot.lane.b32.xlu0 %v522, 104
      %v6135 = vpop.permute.xlu0 %6134
      %6136 = vrot.lane.b32.xlu0 %v527, 104
      %v6137 = vpop.permute.xlu0 %6136
      %6138 = vrot.lane.b32.xlu0 %v522, 72
      %v6139 = vpop.permute.xlu0 %6138
      %6140 = vrot.lane.b32.xlu0 %v527, 72
      %v6141 = vpop.permute.xlu0 %6140
      %v6142 = vsel %vm733, %v6135, 0
      %v6144 = vsel %vm733, %v6137, 0
      %v6146 = vsel %vm733, %v6139, 0
      %v6148 = vsel %vm733, %v6141, 0
      %6150 = vmatprep.subr.mxu0 0.0
      %6151 = vmatpush1.xpose.msra.mxu0 %v6146
      %6152 = vmatprep.subr.mxu0 0.0
      %6153 = vmatpush1.xpose.msra.mxu0 %v6148
      %6154 = vmatprep.subr.mxu0 0.0
      %6155 = vmatpush1.xpose.msra.mxu0 0.0
      %6156 = vmatprep.subr.mxu0 0.0
      %6157 = vmatpush1.xpose.msra.mxu0 0.0
      %6158 = vmatprep.subr.mxu0 0.0
      %6159 = vmatpush1.xpose.msra.mxu0 0.0
      %6160 = vmatprep.subr.mxu0 0.0
      %6161 = vmatpush1.xpose.msra.mxu0 0.0
      %6162 = vmatprep.subr.mxu0 0.0
      %6163 = vmatpush1.xpose.msra.mxu0 0.0
      %6164 = vmatprep.subr.mxu0 0.0
      %6165 = vmatpush1.xpose.msra.mxu0 0.0
      %6166 = vmatprep.subr.mxu0 0.0
      %6167 = vmatpush1.xpose.msra.mxu0 0.0
      %6168 = vmatprep.subr.mxu0 0.0
      %6169 = vmatpush1.xpose.msra.mxu0 0.0
      %6170 = vmatprep.subr.mxu0 0.0
      %6171 = vmatpush1.xpose.msra.mxu0 0.0
      %6172 = vmatprep.subr.mxu0 0.0
      %6173 = vmatpush1.xpose.msra.mxu0 0.0
      %6174 = vmatprep.subr.mxu0 0.0
      %6175 = vmatpush1.xpose.msra.mxu0 0.0
      %6176 = vmatprep.subr.mxu0 0.0
      %6177 = vmatpush1.xpose.msra.mxu0 0.0
      %6178 = vmatprep.subr.mxu0 0.0
      %6179 = vmatpush1.xpose.msra.mxu0 0.0
      %6180 = vmatprep.subr.mxu0 0.0
      %6181 = vmatpush1.xpose.msra.mxu0 0.0
      %6182 = vmatprep.subr.mxu0 0.0
      %6183 = vmatpush1.xpose.msra.mxu0 0.0
      %6184 = vmatprep.subr.mxu0 0.0
      %6185 = vmatpush1.xpose.msra.mxu0 0.0
      %6186 = vmatprep.subr.mxu0 0.0
      %6187 = vmatpush1.xpose.msra.mxu0 0.0
      %6188 = vmatprep.subr.mxu0 0.0
      %6189 = vmatpush1.xpose.msra.mxu0 0.0
      %6190 = vmatprep.subr.mxu0 0.0
      %6191 = vmatpush1.xpose.msra.mxu0 0.0
      %6192 = vmatprep.subr.mxu0 0.0
      %6193 = vmatpush1.xpose.msra.mxu0 0.0
      %6194 = vmatprep.subr.mxu0 0.0
      %6195 = vmatpush1.xpose.msra.mxu0 0.0
      %6196 = vmatprep.subr.mxu0 0.0
      %6197 = vmatpush1.xpose.msra.mxu0 0.0
      %6198 = vmatprep.subr.mxu0 0.0
      %6199 = vmatpush1.xpose.msra.mxu0 0.0
      %6200 = vmatprep.subr.mxu0 0.0
      %6201 = vmatpush1.xpose.msra.mxu0 0.0
      %6202 = vmatprep.subr.mxu0 0.0
      %6203 = vmatpush1.xpose.msra.mxu0 0.0
      %6204 = vmatprep.subr.mxu0 0.0
      %6205 = vmatpush1.xpose.msra.mxu0 0.0
      %6206 = vmatprep.subr.mxu0 0.0
      %6207 = vmatpush1.xpose.msra.mxu0 0.0
      %6208 = vmatprep.subr.mxu0 0.0
      %6209 = vmatpush1.xpose.msra.mxu0 0.0
      %6210 = vmatprep.subr.mxu0 0.0
      %6211 = vmatpush1.xpose.msra.mxu0 0.0
      %6212 = vmatprep.subr.mxu0 0.0
      %6213 = vmatpush1.xpose.msra.mxu0 0.0
      %6214 = vmatprep.mubr.f32.mxu0 0.0
      %6215 = vmatmul.mubr.f32.gmra.mrb[0].mxu0 %v6142
      %v6216 = vpop.f32.mrb[0].mxu0
      %v6217 = vadd.f32 0.0, %v6216
      %v6218 = vpop.f32.mrb[0].mxu0
      %6219 = vmatprep.mubr.f32.mxu0 0.0
      %6220 = vmatmul.mubr.f32.gmra.mrb[0].mxu0 %v6144
      %v6221 = vpop.f32.mrb[0].mxu0
      %v6222 = vadd.f32 0.0, %v6221
      %v6223 = vpop.f32.mrb[0].mxu0
      %6224 = vdwg.mxu0
      %v6225 = vsel %vm1440, %v5580, -inf
      %6226 = vmax.xlane.f32.xlu0 %v6225
      %v6227 = vpop.xlane.xlu0 %6226
      %v6228 = vsel %vm1440, %v5585, -inf
      %6229 = vmax.xlane.f32.xlu0 %v6228
      %v6230 = vpop.xlane.xlu0 %6229
      %v6231 = vsel %vm1440, %v5671, -inf
      %6232 = vmax.xlane.f32.xlu0 %v6231
      %v6233 = vpop.xlane.xlu0 %6232
      %v6234 = vsel %vm1440, %v5676, -inf
      %6235 = vmax.xlane.f32.xlu0 %v6234
      %v6236 = vpop.xlane.xlu0 %6235
      %v6237 = vsel %vm1440, %v5762, -inf
      %6238 = vmax.xlane.f32.xlu0 %v6237
      %v6239 = vpop.xlane.xlu0 %6238
      %v6240 = vsel %vm1440, %v5767, -inf
      %6241 = vmax.xlane.f32.xlu0 %v6240
      %v6242 = vpop.xlane.xlu0 %6241
      %v6243 = vsel %vm1440, %v5853, -inf
      %6244 = vmax.xlane.f32.xlu0 %v6243
      %v6245 = vpop.xlane.xlu0 %6244
      %v6246 = vsel %vm1440, %v5858, -inf
      %6247 = vmax.xlane.f32.xlu0 %v6246
      %v6248 = vpop.xlane.xlu0 %6247
      %v6249 = vsel %vm1440, %v5944, -inf
      %6250 = vmax.xlane.f32.xlu0 %v6249
      %v6251 = vpop.xlane.xlu0 %6250
      %v6252 = vsel %vm1440, %v5949, -inf
      %6253 = vmax.xlane.f32.xlu0 %v6252
      %v6254 = vpop.xlane.xlu0 %6253
      %v6255 = vsel %vm1440, %v6035, -inf
      %6256 = vmax.xlane.f32.xlu0 %v6255
      %v6257 = vpop.xlane.xlu0 %6256
      %v6258 = vsel %vm1440, %v6040, -inf
      %6259 = vmax.xlane.f32.xlu0 %v6258
      %v6260 = vpop.xlane.xlu0 %6259
      %v6261 = vsel %vm1440, %v6126, -inf
      %6262 = vmax.xlane.f32.xlu0 %v6261
      %v6263 = vpop.xlane.xlu0 %6262
      %v6264 = vsel %vm1440, %v6131, -inf
      %6265 = vmax.xlane.f32.xlu0 %v6264
      %v6266 = vpop.xlane.xlu0 %6265
      %v6267 = vsel %vm1440, %v6217, -inf
      %6268 = vmax.xlane.f32.xlu0 %v6267
      %v6269 = vpop.xlane.xlu0 %6268
      %v6270 = vsel %vm1440, %v6222, -inf
      %6271 = vmax.xlane.f32.xlu0 %v6270
      %v6272 = vpop.xlane.xlu0 %6271
      %v6273 = vsub.f32 %v5580, %v6227
      %v6274 = vsub.f32 %v5585, %v6230
      %v6275 = vsub.f32 %v5671, %v6233
      %v6276 = vsub.f32 %v5676, %v6236
      %v6277 = vsub.f32 %v5762, %v6239
      %v6278 = vsub.f32 %v5767, %v6242
      %v6279 = vsub.f32 %v5853, %v6245
      %v6280 = vsub.f32 %v5858, %v6248
      %v6281 = vsub.f32 %v5944, %v6251
      %v6282 = vsub.f32 %v5949, %v6254
      %v6283 = vsub.f32 %v6035, %v6257
      %v6284 = vsub.f32 %v6040, %v6260
      %v6285 = vsub.f32 %v6126, %v6263
      %v6286 = vsub.f32 %v6131, %v6266
      %v6287 = vsub.f32 %v6217, %v6269
      %v6288 = vsub.f32 %v6222, %v6272
      %v6289 = vmul.f32 %v6273, 1.442695
      %v6290 = vpow.pop %v6289
      %v6291 = vmul.f32 %v6274, 1.442695
      %v6292 = vpow.pop %v6291
      %v6293 = vmul.f32 %v6275, 1.442695
      %v6294 = vpow.pop %v6293
      %v6295 = vmul.f32 %v6276, 1.442695
      %v6296 = vpow.pop %v6295
      %v6297 = vmul.f32 %v6277, 1.442695
      %v6298 = vpow.pop %v6297
      %v6299 = vmul.f32 %v6278, 1.442695
      %v6300 = vpow.pop %v6299
      %v6301 = vmul.f32 %v6279, 1.442695
      %v6302 = vpow.pop %v6301
      %v6303 = vmul.f32 %v6280, 1.442695
      %v6304 = vpow.pop %v6303
      %v6305 = vmul.f32 %v6281, 1.442695
      %v6306 = vpow.pop %v6305
      %v6307 = vmul.f32 %v6282, 1.442695
      %v6308 = vpow.pop %v6307
      %v6309 = vmul.f32 %v6283, 1.442695
      %v6310 = vpow.pop %v6309
      %v6311 = vmul.f32 %v6284, 1.442695
      %v6312 = vpow.pop %v6311
      %v6313 = vmul.f32 %v6285, 1.442695
      %v6314 = vpow.pop %v6313
      %v6315 = vmul.f32 %v6286, 1.442695
      %v6316 = vpow.pop %v6315
      %v6317 = vmul.f32 %v6287, 1.442695
      %v6318 = vpow.pop %v6317
      %v6319 = vmul.f32 %v6288, 1.442695
      %v6320 = vpow.pop %v6319
      %v6321 = vsel %vm1440, %v6290, 0.0
      %6322 = vadd.xlane.f32.xlu0 %v6321
      %v6323 = vpop.xlane.xlu0 %6322
      %v6324 = vsel %vm1440, %v6292, 0.0
      %6325 = vadd.xlane.f32.xlu0 %v6324
      %v6326 = vpop.xlane.xlu0 %6325
      %v6327 = vsel %vm1440, %v6294, 0.0
      %6328 = vadd.xlane.f32.xlu0 %v6327
      %v6329 = vpop.xlane.xlu0 %6328
      %v6330 = vsel %vm1440, %v6296, 0.0
      %6331 = vadd.xlane.f32.xlu0 %v6330
      %v6332 = vpop.xlane.xlu0 %6331
      %v6333 = vsel %vm1440, %v6298, 0.0
      %6334 = vadd.xlane.f32.xlu0 %v6333
      %v6335 = vpop.xlane.xlu0 %6334
      %v6336 = vsel %vm1440, %v6300, 0.0
      %6337 = vadd.xlane.f32.xlu0 %v6336
      %v6338 = vpop.xlane.xlu0 %6337
      %v6339 = vsel %vm1440, %v6302, 0.0
      %6340 = vadd.xlane.f32.xlu0 %v6339
      %v6341 = vpop.xlane.xlu0 %6340
      %v6342 = vsel %vm1440, %v6304, 0.0
      %6343 = vadd.xlane.f32.xlu0 %v6342
      %v6344 = vpop.xlane.xlu0 %6343
      %v6345 = vsel %vm1440, %v6306, 0.0
      %6346 = vadd.xlane.f32.xlu0 %v6345
      %v6347 = vpop.xlane.xlu0 %6346
      %v6348 = vsel %vm1440, %v6308, 0.0
      %6349 = vadd.xlane.f32.xlu0 %v6348
      %v6350 = vpop.xlane.xlu0 %6349
      %v6351 = vsel %vm1440, %v6310, 0.0
      %6352 = vadd.xlane.f32.xlu0 %v6351
      %v6353 = vpop.xlane.xlu0 %6352
      %v6354 = vsel %vm1440, %v6312, 0.0
      %6355 = vadd.xlane.f32.xlu0 %v6354
      %v6356 = vpop.xlane.xlu0 %6355
      %v6357 = vsel %vm1440, %v6314, 0.0
      %6358 = vadd.xlane.f32.xlu0 %v6357
      %v6359 = vpop.xlane.xlu0 %6358
      %v6360 = vsel %vm1440, %v6316, 0.0
      %6361 = vadd.xlane.f32.xlu0 %v6360
      %v6362 = vpop.xlane.xlu0 %6361
      %v6363 = vsel %vm1440, %v6318, 0.0
      %6364 = vadd.xlane.f32.xlu0 %v6363
      %v6365 = vpop.xlane.xlu0 %6364
      %v6366 = vsel %vm1440, %v6320, 0.0
      %6367 = vadd.xlane.f32.xlu0 %v6366
      %v6368 = vpop.xlane.xlu0 %6367
      %v6369 = vrcp.pop %v6323
      %v6370 = vrcp.pop %v6326
      %v6371 = vrcp.pop %v6329
      %v6372 = vrcp.pop %v6332
      %v6373 = vrcp.pop %v6335
      %v6374 = vrcp.pop %v6338
      %v6375 = vrcp.pop %v6341
      %v6376 = vrcp.pop %v6344
      %v6377 = vrcp.pop %v6347
      %v6378 = vrcp.pop %v6350
      %v6379 = vrcp.pop %v6353
      %v6380 = vrcp.pop %v6356
      %v6381 = vrcp.pop %v6359
      %v6382 = vrcp.pop %v6362
      %v6383 = vrcp.pop %v6365
      %v6384 = vrcp.pop %v6368
      %v6385 = vmul.f32 %v6290, %v6369
      %v6386 = vmul.f32 %v6292, %v6370
      %v6387 = vmul.f32 %v6294, %v6371
      %v6388 = vmul.f32 %v6296, %v6372
      %v6389 = vmul.f32 %v6298, %v6373
      %v6390 = vmul.f32 %v6300, %v6374
      %v6391 = vmul.f32 %v6302, %v6375
      %v6392 = vmul.f32 %v6304, %v6376
      %v6393 = vmul.f32 %v6306, %v6377
      %v6394 = vmul.f32 %v6308, %v6378
      %v6395 = vmul.f32 %v6310, %v6379
      %v6396 = vmul.f32 %v6312, %v6380
      %v6397 = vmul.f32 %v6314, %v6381
      %v6398 = vmul.f32 %v6316, %v6382
      %v6399 = vmul.f32 %v6318, %v6383
      %v6400 = vmul.f32 %v6320, %v6384
      %6401 = vrot.lane.b32.xlu0 %v649, 32
      %v6402 = vpop.permute.xlu0 %6401
      %6403 = vrot.lane.b32.xlu0 %v654, 32
      %v6404 = vpop.permute.xlu0 %6403
      %v6408 = vsel %vm1440, %v6385, 0
      %v6411 = vsel %vm1440, %v6386, 0
      %6413 = vmatprep.subr.mxu0 0.0
      %6414 = vmatpush1.msra.mxu0 %v6402
      %6415 = vmatprep.subr.mxu0 0.0
      %6416 = vmatpush1.msra.mxu0 %v6404
      %6417 = vmatprep.subr.mxu0 0.0
      %6418 = vmatpush1.msra.mxu0 0.0
      %6419 = vmatprep.subr.mxu0 0.0
      %6420 = vmatpush1.msra.mxu0 0.0
      %6421 = vmatprep.subr.mxu0 0.0
      %6422 = vmatpush1.msra.mxu0 0.0
      %6423 = vmatprep.subr.mxu0 0.0
      %6424 = vmatpush1.msra.mxu0 0.0
      %6425 = vmatprep.subr.mxu0 0.0
      %6426 = vmatpush1.msra.mxu0 0.0
      %6427 = vmatprep.subr.mxu0 0.0
      %6428 = vmatpush1.msra.mxu0 0.0
      %6429 = vmatprep.subr.mxu0 0.0
      %6430 = vmatpush1.msra.mxu0 0.0
      %6431 = vmatprep.subr.mxu0 0.0
      %6432 = vmatpush1.msra.mxu0 0.0
      %6433 = vmatprep.subr.mxu0 0.0
      %6434 = vmatpush1.msra.mxu0 0.0
      %6435 = vmatprep.subr.mxu0 0.0
      %6436 = vmatpush1.msra.mxu0 0.0
      %6437 = vmatprep.subr.mxu0 0.0
      %6438 = vmatpush1.msra.mxu0 0.0
      %6439 = vmatprep.subr.mxu0 0.0
      %6440 = vmatpush1.msra.mxu0 0.0
      %6441 = vmatprep.subr.mxu0 0.0
      %6442 = vmatpush1.msra.mxu0 0.0
      %6443 = vmatprep.subr.mxu0 0.0
      %6444 = vmatpush1.msra.mxu0 0.0
      %6445 = vmatprep.subr.mxu0 0.0
      %6446 = vmatpush1.msra.mxu0 0.0
      %6447 = vmatprep.subr.mxu0 0.0
      %6448 = vmatpush1.msra.mxu0 0.0
      %6449 = vmatprep.subr.mxu0 0.0
      %6450 = vmatpush1.msra.mxu0 0.0
      %6451 = vmatprep.subr.mxu0 0.0
      %6452 = vmatpush1.msra.mxu0 0.0
      %6453 = vmatprep.subr.mxu0 0.0
      %6454 = vmatpush1.msra.mxu0 0.0
      %6455 = vmatprep.subr.mxu0 0.0
      %6456 = vmatpush1.msra.mxu0 0.0
      %6457 = vmatprep.subr.mxu0 0.0
      %6458 = vmatpush1.msra.mxu0 0.0
      %6459 = vmatprep.subr.mxu0 0.0
      %6460 = vmatpush1.msra.mxu0 0.0
      %6461 = vmatprep.subr.mxu0 0.0
      %6462 = vmatpush1.msra.mxu0 0.0
      %6463 = vmatprep.subr.mxu0 0.0
      %6464 = vmatpush1.msra.mxu0 0.0
      %6465 = vmatprep.subr.mxu0 0.0
      %6466 = vmatpush1.msra.mxu0 0.0
      %6467 = vmatprep.subr.mxu0 0.0
      %6468 = vmatpush1.msra.mxu0 0.0
      %6469 = vmatprep.subr.mxu0 0.0
      %6470 = vmatpush1.msra.mxu0 0.0
      %6471 = vmatprep.subr.mxu0 0.0
      %6472 = vmatpush1.msra.mxu0 0.0
      %6473 = vmatprep.subr.mxu0 0.0
      %6474 = vmatpush1.msra.mxu0 0.0
      %6475 = vmatprep.subr.mxu0 0.0
      %6476 = vmatpush1.msra.mxu0 0.0
      %6477 = vmatprep.mubr.f32.mxu0 0.0
      %6478 = vmatmul.mubr.f32.gmra.mrb[0].mxu0 %v6408
      %v6479 = vpop.f32.mrb[0].mxu0
      %v6480 = vadd.f32 0.0, %v6479
      %v6481 = vpop.f32.mrb[0].mxu0
      %6482 = vmatprep.mubr.f32.mxu0 0.0
      %6483 = vmatmul.mubr.f32.gmra.mrb[0].mxu0 %v6411
      %v6484 = vpop.f32.mrb[0].mxu0
      %v6485 = vadd.f32 0.0, %v6484
      %v6486 = vpop.f32.mrb[0].mxu0
      %6487 = vdwg.mxu0
      %6488 = vrot.lane.b32.xlu0 %v659, 32
      %v6489 = vpop.permute.xlu0 %6488
      %6490 = vrot.lane.b32.xlu0 %v664, 32
      %v6491 = vpop.permute.xlu0 %6490
      %v6495 = vsel %vm1440, %v6387, 0
      %v6498 = vsel %vm1440, %v6388, 0
      %6500 = vmatprep.subr.mxu0 0.0
      %6501 = vmatpush1.msra.mxu0 %v6489
      %6502 = vmatprep.subr.mxu0 0.0
      %6503 = vmatpush1.msra.mxu0 %v6491
      %6504 = vmatprep.subr.mxu0 0.0
      %6505 = vmatpush1.msra.mxu0 0.0
      %6506 = vmatprep.subr.mxu0 0.0
      %6507 = vmatpush1.msra.mxu0 0.0
      %6508 = vmatprep.subr.mxu0 0.0
      %6509 = vmatpush1.msra.mxu0 0.0
      %6510 = vmatprep.subr.mxu0 0.0
      %6511 = vmatpush1.msra.mxu0 0.0
      %6512 = vmatprep.subr.mxu0 0.0
      %6513 = vmatpush1.msra.mxu0 0.0
      %6514 = vmatprep.subr.mxu0 0.0
      %6515 = vmatpush1.msra.mxu0 0.0
      %6516 = vmatprep.subr.mxu0 0.0
      %6517 = vmatpush1.msra.mxu0 0.0
      %6518 = vmatprep.subr.mxu0 0.0
      %6519 = vmatpush1.msra.mxu0 0.0
      %6520 = vmatprep.subr.mxu0 0.0
      %6521 = vmatpush1.msra.mxu0 0.0
      %6522 = vmatprep.subr.mxu0 0.0
      %6523 = vmatpush1.msra.mxu0 0.0
      %6524 = vmatprep.subr.mxu0 0.0
      %6525 = vmatpush1.msra.mxu0 0.0
      %6526 = vmatprep.subr.mxu0 0.0
      %6527 = vmatpush1.msra.mxu0 0.0
      %6528 = vmatprep.subr.mxu0 0.0
      %6529 = vmatpush1.msra.mxu0 0.0
      %6530 = vmatprep.subr.mxu0 0.0
      %6531 = vmatpush1.msra.mxu0 0.0
      %6532 = vmatprep.subr.mxu0 0.0
      %6533 = vmatpush1.msra.mxu0 0.0
      %6534 = vmatprep.subr.mxu0 0.0
      %6535 = vmatpush1.msra.mxu0 0.0
      %6536 = vmatprep.subr.mxu0 0.0
      %6537 = vmatpush1.msra.mxu0 0.0
      %6538 = vmatprep.subr.mxu0 0.0
      %6539 = vmatpush1.msra.mxu0 0.0
      %6540 = vmatprep.subr.mxu0 0.0
      %6541 = vmatpush1.msra.mxu0 0.0
      %6542 = vmatprep.subr.mxu0 0.0
      %6543 = vmatpush1.msra.mxu0 0.0
      %6544 = vmatprep.subr.mxu0 0.0
      %6545 = vmatpush1.msra.mxu0 0.0
      %6546 = vmatprep.subr.mxu0 0.0
      %6547 = vmatpush1.msra.mxu0 0.0
      %6548 = vmatprep.subr.mxu0 0.0
      %6549 = vmatpush1.msra.mxu0 0.0
      %6550 = vmatprep.subr.mxu0 0.0
      %6551 = vmatpush1.msra.mxu0 0.0
      %6552 = vmatprep.subr.mxu0 0.0
      %6553 = vmatpush1.msra.mxu0 0.0
      %6554 = vmatprep.subr.mxu0 0.0
      %6555 = vmatpush1.msra.mxu0 0.0
      %6556 = vmatprep.subr.mxu0 0.0
      %6557 = vmatpush1.msra.mxu0 0.0
      %6558 = vmatprep.subr.mxu0 0.0
      %6559 = vmatpush1.msra.mxu0 0.0
      %6560 = vmatprep.subr.mxu0 0.0
      %6561 = vmatpush1.msra.mxu0 0.0
      %6562 = vmatprep.subr.mxu0 0.0
      %6563 = vmatpush1.msra.mxu0 0.0
      %6564 = vmatprep.mubr.f32.mxu0 0.0
      %6565 = vmatmul.mubr.f32.gmra.mrb[0].mxu0 %v6495
      %v6566 = vpop.f32.mrb[0].mxu0
      %v6567 = vadd.f32 0.0, %v6566
      %v6568 = vpop.f32.mrb[0].mxu0
      %6569 = vmatprep.mubr.f32.mxu0 0.0
      %6570 = vmatmul.mubr.f32.gmra.mrb[0].mxu0 %v6498
      %v6571 = vpop.f32.mrb[0].mxu0
      %v6572 = vadd.f32 0.0, %v6571
      %v6573 = vpop.f32.mrb[0].mxu0
      %6574 = vdwg.mxu0
      %6575 = vrot.lane.b32.xlu0 %v669, 32
      %v6576 = vpop.permute.xlu0 %6575
      %6577 = vrot.lane.b32.xlu0 %v674, 32
      %v6578 = vpop.permute.xlu0 %6577
      %v6582 = vsel %vm1440, %v6389, 0
      %v6585 = vsel %vm1440, %v6390, 0
      %6587 = vmatprep.subr.mxu0 0.0
      %6588 = vmatpush1.msra.mxu0 %v6576
      %6589 = vmatprep.subr.mxu0 0.0
      %6590 = vmatpush1.msra.mxu0 %v6578
      %6591 = vmatprep.subr.mxu0 0.0
      %6592 = vmatpush1.msra.mxu0 0.0
      %6593 = vmatprep.subr.mxu0 0.0
      %6594 = vmatpush1.msra.mxu0 0.0
      %6595 = vmatprep.subr.mxu0 0.0
      %6596 = vmatpush1.msra.mxu0 0.0
      %6597 = vmatprep.subr.mxu0 0.0
      %6598 = vmatpush1.msra.mxu0 0.0
      %6599 = vmatprep.subr.mxu0 0.0
      %6600 = vmatpush1.msra.mxu0 0.0
      %6601 = vmatprep.subr.mxu0 0.0
      %6602 = vmatpush1.msra.mxu0 0.0
      %6603 = vmatprep.subr.mxu0 0.0
      %6604 = vmatpush1.msra.mxu0 0.0
      %6605 = vmatprep.subr.mxu0 0.0
      %6606 = vmatpush1.msra.mxu0 0.0
      %6607 = vmatprep.subr.mxu0 0.0
      %6608 = vmatpush1.msra.mxu0 0.0
      %6609 = vmatprep.subr.mxu0 0.0
      %6610 = vmatpush1.msra.mxu0 0.0
      %6611 = vmatprep.subr.mxu0 0.0
      %6612 = vmatpush1.msra.mxu0 0.0
      %6613 = vmatprep.subr.mxu0 0.0
      %6614 = vmatpush1.msra.mxu0 0.0
      %6615 = vmatprep.subr.mxu0 0.0
      %6616 = vmatpush1.msra.mxu0 0.0
      %6617 = vmatprep.subr.mxu0 0.0
      %6618 = vmatpush1.msra.mxu0 0.0
      %6619 = vmatprep.subr.mxu0 0.0
      %6620 = vmatpush1.msra.mxu0 0.0
      %6621 = vmatprep.subr.mxu0 0.0
      %6622 = vmatpush1.msra.mxu0 0.0
      %6623 = vmatprep.subr.mxu0 0.0
      %6624 = vmatpush1.msra.mxu0 0.0
      %6625 = vmatprep.subr.mxu0 0.0
      %6626 = vmatpush1.msra.mxu0 0.0
      %6627 = vmatprep.subr.mxu0 0.0
      %6628 = vmatpush1.msra.mxu0 0.0
      %6629 = vmatprep.subr.mxu0 0.0
      %6630 = vmatpush1.msra.mxu0 0.0
      %6631 = vmatprep.subr.mxu0 0.0
      %6632 = vmatpush1.msra.mxu0 0.0
      %6633 = vmatprep.subr.mxu0 0.0
      %6634 = vmatpush1.msra.mxu0 0.0
      %6635 = vmatprep.subr.mxu0 0.0
      %6636 = vmatpush1.msra.mxu0 0.0
      %6637 = vmatprep.subr.mxu0 0.0
      %6638 = vmatpush1.msra.mxu0 0.0
      %6639 = vmatprep.subr.mxu0 0.0
      %6640 = vmatpush1.msra.mxu0 0.0
      %6641 = vmatprep.subr.mxu0 0.0
      %6642 = vmatpush1.msra.mxu0 0.0
      %6643 = vmatprep.subr.mxu0 0.0
      %6644 = vmatpush1.msra.mxu0 0.0
      %6645 = vmatprep.subr.mxu0 0.0
      %6646 = vmatpush1.msra.mxu0 0.0
      %6647 = vmatprep.subr.mxu0 0.0
      %6648 = vmatpush1.msra.mxu0 0.0
      %6649 = vmatprep.subr.mxu0 0.0
      %6650 = vmatpush1.msra.mxu0 0.0
      %6651 = vmatprep.mubr.f32.mxu0 0.0
      %6652 = vmatmul.mubr.f32.gmra.mrb[0].mxu0 %v6582
      %v6653 = vpop.f32.mrb[0].mxu0
      %v6654 = vadd.f32 0.0, %v6653
      %v6655 = vpop.f32.mrb[0].mxu0
      %6656 = vmatprep.mubr.f32.mxu0 0.0
      %6657 = vmatmul.mubr.f32.gmra.mrb[0].mxu0 %v6585
      %v6658 = vpop.f32.mrb[0].mxu0
      %v6659 = vadd.f32 0.0, %v6658
      %v6660 = vpop.f32.mrb[0].mxu0
      %6661 = vdwg.mxu0
      %6662 = vrot.lane.b32.xlu0 %v679, 32
      %v6663 = vpop.permute.xlu0 %6662
      %6664 = vrot.lane.b32.xlu0 %v684, 32
      %v6665 = vpop.permute.xlu0 %6664
      %v6669 = vsel %vm1440, %v6391, 0
      %v6672 = vsel %vm1440, %v6392, 0
      %6674 = vmatprep.subr.mxu0 0.0
      %6675 = vmatpush1.msra.mxu0 %v6663
      %6676 = vmatprep.subr.mxu0 0.0
      %6677 = vmatpush1.msra.mxu0 %v6665
      %6678 = vmatprep.subr.mxu0 0.0
      %6679 = vmatpush1.msra.mxu0 0.0
      %6680 = vmatprep.subr.mxu0 0.0
      %6681 = vmatpush1.msra.mxu0 0.0
      %6682 = vmatprep.subr.mxu0 0.0
      %6683 = vmatpush1.msra.mxu0 0.0
      %6684 = vmatprep.subr.mxu0 0.0
      %6685 = vmatpush1.msra.mxu0 0.0
      %6686 = vmatprep.subr.mxu0 0.0
      %6687 = vmatpush1.msra.mxu0 0.0
      %6688 = vmatprep.subr.mxu0 0.0
      %6689 = vmatpush1.msra.mxu0 0.0
      %6690 = vmatprep.subr.mxu0 0.0
      %6691 = vmatpush1.msra.mxu0 0.0
      %6692 = vmatprep.subr.mxu0 0.0
      %6693 = vmatpush1.msra.mxu0 0.0
      %6694 = vmatprep.subr.mxu0 0.0
      %6695 = vmatpush1.msra.mxu0 0.0
      %6696 = vmatprep.subr.mxu0 0.0
      %6697 = vmatpush1.msra.mxu0 0.0
      %6698 = vmatprep.subr.mxu0 0.0
      %6699 = vmatpush1.msra.mxu0 0.0
      %6700 = vmatprep.subr.mxu0 0.0
      %6701 = vmatpush1.msra.mxu0 0.0
      %6702 = vmatprep.subr.mxu0 0.0
      %6703 = vmatpush1.msra.mxu0 0.0
      %6704 = vmatprep.subr.mxu0 0.0
      %6705 = vmatpush1.msra.mxu0 0.0
      %6706 = vmatprep.subr.mxu0 0.0
      %6707 = vmatpush1.msra.mxu0 0.0
      %6708 = vmatprep.subr.mxu0 0.0
      %6709 = vmatpush1.msra.mxu0 0.0
      %6710 = vmatprep.subr.mxu0 0.0
      %6711 = vmatpush1.msra.mxu0 0.0
      %6712 = vmatprep.subr.mxu0 0.0
      %6713 = vmatpush1.msra.mxu0 0.0
      %6714 = vmatprep.subr.mxu0 0.0
      %6715 = vmatpush1.msra.mxu0 0.0
      %6716 = vmatprep.subr.mxu0 0.0
      %6717 = vmatpush1.msra.mxu0 0.0
      %6718 = vmatprep.subr.mxu0 0.0
      %6719 = vmatpush1.msra.mxu0 0.0
      %6720 = vmatprep.subr.mxu0 0.0
      %6721 = vmatpush1.msra.mxu0 0.0
      %6722 = vmatprep.subr.mxu0 0.0
      %6723 = vmatpush1.msra.mxu0 0.0
      %6724 = vmatprep.subr.mxu0 0.0
      %6725 = vmatpush1.msra.mxu0 0.0
      %6726 = vmatprep.subr.mxu0 0.0
      %6727 = vmatpush1.msra.mxu0 0.0
      %6728 = vmatprep.subr.mxu0 0.0
      %6729 = vmatpush1.msra.mxu0 0.0
      %6730 = vmatprep.subr.mxu0 0.0
      %6731 = vmatpush1.msra.mxu0 0.0
      %6732 = vmatprep.subr.mxu0 0.0
      %6733 = vmatpush1.msra.mxu0 0.0
      %6734 = vmatprep.subr.mxu0 0.0
      %6735 = vmatpush1.msra.mxu0 0.0
      %6736 = vmatprep.subr.mxu0 0.0
      %6737 = vmatpush1.msra.mxu0 0.0
      %6738 = vmatprep.mubr.f32.mxu0 0.0
      %6739 = vmatmul.mubr.f32.gmra.mrb[0].mxu0 %v6669
      %v6740 = vpop.f32.mrb[0].mxu0
      %v6741 = vadd.f32 0.0, %v6740
      %v6742 = vpop.f32.mrb[0].mxu0
      %6743 = vmatprep.mubr.f32.mxu0 0.0
      %6744 = vmatmul.mubr.f32.gmra.mrb[0].mxu0 %v6672
      %v6745 = vpop.f32.mrb[0].mxu0
      %v6746 = vadd.f32 0.0, %v6745
      %v6747 = vpop.f32.mrb[0].mxu0
      %6748 = vdwg.mxu0
      %6749 = vrot.lane.b32.xlu0 %v689, 32
      %v6750 = vpop.permute.xlu0 %6749
      %6751 = vrot.lane.b32.xlu0 %v694, 32
      %v6752 = vpop.permute.xlu0 %6751
      %v6756 = vsel %vm1440, %v6393, 0
      %v6759 = vsel %vm1440, %v6394, 0
      %6761 = vmatprep.subr.mxu0 0.0
      %6762 = vmatpush1.msra.mxu0 %v6750
      %6763 = vmatprep.subr.mxu0 0.0
      %6764 = vmatpush1.msra.mxu0 %v6752
      %6765 = vmatprep.subr.mxu0 0.0
      %6766 = vmatpush1.msra.mxu0 0.0
      %6767 = vmatprep.subr.mxu0 0.0
      %6768 = vmatpush1.msra.mxu0 0.0
      %6769 = vmatprep.subr.mxu0 0.0
      %6770 = vmatpush1.msra.mxu0 0.0
      %6771 = vmatprep.subr.mxu0 0.0
      %6772 = vmatpush1.msra.mxu0 0.0
      %6773 = vmatprep.subr.mxu0 0.0
      %6774 = vmatpush1.msra.mxu0 0.0
      %6775 = vmatprep.subr.mxu0 0.0
      %6776 = vmatpush1.msra.mxu0 0.0
      %6777 = vmatprep.subr.mxu0 0.0
      %6778 = vmatpush1.msra.mxu0 0.0
      %6779 = vmatprep.subr.mxu0 0.0
      %6780 = vmatpush1.msra.mxu0 0.0
      %6781 = vmatprep.subr.mxu0 0.0
      %6782 = vmatpush1.msra.mxu0 0.0
      %6783 = vmatprep.subr.mxu0 0.0
      %6784 = vmatpush1.msra.mxu0 0.0
      %6785 = vmatprep.subr.mxu0 0.0
      %6786 = vmatpush1.msra.mxu0 0.0
      %6787 = vmatprep.subr.mxu0 0.0
      %6788 = vmatpush1.msra.mxu0 0.0
      %6789 = vmatprep.subr.mxu0 0.0
      %6790 = vmatpush1.msra.mxu0 0.0
      %6791 = vmatprep.subr.mxu0 0.0
      %6792 = vmatpush1.msra.mxu0 0.0
      %6793 = vmatprep.subr.mxu0 0.0
      %6794 = vmatpush1.msra.mxu0 0.0
      %6795 = vmatprep.subr.mxu0 0.0
      %6796 = vmatpush1.msra.mxu0 0.0
      %6797 = vmatprep.subr.mxu0 0.0
      %6798 = vmatpush1.msra.mxu0 0.0
      %6799 = vmatprep.subr.mxu0 0.0
      %6800 = vmatpush1.msra.mxu0 0.0
      %6801 = vmatprep.subr.mxu0 0.0
      %6802 = vmatpush1.msra.mxu0 0.0
      %6803 = vmatprep.subr.mxu0 0.0
      %6804 = vmatpush1.msra.mxu0 0.0
      %6805 = vmatprep.subr.mxu0 0.0
      %6806 = vmatpush1.msra.mxu0 0.0
      %6807 = vmatprep.subr.mxu0 0.0
      %6808 = vmatpush1.msra.mxu0 0.0
      %6809 = vmatprep.subr.mxu0 0.0
      %6810 = vmatpush1.msra.mxu0 0.0
      %6811 = vmatprep.subr.mxu0 0.0
      %6812 = vmatpush1.msra.mxu0 0.0
      %6813 = vmatprep.subr.mxu0 0.0
      %6814 = vmatpush1.msra.mxu0 0.0
      %6815 = vmatprep.subr.mxu0 0.0
      %6816 = vmatpush1.msra.mxu0 0.0
      %6817 = vmatprep.subr.mxu0 0.0
      %6818 = vmatpush1.msra.mxu0 0.0
      %6819 = vmatprep.subr.mxu0 0.0
      %6820 = vmatpush1.msra.mxu0 0.0
      %6821 = vmatprep.subr.mxu0 0.0
      %6822 = vmatpush1.msra.mxu0 0.0
      %6823 = vmatprep.subr.mxu0 0.0
      %6824 = vmatpush1.msra.mxu0 0.0
      %6825 = vmatprep.mubr.f32.mxu0 0.0
      %6826 = vmatmul.mubr.f32.gmra.mrb[0].mxu0 %v6756
      %v6827 = vpop.f32.mrb[0].mxu0
      %v6828 = vadd.f32 0.0, %v6827
      %v6829 = vpop.f32.mrb[0].mxu0
      %6830 = vmatprep.mubr.f32.mxu0 0.0
      %6831 = vmatmul.mubr.f32.gmra.mrb[0].mxu0 %v6759
      %v6832 = vpop.f32.mrb[0].mxu0
      %v6833 = vadd.f32 0.0, %v6832
      %v6834 = vpop.f32.mrb[0].mxu0
      %6835 = vdwg.mxu0
      %6836 = vrot.lane.b32.xlu0 %v699, 32
      %v6837 = vpop.permute.xlu0 %6836
      %6838 = vrot.lane.b32.xlu0 %v704, 32
      %v6839 = vpop.permute.xlu0 %6838
      %v6843 = vsel %vm1440, %v6395, 0
      %v6846 = vsel %vm1440, %v6396, 0
      %6848 = vmatprep.subr.mxu0 0.0
      %6849 = vmatpush1.msra.mxu0 %v6837
      %6850 = vmatprep.subr.mxu0 0.0
      %6851 = vmatpush1.msra.mxu0 %v6839
      %6852 = vmatprep.subr.mxu0 0.0
      %6853 = vmatpush1.msra.mxu0 0.0
      %6854 = vmatprep.subr.mxu0 0.0
      %6855 = vmatpush1.msra.mxu0 0.0
      %6856 = vmatprep.subr.mxu0 0.0
      %6857 = vmatpush1.msra.mxu0 0.0
      %6858 = vmatprep.subr.mxu0 0.0
      %6859 = vmatpush1.msra.mxu0 0.0
      %6860 = vmatprep.subr.mxu0 0.0
      %6861 = vmatpush1.msra.mxu0 0.0
      %6862 = vmatprep.subr.mxu0 0.0
      %6863 = vmatpush1.msra.mxu0 0.0
      %6864 = vmatprep.subr.mxu0 0.0
      %6865 = vmatpush1.msra.mxu0 0.0
      %6866 = vmatprep.subr.mxu0 0.0
      %6867 = vmatpush1.msra.mxu0 0.0
      %6868 = vmatprep.subr.mxu0 0.0
      %6869 = vmatpush1.msra.mxu0 0.0
      %6870 = vmatprep.subr.mxu0 0.0
      %6871 = vmatpush1.msra.mxu0 0.0
      %6872 = vmatprep.subr.mxu0 0.0
      %6873 = vmatpush1.msra.mxu0 0.0
      %6874 = vmatprep.subr.mxu0 0.0
      %6875 = vmatpush1.msra.mxu0 0.0
      %6876 = vmatprep.subr.mxu0 0.0
      %6877 = vmatpush1.msra.mxu0 0.0
      %6878 = vmatprep.subr.mxu0 0.0
      %6879 = vmatpush1.msra.mxu0 0.0
      %6880 = vmatprep.subr.mxu0 0.0
      %6881 = vmatpush1.msra.mxu0 0.0
      %6882 = vmatprep.subr.mxu0 0.0
      %6883 = vmatpush1.msra.mxu0 0.0
      %6884 = vmatprep.subr.mxu0 0.0
      %6885 = vmatpush1.msra.mxu0 0.0
      %6886 = vmatprep.subr.mxu0 0.0
      %6887 = vmatpush1.msra.mxu0 0.0
      %6888 = vmatprep.subr.mxu0 0.0
      %6889 = vmatpush1.msra.mxu0 0.0
      %6890 = vmatprep.subr.mxu0 0.0
      %6891 = vmatpush1.msra.mxu0 0.0
      %6892 = vmatprep.subr.mxu0 0.0
      %6893 = vmatpush1.msra.mxu0 0.0
      %6894 = vmatprep.subr.mxu0 0.0
      %6895 = vmatpush1.msra.mxu0 0.0
      %6896 = vmatprep.subr.mxu0 0.0
      %6897 = vmatpush1.msra.mxu0 0.0
      %6898 = vmatprep.subr.mxu0 0.0
      %6899 = vmatpush1.msra.mxu0 0.0
      %6900 = vmatprep.subr.mxu0 0.0
      %6901 = vmatpush1.msra.mxu0 0.0
      %6902 = vmatprep.subr.mxu0 0.0
      %6903 = vmatpush1.msra.mxu0 0.0
      %6904 = vmatprep.subr.mxu0 0.0
      %6905 = vmatpush1.msra.mxu0 0.0
      %6906 = vmatprep.subr.mxu0 0.0
      %6907 = vmatpush1.msra.mxu0 0.0
      %6908 = vmatprep.subr.mxu0 0.0
      %6909 = vmatpush1.msra.mxu0 0.0
      %6910 = vmatprep.subr.mxu0 0.0
      %6911 = vmatpush1.msra.mxu0 0.0
      %6912 = vmatprep.mubr.f32.mxu0 0.0
      %6913 = vmatmul.mubr.f32.gmra.mrb[0].mxu0 %v6843
      %v6914 = vpop.f32.mrb[0].mxu0
      %v6915 = vadd.f32 0.0, %v6914
      %v6916 = vpop.f32.mrb[0].mxu0
      %6917 = vmatprep.mubr.f32.mxu0 0.0
      %6918 = vmatmul.mubr.f32.gmra.mrb[0].mxu0 %v6846
      %v6919 = vpop.f32.mrb[0].mxu0
      %v6920 = vadd.f32 0.0, %v6919
      %v6921 = vpop.f32.mrb[0].mxu0
      %6922 = vdwg.mxu0
      %6923 = vrot.lane.b32.xlu0 %v709, 32
      %v6924 = vpop.permute.xlu0 %6923
      %6925 = vrot.lane.b32.xlu0 %v714, 32
      %v6926 = vpop.permute.xlu0 %6925
      %v6930 = vsel %vm1440, %v6397, 0
      %v6933 = vsel %vm1440, %v6398, 0
      %6935 = vmatprep.subr.mxu0 0.0
      %6936 = vmatpush1.msra.mxu0 %v6924
      %6937 = vmatprep.subr.mxu0 0.0
      %6938 = vmatpush1.msra.mxu0 %v6926
      %6939 = vmatprep.subr.mxu0 0.0
      %6940 = vmatpush1.msra.mxu0 0.0
      %6941 = vmatprep.subr.mxu0 0.0
      %6942 = vmatpush1.msra.mxu0 0.0
      %6943 = vmatprep.subr.mxu0 0.0
      %6944 = vmatpush1.msra.mxu0 0.0
      %6945 = vmatprep.subr.mxu0 0.0
      %6946 = vmatpush1.msra.mxu0 0.0
      %6947 = vmatprep.subr.mxu0 0.0
      %6948 = vmatpush1.msra.mxu0 0.0
      %6949 = vmatprep.subr.mxu0 0.0
      %6950 = vmatpush1.msra.mxu0 0.0
      %6951 = vmatprep.subr.mxu0 0.0
      %6952 = vmatpush1.msra.mxu0 0.0
      %6953 = vmatprep.subr.mxu0 0.0
      %6954 = vmatpush1.msra.mxu0 0.0
      %6955 = vmatprep.subr.mxu0 0.0
      %6956 = vmatpush1.msra.mxu0 0.0
      %6957 = vmatprep.subr.mxu0 0.0
      %6958 = vmatpush1.msra.mxu0 0.0
      %6959 = vmatprep.subr.mxu0 0.0
      %6960 = vmatpush1.msra.mxu0 0.0
      %6961 = vmatprep.subr.mxu0 0.0
      %6962 = vmatpush1.msra.mxu0 0.0
      %6963 = vmatprep.subr.mxu0 0.0
      %6964 = vmatpush1.msra.mxu0 0.0
      %6965 = vmatprep.subr.mxu0 0.0
      %6966 = vmatpush1.msra.mxu0 0.0
      %6967 = vmatprep.subr.mxu0 0.0
      %6968 = vmatpush1.msra.mxu0 0.0
      %6969 = vmatprep.subr.mxu0 0.0
      %6970 = vmatpush1.msra.mxu0 0.0
      %6971 = vmatprep.subr.mxu0 0.0
      %6972 = vmatpush1.msra.mxu0 0.0
      %6973 = vmatprep.subr.mxu0 0.0
      %6974 = vmatpush1.msra.mxu0 0.0
      %6975 = vmatprep.subr.mxu0 0.0
      %6976 = vmatpush1.msra.mxu0 0.0
      %6977 = vmatprep.subr.mxu0 0.0
      %6978 = vmatpush1.msra.mxu0 0.0
      %6979 = vmatprep.subr.mxu0 0.0
      %6980 = vmatpush1.msra.mxu0 0.0
      %6981 = vmatprep.subr.mxu0 0.0
      %6982 = vmatpush1.msra.mxu0 0.0
      %6983 = vmatprep.subr.mxu0 0.0
      %6984 = vmatpush1.msra.mxu0 0.0
      %6985 = vmatprep.subr.mxu0 0.0
      %6986 = vmatpush1.msra.mxu0 0.0
      %6987 = vmatprep.subr.mxu0 0.0
      %6988 = vmatpush1.msra.mxu0 0.0
      %6989 = vmatprep.subr.mxu0 0.0
      %6990 = vmatpush1.msra.mxu0 0.0
      %6991 = vmatprep.subr.mxu0 0.0
      %6992 = vmatpush1.msra.mxu0 0.0
      %6993 = vmatprep.subr.mxu0 0.0
      %6994 = vmatpush1.msra.mxu0 0.0
      %6995 = vmatprep.subr.mxu0 0.0
      %6996 = vmatpush1.msra.mxu0 0.0
      %6997 = vmatprep.subr.mxu0 0.0
      %6998 = vmatpush1.msra.mxu0 0.0
      %6999 = vmatprep.mubr.f32.mxu0 0.0
      %7000 = vmatmul.mubr.f32.gmra.mrb[0].mxu0 %v6930
      %v7001 = vpop.f32.mrb[0].mxu0
      %v7002 = vadd.f32 0.0, %v7001
      %v7003 = vpop.f32.mrb[0].mxu0
      %7004 = vmatprep.mubr.f32.mxu0 0.0
      %7005 = vmatmul.mubr.f32.gmra.mrb[0].mxu0 %v6933
      %v7006 = vpop.f32.mrb[0].mxu0
      %v7007 = vadd.f32 0.0, %v7006
      %v7008 = vpop.f32.mrb[0].mxu0
      %7009 = vdwg.mxu0
      %7010 = vrot.lane.b32.xlu0 %v719, 32
      %v7011 = vpop.permute.xlu0 %7010
      %7012 = vrot.lane.b32.xlu0 %v724, 32
      %v7013 = vpop.permute.xlu0 %7012
      %v7017 = vsel %vm1440, %v6399, 0
      %v7020 = vsel %vm1440, %v6400, 0
      %7022 = vmatprep.subr.mxu0 0.0
      %7023 = vmatpush1.msra.mxu0 %v7011
      %7024 = vmatprep.subr.mxu0 0.0
      %7025 = vmatpush1.msra.mxu0 %v7013
      %7026 = vmatprep.subr.mxu0 0.0
      %7027 = vmatpush1.msra.mxu0 0.0
      %7028 = vmatprep.subr.mxu0 0.0
      %7029 = vmatpush1.msra.mxu0 0.0
      %7030 = vmatprep.subr.mxu0 0.0
      %7031 = vmatpush1.msra.mxu0 0.0
      %7032 = vmatprep.subr.mxu0 0.0
      %7033 = vmatpush1.msra.mxu0 0.0
      %7034 = vmatprep.subr.mxu0 0.0
      %7035 = vmatpush1.msra.mxu0 0.0
      %7036 = vmatprep.subr.mxu0 0.0
      %7037 = vmatpush1.msra.mxu0 0.0
      %7038 = vmatprep.subr.mxu0 0.0
      %7039 = vmatpush1.msra.mxu0 0.0
      %7040 = vmatprep.subr.mxu0 0.0
      %7041 = vmatpush1.msra.mxu0 0.0
      %7042 = vmatprep.subr.mxu0 0.0
      %7043 = vmatpush1.msra.mxu0 0.0
      %7044 = vmatprep.subr.mxu0 0.0
      %7045 = vmatpush1.msra.mxu0 0.0
      %7046 = vmatprep.subr.mxu0 0.0
      %7047 = vmatpush1.msra.mxu0 0.0
      %7048 = vmatprep.subr.mxu0 0.0
      %7049 = vmatpush1.msra.mxu0 0.0
      %7050 = vmatprep.subr.mxu0 0.0
      %7051 = vmatpush1.msra.mxu0 0.0
      %7052 = vmatprep.subr.mxu0 0.0
      %7053 = vmatpush1.msra.mxu0 0.0
      %7054 = vmatprep.subr.mxu0 0.0
      %7055 = vmatpush1.msra.mxu0 0.0
      %7056 = vmatprep.subr.mxu0 0.0
      %7057 = vmatpush1.msra.mxu0 0.0
      %7058 = vmatprep.subr.mxu0 0.0
      %7059 = vmatpush1.msra.mxu0 0.0
      %7060 = vmatprep.subr.mxu0 0.0
      %7061 = vmatpush1.msra.mxu0 0.0
      %7062 = vmatprep.subr.mxu0 0.0
      %7063 = vmatpush1.msra.mxu0 0.0
      %7064 = vmatprep.subr.mxu0 0.0
      %7065 = vmatpush1.msra.mxu0 0.0
      %7066 = vmatprep.subr.mxu0 0.0
      %7067 = vmatpush1.msra.mxu0 0.0
      %7068 = vmatprep.subr.mxu0 0.0
      %7069 = vmatpush1.msra.mxu0 0.0
      %7070 = vmatprep.subr.mxu0 0.0
      %7071 = vmatpush1.msra.mxu0 0.0
      %7072 = vmatprep.subr.mxu0 0.0
      %7073 = vmatpush1.msra.mxu0 0.0
      %7074 = vmatprep.subr.mxu0 0.0
      %7075 = vmatpush1.msra.mxu0 0.0
      %7076 = vmatprep.subr.mxu0 0.0
      %7077 = vmatpush1.msra.mxu0 0.0
      %7078 = vmatprep.subr.mxu0 0.0
      %7079 = vmatpush1.msra.mxu0 0.0
      %7080 = vmatprep.subr.mxu0 0.0
      %7081 = vmatpush1.msra.mxu0 0.0
      %7082 = vmatprep.subr.mxu0 0.0
      %7083 = vmatpush1.msra.mxu0 0.0
      %7084 = vmatprep.subr.mxu0 0.0
      %7085 = vmatpush1.msra.mxu0 0.0
      %7086 = vmatprep.mubr.f32.mxu0 0.0
      %7087 = vmatmul.mubr.f32.gmra.mrb[0].mxu0 %v7017
      %v7088 = vpop.f32.mrb[0].mxu0
      %v7089 = vadd.f32 0.0, %v7088
      %v7090 = vpop.f32.mrb[0].mxu0
      %7091 = vmatprep.mubr.f32.mxu0 0.0
      %7092 = vmatmul.mubr.f32.gmra.mrb[0].mxu0 %v7020
      %v7093 = vpop.f32.mrb[0].mxu0
      %v7094 = vadd.f32 0.0, %v7093
      %v7095 = vpop.f32.mrb[0].mxu0
      %7096 = vdwg.mxu0
      %v7097 = vadd.f32 %v5481, %v6480
      %v7098 = vadd.f32 %v5482, %v6485
      %v7099 = vadd.f32 %v5483, %v6567
      %v7100 = vadd.f32 %v5484, %v6572
      %v7101 = vadd.f32 %v5485, %v6654
      %v7102 = vadd.f32 %v5486, %v6659
      %v7103 = vadd.f32 %v5487, %v6741
      %v7104 = vadd.f32 %v5488, %v6746
      %v7105 = vadd.f32 %v5489, %v6828
      %v7106 = vadd.f32 %v5490, %v6833
      %v7107 = vadd.f32 %v5491, %v6915
      %v7108 = vadd.f32 %v5492, %v6920
      %v7109 = vadd.f32 %v5493, %v7002
      %v7110 = vadd.f32 %v5494, %v7007
      %v7111 = vadd.f32 %v5495, %v7089
      %v7112 = vadd.f32 %v5496, %v7094
      %v7113 = vld [vmem:[%s5] sm:$0x1]
      %v7115 = vlaneseq
      %v7116 = vshrl.u32 %v7115, 7
      %v7117 = vsub.s32 0, %v7116
      %v7118 = vrot.slane %v7113, %v7117
      %v7120 = vadd.f32 %v7097, %v7118
      %v7121 = vadd.f32 %v7098, %v7118
      %v7122 = vadd.f32 %v7099, %v7118
      %v7123 = vadd.f32 %v7100, %v7118
      %v7124 = vadd.f32 %v7101, %v7118
      %v7125 = vadd.f32 %v7102, %v7118
      %v7126 = vadd.f32 %v7103, %v7118
      %v7127 = vadd.f32 %v7104, %v7118
      %v7128 = vadd.f32 %v7105, %v7118
      %v7129 = vadd.f32 %v7106, %v7118
      %v7130 = vadd.f32 %v7107, %v7118
      %v7131 = vadd.f32 %v7108, %v7118
      %v7132 = vadd.f32 %v7109, %v7118
      %v7133 = vadd.f32 %v7110, %v7118
      %v7134 = vadd.f32 %v7111, %v7118
      %v7135 = vadd.f32 %v7112, %v7118
      %7136 = vst.msk [vmem:[%s275] sm:$0xff] %vm336, %v7120
      %7137 = vst.msk [vmem:[%s275 + $0x8] sm:$0xff] %vm336, %v7121
      %7138 = vst.msk [vmem:[%s275 + $0x10] sm:$0xff] %vm336, %v7122
      %7139 = vst.msk [vmem:[%s275 + $0x18] sm:$0xff] %vm336, %v7123
      %7140 = vst.msk [vmem:[%s275 + $0x20] sm:$0xff] %vm336, %v7124
      %7141 = vst.msk [vmem:[%s275 + $0x28] sm:$0xff] %vm336, %v7125
      %7142 = vst.msk [vmem:[%s275 + $0x30] sm:$0xff] %vm336, %v7126
      %7143 = vst.msk [vmem:[%s275 + $0x38] sm:$0xff] %vm336, %v7127
      %7144 = vst.msk [vmem:[%s275 + $0x40] sm:$0xff] %vm336, %v7128
      %7145 = vst.msk [vmem:[%s275 + $0x48] sm:$0xff] %vm336, %v7129
      %7146 = vst.msk [vmem:[%s275 + $0x50] sm:$0xff] %vm336, %v7130
      %7147 = vst.msk [vmem:[%s275 + $0x58] sm:$0xff] %vm336, %v7131
      %7148 = vst.msk [vmem:[%s275 + $0x60] sm:$0xff] %vm336, %v7132
      %7149 = vst.msk [vmem:[%s275 + $0x68] sm:$0xff] %vm336, %v7133
      %7150 = vst.msk [vmem:[%s275 + $0x70] sm:$0xff] %vm336, %v7134
      %7151 = vst.msk [vmem:[%s275 + $0x78] sm:$0xff] %vm336, %v7135
      %s7152 = smul.u32 16, %s17
      %p7153 = scmp.lt.s32.totalorder %s7152, 31
      %s7154 = scalar_select %p7153, %s7152, 31
      %s7155 = smul.addr %s7154, 8
      %s7156 = scalar_lea.vmem %s6, %s7155
      // Predicated region
      $region45: #{tpu_custom_call.1} parent=43 // pred_check
        %p7157 = pneg %p171
      $region46: #{tpu_custom_call.1} parent=43 // pred_check_branch
        %7159 = sbr.rel (%p7157) target = $region48
      $region47: #{tpu_custom_call.1} parent=43 // pred_region
        %s7160 = smul.u32 16, %s17
      $region48: #{tpu_custom_call.1} parent=43 // pred_fallthru
        _
    $region44: #{tpu_custom_call.1} parent=5 // pred_fallthru
      _
    %p7161 = scmp.le.s32.totalorder 2, %s12
    // Predicated region
    $region49: #{tpu_custom_call.1} parent=5 // pred_check
      %p7162 = pneg %p7161
    $region50: #{tpu_custom_call.1} parent=5 // pred_check_branch
      %7164 = sbr.rel (%p7162) target = $region52
    $region51: #{tpu_custom_call.1} parent=5 // pred_region
      %s7165 = ssub.s32 %s12, 2
      // Predicated region
      $region53: #{tpu_custom_call.1} parent=51 // pred_check
        %p7166 = pneg %p177
      $region54: #{tpu_custom_call.1} parent=51 // pred_check_branch
        %7168 = sbr.rel (%p7166) target = $region56
      $region55: #{tpu_custom_call.1} parent=51 // pred_region
        %s7169 = smul.u32 16, %s18
        %p7170 = scmp.lt.s32.totalorder %s7169, 31
        %s7171 = scalar_select %p7170, %s7169, 31
        %s7172 = smul.addr %s7171, 8
        %s7173 = scalar_lea.vmem %s6, %s7172
      $region56: #{tpu_custom_call.1} parent=51 // pred_fallthru
        _
    $region52: #{tpu_custom_call.1} parent=5 // pred_fallthru
      _
  $region6: #{tpu_custom_call.1} parent=0 // loop_footer
    %s16 = sadd.s32 1, %s12
  $region7: #{tpu_custom_call.1} parent=0 // loop_footer_branch
    %11 = sbr.rel target = $region3
  $region8: #{tpu_custom_call.1} parent=0 // loop_exit
    _

</llo_original>
